<compile_context>
chip_gen: v7x
topology: tpu7x:2x2x1
jax: 0.10.0
libtpu: 0.0.40
codegen_flags: <defaults>
</compile_context>

<pallas_src>
import functools
import math

import jax
import jax.numpy as jnp
from jax import lax
from jax.experimental import pallas as pl
from jax.experimental.pallas import tpu as pltpu


def _layer_norm(v, g, b, eps=1e-5):
    mu = jnp.mean(v, axis=-1, keepdims=True)
    var = jnp.mean((v - mu) ** 2, axis=-1, keepdims=True)
    return (v - mu) * lax.rsqrt(var + eps) * g + b


def _round_up(n, m):
    return ((n + m - 1) // m) * m


def _preferred_tile():
    # v6e/v7x MXUs are 2x256x256 -> 256 rows fill the M dim of the projection /
    # FFN matmuls; v5e's 4x128x128 MXU is already matched at 128.
    try:
        kind = jax.devices()[0].device_kind.lower()
    except Exception:
        kind = ""
    if any(t in kind for t in ("v2", "v3", "v4", "v5")):
        return 128
    return 256


def _vmem_limit_bytes():
    # ~7/8 of physical VMEM: ~56 MiB on v7x (64 MiB), ~112 MiB on v5e/v6e (128 MiB).
    try:
        cap = pltpu.get_tpu_info().vmem_capacity_bytes
    except Exception:
        cap = 64 * 1024 * 1024
    return int(cap * 7 // 8)


# --------------------------------------------------------------------------- #
# Pass 1: LN1 + Q / packed-[K|V] projection, head-major bf16 output to HBM.
# --------------------------------------------------------------------------- #
def qkv_projection_kernel(x_ref, ln1g_ref, ln1b_ref, wq_ref, wkv_ref,
                          q_ref, k_ref, v_ref, *, num_heads, head_size):
    H, d = num_heads, head_size
    C = H * d
    TS = x_ref.shape[1]

    x = x_ref[0].astype(jnp.float32)                                  # (TS, C)
    h = _layer_norm(x, ln1g_ref[...], ln1b_ref[...]).astype(jnp.bfloat16)
    # 1/sqrt(head_size) is pre-folded into wq on the host.
    q = jnp.dot(h, wq_ref[...], preferred_element_type=jnp.float32)   # (TS, C)
    kv = jnp.dot(h, wkv_ref[...], preferred_element_type=jnp.float32)  # (TS, 2C)

    # One-time relayout to head-major (H, TS, d): the attention pass never
    # transposes Q/K/V again.
    q_ref[0] = q.reshape(TS, H, d).transpose(1, 0, 2).astype(jnp.bfloat16)
    k_ref[0] = kv[:, :C].reshape(TS, H, d).transpose(1, 0, 2).astype(jnp.bfloat16)
    v_ref[0] = kv[:, C:].reshape(TS, H, d).transpose(1, 0, 2).astype(jnp.bfloat16)


# --------------------------------------------------------------------------- #
# Pass 2: flash-style causal attention (online softmax over key tiles) fused
# with the attention output projection, residuals, LN2 and the FFN.
# --------------------------------------------------------------------------- #
def attn_ffn_kernel(x_ref, q_ref, k_ref, v_ref,
                    wo_ref, bo_ref, ln2g_ref, ln2b_ref,
                    w1_ref, b1_ref, w2_ref, b2_ref,
                    o_ref, m_sc, l_sc, acc_sc, *, q_tile, k_tile):
    qi = pl.program_id(1)
    ki = pl.program_id(2)
    n_k = pl.num_programs(2)
    NEG = -1e30  # large finite negative (never -inf: fully-masked rows stay NaN-free)

    @pl.when(ki == 0)
    def _():
        m_sc[...] = jnp.full_like(m_sc, NEG)
        l_sc[...] = jnp.zeros_like(l_sc)
        acc_sc[...] = jnp.zeros_like(acc_sc)

    # Causal skip: key tiles starting past the last query row of this q tile do
    # no compute (their K/V DMA is also suppressed via the clamped index_map).
    @pl.when(ki * k_tile <= qi * q_tile + (q_tile - 1))
    def _():
        qh = q_ref[0]                                                  # (H, TQ, d) bf16
        kh = k_ref[0]                                                  # (H, TK, d) bf16
        vh = v_ref[0]                                                  # (H, TK, d) bf16

        s = jnp.einsum("htd,hsd->hts", qh, kh,
                       preferred_element_type=jnp.float32)             # (H, TQ, TK) f32
        rows = qi * q_tile + lax.broadcasted_iota(jnp.int32, (q_tile, k_tile), 0)
        cols = ki * k_tile + lax.broadcasted_iota(jnp.int32, (q_tile, k_tile), 1)
        s = jnp.where((cols <= rows)[None], s, NEG)

        m_new = jnp.maximum(m_sc[...], jnp.max(s, axis=-1, keepdims=True))
        alpha = jnp.exp(m_sc[...] - m_new)
        p = jnp.exp(s - m_new)                                          # fp32 (v5e VPU)
        l_sc[...] = alpha * l_sc[...] + jnp.sum(p, axis=-1, keepdims=True)
        acc_sc[...] = alpha * acc_sc[...] + jnp.einsum(
            "hts,hsd->htd", p.astype(jnp.bfloat16), vh,
            preferred_element_type=jnp.float32)
        m_sc[...] = m_new

    @pl.when(ki == n_k - 1)
    def _():
        H, TQ, d = acc_sc.shape
        # TODO(synk): use approx=False (exact divide) if reused for training paths.
        attn = acc_sc[...] * pl.reciprocal(l_sc[...], approx=True)      # (H, TQ, d) f32
        attn = attn.transpose(1, 0, 2).reshape(TQ, H * d)               # (TQ, C)

        x_t = x_ref[0].astype(jnp.float32)                              # (TQ, C)
        sa = jnp.dot(attn.astype(jnp.bfloat16), wo_ref[...],
                     preferred_element_type=jnp.float32) + bo_ref[...]
        x1 = x_t + sa                                                   # residual 1

        h2 = _layer_norm(x1, ln2g_ref[...], ln2b_ref[...])
        ff = jnp.dot(h2.astype(jnp.bfloat16), w1_ref[...],
                     preferred_element_type=jnp.float32) + b1_ref[...]
        ff = jnp.maximum(ff, 0.0)                                       # ReLU
        ff = jnp.dot(ff.astype(jnp.bfloat16), w2_ref[...],
                     preferred_element_type=jnp.float32) + b2_ref[...]
        o_ref[0] = (x1 + ff).astype(o_ref.dtype)                        # residual 2


# --------------------------------------------------------------------------- #
# Host wrapper.
# --------------------------------------------------------------------------- #
def transformer_block(x, params, *, num_heads):
    (ln1g, ln1b, wq, wk, wv, wo, bo, ln2g, ln2b, w1, b1, w2, b2) = params
    B, T, C = x.shape
    assert C % num_heads == 0
    d = C // num_heads
    H4 = w1.shape[1]

    # Sequence tiling: pad T up to a multiple of the tile so any T keeps the
    # tiled, bounded-VMEM path (no full-sequence fallback).
    tile = min(_preferred_tile(), _round_up(T, 128))
    T_pad = _round_up(T, tile)
    n_t = T_pad // tile
    x_p = x if T_pad == T else jnp.pad(x, ((0, 0), (0, T_pad - T), (0, 0)))

    bf = jnp.bfloat16
    wq_s = (wq * (1.0 / math.sqrt(d))).astype(bf)         # scale folded into wq
    wkv = jnp.concatenate([wk, wv], axis=1).astype(bf)    # packed [K|V]: one DMA
    wo_b, w1_b, w2_b = wo.astype(bf), w1.astype(bf), w2.astype(bf)

    vmem_limit = _vmem_limit_bytes()

    # Single-buffer the constant weight blocks once double-buffering them would
    # cost real VMEM (matters on v7x's 64 MiB); tiny test weights keep the default.
    weight_bytes = 2 * (wq_s.size + wkv.size + wo_b.size + w1_b.size + w2_b.size)
    single_buffer = weight_bytes > (8 << 20)

    def const_spec(shape):
        idx = lambda *_: (0,) * len(shape)
        if single_buffer:
            return pl.BlockSpec(shape, idx, pipeline_mode=pl.Buffered(1))
        return pl.BlockSpec(shape, idx)

    # ---- pass 1: LN1 + Q / packed [K|V] projection (head-major bf16 to HBM) ----
    q, k, v = pl.pallas_call(
        functools.partial(qkv_projection_kernel, num_heads=num_heads, head_size=d),
        out_shape=tuple(jax.ShapeDtypeStruct((B, num_heads, T_pad, d), bf)
                        for _ in range(3)),
        grid_spec=pltpu.PrefetchScalarGridSpec(
            num_scalar_prefetch=0,
            grid=(B, n_t),
            in_specs=[
                pl.BlockSpec((1, tile, C), lambda b, s: (b, s, 0)),   # x tile
                const_spec((1, C)), const_spec((1, C)),               # ln1 gamma/beta
                const_spec((C, C)),                                   # wq (pre-scaled)
                const_spec((C, 2 * C)),                               # packed [wk | wv]
            ],
            out_specs=tuple(
                pl.BlockSpec((1, num_heads, tile, d), lambda b, s: (b, 0, s, 0))
                for _ in range(3)),
        ),
        compiler_params=pltpu.CompilerParams(
            dimension_semantics=("parallel", "parallel"),
            vmem_limit_bytes=vmem_limit),
    )(x_p, ln1g, ln1b, wq_s, wkv)

    # ---- pass 2: causal flash attention + output proj + residual + LN2 + FFN ----
    q_tile = k_tile = tile
    # Clamp the K/V block index for causally-skipped key tiles: the block index
    # does not change, so no new DMA is issued for tiles whose compute is skipped.
    kv_idx = lambda b, qi, ki: (
        b, 0, jnp.minimum(ki, (qi * q_tile + q_tile - 1) // k_tile), 0)

    out_p = pl.pallas_call(
        functools.partial(attn_ffn_kernel, q_tile=q_tile, k_tile=k_tile),
        out_shape=jax.ShapeDtypeStruct((B, T_pad, C), x.dtype),
        grid_spec=pltpu.PrefetchScalarGridSpec(
            num_scalar_prefetch=0,
            grid=(B, n_t, n_t),
            in_specs=[
                pl.BlockSpec((1, q_tile, C), lambda b, qi, ki: (b, qi, 0)),   # x (residual)
                pl.BlockSpec((1, num_heads, q_tile, d),
                             lambda b, qi, ki: (b, 0, qi, 0)),                # Q tile
                pl.BlockSpec((1, num_heads, k_tile, d), kv_idx),              # K tile
                pl.BlockSpec((1, num_heads, k_tile, d), kv_idx),              # V tile
                const_spec((C, C)), const_spec((1, C)),                       # wo, bo
                const_spec((1, C)), const_spec((1, C)),                       # ln2 gamma/beta
                const_spec((C, H4)), const_spec((1, H4)),                     # w1, b1
                const_spec((H4, C)), const_spec((1, C)),                      # w2, b2
            ],
            out_specs=pl.BlockSpec((1, q_tile, C), lambda b, qi, ki: (b, qi, 0)),
            scratch_shapes=[
                pltpu.VMEM((num_heads, q_tile, 1), jnp.float32),   # running max
                pltpu.VMEM((num_heads, q_tile, 1), jnp.float32),   # running sum
                pltpu.VMEM((num_heads, q_tile, d), jnp.float32),   # running PV acc
            ],
        ),
        compiler_params=pltpu.CompilerParams(
            dimension_semantics=("parallel", "parallel", "arbitrary"),
            vmem_limit_bytes=vmem_limit),
    )(x_p, q, k, v, wo_b, bo, ln2g, ln2b, w1_b, b1, w2_b, b2)

    return out_p if T_pad == T else out_p[:, :T, :]


def reference_block(x, params, *, num_heads):
    """Pure-JAX fp32 reference identical to the PyTorch forward (dropout = identity)."""
    (ln1g, ln1b, wq, wk, wv, wo, bo, ln2g, ln2b, w1, b1, w2, b2) = params
    C = x.shape[-1]
    head_size = C // num_heads

    def ln(v, g, b):
        mu = v.mean(-1, keepdims=True)
        var = ((v - mu) ** 2).mean(-1, keepdims=True)
        return (v - mu) / jnp.sqrt(var + 1e-5) * g + b

    h = ln(x, ln1g, ln1b)
    q, k, v = h @ wq, h @ wk, h @ wv
    B, T, _ = x.shape
    q = q.reshape(B, T, num_heads, head_size).transpose(0, 2, 1, 3)
    k = k.reshape(B, T, num_heads, head_size).transpose(0, 2, 1, 3)
    v = v.reshape(B, T, num_heads, head_size).transpose(0, 2, 1, 3)
    s = jnp.einsum("bhtd,bhsd->bhts", q, k) / math.sqrt(head_size)
    mask = jnp.tril(jnp.ones((T, T), bool))
    s = jnp.where(mask, s, -jnp.inf)
    p = jax.nn.softmax(s, axis=-1)
    attn = jnp.einsum("bhts,bhsd->bhtd", p, v).transpose(0, 2, 1, 3).reshape(B, T, C)
    x = x + attn @ wo + bo
    h2 = ln(x, ln2g, ln2b)
    ff = jnp.maximum(h2 @ w1 + b1, 0.0) @ w2 + b2
    return x + ff


if __name__ == "__main__":
    B, T = 2, 8           # batch, sequence (block_size)
    C = 32                # n_embed
    NUM_HEADS = 4
    H4 = 4 * C

    key = jax.random.PRNGKey(0)
    ks = jax.random.split(key, 8)

    x = jax.random.normal(ks[0], (B, T, C), jnp.float32)

    std = 0.02
    ln1g = jnp.ones((1, C), jnp.float32)
    ln1b = jnp.zeros((1, C), jnp.float32)
    wq = std * jax.random.normal(ks[1], (C, C), jnp.float32)
    wk = std * jax.random.normal(ks[2], (C, C), jnp.float32)
    wv = std * jax.random.normal(ks[3], (C, C), jnp.float32)
    wo = std * jax.random.normal(ks[4], (C, C), jnp.float32)
    bo = jnp.zeros((1, C), jnp.float32)
    ln2g = jnp.ones((1, C), jnp.float32)
    ln2b = jnp.zeros((1, C), jnp.float32)
    w1 = std * jax.random.normal(ks[5], (C, H4), jnp.float32)
    b1 = jnp.zeros((1, H4), jnp.float32)
    w2 = std * jax.random.normal(ks[6], (H4, C), jnp.float32)
    b2 = jnp.zeros((1, C), jnp.float32)

    params = (ln1g, ln1b, wq, wk, wv, wo, bo, ln2g, ln2b, w1, b1, w2, b2)

    out = transformer_block(x, params, num_heads=NUM_HEADS)
    out = jax.block_until_ready(out)

    ref = reference_block(x, params, num_heads=NUM_HEADS)
    assert out.shape == (B, T, C)
    # bf16 MXU operands + approx reciprocal => slightly looser tolerance than fp32.
    assert jnp.allclose(out, ref, rtol=2e-2, atol=2e-2), "mismatch vs reference"

    print("KERNEL_OK")
</pallas_src>

<mosaic_0001>
module attributes {stable_mosaic.version = 11 : i64} {
  func.func @qkv_projection_kernel(%arg0: i32, %arg1: i32, %arg2: memref<1x128x32xf32, #tpu.memory_space<vmem>>, %arg3: memref<1x32xf32, #tpu.memory_space<vmem>>, %arg4: memref<1x32xf32, #tpu.memory_space<vmem>>, %arg5: memref<32x32xbf16, #tpu.memory_space<vmem>>, %arg6: memref<32x64xbf16, #tpu.memory_space<vmem>>, %arg7: memref<1x4x128x8xbf16, #tpu.memory_space<vmem>>, %arg8: memref<1x4x128x8xbf16, #tpu.memory_space<vmem>>, %arg9: memref<1x4x128x8xbf16, #tpu.memory_space<vmem>>) attributes {dimension_semantics = [#tpu.dimension_semantics<parallel>, #tpu.dimension_semantics<parallel>], iteration_bounds = array<i64: 2, 1>, scalar_prefetch = 0 : i64, scratch_operands = 0 : i64, tpu.core_type = #tpu.core_type<tc>, window_params = [{transform_indices = @transform_0, window_bounds = array<i64: 1, 128, 32>}, {pipeline_mode = #tpu.pipeline_mode<synchronous>, transform_indices = @transform_1, window_bounds = array<i64: 1, 32>}, {pipeline_mode = #tpu.pipeline_mode<synchronous>, transform_indices = @transform_2, window_bounds = array<i64: 1, 32>}, {pipeline_mode = #tpu.pipeline_mode<synchronous>, transform_indices = @transform_3, window_bounds = array<i64: 32, 32>}, {pipeline_mode = #tpu.pipeline_mode<synchronous>, transform_indices = @transform_4, window_bounds = array<i64: 32, 64>}, {transform_indices = @transform_5, window_bounds = array<i64: 1, 4, 128, 8>}, {transform_indices = @transform_6, window_bounds = array<i64: 1, 4, 128, 8>}, {transform_indices = @transform_7, window_bounds = array<i64: 1, 4, 128, 8>}]} {
    %c0 = arith.constant 0 : index
    %c0_0 = arith.constant 0 : index
    %c0_1 = arith.constant 0 : index
    %0 = vector.load %arg2[%c0, %c0_0, %c0_1] : memref<1x128x32xf32, #tpu.memory_space<vmem>>, vector<1x128x32xf32>
    %1 = vector.shape_cast %0 : vector<1x128x32xf32> to vector<128x32xf32>
    %c0_2 = arith.constant 0 : index
    %c0_3 = arith.constant 0 : index
    %2 = vector.load %arg3[%c0_2, %c0_3] : memref<1x32xf32, #tpu.memory_space<vmem>>, vector<1x32xf32>
    %c0_4 = arith.constant 0 : index
    %c0_5 = arith.constant 0 : index
    %3 = vector.load %arg4[%c0_4, %c0_5] : memref<1x32xf32, #tpu.memory_space<vmem>>, vector<1x32xf32>
    %cst = arith.constant dense<0.000000e+00> : vector<128xf32>
    %4 = vector.multi_reduction <add>, %1, %cst [1] : vector<128x32xf32> to vector<128xf32>
    %5 = vector.shape_cast %4 : vector<128xf32> to vector<128x1xf32>
    %cst_6 = arith.constant 3.200000e+01 : f32
    %6 = vector.broadcast %cst_6 : f32 to vector<128x1xf32>
    %7 = arith.divf %5, %6 : vector<128x1xf32>
    %8 = vector.broadcast %7 : vector<128x1xf32> to vector<128x32xf32>
    %9 = arith.subf %1, %8 : vector<128x32xf32>
    %10 = arith.mulf %9, %9 : vector<128x32xf32>
    %cst_7 = arith.constant dense<0.000000e+00> : vector<128xf32>
    %11 = vector.multi_reduction <add>, %10, %cst_7 [1] : vector<128x32xf32> to vector<128xf32>
    %12 = vector.shape_cast %11 : vector<128xf32> to vector<128x1xf32>
    %cst_8 = arith.constant 3.200000e+01 : f32
    %13 = vector.broadcast %cst_8 : f32 to vector<128x1xf32>
    %14 = arith.divf %12, %13 : vector<128x1xf32>
    %15 = vector.broadcast %7 : vector<128x1xf32> to vector<128x32xf32>
    %16 = arith.subf %1, %15 : vector<128x32xf32>
    %cst_9 = arith.constant 9.99999974E-6 : f32
    %17 = vector.broadcast %cst_9 : f32 to vector<128x1xf32>
    %18 = arith.addf %14, %17 : vector<128x1xf32>
    %19 = math.rsqrt %18 : vector<128x1xf32>
    %20 = vector.broadcast %19 : vector<128x1xf32> to vector<128x32xf32>
    %21 = arith.mulf %16, %20 : vector<128x32xf32>
    %22 = vector.broadcast %2 : vector<1x32xf32> to vector<128x32xf32>
    %23 = arith.mulf %21, %22 : vector<128x32xf32>
    %24 = vector.broadcast %3 : vector<1x32xf32> to vector<128x32xf32>
    %25 = arith.addf %23, %24 : vector<128x32xf32>
    %26 = arith.truncf %25 : vector<128x32xf32> to vector<128x32xbf16>
    %c0_10 = arith.constant 0 : index
    %c0_11 = arith.constant 0 : index
    %27 = vector.load %arg5[%c0_10, %c0_11] : memref<32x32xbf16, #tpu.memory_space<vmem>>, vector<32x32xbf16>
    %cst_12 = arith.constant dense<0.000000e+00> : vector<128x32xf32>
    %28 = tpu.matmul %26, %27, %cst_12 {dimension_numbers = #tpu.dot_dimension_numbers<[1], [0], [0], [1], [0, 0, 1, 1], [], []>} : vector<128x32xbf16>, vector<32x32xbf16>, vector<128x32xf32> -> vector<128x32xf32>
    %c0_13 = arith.constant 0 : index
    %c0_14 = arith.constant 0 : index
    %29 = vector.load %arg6[%c0_13, %c0_14] : memref<32x64xbf16, #tpu.memory_space<vmem>>, vector<32x64xbf16>
    %cst_15 = arith.constant dense<0.000000e+00> : vector<128x64xf32>
    %30 = tpu.matmul %26, %29, %cst_15 {dimension_numbers = #tpu.dot_dimension_numbers<[1], [0], [0], [1], [0, 0, 1, 1], [], []>} : vector<128x32xbf16>, vector<32x64xbf16>, vector<128x64xf32> -> vector<128x64xf32>
    %31 = vector.shape_cast %28 : vector<128x32xf32> to vector<128x4x8xf32>
    %32 = tpu.transpose %31, [1, 0, 2] : vector<128x4x8xf32> -> vector<4x128x8xf32>
    %33 = arith.truncf %32 : vector<4x128x8xf32> to vector<4x128x8xbf16>
    %c0_16 = arith.constant 0 : index
    %c0_17 = arith.constant 0 : index
    %c0_18 = arith.constant 0 : index
    %c0_19 = arith.constant 0 : index
    %34 = vector.load %arg7[%c0_16, %c0_17, %c0_18, %c0_19] : memref<1x4x128x8xbf16, #tpu.memory_space<vmem>>, vector<1x4x128x8xbf16>
    %35 = vector.shape_cast %34 : vector<1x4x128x8xbf16> to vector<4x128x8xbf16>
    %36 = vector.shape_cast %33 : vector<4x128x8xbf16> to vector<1x4x128x8xbf16>
    tpu.vector_store %arg7[%c0_16, %c0_17, %c0_18, %c0_19], %36 {strides = array<i32>} : memref<1x4x128x8xbf16, #tpu.memory_space<vmem>>, vector<1x4x128x8xbf16>,
    %37 = vector.extract_strided_slice %30 {offsets = [0, 0], sizes = [128, 32], strides = [1, 1]} : vector<128x64xf32> to vector<128x32xf32>
    %38 = vector.shape_cast %37 : vector<128x32xf32> to vector<128x4x8xf32>
    %39 = tpu.transpose %38, [1, 0, 2] : vector<128x4x8xf32> -> vector<4x128x8xf32>
    %40 = arith.truncf %39 : vector<4x128x8xf32> to vector<4x128x8xbf16>
    %c0_20 = arith.constant 0 : index
    %c0_21 = arith.constant 0 : index
    %c0_22 = arith.constant 0 : index
    %c0_23 = arith.constant 0 : index
    %41 = vector.load %arg8[%c0_20, %c0_21, %c0_22, %c0_23] : memref<1x4x128x8xbf16, #tpu.memory_space<vmem>>, vector<1x4x128x8xbf16>
    %42 = vector.shape_cast %41 : vector<1x4x128x8xbf16> to vector<4x128x8xbf16>
    %43 = vector.shape_cast %40 : vector<4x128x8xbf16> to vector<1x4x128x8xbf16>
    tpu.vector_store %arg8[%c0_20, %c0_21, %c0_22, %c0_23], %43 {strides = array<i32>} : memref<1x4x128x8xbf16, #tpu.memory_space<vmem>>, vector<1x4x128x8xbf16>,
    %44 = vector.extract_strided_slice %30 {offsets = [0, 32], sizes = [128, 32], strides = [1, 1]} : vector<128x64xf32> to vector<128x32xf32>
    %45 = vector.shape_cast %44 : vector<128x32xf32> to vector<128x4x8xf32>
    %46 = tpu.transpose %45, [1, 0, 2] : vector<128x4x8xf32> -> vector<4x128x8xf32>
    %47 = arith.truncf %46 : vector<4x128x8xf32> to vector<4x128x8xbf16>
    %c0_24 = arith.constant 0 : index
    %c0_25 = arith.constant 0 : index
    %c0_26 = arith.constant 0 : index
    %c0_27 = arith.constant 0 : index
    %48 = vector.load %arg9[%c0_24, %c0_25, %c0_26, %c0_27] : memref<1x4x128x8xbf16, #tpu.memory_space<vmem>>, vector<1x4x128x8xbf16>
    %49 = vector.shape_cast %48 : vector<1x4x128x8xbf16> to vector<4x128x8xbf16>
    %50 = vector.shape_cast %47 : vector<4x128x8xbf16> to vector<1x4x128x8xbf16>
    tpu.vector_store %arg9[%c0_24, %c0_25, %c0_26, %c0_27], %50 {strides = array<i32>} : memref<1x4x128x8xbf16, #tpu.memory_space<vmem>>, vector<1x4x128x8xbf16>,
    return
  }
  func.func @transform_0(%arg0: i32, %arg1: i32) -> (i32, i32, i32) {
    %c0_i32 = arith.constant 0 : i32
    %c0_i32_0 = arith.constant 0 : i32
    return %arg0, %arg1, %c0_i32 : i32, i32, i32
  }
  func.func @transform_1(%arg0: i32, %arg1: i32) -> (i32, i32) {
    %c0_i32 = arith.constant 0 : i32
    %c0_i32_0 = arith.constant 0 : i32
    %c0_i32_1 = arith.constant 0 : i32
    return %c0_i32, %c0_i32_0 : i32, i32
  }
  func.func @transform_2(%arg0: i32, %arg1: i32) -> (i32, i32) {
    %c0_i32 = arith.constant 0 : i32
    %c0_i32_0 = arith.constant 0 : i32
    %c0_i32_1 = arith.constant 0 : i32
    return %c0_i32, %c0_i32_0 : i32, i32
  }
  func.func @transform_3(%arg0: i32, %arg1: i32) -> (i32, i32) {
    %c0_i32 = arith.constant 0 : i32
    %c0_i32_0 = arith.constant 0 : i32
    %c0_i32_1 = arith.constant 0 : i32
    return %c0_i32, %c0_i32_0 : i32, i32
  }
  func.func @transform_4(%arg0: i32, %arg1: i32) -> (i32, i32) {
    %c0_i32 = arith.constant 0 : i32
    %c0_i32_0 = arith.constant 0 : i32
    %c0_i32_1 = arith.constant 0 : i32
    return %c0_i32, %c0_i32_0 : i32, i32
  }
  func.func @transform_5(%arg0: i32, %arg1: i32) -> (i32, i32, i32, i32) {
    %c0_i32 = arith.constant 0 : i32
    %c0_i32_0 = arith.constant 0 : i32
    %c0_i32_1 = arith.constant 0 : i32
    return %arg0, %c0_i32, %arg1, %c0_i32_0 : i32, i32, i32, i32
  }
  func.func @transform_6(%arg0: i32, %arg1: i32) -> (i32, i32, i32, i32) {
    %c0_i32 = arith.constant 0 : i32
    %c0_i32_0 = arith.constant 0 : i32
    %c0_i32_1 = arith.constant 0 : i32
    return %arg0, %c0_i32, %arg1, %c0_i32_0 : i32, i32, i32, i32
  }
  func.func @transform_7(%arg0: i32, %arg1: i32) -> (i32, i32, i32, i32) {
    %c0_i32 = arith.constant 0 : i32
    %c0_i32_0 = arith.constant 0 : i32
    %c0_i32_1 = arith.constant 0 : i32
    return %arg0, %c0_i32, %arg1, %c0_i32_0 : i32, i32, i32, i32
  }
}

</mosaic_0001>

<llo_original>
// kernel: tpu_custom_call.1
$region0: #{tpu_custom_call.1}
  #allocation0 [shape = 'u32[]', space=smem, size = 0x4, offset = 0x4, fixed_abs, tag = 'smem constant byte address 0x4 - core index']
  #allocation1 [shape = 'u32[144,128]{1,0:T(1,128)}', space=vmem, size = 0x12000, scoped, tag = 'internal scratch']
  %s0 = inlined_call_operand.vmem [shape: f32[2,128,32], index: 0, kind: input, shape index: {}]
  %s1 = inlined_call_operand.vmem [shape: f32[1,32], index: 1, kind: input, shape index: {}]
  %s2 = inlined_call_operand.vmem [shape: f32[1,32], index: 2, kind: input, shape index: {}]
  %s3 = inlined_call_operand.vmem [shape: bf16[32,32], index: 3, kind: input, shape index: {}]
  %s4 = inlined_call_operand.vmem [shape: bf16[32,64], index: 4, kind: input, shape index: {}]
  %s5 = inlined_call_operand.vmem [shape: bf16[2,4,128,8], index: 5, kind: output, shape index: {0}]
  %s6 = inlined_call_operand.vmem [shape: bf16[2,4,128,8], index: 6, kind: output, shape index: {1}]
  %s7 = inlined_call_operand.vmem [shape: bf16[2,4,128,8], index: 7, kind: output, shape index: {2}]
  %8 = xla_tuple %s5, %s6, %s7
  %s9 = sld [smem:[#allocation0]]
  $region69: #{tpu_custom_call.1} parent=0
    _
  %s11 = ssub.s32 1, %s9
  %s12 = scalar_select 0, %s11, %s9
  loop: start=0, step=1, limit=4
  $region2: #{tpu_custom_call.1} parent=0 // loop_pre_header
    _
  $region3: #{tpu_custom_call.1} parent=0 // loop_header
    %s14 = sphi 0, %s18
    %p15 = scmp.ge.s32.totalorder %s14, 4
    %s21 = sphi 0, %s33
    %s22 = sphi 0, %s29
    %s23 = sphi 0, %s21
    %s24 = sphi 0, %s22
    %s25 = sphi 0, %s23
    %s26 = sphi 0, %s24
    %s38 = sphi 0, %s40
    %s41 = sphi 0, %s38
    %s42 = sphi 0, %s41
    %s58 = sphi 0, %s42
    %s62 = sphi 0, %s62
    %s64 = sphi 0, %s62
    %s65 = sphi 0, %s64
    %s79 = sphi 0, %s65
    %s83 = sphi 0, %s83
    %s85 = sphi 0, %s83
    %s86 = sphi 0, %s85
    %s100 = sphi 0, %s86
    %s104 = sphi 0, %s104
    %s106 = sphi 0, %s104
    %s107 = sphi 0, %s106
    %s121 = sphi 0, %s107
    %s125 = sphi 0, %s125
    %s127 = sphi 0, %s125
    %s128 = sphi 0, %s127
    %s142 = sphi 0, %s128
    %s150 = sphi 0, %s152
    %s153 = sphi 0, %s150
    %s154 = sphi 0, %s153
    %s170 = sphi 0, %s154
    %s178 = sphi 0, %s180
    %s181 = sphi 0, %s178
    %s182 = sphi 0, %s181
    %s198 = sphi 0, %s182
    %s206 = sphi 0, %s208
    %s209 = sphi 0, %s206
    %s210 = sphi 0, %s209
    %s226 = sphi 0, %s210
  $region4: #{tpu_custom_call.1} parent=0 // loop_header_branch
    %17 = sbr.rel (%p15) target = $region8
  $region5: #{tpu_custom_call.1} parent=0 // loop_body
    %s19 = ssub.s32 %s14, 1
    %s20 = ssub.s32 %s14, 2
    %s27 = sadd.s32 1, %s22
    %p28 = scmp.ge.s32.totalorder %s27, 1
    %s29 = scalar_select %p28, 0, %s27
    %s30 = sadd.s32 1, %s21
    %s31 = scalar_select %p28, %s30, %s21
    %p32 = scmp.ge.s32.totalorder %s31, 2
    %s33 = scalar_select %p32, 0, %s31
    %s34 = ssub.s32 %s21, %s33
    %s35 = ssub.s32 %s22, %s29
    %s36 = sor.u32 %s34, %s35
    %p37 = scmp.eq.s32.totalorder %s36, 0
    %s39 = sadd.s32 %s38, 1
    %s40 = scalar_select %p37, %s38, %s39
    %p43 = pneg %p37
    %p44 = scmp.eq.s32.totalorder %s14, 1
    %p45 = por %p43, %p44
    %p46 = scmp.ne.s32.totalorder %s38, %s41
    %p47 = scmp.eq.s32.totalorder %s14, 0
    %p48 = por %p46, %p47
    %p49 = scmp.ne.s32.totalorder %s38, %s41
    %p50 = scmp.eq.s32.totalorder %s19, 1
    %p51 = por %p49, %p50
    %p52 = scmp.ne.s32.totalorder %s41, %s42
    %p53 = scmp.eq.s32.totalorder %s19, 0
    %p54 = por %p52, %p53
    %p55 = scmp.ne.s32.totalorder %s41, %s42
    %p56 = scmp.eq.s32.totalorder %s20, 1
    %p57 = por %p55, %p56
    %p59 = scmp.ne.s32.totalorder %s42, %s58
    %p60 = scmp.eq.s32.totalorder %s20, 0
    %p61 = por %p59, %p60
    %s63 = sadd.s32 %s62, 1
    %p66 = scmp.eq.s32.totalorder %s14, 1
    %p67 = scmp.ne.s32.totalorder %s62, %s64
    %p68 = scmp.eq.s32.totalorder %s14, 0
    %p69 = por %p67, %p68
    %p70 = scmp.ne.s32.totalorder %s62, %s64
    %p71 = scmp.eq.s32.totalorder %s19, 1
    %p72 = por %p70, %p71
    %p73 = scmp.ne.s32.totalorder %s64, %s65
    %p74 = scmp.eq.s32.totalorder %s19, 0
    %p75 = por %p73, %p74
    %p76 = scmp.ne.s32.totalorder %s64, %s65
    %p77 = scmp.eq.s32.totalorder %s20, 1
    %p78 = por %p76, %p77
    %p80 = scmp.ne.s32.totalorder %s65, %s79
    %p81 = scmp.eq.s32.totalorder %s20, 0
    %p82 = por %p80, %p81
    %s84 = sadd.s32 %s83, 1
    %p87 = scmp.eq.s32.totalorder %s14, 1
    %p88 = scmp.ne.s32.totalorder %s83, %s85
    %p89 = scmp.eq.s32.totalorder %s14, 0
    %p90 = por %p88, %p89
    %p91 = scmp.ne.s32.totalorder %s83, %s85
    %p92 = scmp.eq.s32.totalorder %s19, 1
    %p93 = por %p91, %p92
    %p94 = scmp.ne.s32.totalorder %s85, %s86
    %p95 = scmp.eq.s32.totalorder %s19, 0
    %p96 = por %p94, %p95
    %p97 = scmp.ne.s32.totalorder %s85, %s86
    %p98 = scmp.eq.s32.totalorder %s20, 1
    %p99 = por %p97, %p98
    %p101 = scmp.ne.s32.totalorder %s86, %s100
    %p102 = scmp.eq.s32.totalorder %s20, 0
    %p103 = por %p101, %p102
    %s105 = sadd.s32 %s104, 1
    %p108 = scmp.eq.s32.totalorder %s14, 1
    %p109 = scmp.ne.s32.totalorder %s104, %s106
    %p110 = scmp.eq.s32.totalorder %s14, 0
    %p111 = por %p109, %p110
    %p112 = scmp.ne.s32.totalorder %s104, %s106
    %p113 = scmp.eq.s32.totalorder %s19, 1
    %p114 = por %p112, %p113
    %p115 = scmp.ne.s32.totalorder %s106, %s107
    %p116 = scmp.eq.s32.totalorder %s19, 0
    %p117 = por %p115, %p116
    %p118 = scmp.ne.s32.totalorder %s106, %s107
    %p119 = scmp.eq.s32.totalorder %s20, 1
    %p120 = por %p118, %p119
    %p122 = scmp.ne.s32.totalorder %s107, %s121
    %p123 = scmp.eq.s32.totalorder %s20, 0
    %p124 = por %p122, %p123
    %s126 = sadd.s32 %s125, 1
    %p129 = scmp.eq.s32.totalorder %s14, 1
    %p130 = scmp.ne.s32.totalorder %s125, %s127
    %p131 = scmp.eq.s32.totalorder %s14, 0
    %p132 = por %p130, %p131
    %p133 = scmp.ne.s32.totalorder %s125, %s127
    %p134 = scmp.eq.s32.totalorder %s19, 1
    %p135 = por %p133, %p134
    %p136 = scmp.ne.s32.totalorder %s127, %s128
    %p137 = scmp.eq.s32.totalorder %s19, 0
    %p138 = por %p136, %p137
    %p139 = scmp.ne.s32.totalorder %s127, %s128
    %p140 = scmp.eq.s32.totalorder %s20, 1
    %p141 = por %p139, %p140
    %p143 = scmp.ne.s32.totalorder %s128, %s142
    %p144 = scmp.eq.s32.totalorder %s20, 0
    %p145 = por %p143, %p144
    %s146 = ssub.s32 %s21, %s33
    %s147 = ssub.s32 %s22, %s29
    %s148 = sor.u32 %s146, %s147
    %p149 = scmp.eq.s32.totalorder %s148, 0
    %s151 = sadd.s32 %s150, 1
    %s152 = scalar_select %p149, %s150, %s151
    %p155 = pneg %p149
    %p156 = scmp.eq.s32.totalorder %s14, 1
    %p157 = por %p155, %p156
    %p158 = scmp.ne.s32.totalorder %s150, %s153
    %p159 = scmp.eq.s32.totalorder %s14, 0
    %p160 = por %p158, %p159
    %p161 = scmp.ne.s32.totalorder %s150, %s153
    %p162 = scmp.eq.s32.totalorder %s19, 1
    %p163 = por %p161, %p162
    %p164 = scmp.ne.s32.totalorder %s153, %s154
    %p165 = scmp.eq.s32.totalorder %s19, 0
    %p166 = por %p164, %p165
    %p167 = scmp.ne.s32.totalorder %s153, %s154
    %p168 = scmp.eq.s32.totalorder %s20, 1
    %p169 = por %p167, %p168
    %p171 = scmp.ne.s32.totalorder %s154, %s170
    %p172 = scmp.eq.s32.totalorder %s20, 0
    %p173 = por %p171, %p172
    %s174 = ssub.s32 %s21, %s33
    %s175 = ssub.s32 %s22, %s29
    %s176 = sor.u32 %s174, %s175
    %p177 = scmp.eq.s32.totalorder %s176, 0
    %s179 = sadd.s32 %s178, 1
    %s180 = scalar_select %p177, %s178, %s179
    %p183 = pneg %p177
    %p184 = scmp.eq.s32.totalorder %s14, 1
    %p185 = por %p183, %p184
    %p186 = scmp.ne.s32.totalorder %s178, %s181
    %p187 = scmp.eq.s32.totalorder %s14, 0
    %p188 = por %p186, %p187
    %p189 = scmp.ne.s32.totalorder %s178, %s181
    %p190 = scmp.eq.s32.totalorder %s19, 1
    %p191 = por %p189, %p190
    %p192 = scmp.ne.s32.totalorder %s181, %s182
    %p193 = scmp.eq.s32.totalorder %s19, 0
    %p194 = por %p192, %p193
    %p195 = scmp.ne.s32.totalorder %s181, %s182
    %p196 = scmp.eq.s32.totalorder %s20, 1
    %p197 = por %p195, %p196
    %p199 = scmp.ne.s32.totalorder %s182, %s198
    %p200 = scmp.eq.s32.totalorder %s20, 0
    %p201 = por %p199, %p200
    %s202 = ssub.s32 %s21, %s33
    %s203 = ssub.s32 %s22, %s29
    %s204 = sor.u32 %s202, %s203
    %p205 = scmp.eq.s32.totalorder %s204, 0
    %s207 = sadd.s32 %s206, 1
    %s208 = scalar_select %p205, %s206, %s207
    %p211 = pneg %p205
    %p212 = scmp.eq.s32.totalorder %s14, 1
    %p213 = por %p211, %p212
    %p214 = scmp.ne.s32.totalorder %s206, %s209
    %p215 = scmp.eq.s32.totalorder %s14, 0
    %p216 = por %p214, %p215
    %p217 = scmp.ne.s32.totalorder %s206, %s209
    %p218 = scmp.eq.s32.totalorder %s19, 1
    %p219 = por %p217, %p218
    %p220 = scmp.ne.s32.totalorder %s209, %s210
    %p221 = scmp.eq.s32.totalorder %s19, 0
    %p222 = por %p220, %p221
    %p223 = scmp.ne.s32.totalorder %s209, %s210
    %p224 = scmp.eq.s32.totalorder %s20, 1
    %p225 = por %p223, %p224
    %p227 = scmp.ne.s32.totalorder %s210, %s226
    %p228 = scmp.eq.s32.totalorder %s20, 0
    %p229 = por %p227, %p228
    %p230 = scmp.le.s32.totalorder 1, %s14
    %p231 = scmp.lt.s32.totalorder %s14, 3
    %p232 = pnand %p230, %p231
    %p233 = pneg %p232
    // Predicated region
    $region9: #{tpu_custom_call.1} parent=5 // pred_check
      _
    $region10: #{tpu_custom_call.1} parent=5 // pred_check_branch
      %235 = sbr.rel (%p232) target = $region12
    $region11: #{tpu_custom_call.1} parent=5 // pred_region
      %s236 = ssub.s32 %s14, 1
      // Predicated region
      $region13: #{tpu_custom_call.1} parent=11 // pred_check
        %p237 = pneg %p75
      $region14: #{tpu_custom_call.1} parent=11 // pred_check_branch
        %239 = sbr.rel (%p237) target = $region16
      $region15: #{tpu_custom_call.1} parent=11 // pred_region
        _
      $region16: #{tpu_custom_call.1} parent=11 // pred_fallthru
        _
      // Predicated region
      $region17: #{tpu_custom_call.1} parent=11 // pred_check
        %p240 = pneg %p96
      $region18: #{tpu_custom_call.1} parent=11 // pred_check_branch
        %242 = sbr.rel (%p240) target = $region20
      $region19: #{tpu_custom_call.1} parent=11 // pred_region
        _
      $region20: #{tpu_custom_call.1} parent=11 // pred_fallthru
        _
      // Predicated region
      $region21: #{tpu_custom_call.1} parent=11 // pred_check
        %p243 = pneg %p117
      $region22: #{tpu_custom_call.1} parent=11 // pred_check_branch
        %245 = sbr.rel (%p243) target = $region24
      $region23: #{tpu_custom_call.1} parent=11 // pred_region
        _
      $region24: #{tpu_custom_call.1} parent=11 // pred_fallthru
        _
      // Predicated region
      $region25: #{tpu_custom_call.1} parent=11 // pred_check
        %p246 = pneg %p138
      $region26: #{tpu_custom_call.1} parent=11 // pred_check_branch
        %248 = sbr.rel (%p246) target = $region28
      $region27: #{tpu_custom_call.1} parent=11 // pred_region
        _
      $region28: #{tpu_custom_call.1} parent=11 // pred_fallthru
        _
    $region12: #{tpu_custom_call.1} parent=5 // pred_fallthru
      _
    %p249 = scmp.lt.s32.totalorder %s14, 2
    // Predicated region
    $region29: #{tpu_custom_call.1} parent=5 // pred_check
      %p250 = pneg %p249
    $region30: #{tpu_custom_call.1} parent=5 // pred_check_branch
      %252 = sbr.rel (%p250) target = $region32
    $region31: #{tpu_custom_call.1} parent=5 // pred_region
      // Predicated region
      $region33: #{tpu_custom_call.1} parent=31 // pred_check
        %p253 = pneg %p48
      $region34: #{tpu_custom_call.1} parent=31 // pred_check_branch
        %255 = sbr.rel (%p253) target = $region36
      $region35: #{tpu_custom_call.1} parent=31 // pred_region
        %s256 = smul.u32 16, %s22
        %p257 = scmp.lt.s32.totalorder %s21, 1
        %s258 = scalar_select %p257, %s21, 1
        %p259 = scmp.lt.s32.totalorder %s256, 15
        %s260 = scalar_select %p259, %s256, 15
        %s261 = smul.addr %s258, 16
        %s262 = sadd.s32 %s260, %s261
        %s263 = smul.addr %s262, 8
        %s264 = scalar_lea.vmem %s0, %s263
        %s265 = smul.u32 16, %s22
      $region36: #{tpu_custom_call.1} parent=31 // pred_fallthru
        _
    $region32: #{tpu_custom_call.1} parent=5 // pred_fallthru
      _
    %p266 = scmp.le.s32.totalorder 1, %s14
    %p267 = scmp.lt.s32.totalorder %s14, 3
    %p268 = pnand %p266, %p267
    %p269 = pneg %p268
    // Predicated region
    $region37: #{tpu_custom_call.1} parent=5 // pred_check
      _
    $region38: #{tpu_custom_call.1} parent=5 // pred_check_branch
      %271 = sbr.rel (%p268) target = $region40
    $region39: #{tpu_custom_call.1} parent=5 // pred_region
      %s272 = ssub.s32 %s14, 1
      %s273 = smul.u32 16, %s24
      %p274 = scmp.lt.s32.totalorder %s23, 1
      %s275 = scalar_select %p274, %s23, 1
      %p276 = scmp.lt.s32.totalorder %s273, 15
      %s277 = scalar_select %p276, %s273, 15
      %s278 = smul.addr %s275, 16
      %s279 = sadd.s32 %s277, %s278
      %s280 = smul.addr %s279, 8
      %s281 = scalar_lea.vmem %s0, %s280
      %p282 = pneg %p54
      %p283 = pneg %p51
      %p284 = pneg %p75
      %p285 = pneg %p72
      %p286 = pneg %p96
      %p287 = pneg %p93
      %p288 = pneg %p117
      %p289 = pneg %p114
      %p290 = pneg %p138
      %p291 = pneg %p135
      %p292 = pneg %p166
      %p293 = pneg %p163
      %s294 = smul.u32 16, %s24
      %p295 = scmp.lt.s32.totalorder %s23, 1
      %s296 = scalar_select %p295, %s23, 1
      %p297 = scmp.lt.s32.totalorder %s294, 15
      %s298 = scalar_select %p297, %s294, 15
      %s299 = smul.addr %s296, 64
      %s300 = sadd.s32 %s298, %s299
      %s301 = smul.addr %s300, 4
      %s302 = scalar_lea.vmem %s5, %s301
      %p303 = pneg %p194
      %p304 = pneg %p191
      %s305 = smul.u32 16, %s24
      %p306 = scmp.lt.s32.totalorder %s23, 1
      %s307 = scalar_select %p306, %s23, 1
      %p308 = scmp.lt.s32.totalorder %s305, 15
      %s309 = scalar_select %p308, %s305, 15
      %s310 = smul.addr %s307, 64
      %s311 = sadd.s32 %s309, %s310
      %s312 = smul.addr %s311, 4
      %s313 = scalar_lea.vmem %s6, %s312
      %p314 = pneg %p222
      %p315 = pneg %p219
      %s316 = smul.u32 16, %s24
      %p317 = scmp.lt.s32.totalorder %s23, 1
      %s318 = scalar_select %p317, %s23, 1
      %p319 = scmp.lt.s32.totalorder %s316, 15
      %s320 = scalar_select %p319, %s316, 15
      %s321 = smul.addr %s318, 64
      %s322 = sadd.s32 %s320, %s321
      %s323 = smul.addr %s322, 4
      %s324 = scalar_lea.vmem %s7, %s323
      %s325 = smul.u32 16, %s24
      %p326 = scmp.lt.s32.totalorder %s23, 1
      %s327 = scalar_select %p326, %s23, 1
      %p328 = scmp.lt.s32.totalorder %s325, 15
      %s329 = scalar_select %p328, %s325, 15
      %s330 = smul.addr %s327, 16
      %s331 = sadd.s32 %s329, %s330
      %s332 = smul.addr %s331, 8
      %s333 = scalar_lea.vmem %s0, %s332
      %s334 = smul.u32 16, %s24
      %s335 = smul.u32 16, %s24
      %p336 = scmp.lt.s32.totalorder %s23, 1
      %s337 = scalar_select %p336, %s23, 1
      %p338 = scmp.lt.s32.totalorder %s335, 15
      %s339 = scalar_select %p338, %s335, 15
      %s340 = smul.addr %s337, 64
      %s341 = sadd.s32 %s339, %s340
      %s342 = smul.addr %s341, 4
      %s343 = scalar_lea.vmem %s5, %s342
      %s344 = smul.u32 16, %s24
      %s345 = smul.u32 16, %s24
      %p346 = scmp.lt.s32.totalorder %s23, 1
      %s347 = scalar_select %p346, %s23, 1
      %p348 = scmp.lt.s32.totalorder %s345, 15
      %s349 = scalar_select %p348, %s345, 15
      %s350 = smul.addr %s347, 64
      %s351 = sadd.s32 %s349, %s350
      %s352 = smul.addr %s351, 4
      %s353 = scalar_lea.vmem %s6, %s352
      %s354 = smul.u32 16, %s24
      %s355 = smul.u32 16, %s24
      %p356 = scmp.lt.s32.totalorder %s23, 1
      %s357 = scalar_select %p356, %s23, 1
      %p358 = scmp.lt.s32.totalorder %s355, 15
      %s359 = scalar_select %p358, %s355, 15
      %s360 = smul.addr %s357, 64
      %s361 = sadd.s32 %s359, %s360
      %s362 = smul.addr %s361, 4
      %s363 = scalar_lea.vmem %s7, %s362
      %s364 = smul.u32 16, %s24
      %v366 = vld [vmem:[%s333] sm:$0xff]
      %v367 = vld [vmem:[%s333 + $0x8] sm:$0xff]
      %v368 = vld [vmem:[%s333 + $0x10] sm:$0xff]
      %v369 = vld [vmem:[%s333 + $0x18] sm:$0xff]
      %v370 = vld [vmem:[%s333 + $0x20] sm:$0xff]
      %v371 = vld [vmem:[%s333 + $0x28] sm:$0xff]
      %v372 = vld [vmem:[%s333 + $0x30] sm:$0xff]
      %v373 = vld [vmem:[%s333 + $0x38] sm:$0xff]
      %v374 = vld [vmem:[%s333 + $0x40] sm:$0xff]
      %v375 = vld [vmem:[%s333 + $0x48] sm:$0xff]
      %v376 = vld [vmem:[%s333 + $0x50] sm:$0xff]
      %v377 = vld [vmem:[%s333 + $0x58] sm:$0xff]
      %v378 = vld [vmem:[%s333 + $0x60] sm:$0xff]
      %v379 = vld [vmem:[%s333 + $0x68] sm:$0xff]
      %v380 = vld [vmem:[%s333 + $0x70] sm:$0xff]
      %v381 = vld [vmem:[%s333 + $0x78] sm:$0xff]
      %v382 = vld [vmem:[%s1] sm:$0x1]
      %v383 = vld [vmem:[%s2] sm:$0x1]
      %vm384 = vcmask 261120
      %v385 = vsel %vm384, %v366, 0.0
      %386 = vadd.xlane.f32.xlu0 %v385
      %v387 = vpop.xlane.xlu0 %386
      %v388 = vsel %vm384, %v367, 0.0
      %389 = vadd.xlane.f32.xlu0 %v388
      %v390 = vpop.xlane.xlu0 %389
      %v391 = vsel %vm384, %v368, 0.0
      %392 = vadd.xlane.f32.xlu0 %v391
      %v393 = vpop.xlane.xlu0 %392
      %v394 = vsel %vm384, %v369, 0.0
      %395 = vadd.xlane.f32.xlu0 %v394
      %v396 = vpop.xlane.xlu0 %395
      %v397 = vsel %vm384, %v370, 0.0
      %398 = vadd.xlane.f32.xlu0 %v397
      %v399 = vpop.xlane.xlu0 %398
      %v400 = vsel %vm384, %v371, 0.0
      %401 = vadd.xlane.f32.xlu0 %v400
      %v402 = vpop.xlane.xlu0 %401
      %v403 = vsel %vm384, %v372, 0.0
      %404 = vadd.xlane.f32.xlu0 %v403
      %v405 = vpop.xlane.xlu0 %404
      %v406 = vsel %vm384, %v373, 0.0
      %407 = vadd.xlane.f32.xlu0 %v406
      %v408 = vpop.xlane.xlu0 %407
      %v409 = vsel %vm384, %v374, 0.0
      %410 = vadd.xlane.f32.xlu0 %v409
      %v411 = vpop.xlane.xlu0 %410
      %v412 = vsel %vm384, %v375, 0.0
      %413 = vadd.xlane.f32.xlu0 %v412
      %v414 = vpop.xlane.xlu0 %413
      %v415 = vsel %vm384, %v376, 0.0
      %416 = vadd.xlane.f32.xlu0 %v415
      %v417 = vpop.xlane.xlu0 %416
      %v418 = vsel %vm384, %v377, 0.0
      %419 = vadd.xlane.f32.xlu0 %v418
      %v420 = vpop.xlane.xlu0 %419
      %v421 = vsel %vm384, %v378, 0.0
      %422 = vadd.xlane.f32.xlu0 %v421
      %v423 = vpop.xlane.xlu0 %422
      %v424 = vsel %vm384, %v379, 0.0
      %425 = vadd.xlane.f32.xlu0 %v424
      %v426 = vpop.xlane.xlu0 %425
      %v427 = vsel %vm384, %v380, 0.0
      %428 = vadd.xlane.f32.xlu0 %v427
      %v429 = vpop.xlane.xlu0 %428
      %v430 = vsel %vm384, %v381, 0.0
      %431 = vadd.xlane.f32.xlu0 %v430
      %v432 = vpop.xlane.xlu0 %431
      %v433 = vrcp.pop 32.0
      %v434 = vmul.f32 %v387, %v433
      %v435 = vmul.f32 %v390, %v433
      %v436 = vmul.f32 %v393, %v433
      %v437 = vmul.f32 %v396, %v433
      %v438 = vmul.f32 %v399, %v433
      %v439 = vmul.f32 %v402, %v433
      %v440 = vmul.f32 %v405, %v433
      %v441 = vmul.f32 %v408, %v433
      %v442 = vmul.f32 %v411, %v433
      %v443 = vmul.f32 %v414, %v433
      %v444 = vmul.f32 %v417, %v433
      %v445 = vmul.f32 %v420, %v433
      %v446 = vmul.f32 %v423, %v433
      %v447 = vmul.f32 %v426, %v433
      %v448 = vmul.f32 %v429, %v433
      %v449 = vmul.f32 %v432, %v433
      %v450 = vsub.f32 %v366, %v434
      %v451 = vsub.f32 %v367, %v435
      %v452 = vsub.f32 %v368, %v436
      %v453 = vsub.f32 %v369, %v437
      %v454 = vsub.f32 %v370, %v438
      %v455 = vsub.f32 %v371, %v439
      %v456 = vsub.f32 %v372, %v440
      %v457 = vsub.f32 %v373, %v441
      %v458 = vsub.f32 %v374, %v442
      %v459 = vsub.f32 %v375, %v443
      %v460 = vsub.f32 %v376, %v444
      %v461 = vsub.f32 %v377, %v445
      %v462 = vsub.f32 %v378, %v446
      %v463 = vsub.f32 %v379, %v447
      %v464 = vsub.f32 %v380, %v448
      %v465 = vsub.f32 %v381, %v449
      %v466 = vmul.f32 %v450, %v450
      %v467 = vmul.f32 %v451, %v451
      %v468 = vmul.f32 %v452, %v452
      %v469 = vmul.f32 %v453, %v453
      %v470 = vmul.f32 %v454, %v454
      %v471 = vmul.f32 %v455, %v455
      %v472 = vmul.f32 %v456, %v456
      %v473 = vmul.f32 %v457, %v457
      %v474 = vmul.f32 %v458, %v458
      %v475 = vmul.f32 %v459, %v459
      %v476 = vmul.f32 %v460, %v460
      %v477 = vmul.f32 %v461, %v461
      %v478 = vmul.f32 %v462, %v462
      %v479 = vmul.f32 %v463, %v463
      %v480 = vmul.f32 %v464, %v464
      %v481 = vmul.f32 %v465, %v465
      %v482 = vsel %vm384, %v466, 0.0
      %483 = vadd.xlane.f32.xlu0 %v482
      %v484 = vpop.xlane.xlu0 %483
      %v485 = vsel %vm384, %v467, 0.0
      %486 = vadd.xlane.f32.xlu0 %v485
      %v487 = vpop.xlane.xlu0 %486
      %v488 = vsel %vm384, %v468, 0.0
      %489 = vadd.xlane.f32.xlu0 %v488
      %v490 = vpop.xlane.xlu0 %489
      %v491 = vsel %vm384, %v469, 0.0
      %492 = vadd.xlane.f32.xlu0 %v491
      %v493 = vpop.xlane.xlu0 %492
      %v494 = vsel %vm384, %v470, 0.0
      %495 = vadd.xlane.f32.xlu0 %v494
      %v496 = vpop.xlane.xlu0 %495
      %v497 = vsel %vm384, %v471, 0.0
      %498 = vadd.xlane.f32.xlu0 %v497
      %v499 = vpop.xlane.xlu0 %498
      %v500 = vsel %vm384, %v472, 0.0
      %501 = vadd.xlane.f32.xlu0 %v500
      %v502 = vpop.xlane.xlu0 %501
      %v503 = vsel %vm384, %v473, 0.0
      %504 = vadd.xlane.f32.xlu0 %v503
      %v505 = vpop.xlane.xlu0 %504
      %v506 = vsel %vm384, %v474, 0.0
      %507 = vadd.xlane.f32.xlu0 %v506
      %v508 = vpop.xlane.xlu0 %507
      %v509 = vsel %vm384, %v475, 0.0
      %510 = vadd.xlane.f32.xlu0 %v509
      %v511 = vpop.xlane.xlu0 %510
      %v512 = vsel %vm384, %v476, 0.0
      %513 = vadd.xlane.f32.xlu0 %v512
      %v514 = vpop.xlane.xlu0 %513
      %v515 = vsel %vm384, %v477, 0.0
      %516 = vadd.xlane.f32.xlu0 %v515
      %v517 = vpop.xlane.xlu0 %516
      %v518 = vsel %vm384, %v478, 0.0
      %519 = vadd.xlane.f32.xlu0 %v518
      %v520 = vpop.xlane.xlu0 %519
      %v521 = vsel %vm384, %v479, 0.0
      %522 = vadd.xlane.f32.xlu0 %v521
      %v523 = vpop.xlane.xlu0 %522
      %v524 = vsel %vm384, %v480, 0.0
      %525 = vadd.xlane.f32.xlu0 %v524
      %v526 = vpop.xlane.xlu0 %525
      %v527 = vsel %vm384, %v481, 0.0
      %528 = vadd.xlane.f32.xlu0 %v527
      %v529 = vpop.xlane.xlu0 %528
      %v530 = vmul.f32 %v484, %v433
      %v531 = vmul.f32 %v487, %v433
      %v532 = vmul.f32 %v490, %v433
      %v533 = vmul.f32 %v493, %v433
      %v534 = vmul.f32 %v496, %v433
      %v535 = vmul.f32 %v499, %v433
      %v536 = vmul.f32 %v502, %v433
      %v537 = vmul.f32 %v505, %v433
      %v538 = vmul.f32 %v508, %v433
      %v539 = vmul.f32 %v511, %v433
      %v540 = vmul.f32 %v514, %v433
      %v541 = vmul.f32 %v517, %v433
      %v542 = vmul.f32 %v520, %v433
      %v543 = vmul.f32 %v523, %v433
      %v544 = vmul.f32 %v526, %v433
      %v545 = vmul.f32 %v529, %v433
      %v546 = vadd.f32 %v530, 1e-05
      %v547 = vadd.f32 %v531, 1e-05
      %v548 = vadd.f32 %v532, 1e-05
      %v549 = vadd.f32 %v533, 1e-05
      %v550 = vadd.f32 %v534, 1e-05
      %v551 = vadd.f32 %v535, 1e-05
      %v552 = vadd.f32 %v536, 1e-05
      %v553 = vadd.f32 %v537, 1e-05
      %v554 = vadd.f32 %v538, 1e-05
      %v555 = vadd.f32 %v539, 1e-05
      %v556 = vadd.f32 %v540, 1e-05
      %v557 = vadd.f32 %v541, 1e-05
      %v558 = vadd.f32 %v542, 1e-05
      %v559 = vadd.f32 %v543, 1e-05
      %v560 = vadd.f32 %v544, 1e-05
      %v561 = vadd.f32 %v545, 1e-05
      %v562 = vrsqrt.pop %v546
      %v563 = vrsqrt.pop %v547
      %v564 = vrsqrt.pop %v548
      %v565 = vrsqrt.pop %v549
      %v566 = vrsqrt.pop %v550
      %v567 = vrsqrt.pop %v551
      %v568 = vrsqrt.pop %v552
      %v569 = vrsqrt.pop %v553
      %v570 = vrsqrt.pop %v554
      %v571 = vrsqrt.pop %v555
      %v572 = vrsqrt.pop %v556
      %v573 = vrsqrt.pop %v557
      %v574 = vrsqrt.pop %v558
      %v575 = vrsqrt.pop %v559
      %v576 = vrsqrt.pop %v560
      %v577 = vrsqrt.pop %v561
      %v578 = vmul.f32 %v450, %v562
      %v579 = vmul.f32 %v451, %v563
      %v580 = vmul.f32 %v452, %v564
      %v581 = vmul.f32 %v453, %v565
      %v582 = vmul.f32 %v454, %v566
      %v583 = vmul.f32 %v455, %v567
      %v584 = vmul.f32 %v456, %v568
      %v585 = vmul.f32 %v457, %v569
      %v586 = vmul.f32 %v458, %v570
      %v587 = vmul.f32 %v459, %v571
      %v588 = vmul.f32 %v460, %v572
      %v589 = vmul.f32 %v461, %v573
      %v590 = vmul.f32 %v462, %v574
      %v591 = vmul.f32 %v463, %v575
      %v592 = vmul.f32 %v464, %v576
      %v593 = vmul.f32 %v465, %v577
      %v595 = vlaneseq
      %v596 = vshrl.u32 %v595, 7
      %v597 = vsub.s32 0, %v596
      %v598 = vrot.slane %v382, %v597
      %v600 = vmul.f32 %v578, %v598
      %v601 = vmul.f32 %v579, %v598
      %v602 = vmul.f32 %v580, %v598
      %v603 = vmul.f32 %v581, %v598
      %v604 = vmul.f32 %v582, %v598
      %v605 = vmul.f32 %v583, %v598
      %v606 = vmul.f32 %v584, %v598
      %v607 = vmul.f32 %v585, %v598
      %v608 = vmul.f32 %v586, %v598
      %v609 = vmul.f32 %v587, %v598
      %v610 = vmul.f32 %v588, %v598
      %v611 = vmul.f32 %v589, %v598
      %v612 = vmul.f32 %v590, %v598
      %v613 = vmul.f32 %v591, %v598
      %v614 = vmul.f32 %v592, %v598
      %v615 = vmul.f32 %v593, %v598
      %v617 = vlaneseq
      %v618 = vshrl.u32 %v617, 7
      %v619 = vsub.s32 0, %v618
      %v620 = vrot.slane %v383, %v619
      %v622 = vadd.f32 %v600, %v620
      %v623 = vadd.f32 %v601, %v620
      %v624 = vadd.f32 %v602, %v620
      %v625 = vadd.f32 %v603, %v620
      %v626 = vadd.f32 %v604, %v620
      %v627 = vadd.f32 %v605, %v620
      %v628 = vadd.f32 %v606, %v620
      %v629 = vadd.f32 %v607, %v620
      %v630 = vadd.f32 %v608, %v620
      %v631 = vadd.f32 %v609, %v620
      %v632 = vadd.f32 %v610, %v620
      %v633 = vadd.f32 %v611, %v620
      %v634 = vadd.f32 %v612, %v620
      %v635 = vadd.f32 %v613, %v620
      %v636 = vadd.f32 %v614, %v620
      %v637 = vadd.f32 %v615, %v620
      %v638 = vpack.c.bf16 %v623, %v622
      %v639 = vpack.c.bf16 %v625, %v624
      %v640 = vpack.c.bf16 %v627, %v626
      %v641 = vpack.c.bf16 %v629, %v628
      %v642 = vpack.c.bf16 %v631, %v630
      %v643 = vpack.c.bf16 %v633, %v632
      %v644 = vpack.c.bf16 %v635, %v634
      %v645 = vpack.c.bf16 %v637, %v636
      %v646 = vld [vmem:[%s3] sm:$0xf]
      %v647 = vld [vmem:[%s3 + $0x4] sm:$0xf]
      %v648 = vld [vmem:[%s3 + $0x8] sm:$0xf]
      %v649 = vld [vmem:[%s3 + $0xc] sm:$0xf]
      %v654 = vunpack.c.l.b16 %v646
      %v655 = vunpack.c.l.b16 %v647
      %v656 = vunpack.c.l.b16 %v648
      %v657 = vunpack.c.l.b16 %v649
      %v658 = vpack.c.b16 %v655, %v654
      %v659 = vpack.c.b16 %v657, %v656
      %v663 = vsel %vm384, %v638, 0
      %v666 = vsel %vm384, %v639, 0
      %v669 = vsel %vm384, %v640, 0
      %v672 = vsel %vm384, %v641, 0
      %v675 = vsel %vm384, %v642, 0
      %v678 = vsel %vm384, %v643, 0
      %v681 = vsel %vm384, %v644, 0
      %v684 = vsel %vm384, %v645, 0
      %686 = vmatprep.subr.bf16.mxu0 0
      %687 = vmatpush1.bf16.msra.mxu0 %v658
      %688 = vmatprep.subr.bf16.mxu0 0
      %689 = vmatpush1.bf16.msra.mxu0 %v659
      %690 = vmatprep.subr.bf16.mxu0 0
      %691 = vmatpush1.bf16.msra.mxu0 0
      %692 = vmatprep.subr.bf16.mxu0 0
      %693 = vmatpush1.bf16.msra.mxu0 0
      %694 = vmatprep.subr.bf16.mxu0 0
      %695 = vmatpush1.bf16.msra.mxu0 0
      %696 = vmatprep.subr.bf16.mxu0 0
      %697 = vmatpush1.bf16.msra.mxu0 0
      %698 = vmatprep.subr.bf16.mxu0 0
      %699 = vmatpush1.bf16.msra.mxu0 0
      %700 = vmatprep.subr.bf16.mxu0 0
      %701 = vmatpush1.bf16.msra.mxu0 0
      %702 = vmatprep.subr.bf16.mxu0 0
      %703 = vmatpush1.bf16.msra.mxu0 0
      %704 = vmatprep.subr.bf16.mxu0 0
      %705 = vmatpush1.bf16.msra.mxu0 0
      %706 = vmatprep.subr.bf16.mxu0 0
      %707 = vmatpush1.bf16.msra.mxu0 0
      %708 = vmatprep.subr.bf16.mxu0 0
      %709 = vmatpush1.bf16.msra.mxu0 0
      %710 = vmatprep.subr.bf16.mxu0 0
      %711 = vmatpush1.bf16.msra.mxu0 0
      %712 = vmatprep.subr.bf16.mxu0 0
      %713 = vmatpush1.bf16.msra.mxu0 0
      %714 = vmatprep.subr.bf16.mxu0 0
      %715 = vmatpush1.bf16.msra.mxu0 0
      %716 = vmatprep.subr.bf16.mxu0 0
      %717 = vmatpush1.bf16.msra.mxu0 0
      %718 = vmatprep.mubr.bf16.mxu0 0
      %719 = vmatmul.mubr.bf16.gmra.mrb[0].mxu0 %v663
      %v720 = vpop.f32.mrb[0].mxu0
      %v721 = vadd.f32 0.0, %v720
      %v722 = vpop.f32.mrb[0].mxu0
      %v723 = vpop.f32.mrb[0].mxu0
      %v724 = vadd.f32 0.0, %v723
      %v725 = vpop.f32.mrb[0].mxu0
      %726 = vmatprep.mubr.bf16.mxu0 0
      %727 = vmatmul.mubr.bf16.gmra.mrb[0].mxu0 %v666
      %v728 = vpop.f32.mrb[0].mxu0
      %v729 = vadd.f32 0.0, %v728
      %v730 = vpop.f32.mrb[0].mxu0
      %v731 = vpop.f32.mrb[0].mxu0
      %v732 = vadd.f32 0.0, %v731
      %v733 = vpop.f32.mrb[0].mxu0
      %734 = vmatprep.mubr.bf16.mxu0 0
      %735 = vmatmul.mubr.bf16.gmra.mrb[0].mxu0 %v669
      %v736 = vpop.f32.mrb[0].mxu0
      %v737 = vadd.f32 0.0, %v736
      %v738 = vpop.f32.mrb[0].mxu0
      %v739 = vpop.f32.mrb[0].mxu0
      %v740 = vadd.f32 0.0, %v739
      %v741 = vpop.f32.mrb[0].mxu0
      %742 = vmatprep.mubr.bf16.mxu0 0
      %743 = vmatmul.mubr.bf16.gmra.mrb[0].mxu0 %v672
      %v744 = vpop.f32.mrb[0].mxu0
      %v745 = vadd.f32 0.0, %v744
      %v746 = vpop.f32.mrb[0].mxu0
      %v747 = vpop.f32.mrb[0].mxu0
      %v748 = vadd.f32 0.0, %v747
      %v749 = vpop.f32.mrb[0].mxu0
      %750 = vmatprep.mubr.bf16.mxu0 0
      %751 = vmatmul.mubr.bf16.gmra.mrb[0].mxu0 %v675
      %v752 = vpop.f32.mrb[0].mxu0
      %v753 = vadd.f32 0.0, %v752
      %v754 = vpop.f32.mrb[0].mxu0
      %v755 = vpop.f32.mrb[0].mxu0
      %v756 = vadd.f32 0.0, %v755
      %v757 = vpop.f32.mrb[0].mxu0
      %758 = vmatprep.mubr.bf16.mxu0 0
      %759 = vmatmul.mubr.bf16.gmra.mrb[0].mxu0 %v678
      %v760 = vpop.f32.mrb[0].mxu0
      %v761 = vadd.f32 0.0, %v760
      %v762 = vpop.f32.mrb[0].mxu0
      %v763 = vpop.f32.mrb[0].mxu0
      %v764 = vadd.f32 0.0, %v763
      %v765 = vpop.f32.mrb[0].mxu0
      %766 = vmatprep.mubr.bf16.mxu0 0
      %767 = vmatmul.mubr.bf16.gmra.mrb[0].mxu0 %v681
      %v768 = vpop.f32.mrb[0].mxu0
      %v769 = vadd.f32 0.0, %v768
      %v770 = vpop.f32.mrb[0].mxu0
      %v771 = vpop.f32.mrb[0].mxu0
      %v772 = vadd.f32 0.0, %v771
      %v773 = vpop.f32.mrb[0].mxu0
      %774 = vmatprep.mubr.bf16.mxu0 0
      %775 = vmatmul.mubr.bf16.gmra.mrb[0].mxu0 %v684
      %v776 = vpop.f32.mrb[0].mxu0
      %v777 = vadd.f32 0.0, %v776
      %v778 = vpop.f32.mrb[0].mxu0
      %v779 = vpop.f32.mrb[0].mxu0
      %v780 = vadd.f32 0.0, %v779
      %v781 = vpop.f32.mrb[0].mxu0
      %782 = vdwg.mxu0
      %v783 = vld [vmem:[%s4] sm:$0xf]
      %v784 = vld [vmem:[%s4 + $0x4] sm:$0xf]
      %v785 = vld [vmem:[%s4 + $0x8] sm:$0xf]
      %v786 = vld [vmem:[%s4 + $0xc] sm:$0xf]
      %v791 = vunpack.c.l.b16 %v783
      %v792 = vunpack.c.l.b16 %v784
      %v793 = vunpack.c.l.b16 %v785
      %v794 = vunpack.c.l.b16 %v786
      %v795 = vpack.c.b16 %v792, %v791
      %v796 = vpack.c.b16 %v794, %v793
      %799 = vmatprep.subr.bf16.mxu0 0
      %800 = vmatpush1.bf16.msra.mxu0 %v795
      %801 = vmatprep.subr.bf16.mxu0 0
      %802 = vmatpush1.bf16.msra.mxu0 %v796
      %803 = vmatprep.subr.bf16.mxu0 0
      %804 = vmatpush1.bf16.msra.mxu0 0
      %805 = vmatprep.subr.bf16.mxu0 0
      %806 = vmatpush1.bf16.msra.mxu0 0
      %807 = vmatprep.subr.bf16.mxu0 0
      %808 = vmatpush1.bf16.msra.mxu0 0
      %809 = vmatprep.subr.bf16.mxu0 0
      %810 = vmatpush1.bf16.msra.mxu0 0
      %811 = vmatprep.subr.bf16.mxu0 0
      %812 = vmatpush1.bf16.msra.mxu0 0
      %813 = vmatprep.subr.bf16.mxu0 0
      %814 = vmatpush1.bf16.msra.mxu0 0
      %815 = vmatprep.subr.bf16.mxu0 0
      %816 = vmatpush1.bf16.msra.mxu0 0
      %817 = vmatprep.subr.bf16.mxu0 0
      %818 = vmatpush1.bf16.msra.mxu0 0
      %819 = vmatprep.subr.bf16.mxu0 0
      %820 = vmatpush1.bf16.msra.mxu0 0
      %821 = vmatprep.subr.bf16.mxu0 0
      %822 = vmatpush1.bf16.msra.mxu0 0
      %823 = vmatprep.subr.bf16.mxu0 0
      %824 = vmatpush1.bf16.msra.mxu0 0
      %825 = vmatprep.subr.bf16.mxu0 0
      %826 = vmatpush1.bf16.msra.mxu0 0
      %827 = vmatprep.subr.bf16.mxu0 0
      %828 = vmatpush1.bf16.msra.mxu0 0
      %829 = vmatprep.subr.bf16.mxu0 0
      %830 = vmatpush1.bf16.msra.mxu0 0
      %831 = vmatprep.mubr.bf16.mxu0 0
      %832 = vmatmul.mubr.bf16.gmra.mrb[0].mxu0 %v663
      %v833 = vpop.f32.mrb[0].mxu0
      %v834 = vadd.f32 0.0, %v833
      %v835 = vpop.f32.mrb[0].mxu0
      %v836 = vpop.f32.mrb[0].mxu0
      %v837 = vadd.f32 0.0, %v836
      %v838 = vpop.f32.mrb[0].mxu0
      %839 = vmatprep.mubr.bf16.mxu0 0
      %840 = vmatmul.mubr.bf16.gmra.mrb[0].mxu0 %v666
      %v841 = vpop.f32.mrb[0].mxu0
      %v842 = vadd.f32 0.0, %v841
      %v843 = vpop.f32.mrb[0].mxu0
      %v844 = vpop.f32.mrb[0].mxu0
      %v845 = vadd.f32 0.0, %v844
      %v846 = vpop.f32.mrb[0].mxu0
      %847 = vmatprep.mubr.bf16.mxu0 0
      %848 = vmatmul.mubr.bf16.gmra.mrb[0].mxu0 %v669
      %v849 = vpop.f32.mrb[0].mxu0
      %v850 = vadd.f32 0.0, %v849
      %v851 = vpop.f32.mrb[0].mxu0
      %v852 = vpop.f32.mrb[0].mxu0
      %v853 = vadd.f32 0.0, %v852
      %v854 = vpop.f32.mrb[0].mxu0
      %855 = vmatprep.mubr.bf16.mxu0 0
      %856 = vmatmul.mubr.bf16.gmra.mrb[0].mxu0 %v672
      %v857 = vpop.f32.mrb[0].mxu0
      %v858 = vadd.f32 0.0, %v857
      %v859 = vpop.f32.mrb[0].mxu0
      %v860 = vpop.f32.mrb[0].mxu0
      %v861 = vadd.f32 0.0, %v860
      %v862 = vpop.f32.mrb[0].mxu0
      %863 = vmatprep.mubr.bf16.mxu0 0
      %864 = vmatmul.mubr.bf16.gmra.mrb[0].mxu0 %v675
      %v865 = vpop.f32.mrb[0].mxu0
      %v866 = vadd.f32 0.0, %v865
      %v867 = vpop.f32.mrb[0].mxu0
      %v868 = vpop.f32.mrb[0].mxu0
      %v869 = vadd.f32 0.0, %v868
      %v870 = vpop.f32.mrb[0].mxu0
      %871 = vmatprep.mubr.bf16.mxu0 0
      %872 = vmatmul.mubr.bf16.gmra.mrb[0].mxu0 %v678
      %v873 = vpop.f32.mrb[0].mxu0
      %v874 = vadd.f32 0.0, %v873
      %v875 = vpop.f32.mrb[0].mxu0
      %v876 = vpop.f32.mrb[0].mxu0
      %v877 = vadd.f32 0.0, %v876
      %v878 = vpop.f32.mrb[0].mxu0
      %879 = vmatprep.mubr.bf16.mxu0 0
      %880 = vmatmul.mubr.bf16.gmra.mrb[0].mxu0 %v681
      %v881 = vpop.f32.mrb[0].mxu0
      %v882 = vadd.f32 0.0, %v881
      %v883 = vpop.f32.mrb[0].mxu0
      %v884 = vpop.f32.mrb[0].mxu0
      %v885 = vadd.f32 0.0, %v884
      %v886 = vpop.f32.mrb[0].mxu0
      %887 = vmatprep.mubr.bf16.mxu0 0
      %888 = vmatmul.mubr.bf16.gmra.mrb[0].mxu0 %v684
      %v889 = vpop.f32.mrb[0].mxu0
      %v890 = vadd.f32 0.0, %v889
      %v891 = vpop.f32.mrb[0].mxu0
      %v892 = vpop.f32.mrb[0].mxu0
      %v893 = vadd.f32 0.0, %v892
      %v894 = vpop.f32.mrb[0].mxu0
      %895 = vdwg.mxu0
      %912 = vrot.lane.b32.xlu0 %v721, 120
      %v913 = vpop.permute.xlu0 %912
      %914 = vrot.lane.b32.xlu0 %v724, 120
      %v915 = vpop.permute.xlu0 %914
      %916 = vrot.lane.b32.xlu0 %v729, 120
      %v917 = vpop.permute.xlu0 %916
      %918 = vrot.lane.b32.xlu0 %v732, 120
      %v919 = vpop.permute.xlu0 %918
      %920 = vrot.lane.b32.xlu0 %v737, 120
      %v921 = vpop.permute.xlu0 %920
      %922 = vrot.lane.b32.xlu0 %v740, 120
      %v923 = vpop.permute.xlu0 %922
      %924 = vrot.lane.b32.xlu0 %v745, 120
      %v925 = vpop.permute.xlu0 %924
      %926 = vrot.lane.b32.xlu0 %v748, 120
      %v927 = vpop.permute.xlu0 %926
      %928 = vrot.lane.b32.xlu0 %v753, 120
      %v929 = vpop.permute.xlu0 %928
      %930 = vrot.lane.b32.xlu0 %v756, 120
      %v931 = vpop.permute.xlu0 %930
      %932 = vrot.lane.b32.xlu0 %v761, 120
      %v933 = vpop.permute.xlu0 %932
      %934 = vrot.lane.b32.xlu0 %v764, 120
      %v935 = vpop.permute.xlu0 %934
      %936 = vrot.lane.b32.xlu0 %v769, 120
      %v937 = vpop.permute.xlu0 %936
      %938 = vrot.lane.b32.xlu0 %v772, 120
      %v939 = vpop.permute.xlu0 %938
      %940 = vrot.lane.b32.xlu0 %v777, 120
      %v941 = vpop.permute.xlu0 %940
      %942 = vrot.lane.b32.xlu0 %v780, 120
      %v943 = vpop.permute.xlu0 %942
      %960 = vrot.lane.b32.xlu0 %v721, 112
      %v961 = vpop.permute.xlu0 %960
      %962 = vrot.lane.b32.xlu0 %v724, 112
      %v963 = vpop.permute.xlu0 %962
      %964 = vrot.lane.b32.xlu0 %v729, 112
      %v965 = vpop.permute.xlu0 %964
      %966 = vrot.lane.b32.xlu0 %v732, 112
      %v967 = vpop.permute.xlu0 %966
      %968 = vrot.lane.b32.xlu0 %v737, 112
      %v969 = vpop.permute.xlu0 %968
      %970 = vrot.lane.b32.xlu0 %v740, 112
      %v971 = vpop.permute.xlu0 %970
      %972 = vrot.lane.b32.xlu0 %v745, 112
      %v973 = vpop.permute.xlu0 %972
      %974 = vrot.lane.b32.xlu0 %v748, 112
      %v975 = vpop.permute.xlu0 %974
      %976 = vrot.lane.b32.xlu0 %v753, 112
      %v977 = vpop.permute.xlu0 %976
      %978 = vrot.lane.b32.xlu0 %v756, 112
      %v979 = vpop.permute.xlu0 %978
      %980 = vrot.lane.b32.xlu0 %v761, 112
      %v981 = vpop.permute.xlu0 %980
      %982 = vrot.lane.b32.xlu0 %v764, 112
      %v983 = vpop.permute.xlu0 %982
      %984 = vrot.lane.b32.xlu0 %v769, 112
      %v985 = vpop.permute.xlu0 %984
      %986 = vrot.lane.b32.xlu0 %v772, 112
      %v987 = vpop.permute.xlu0 %986
      %988 = vrot.lane.b32.xlu0 %v777, 112
      %v989 = vpop.permute.xlu0 %988
      %990 = vrot.lane.b32.xlu0 %v780, 112
      %v991 = vpop.permute.xlu0 %990
      %1008 = vrot.lane.b32.xlu0 %v721, 104
      %v1009 = vpop.permute.xlu0 %1008
      %1010 = vrot.lane.b32.xlu0 %v724, 104
      %v1011 = vpop.permute.xlu0 %1010
      %1012 = vrot.lane.b32.xlu0 %v729, 104
      %v1013 = vpop.permute.xlu0 %1012
      %1014 = vrot.lane.b32.xlu0 %v732, 104
      %v1015 = vpop.permute.xlu0 %1014
      %1016 = vrot.lane.b32.xlu0 %v737, 104
      %v1017 = vpop.permute.xlu0 %1016
      %1018 = vrot.lane.b32.xlu0 %v740, 104
      %v1019 = vpop.permute.xlu0 %1018
      %1020 = vrot.lane.b32.xlu0 %v745, 104
      %v1021 = vpop.permute.xlu0 %1020
      %1022 = vrot.lane.b32.xlu0 %v748, 104
      %v1023 = vpop.permute.xlu0 %1022
      %1024 = vrot.lane.b32.xlu0 %v753, 104
      %v1025 = vpop.permute.xlu0 %1024
      %1026 = vrot.lane.b32.xlu0 %v756, 104
      %v1027 = vpop.permute.xlu0 %1026
      %1028 = vrot.lane.b32.xlu0 %v761, 104
      %v1029 = vpop.permute.xlu0 %1028
      %1030 = vrot.lane.b32.xlu0 %v764, 104
      %v1031 = vpop.permute.xlu0 %1030
      %1032 = vrot.lane.b32.xlu0 %v769, 104
      %v1033 = vpop.permute.xlu0 %1032
      %1034 = vrot.lane.b32.xlu0 %v772, 104
      %v1035 = vpop.permute.xlu0 %1034
      %1036 = vrot.lane.b32.xlu0 %v777, 104
      %v1037 = vpop.permute.xlu0 %1036
      %1038 = vrot.lane.b32.xlu0 %v780, 104
      %v1039 = vpop.permute.xlu0 %1038
      %v1056 = vcombine.low %v721, %v961
      %v1057 = vcombine.high %v721, %v961
      %v1059 = vunpack.c.l.s4 1983009808
      %v1060 = vunpack.c.0.s8 %v1059
      %v1061 = vlaneseq
      %v1062 = vshrl.u32 %v1061, 7
      %v1063 = vsub.s32 %v1060, %v1062
      %v1064 = vrot.slane %v1056, %v1063
      %v1066 = vunpack.c.l.s4 1983009808
      %v1067 = vunpack.c.0.s8 %v1066
      %v1068 = vlaneseq
      %v1069 = vshrl.u32 %v1068, 7
      %v1070 = vsub.s32 %v1067, %v1069
      %v1071 = vrot.slane %v1057, %v1070
      %v1072 = vcombine.low %v913, %v1009
      %v1073 = vcombine.high %v913, %v1009
      %v1075 = vunpack.c.l.s4 1983009808
      %v1076 = vunpack.c.0.s8 %v1075
      %v1077 = vlaneseq
      %v1078 = vshrl.u32 %v1077, 7
      %v1079 = vsub.s32 %v1076, %v1078
      %v1080 = vrot.slane %v1072, %v1079
      %v1082 = vunpack.c.l.s4 1983009808
      %v1083 = vunpack.c.0.s8 %v1082
      %v1084 = vlaneseq
      %v1085 = vshrl.u32 %v1084, 7
      %v1086 = vsub.s32 %v1083, %v1085
      %v1087 = vrot.slane %v1073, %v1086
      %v1088 = vcombine.low %v1064, %v1080
      %v1089 = vcombine.high %v1064, %v1080
      %v1091 = vunpack.c.l.s4 1934713408
      %v1092 = vunpack.c.0.s8 %v1091
      %v1093 = vlaneseq
      %v1094 = vshrl.u32 %v1093, 7
      %v1095 = vsub.s32 %v1092, %v1094
      %v1096 = vrot.slane %v1088, %v1095
      %v1098 = vunpack.c.l.s4 1934713408
      %v1099 = vunpack.c.0.s8 %v1098
      %v1100 = vlaneseq
      %v1101 = vshrl.u32 %v1100, 7
      %v1102 = vsub.s32 %v1099, %v1101
      %v1103 = vrot.slane %v1089, %v1102
      %v1104 = vcombine.low %v1071, %v1087
      %v1105 = vcombine.high %v1071, %v1087
      %v1107 = vunpack.c.l.s4 1934713408
      %v1108 = vunpack.c.0.s8 %v1107
      %v1109 = vlaneseq
      %v1110 = vshrl.u32 %v1109, 7
      %v1111 = vsub.s32 %v1108, %v1110
      %v1112 = vrot.slane %v1104, %v1111
      %v1114 = vunpack.c.l.s4 1934713408
      %v1115 = vunpack.c.0.s8 %v1114
      %v1116 = vlaneseq
      %v1117 = vshrl.u32 %v1116, 7
      %v1118 = vsub.s32 %v1115, %v1117
      %v1119 = vrot.slane %v1105, %v1118
      %v1120 = vcombine.high %v1096, 0.0
      %v1121 = vcombine.high %v1103, 0.0
      %v1122 = vcombine.high %v1112, 0.0
      %v1123 = vcombine.high %v1119, 0.0
      %v1124 = vcombine.low %v724, %v963
      %v1125 = vcombine.high %v724, %v963
      %v1127 = vunpack.c.l.s4 1983009808
      %v1128 = vunpack.c.0.s8 %v1127
      %v1129 = vlaneseq
      %v1130 = vshrl.u32 %v1129, 7
      %v1131 = vsub.s32 %v1128, %v1130
      %v1132 = vrot.slane %v1124, %v1131
      %v1134 = vunpack.c.l.s4 1983009808
      %v1135 = vunpack.c.0.s8 %v1134
      %v1136 = vlaneseq
      %v1137 = vshrl.u32 %v1136, 7
      %v1138 = vsub.s32 %v1135, %v1137
      %v1139 = vrot.slane %v1125, %v1138
      %v1140 = vcombine.low %v915, %v1011
      %v1141 = vcombine.high %v915, %v1011
      %v1143 = vunpack.c.l.s4 1983009808
      %v1144 = vunpack.c.0.s8 %v1143
      %v1145 = vlaneseq
      %v1146 = vshrl.u32 %v1145, 7
      %v1147 = vsub.s32 %v1144, %v1146
      %v1148 = vrot.slane %v1140, %v1147
      %v1150 = vunpack.c.l.s4 1983009808
      %v1151 = vunpack.c.0.s8 %v1150
      %v1152 = vlaneseq
      %v1153 = vshrl.u32 %v1152, 7
      %v1154 = vsub.s32 %v1151, %v1153
      %v1155 = vrot.slane %v1141, %v1154
      %v1156 = vcombine.low %v1132, %v1148
      %v1157 = vcombine.high %v1132, %v1148
      %v1159 = vunpack.c.l.s4 1934713408
      %v1160 = vunpack.c.0.s8 %v1159
      %v1161 = vlaneseq
      %v1162 = vshrl.u32 %v1161, 7
      %v1163 = vsub.s32 %v1160, %v1162
      %v1164 = vrot.slane %v1156, %v1163
      %v1166 = vunpack.c.l.s4 1934713408
      %v1167 = vunpack.c.0.s8 %v1166
      %v1168 = vlaneseq
      %v1169 = vshrl.u32 %v1168, 7
      %v1170 = vsub.s32 %v1167, %v1169
      %v1171 = vrot.slane %v1157, %v1170
      %v1172 = vcombine.low %v1139, %v1155
      %v1173 = vcombine.high %v1139, %v1155
      %v1175 = vunpack.c.l.s4 1934713408
      %v1176 = vunpack.c.0.s8 %v1175
      %v1177 = vlaneseq
      %v1178 = vshrl.u32 %v1177, 7
      %v1179 = vsub.s32 %v1176, %v1178
      %v1180 = vrot.slane %v1172, %v1179
      %v1182 = vunpack.c.l.s4 1934713408
      %v1183 = vunpack.c.0.s8 %v1182
      %v1184 = vlaneseq
      %v1185 = vshrl.u32 %v1184, 7
      %v1186 = vsub.s32 %v1183, %v1185
      %v1187 = vrot.slane %v1173, %v1186
      %v1188 = vcombine.high %v1164, 0.0
      %v1189 = vcombine.high %v1171, 0.0
      %v1190 = vcombine.high %v1180, 0.0
      %v1191 = vcombine.high %v1187, 0.0
      %v1192 = vcombine.low %v729, %v965
      %v1193 = vcombine.high %v729, %v965
      %v1195 = vunpack.c.l.s4 1983009808
      %v1196 = vunpack.c.0.s8 %v1195
      %v1197 = vlaneseq
      %v1198 = vshrl.u32 %v1197, 7
      %v1199 = vsub.s32 %v1196, %v1198
      %v1200 = vrot.slane %v1192, %v1199
      %v1202 = vunpack.c.l.s4 1983009808
      %v1203 = vunpack.c.0.s8 %v1202
      %v1204 = vlaneseq
      %v1205 = vshrl.u32 %v1204, 7
      %v1206 = vsub.s32 %v1203, %v1205
      %v1207 = vrot.slane %v1193, %v1206
      %v1208 = vcombine.low %v917, %v1013
      %v1209 = vcombine.high %v917, %v1013
      %v1211 = vunpack.c.l.s4 1983009808
      %v1212 = vunpack.c.0.s8 %v1211
      %v1213 = vlaneseq
      %v1214 = vshrl.u32 %v1213, 7
      %v1215 = vsub.s32 %v1212, %v1214
      %v1216 = vrot.slane %v1208, %v1215
      %v1218 = vunpack.c.l.s4 1983009808
      %v1219 = vunpack.c.0.s8 %v1218
      %v1220 = vlaneseq
      %v1221 = vshrl.u32 %v1220, 7
      %v1222 = vsub.s32 %v1219, %v1221
      %v1223 = vrot.slane %v1209, %v1222
      %v1224 = vcombine.low %v1200, %v1216
      %v1225 = vcombine.high %v1200, %v1216
      %v1227 = vunpack.c.l.s4 1934713408
      %v1228 = vunpack.c.0.s8 %v1227
      %v1229 = vlaneseq
      %v1230 = vshrl.u32 %v1229, 7
      %v1231 = vsub.s32 %v1228, %v1230
      %v1232 = vrot.slane %v1224, %v1231
      %v1234 = vunpack.c.l.s4 1934713408
      %v1235 = vunpack.c.0.s8 %v1234
      %v1236 = vlaneseq
      %v1237 = vshrl.u32 %v1236, 7
      %v1238 = vsub.s32 %v1235, %v1237
      %v1239 = vrot.slane %v1225, %v1238
      %v1240 = vcombine.low %v1207, %v1223
      %v1241 = vcombine.high %v1207, %v1223
      %v1243 = vunpack.c.l.s4 1934713408
      %v1244 = vunpack.c.0.s8 %v1243
      %v1245 = vlaneseq
      %v1246 = vshrl.u32 %v1245, 7
      %v1247 = vsub.s32 %v1244, %v1246
      %v1248 = vrot.slane %v1240, %v1247
      %v1250 = vunpack.c.l.s4 1934713408
      %v1251 = vunpack.c.0.s8 %v1250
      %v1252 = vlaneseq
      %v1253 = vshrl.u32 %v1252, 7
      %v1254 = vsub.s32 %v1251, %v1253
      %v1255 = vrot.slane %v1241, %v1254
      %v1256 = vcombine.high %v1232, 0.0
      %v1257 = vcombine.high %v1239, 0.0
      %v1258 = vcombine.high %v1248, 0.0
      %v1259 = vcombine.high %v1255, 0.0
      %v1260 = vcombine.low %v732, %v967
      %v1261 = vcombine.high %v732, %v967
      %v1263 = vunpack.c.l.s4 1983009808
      %v1264 = vunpack.c.0.s8 %v1263
      %v1265 = vlaneseq
      %v1266 = vshrl.u32 %v1265, 7
      %v1267 = vsub.s32 %v1264, %v1266
      %v1268 = vrot.slane %v1260, %v1267
      %v1270 = vunpack.c.l.s4 1983009808
      %v1271 = vunpack.c.0.s8 %v1270
      %v1272 = vlaneseq
      %v1273 = vshrl.u32 %v1272, 7
      %v1274 = vsub.s32 %v1271, %v1273
      %v1275 = vrot.slane %v1261, %v1274
      %v1276 = vcombine.low %v919, %v1015
      %v1277 = vcombine.high %v919, %v1015
      %v1279 = vunpack.c.l.s4 1983009808
      %v1280 = vunpack.c.0.s8 %v1279
      %v1281 = vlaneseq
      %v1282 = vshrl.u32 %v1281, 7
      %v1283 = vsub.s32 %v1280, %v1282
      %v1284 = vrot.slane %v1276, %v1283
      %v1286 = vunpack.c.l.s4 1983009808
      %v1287 = vunpack.c.0.s8 %v1286
      %v1288 = vlaneseq
      %v1289 = vshrl.u32 %v1288, 7
      %v1290 = vsub.s32 %v1287, %v1289
      %v1291 = vrot.slane %v1277, %v1290
      %v1292 = vcombine.low %v1268, %v1284
      %v1293 = vcombine.high %v1268, %v1284
      %v1295 = vunpack.c.l.s4 1934713408
      %v1296 = vunpack.c.0.s8 %v1295
      %v1297 = vlaneseq
      %v1298 = vshrl.u32 %v1297, 7
      %v1299 = vsub.s32 %v1296, %v1298
      %v1300 = vrot.slane %v1292, %v1299
      %v1302 = vunpack.c.l.s4 1934713408
      %v1303 = vunpack.c.0.s8 %v1302
      %v1304 = vlaneseq
      %v1305 = vshrl.u32 %v1304, 7
      %v1306 = vsub.s32 %v1303, %v1305
      %v1307 = vrot.slane %v1293, %v1306
      %v1308 = vcombine.low %v1275, %v1291
      %v1309 = vcombine.high %v1275, %v1291
      %v1311 = vunpack.c.l.s4 1934713408
      %v1312 = vunpack.c.0.s8 %v1311
      %v1313 = vlaneseq
      %v1314 = vshrl.u32 %v1313, 7
      %v1315 = vsub.s32 %v1312, %v1314
      %v1316 = vrot.slane %v1308, %v1315
      %v1318 = vunpack.c.l.s4 1934713408
      %v1319 = vunpack.c.0.s8 %v1318
      %v1320 = vlaneseq
      %v1321 = vshrl.u32 %v1320, 7
      %v1322 = vsub.s32 %v1319, %v1321
      %v1323 = vrot.slane %v1309, %v1322
      %v1324 = vcombine.high %v1300, 0.0
      %v1325 = vcombine.high %v1307, 0.0
      %v1326 = vcombine.high %v1316, 0.0
      %v1327 = vcombine.high %v1323, 0.0
      %v1328 = vcombine.low %v737, %v969
      %v1329 = vcombine.high %v737, %v969
      %v1331 = vunpack.c.l.s4 1983009808
      %v1332 = vunpack.c.0.s8 %v1331
      %v1333 = vlaneseq
      %v1334 = vshrl.u32 %v1333, 7
      %v1335 = vsub.s32 %v1332, %v1334
      %v1336 = vrot.slane %v1328, %v1335
      %v1338 = vunpack.c.l.s4 1983009808
      %v1339 = vunpack.c.0.s8 %v1338
      %v1340 = vlaneseq
      %v1341 = vshrl.u32 %v1340, 7
      %v1342 = vsub.s32 %v1339, %v1341
      %v1343 = vrot.slane %v1329, %v1342
      %v1344 = vcombine.low %v921, %v1017
      %v1345 = vcombine.high %v921, %v1017
      %v1347 = vunpack.c.l.s4 1983009808
      %v1348 = vunpack.c.0.s8 %v1347
      %v1349 = vlaneseq
      %v1350 = vshrl.u32 %v1349, 7
      %v1351 = vsub.s32 %v1348, %v1350
      %v1352 = vrot.slane %v1344, %v1351
      %v1354 = vunpack.c.l.s4 1983009808
      %v1355 = vunpack.c.0.s8 %v1354
      %v1356 = vlaneseq
      %v1357 = vshrl.u32 %v1356, 7
      %v1358 = vsub.s32 %v1355, %v1357
      %v1359 = vrot.slane %v1345, %v1358
      %v1360 = vcombine.low %v1336, %v1352
      %v1361 = vcombine.high %v1336, %v1352
      %v1363 = vunpack.c.l.s4 1934713408
      %v1364 = vunpack.c.0.s8 %v1363
      %v1365 = vlaneseq
      %v1366 = vshrl.u32 %v1365, 7
      %v1367 = vsub.s32 %v1364, %v1366
      %v1368 = vrot.slane %v1360, %v1367
      %v1370 = vunpack.c.l.s4 1934713408
      %v1371 = vunpack.c.0.s8 %v1370
      %v1372 = vlaneseq
      %v1373 = vshrl.u32 %v1372, 7
      %v1374 = vsub.s32 %v1371, %v1373
      %v1375 = vrot.slane %v1361, %v1374
      %v1376 = vcombine.low %v1343, %v1359
      %v1377 = vcombine.high %v1343, %v1359
      %v1379 = vunpack.c.l.s4 1934713408
      %v1380 = vunpack.c.0.s8 %v1379
      %v1381 = vlaneseq
      %v1382 = vshrl.u32 %v1381, 7
      %v1383 = vsub.s32 %v1380, %v1382
      %v1384 = vrot.slane %v1376, %v1383
      %v1386 = vunpack.c.l.s4 1934713408
      %v1387 = vunpack.c.0.s8 %v1386
      %v1388 = vlaneseq
      %v1389 = vshrl.u32 %v1388, 7
      %v1390 = vsub.s32 %v1387, %v1389
      %v1391 = vrot.slane %v1377, %v1390
      %v1392 = vcombine.high %v1368, 0.0
      %v1393 = vcombine.high %v1375, 0.0
      %v1394 = vcombine.high %v1384, 0.0
      %v1395 = vcombine.high %v1391, 0.0
      %v1396 = vcombine.low %v740, %v971
      %v1397 = vcombine.high %v740, %v971
      %v1399 = vunpack.c.l.s4 1983009808
      %v1400 = vunpack.c.0.s8 %v1399
      %v1401 = vlaneseq
      %v1402 = vshrl.u32 %v1401, 7
      %v1403 = vsub.s32 %v1400, %v1402
      %v1404 = vrot.slane %v1396, %v1403
      %v1406 = vunpack.c.l.s4 1983009808
      %v1407 = vunpack.c.0.s8 %v1406
      %v1408 = vlaneseq
      %v1409 = vshrl.u32 %v1408, 7
      %v1410 = vsub.s32 %v1407, %v1409
      %v1411 = vrot.slane %v1397, %v1410
      %v1412 = vcombine.low %v923, %v1019
      %v1413 = vcombine.high %v923, %v1019
      %v1415 = vunpack.c.l.s4 1983009808
      %v1416 = vunpack.c.0.s8 %v1415
      %v1417 = vlaneseq
      %v1418 = vshrl.u32 %v1417, 7
      %v1419 = vsub.s32 %v1416, %v1418
      %v1420 = vrot.slane %v1412, %v1419
      %v1422 = vunpack.c.l.s4 1983009808
      %v1423 = vunpack.c.0.s8 %v1422
      %v1424 = vlaneseq
      %v1425 = vshrl.u32 %v1424, 7
      %v1426 = vsub.s32 %v1423, %v1425
      %v1427 = vrot.slane %v1413, %v1426
      %v1428 = vcombine.low %v1404, %v1420
      %v1429 = vcombine.high %v1404, %v1420
      %v1431 = vunpack.c.l.s4 1934713408
      %v1432 = vunpack.c.0.s8 %v1431
      %v1433 = vlaneseq
      %v1434 = vshrl.u32 %v1433, 7
      %v1435 = vsub.s32 %v1432, %v1434
      %v1436 = vrot.slane %v1428, %v1435
      %v1438 = vunpack.c.l.s4 1934713408
      %v1439 = vunpack.c.0.s8 %v1438
      %v1440 = vlaneseq
      %v1441 = vshrl.u32 %v1440, 7
      %v1442 = vsub.s32 %v1439, %v1441
      %v1443 = vrot.slane %v1429, %v1442
      %v1444 = vcombine.low %v1411, %v1427
      %v1445 = vcombine.high %v1411, %v1427
      %v1447 = vunpack.c.l.s4 1934713408
      %v1448 = vunpack.c.0.s8 %v1447
      %v1449 = vlaneseq
      %v1450 = vshrl.u32 %v1449, 7
      %v1451 = vsub.s32 %v1448, %v1450
      %v1452 = vrot.slane %v1444, %v1451
      %v1454 = vunpack.c.l.s4 1934713408
      %v1455 = vunpack.c.0.s8 %v1454
      %v1456 = vlaneseq
      %v1457 = vshrl.u32 %v1456, 7
      %v1458 = vsub.s32 %v1455, %v1457
      %v1459 = vrot.slane %v1445, %v1458
      %v1460 = vcombine.high %v1436, 0.0
      %v1461 = vcombine.high %v1443, 0.0
      %v1462 = vcombine.high %v1452, 0.0
      %v1463 = vcombine.high %v1459, 0.0
      %v1464 = vcombine.low %v745, %v973
      %v1465 = vcombine.high %v745, %v973
      %v1467 = vunpack.c.l.s4 1983009808
      %v1468 = vunpack.c.0.s8 %v1467
      %v1469 = vlaneseq
      %v1470 = vshrl.u32 %v1469, 7
      %v1471 = vsub.s32 %v1468, %v1470
      %v1472 = vrot.slane %v1464, %v1471
      %v1474 = vunpack.c.l.s4 1983009808
      %v1475 = vunpack.c.0.s8 %v1474
      %v1476 = vlaneseq
      %v1477 = vshrl.u32 %v1476, 7
      %v1478 = vsub.s32 %v1475, %v1477
      %v1479 = vrot.slane %v1465, %v1478
      %v1480 = vcombine.low %v925, %v1021
      %v1481 = vcombine.high %v925, %v1021
      %v1483 = vunpack.c.l.s4 1983009808
      %v1484 = vunpack.c.0.s8 %v1483
      %v1485 = vlaneseq
      %v1486 = vshrl.u32 %v1485, 7
      %v1487 = vsub.s32 %v1484, %v1486
      %v1488 = vrot.slane %v1480, %v1487
      %v1490 = vunpack.c.l.s4 1983009808
      %v1491 = vunpack.c.0.s8 %v1490
      %v1492 = vlaneseq
      %v1493 = vshrl.u32 %v1492, 7
      %v1494 = vsub.s32 %v1491, %v1493
      %v1495 = vrot.slane %v1481, %v1494
      %v1496 = vcombine.low %v1472, %v1488
      %v1497 = vcombine.high %v1472, %v1488
      %v1499 = vunpack.c.l.s4 1934713408
      %v1500 = vunpack.c.0.s8 %v1499
      %v1501 = vlaneseq
      %v1502 = vshrl.u32 %v1501, 7
      %v1503 = vsub.s32 %v1500, %v1502
      %v1504 = vrot.slane %v1496, %v1503
      %v1506 = vunpack.c.l.s4 1934713408
      %v1507 = vunpack.c.0.s8 %v1506
      %v1508 = vlaneseq
      %v1509 = vshrl.u32 %v1508, 7
      %v1510 = vsub.s32 %v1507, %v1509
      %v1511 = vrot.slane %v1497, %v1510
      %v1512 = vcombine.low %v1479, %v1495
      %v1513 = vcombine.high %v1479, %v1495
      %v1515 = vunpack.c.l.s4 1934713408
      %v1516 = vunpack.c.0.s8 %v1515
      %v1517 = vlaneseq
      %v1518 = vshrl.u32 %v1517, 7
      %v1519 = vsub.s32 %v1516, %v1518
      %v1520 = vrot.slane %v1512, %v1519
      %v1522 = vunpack.c.l.s4 1934713408
      %v1523 = vunpack.c.0.s8 %v1522
      %v1524 = vlaneseq
      %v1525 = vshrl.u32 %v1524, 7
      %v1526 = vsub.s32 %v1523, %v1525
      %v1527 = vrot.slane %v1513, %v1526
      %v1528 = vcombine.high %v1504, 0.0
      %v1529 = vcombine.high %v1511, 0.0
      %v1530 = vcombine.high %v1520, 0.0
      %v1531 = vcombine.high %v1527, 0.0
      %v1532 = vcombine.low %v748, %v975
      %v1533 = vcombine.high %v748, %v975
      %v1535 = vunpack.c.l.s4 1983009808
      %v1536 = vunpack.c.0.s8 %v1535
      %v1537 = vlaneseq
      %v1538 = vshrl.u32 %v1537, 7
      %v1539 = vsub.s32 %v1536, %v1538
      %v1540 = vrot.slane %v1532, %v1539
      %v1542 = vunpack.c.l.s4 1983009808
      %v1543 = vunpack.c.0.s8 %v1542
      %v1544 = vlaneseq
      %v1545 = vshrl.u32 %v1544, 7
      %v1546 = vsub.s32 %v1543, %v1545
      %v1547 = vrot.slane %v1533, %v1546
      %v1548 = vcombine.low %v927, %v1023
      %v1549 = vcombine.high %v927, %v1023
      %v1551 = vunpack.c.l.s4 1983009808
      %v1552 = vunpack.c.0.s8 %v1551
      %v1553 = vlaneseq
      %v1554 = vshrl.u32 %v1553, 7
      %v1555 = vsub.s32 %v1552, %v1554
      %v1556 = vrot.slane %v1548, %v1555
      %v1558 = vunpack.c.l.s4 1983009808
      %v1559 = vunpack.c.0.s8 %v1558
      %v1560 = vlaneseq
      %v1561 = vshrl.u32 %v1560, 7
      %v1562 = vsub.s32 %v1559, %v1561
      %v1563 = vrot.slane %v1549, %v1562
      %v1564 = vcombine.low %v1540, %v1556
      %v1565 = vcombine.high %v1540, %v1556
      %v1567 = vunpack.c.l.s4 1934713408
      %v1568 = vunpack.c.0.s8 %v1567
      %v1569 = vlaneseq
      %v1570 = vshrl.u32 %v1569, 7
      %v1571 = vsub.s32 %v1568, %v1570
      %v1572 = vrot.slane %v1564, %v1571
      %v1574 = vunpack.c.l.s4 1934713408
      %v1575 = vunpack.c.0.s8 %v1574
      %v1576 = vlaneseq
      %v1577 = vshrl.u32 %v1576, 7
      %v1578 = vsub.s32 %v1575, %v1577
      %v1579 = vrot.slane %v1565, %v1578
      %v1580 = vcombine.low %v1547, %v1563
      %v1581 = vcombine.high %v1547, %v1563
      %v1583 = vunpack.c.l.s4 1934713408
      %v1584 = vunpack.c.0.s8 %v1583
      %v1585 = vlaneseq
      %v1586 = vshrl.u32 %v1585, 7
      %v1587 = vsub.s32 %v1584, %v1586
      %v1588 = vrot.slane %v1580, %v1587
      %v1590 = vunpack.c.l.s4 1934713408
      %v1591 = vunpack.c.0.s8 %v1590
      %v1592 = vlaneseq
      %v1593 = vshrl.u32 %v1592, 7
      %v1594 = vsub.s32 %v1591, %v1593
      %v1595 = vrot.slane %v1581, %v1594
      %v1596 = vcombine.high %v1572, 0.0
      %v1597 = vcombine.high %v1579, 0.0
      %v1598 = vcombine.high %v1588, 0.0
      %v1599 = vcombine.high %v1595, 0.0
      %v1600 = vcombine.low %v753, %v977
      %v1601 = vcombine.high %v753, %v977
      %v1603 = vunpack.c.l.s4 1983009808
      %v1604 = vunpack.c.0.s8 %v1603
      %v1605 = vlaneseq
      %v1606 = vshrl.u32 %v1605, 7
      %v1607 = vsub.s32 %v1604, %v1606
      %v1608 = vrot.slane %v1600, %v1607
      %v1610 = vunpack.c.l.s4 1983009808
      %v1611 = vunpack.c.0.s8 %v1610
      %v1612 = vlaneseq
      %v1613 = vshrl.u32 %v1612, 7
      %v1614 = vsub.s32 %v1611, %v1613
      %v1615 = vrot.slane %v1601, %v1614
      %v1616 = vcombine.low %v929, %v1025
      %v1617 = vcombine.high %v929, %v1025
      %v1619 = vunpack.c.l.s4 1983009808
      %v1620 = vunpack.c.0.s8 %v1619
      %v1621 = vlaneseq
      %v1622 = vshrl.u32 %v1621, 7
      %v1623 = vsub.s32 %v1620, %v1622
      %v1624 = vrot.slane %v1616, %v1623
      %v1626 = vunpack.c.l.s4 1983009808
      %v1627 = vunpack.c.0.s8 %v1626
      %v1628 = vlaneseq
      %v1629 = vshrl.u32 %v1628, 7
      %v1630 = vsub.s32 %v1627, %v1629
      %v1631 = vrot.slane %v1617, %v1630
      %v1632 = vcombine.low %v1608, %v1624
      %v1633 = vcombine.high %v1608, %v1624
      %v1635 = vunpack.c.l.s4 1934713408
      %v1636 = vunpack.c.0.s8 %v1635
      %v1637 = vlaneseq
      %v1638 = vshrl.u32 %v1637, 7
      %v1639 = vsub.s32 %v1636, %v1638
      %v1640 = vrot.slane %v1632, %v1639
      %v1642 = vunpack.c.l.s4 1934713408
      %v1643 = vunpack.c.0.s8 %v1642
      %v1644 = vlaneseq
      %v1645 = vshrl.u32 %v1644, 7
      %v1646 = vsub.s32 %v1643, %v1645
      %v1647 = vrot.slane %v1633, %v1646
      %v1648 = vcombine.low %v1615, %v1631
      %v1649 = vcombine.high %v1615, %v1631
      %v1651 = vunpack.c.l.s4 1934713408
      %v1652 = vunpack.c.0.s8 %v1651
      %v1653 = vlaneseq
      %v1654 = vshrl.u32 %v1653, 7
      %v1655 = vsub.s32 %v1652, %v1654
      %v1656 = vrot.slane %v1648, %v1655
      %v1658 = vunpack.c.l.s4 1934713408
      %v1659 = vunpack.c.0.s8 %v1658
      %v1660 = vlaneseq
      %v1661 = vshrl.u32 %v1660, 7
      %v1662 = vsub.s32 %v1659, %v1661
      %v1663 = vrot.slane %v1649, %v1662
      %v1664 = vcombine.high %v1640, 0.0
      %v1665 = vcombine.high %v1647, 0.0
      %v1666 = vcombine.high %v1656, 0.0
      %v1667 = vcombine.high %v1663, 0.0
      %v1668 = vcombine.low %v756, %v979
      %v1669 = vcombine.high %v756, %v979
      %v1671 = vunpack.c.l.s4 1983009808
      %v1672 = vunpack.c.0.s8 %v1671
      %v1673 = vlaneseq
      %v1674 = vshrl.u32 %v1673, 7
      %v1675 = vsub.s32 %v1672, %v1674
      %v1676 = vrot.slane %v1668, %v1675
      %v1678 = vunpack.c.l.s4 1983009808
      %v1679 = vunpack.c.0.s8 %v1678
      %v1680 = vlaneseq
      %v1681 = vshrl.u32 %v1680, 7
      %v1682 = vsub.s32 %v1679, %v1681
      %v1683 = vrot.slane %v1669, %v1682
      %v1684 = vcombine.low %v931, %v1027
      %v1685 = vcombine.high %v931, %v1027
      %v1687 = vunpack.c.l.s4 1983009808
      %v1688 = vunpack.c.0.s8 %v1687
      %v1689 = vlaneseq
      %v1690 = vshrl.u32 %v1689, 7
      %v1691 = vsub.s32 %v1688, %v1690
      %v1692 = vrot.slane %v1684, %v1691
      %v1694 = vunpack.c.l.s4 1983009808
      %v1695 = vunpack.c.0.s8 %v1694
      %v1696 = vlaneseq
      %v1697 = vshrl.u32 %v1696, 7
      %v1698 = vsub.s32 %v1695, %v1697
      %v1699 = vrot.slane %v1685, %v1698
      %v1700 = vcombine.low %v1676, %v1692
      %v1701 = vcombine.high %v1676, %v1692
      %v1703 = vunpack.c.l.s4 1934713408
      %v1704 = vunpack.c.0.s8 %v1703
      %v1705 = vlaneseq
      %v1706 = vshrl.u32 %v1705, 7
      %v1707 = vsub.s32 %v1704, %v1706
      %v1708 = vrot.slane %v1700, %v1707
      %v1710 = vunpack.c.l.s4 1934713408
      %v1711 = vunpack.c.0.s8 %v1710
      %v1712 = vlaneseq
      %v1713 = vshrl.u32 %v1712, 7
      %v1714 = vsub.s32 %v1711, %v1713
      %v1715 = vrot.slane %v1701, %v1714
      %v1716 = vcombine.low %v1683, %v1699
      %v1717 = vcombine.high %v1683, %v1699
      %v1719 = vunpack.c.l.s4 1934713408
      %v1720 = vunpack.c.0.s8 %v1719
      %v1721 = vlaneseq
      %v1722 = vshrl.u32 %v1721, 7
      %v1723 = vsub.s32 %v1720, %v1722
      %v1724 = vrot.slane %v1716, %v1723
      %v1726 = vunpack.c.l.s4 1934713408
      %v1727 = vunpack.c.0.s8 %v1726
      %v1728 = vlaneseq
      %v1729 = vshrl.u32 %v1728, 7
      %v1730 = vsub.s32 %v1727, %v1729
      %v1731 = vrot.slane %v1717, %v1730
      %v1732 = vcombine.high %v1708, 0.0
      %v1733 = vcombine.high %v1715, 0.0
      %v1734 = vcombine.high %v1724, 0.0
      %v1735 = vcombine.high %v1731, 0.0
      %v1736 = vcombine.low %v761, %v981
      %v1737 = vcombine.high %v761, %v981
      %v1739 = vunpack.c.l.s4 1983009808
      %v1740 = vunpack.c.0.s8 %v1739
      %v1741 = vlaneseq
      %v1742 = vshrl.u32 %v1741, 7
      %v1743 = vsub.s32 %v1740, %v1742
      %v1744 = vrot.slane %v1736, %v1743
      %v1746 = vunpack.c.l.s4 1983009808
      %v1747 = vunpack.c.0.s8 %v1746
      %v1748 = vlaneseq
      %v1749 = vshrl.u32 %v1748, 7
      %v1750 = vsub.s32 %v1747, %v1749
      %v1751 = vrot.slane %v1737, %v1750
      %v1752 = vcombine.low %v933, %v1029
      %v1753 = vcombine.high %v933, %v1029
      %v1755 = vunpack.c.l.s4 1983009808
      %v1756 = vunpack.c.0.s8 %v1755
      %v1757 = vlaneseq
      %v1758 = vshrl.u32 %v1757, 7
      %v1759 = vsub.s32 %v1756, %v1758
      %v1760 = vrot.slane %v1752, %v1759
      %v1762 = vunpack.c.l.s4 1983009808
      %v1763 = vunpack.c.0.s8 %v1762
      %v1764 = vlaneseq
      %v1765 = vshrl.u32 %v1764, 7
      %v1766 = vsub.s32 %v1763, %v1765
      %v1767 = vrot.slane %v1753, %v1766
      %v1768 = vcombine.low %v1744, %v1760
      %v1769 = vcombine.high %v1744, %v1760
      %v1771 = vunpack.c.l.s4 1934713408
      %v1772 = vunpack.c.0.s8 %v1771
      %v1773 = vlaneseq
      %v1774 = vshrl.u32 %v1773, 7
      %v1775 = vsub.s32 %v1772, %v1774
      %v1776 = vrot.slane %v1768, %v1775
      %v1778 = vunpack.c.l.s4 1934713408
      %v1779 = vunpack.c.0.s8 %v1778
      %v1780 = vlaneseq
      %v1781 = vshrl.u32 %v1780, 7
      %v1782 = vsub.s32 %v1779, %v1781
      %v1783 = vrot.slane %v1769, %v1782
      %v1784 = vcombine.low %v1751, %v1767
      %v1785 = vcombine.high %v1751, %v1767
      %v1787 = vunpack.c.l.s4 1934713408
      %v1788 = vunpack.c.0.s8 %v1787
      %v1789 = vlaneseq
      %v1790 = vshrl.u32 %v1789, 7
      %v1791 = vsub.s32 %v1788, %v1790
      %v1792 = vrot.slane %v1784, %v1791
      %v1794 = vunpack.c.l.s4 1934713408
      %v1795 = vunpack.c.0.s8 %v1794
      %v1796 = vlaneseq
      %v1797 = vshrl.u32 %v1796, 7
      %v1798 = vsub.s32 %v1795, %v1797
      %v1799 = vrot.slane %v1785, %v1798
      %v1800 = vcombine.high %v1776, 0.0
      %v1801 = vcombine.high %v1783, 0.0
      %v1802 = vcombine.high %v1792, 0.0
      %v1803 = vcombine.high %v1799, 0.0
      %v1804 = vcombine.low %v764, %v983
      %v1805 = vcombine.high %v764, %v983
      %v1807 = vunpack.c.l.s4 1983009808
      %v1808 = vunpack.c.0.s8 %v1807
      %v1809 = vlaneseq
      %v1810 = vshrl.u32 %v1809, 7
      %v1811 = vsub.s32 %v1808, %v1810
      %v1812 = vrot.slane %v1804, %v1811
      %v1814 = vunpack.c.l.s4 1983009808
      %v1815 = vunpack.c.0.s8 %v1814
      %v1816 = vlaneseq
      %v1817 = vshrl.u32 %v1816, 7
      %v1818 = vsub.s32 %v1815, %v1817
      %v1819 = vrot.slane %v1805, %v1818
      %v1820 = vcombine.low %v935, %v1031
      %v1821 = vcombine.high %v935, %v1031
      %v1823 = vunpack.c.l.s4 1983009808
      %v1824 = vunpack.c.0.s8 %v1823
      %v1825 = vlaneseq
      %v1826 = vshrl.u32 %v1825, 7
      %v1827 = vsub.s32 %v1824, %v1826
      %v1828 = vrot.slane %v1820, %v1827
      %v1830 = vunpack.c.l.s4 1983009808
      %v1831 = vunpack.c.0.s8 %v1830
      %v1832 = vlaneseq
      %v1833 = vshrl.u32 %v1832, 7
      %v1834 = vsub.s32 %v1831, %v1833
      %v1835 = vrot.slane %v1821, %v1834
      %v1836 = vcombine.low %v1812, %v1828
      %v1837 = vcombine.high %v1812, %v1828
      %v1839 = vunpack.c.l.s4 1934713408
      %v1840 = vunpack.c.0.s8 %v1839
      %v1841 = vlaneseq
      %v1842 = vshrl.u32 %v1841, 7
      %v1843 = vsub.s32 %v1840, %v1842
      %v1844 = vrot.slane %v1836, %v1843
      %v1846 = vunpack.c.l.s4 1934713408
      %v1847 = vunpack.c.0.s8 %v1846
      %v1848 = vlaneseq
      %v1849 = vshrl.u32 %v1848, 7
      %v1850 = vsub.s32 %v1847, %v1849
      %v1851 = vrot.slane %v1837, %v1850
      %v1852 = vcombine.low %v1819, %v1835
      %v1853 = vcombine.high %v1819, %v1835
      %v1855 = vunpack.c.l.s4 1934713408
      %v1856 = vunpack.c.0.s8 %v1855
      %v1857 = vlaneseq
      %v1858 = vshrl.u32 %v1857, 7
      %v1859 = vsub.s32 %v1856, %v1858
      %v1860 = vrot.slane %v1852, %v1859
      %v1862 = vunpack.c.l.s4 1934713408
      %v1863 = vunpack.c.0.s8 %v1862
      %v1864 = vlaneseq
      %v1865 = vshrl.u32 %v1864, 7
      %v1866 = vsub.s32 %v1863, %v1865
      %v1867 = vrot.slane %v1853, %v1866
      %v1868 = vcombine.high %v1844, 0.0
      %v1869 = vcombine.high %v1851, 0.0
      %v1870 = vcombine.high %v1860, 0.0
      %v1871 = vcombine.high %v1867, 0.0
      %v1872 = vcombine.low %v769, %v985
      %v1873 = vcombine.high %v769, %v985
      %v1875 = vunpack.c.l.s4 1983009808
      %v1876 = vunpack.c.0.s8 %v1875
      %v1877 = vlaneseq
      %v1878 = vshrl.u32 %v1877, 7
      %v1879 = vsub.s32 %v1876, %v1878
      %v1880 = vrot.slane %v1872, %v1879
      %v1882 = vunpack.c.l.s4 1983009808
      %v1883 = vunpack.c.0.s8 %v1882
      %v1884 = vlaneseq
      %v1885 = vshrl.u32 %v1884, 7
      %v1886 = vsub.s32 %v1883, %v1885
      %v1887 = vrot.slane %v1873, %v1886
      %v1888 = vcombine.low %v937, %v1033
      %v1889 = vcombine.high %v937, %v1033
      %v1891 = vunpack.c.l.s4 1983009808
      %v1892 = vunpack.c.0.s8 %v1891
      %v1893 = vlaneseq
      %v1894 = vshrl.u32 %v1893, 7
      %v1895 = vsub.s32 %v1892, %v1894
      %v1896 = vrot.slane %v1888, %v1895
      %v1898 = vunpack.c.l.s4 1983009808
      %v1899 = vunpack.c.0.s8 %v1898
      %v1900 = vlaneseq
      %v1901 = vshrl.u32 %v1900, 7
      %v1902 = vsub.s32 %v1899, %v1901
      %v1903 = vrot.slane %v1889, %v1902
      %v1904 = vcombine.low %v1880, %v1896
      %v1905 = vcombine.high %v1880, %v1896
      %v1907 = vunpack.c.l.s4 1934713408
      %v1908 = vunpack.c.0.s8 %v1907
      %v1909 = vlaneseq
      %v1910 = vshrl.u32 %v1909, 7
      %v1911 = vsub.s32 %v1908, %v1910
      %v1912 = vrot.slane %v1904, %v1911
      %v1914 = vunpack.c.l.s4 1934713408
      %v1915 = vunpack.c.0.s8 %v1914
      %v1916 = vlaneseq
      %v1917 = vshrl.u32 %v1916, 7
      %v1918 = vsub.s32 %v1915, %v1917
      %v1919 = vrot.slane %v1905, %v1918
      %v1920 = vcombine.low %v1887, %v1903
      %v1921 = vcombine.high %v1887, %v1903
      %v1923 = vunpack.c.l.s4 1934713408
      %v1924 = vunpack.c.0.s8 %v1923
      %v1925 = vlaneseq
      %v1926 = vshrl.u32 %v1925, 7
      %v1927 = vsub.s32 %v1924, %v1926
      %v1928 = vrot.slane %v1920, %v1927
      %v1930 = vunpack.c.l.s4 1934713408
      %v1931 = vunpack.c.0.s8 %v1930
      %v1932 = vlaneseq
      %v1933 = vshrl.u32 %v1932, 7
      %v1934 = vsub.s32 %v1931, %v1933
      %v1935 = vrot.slane %v1921, %v1934
      %v1936 = vcombine.high %v1912, 0.0
      %v1937 = vcombine.high %v1919, 0.0
      %v1938 = vcombine.high %v1928, 0.0
      %v1939 = vcombine.high %v1935, 0.0
      %v1940 = vcombine.low %v772, %v987
      %v1941 = vcombine.high %v772, %v987
      %v1943 = vunpack.c.l.s4 1983009808
      %v1944 = vunpack.c.0.s8 %v1943
      %v1945 = vlaneseq
      %v1946 = vshrl.u32 %v1945, 7
      %v1947 = vsub.s32 %v1944, %v1946
      %v1948 = vrot.slane %v1940, %v1947
      %v1950 = vunpack.c.l.s4 1983009808
      %v1951 = vunpack.c.0.s8 %v1950
      %v1952 = vlaneseq
      %v1953 = vshrl.u32 %v1952, 7
      %v1954 = vsub.s32 %v1951, %v1953
      %v1955 = vrot.slane %v1941, %v1954
      %v1956 = vcombine.low %v939, %v1035
      %v1957 = vcombine.high %v939, %v1035
      %v1959 = vunpack.c.l.s4 1983009808
      %v1960 = vunpack.c.0.s8 %v1959
      %v1961 = vlaneseq
      %v1962 = vshrl.u32 %v1961, 7
      %v1963 = vsub.s32 %v1960, %v1962
      %v1964 = vrot.slane %v1956, %v1963
      %v1966 = vunpack.c.l.s4 1983009808
      %v1967 = vunpack.c.0.s8 %v1966
      %v1968 = vlaneseq
      %v1969 = vshrl.u32 %v1968, 7
      %v1970 = vsub.s32 %v1967, %v1969
      %v1971 = vrot.slane %v1957, %v1970
      %v1972 = vcombine.low %v1948, %v1964
      %v1973 = vcombine.high %v1948, %v1964
      %v1975 = vunpack.c.l.s4 1934713408
      %v1976 = vunpack.c.0.s8 %v1975
      %v1977 = vlaneseq
      %v1978 = vshrl.u32 %v1977, 7
      %v1979 = vsub.s32 %v1976, %v1978
      %v1980 = vrot.slane %v1972, %v1979
      %v1982 = vunpack.c.l.s4 1934713408
      %v1983 = vunpack.c.0.s8 %v1982
      %v1984 = vlaneseq
      %v1985 = vshrl.u32 %v1984, 7
      %v1986 = vsub.s32 %v1983, %v1985
      %v1987 = vrot.slane %v1973, %v1986
      %v1988 = vcombine.low %v1955, %v1971
      %v1989 = vcombine.high %v1955, %v1971
      %v1991 = vunpack.c.l.s4 1934713408
      %v1992 = vunpack.c.0.s8 %v1991
      %v1993 = vlaneseq
      %v1994 = vshrl.u32 %v1993, 7
      %v1995 = vsub.s32 %v1992, %v1994
      %v1996 = vrot.slane %v1988, %v1995
      %v1998 = vunpack.c.l.s4 1934713408
      %v1999 = vunpack.c.0.s8 %v1998
      %v2000 = vlaneseq
      %v2001 = vshrl.u32 %v2000, 7
      %v2002 = vsub.s32 %v1999, %v2001
      %v2003 = vrot.slane %v1989, %v2002
      %v2004 = vcombine.high %v1980, 0.0
      %v2005 = vcombine.high %v1987, 0.0
      %v2006 = vcombine.high %v1996, 0.0
      %v2007 = vcombine.high %v2003, 0.0
      %v2008 = vcombine.low %v777, %v989
      %v2009 = vcombine.high %v777, %v989
      %v2011 = vunpack.c.l.s4 1983009808
      %v2012 = vunpack.c.0.s8 %v2011
      %v2013 = vlaneseq
      %v2014 = vshrl.u32 %v2013, 7
      %v2015 = vsub.s32 %v2012, %v2014
      %v2016 = vrot.slane %v2008, %v2015
      %v2018 = vunpack.c.l.s4 1983009808
      %v2019 = vunpack.c.0.s8 %v2018
      %v2020 = vlaneseq
      %v2021 = vshrl.u32 %v2020, 7
      %v2022 = vsub.s32 %v2019, %v2021
      %v2023 = vrot.slane %v2009, %v2022
      %v2024 = vcombine.low %v941, %v1037
      %v2025 = vcombine.high %v941, %v1037
      %v2027 = vunpack.c.l.s4 1983009808
      %v2028 = vunpack.c.0.s8 %v2027
      %v2029 = vlaneseq
      %v2030 = vshrl.u32 %v2029, 7
      %v2031 = vsub.s32 %v2028, %v2030
      %v2032 = vrot.slane %v2024, %v2031
      %v2034 = vunpack.c.l.s4 1983009808
      %v2035 = vunpack.c.0.s8 %v2034
      %v2036 = vlaneseq
      %v2037 = vshrl.u32 %v2036, 7
      %v2038 = vsub.s32 %v2035, %v2037
      %v2039 = vrot.slane %v2025, %v2038
      %v2040 = vcombine.low %v2016, %v2032
      %v2041 = vcombine.high %v2016, %v2032
      %v2043 = vunpack.c.l.s4 1934713408
      %v2044 = vunpack.c.0.s8 %v2043
      %v2045 = vlaneseq
      %v2046 = vshrl.u32 %v2045, 7
      %v2047 = vsub.s32 %v2044, %v2046
      %v2048 = vrot.slane %v2040, %v2047
      %v2050 = vunpack.c.l.s4 1934713408
      %v2051 = vunpack.c.0.s8 %v2050
      %v2052 = vlaneseq
      %v2053 = vshrl.u32 %v2052, 7
      %v2054 = vsub.s32 %v2051, %v2053
      %v2055 = vrot.slane %v2041, %v2054
      %v2056 = vcombine.low %v2023, %v2039
      %v2057 = vcombine.high %v2023, %v2039
      %v2059 = vunpack.c.l.s4 1934713408
      %v2060 = vunpack.c.0.s8 %v2059
      %v2061 = vlaneseq
      %v2062 = vshrl.u32 %v2061, 7
      %v2063 = vsub.s32 %v2060, %v2062
      %v2064 = vrot.slane %v2056, %v2063
      %v2066 = vunpack.c.l.s4 1934713408
      %v2067 = vunpack.c.0.s8 %v2066
      %v2068 = vlaneseq
      %v2069 = vshrl.u32 %v2068, 7
      %v2070 = vsub.s32 %v2067, %v2069
      %v2071 = vrot.slane %v2057, %v2070
      %v2072 = vcombine.high %v2048, 0.0
      %v2073 = vcombine.high %v2055, 0.0
      %v2074 = vcombine.high %v2064, 0.0
      %v2075 = vcombine.high %v2071, 0.0
      %v2076 = vcombine.low %v780, %v991
      %v2077 = vcombine.high %v780, %v991
      %v2079 = vunpack.c.l.s4 1983009808
      %v2080 = vunpack.c.0.s8 %v2079
      %v2081 = vlaneseq
      %v2082 = vshrl.u32 %v2081, 7
      %v2083 = vsub.s32 %v2080, %v2082
      %v2084 = vrot.slane %v2076, %v2083
      %v2086 = vunpack.c.l.s4 1983009808
      %v2087 = vunpack.c.0.s8 %v2086
      %v2088 = vlaneseq
      %v2089 = vshrl.u32 %v2088, 7
      %v2090 = vsub.s32 %v2087, %v2089
      %v2091 = vrot.slane %v2077, %v2090
      %v2092 = vcombine.low %v943, %v1039
      %v2093 = vcombine.high %v943, %v1039
      %v2095 = vunpack.c.l.s4 1983009808
      %v2096 = vunpack.c.0.s8 %v2095
      %v2097 = vlaneseq
      %v2098 = vshrl.u32 %v2097, 7
      %v2099 = vsub.s32 %v2096, %v2098
      %v2100 = vrot.slane %v2092, %v2099
      %v2102 = vunpack.c.l.s4 1983009808
      %v2103 = vunpack.c.0.s8 %v2102
      %v2104 = vlaneseq
      %v2105 = vshrl.u32 %v2104, 7
      %v2106 = vsub.s32 %v2103, %v2105
      %v2107 = vrot.slane %v2093, %v2106
      %v2108 = vcombine.low %v2084, %v2100
      %v2109 = vcombine.high %v2084, %v2100
      %v2111 = vunpack.c.l.s4 1934713408
      %v2112 = vunpack.c.0.s8 %v2111
      %v2113 = vlaneseq
      %v2114 = vshrl.u32 %v2113, 7
      %v2115 = vsub.s32 %v2112, %v2114
      %v2116 = vrot.slane %v2108, %v2115
      %v2118 = vunpack.c.l.s4 1934713408
      %v2119 = vunpack.c.0.s8 %v2118
      %v2120 = vlaneseq
      %v2121 = vshrl.u32 %v2120, 7
      %v2122 = vsub.s32 %v2119, %v2121
      %v2123 = vrot.slane %v2109, %v2122
      %v2124 = vcombine.low %v2091, %v2107
      %v2125 = vcombine.high %v2091, %v2107
      %v2127 = vunpack.c.l.s4 1934713408
      %v2128 = vunpack.c.0.s8 %v2127
      %v2129 = vlaneseq
      %v2130 = vshrl.u32 %v2129, 7
      %v2131 = vsub.s32 %v2128, %v2130
      %v2132 = vrot.slane %v2124, %v2131
      %v2134 = vunpack.c.l.s4 1934713408
      %v2135 = vunpack.c.0.s8 %v2134
      %v2136 = vlaneseq
      %v2137 = vshrl.u32 %v2136, 7
      %v2138 = vsub.s32 %v2135, %v2137
      %v2139 = vrot.slane %v2125, %v2138
      %v2140 = vcombine.high %v2116, 0.0
      %v2141 = vcombine.high %v2123, 0.0
      %v2142 = vcombine.high %v2132, 0.0
      %v2143 = vcombine.high %v2139, 0.0
      %v2144 = vcombine.low %v1096, %v1103
      %v2146 = vunpack.c.l.s4 1983009808
      %v2147 = vunpack.c.0.s8 %v2146
      %v2148 = vlaneseq
      %v2149 = vshrl.u32 %v2148, 7
      %v2150 = vsub.s32 %v2147, %v2149
      %v2151 = vrot.slane %v2144, %v2150
      %v2152 = vcombine.low %v1120, %v1121
      %v2154 = vunpack.c.l.s4 1983009808
      %v2155 = vunpack.c.0.s8 %v2154
      %v2156 = vlaneseq
      %v2157 = vshrl.u32 %v2156, 7
      %v2158 = vsub.s32 %v2155, %v2157
      %v2159 = vrot.slane %v2152, %v2158
      %v2160 = vcombine.low %v1112, %v1119
      %v2162 = vunpack.c.l.s4 1983009808
      %v2163 = vunpack.c.0.s8 %v2162
      %v2164 = vlaneseq
      %v2165 = vshrl.u32 %v2164, 7
      %v2166 = vsub.s32 %v2163, %v2165
      %v2167 = vrot.slane %v2160, %v2166
      %v2168 = vcombine.low %v1122, %v1123
      %v2170 = vunpack.c.l.s4 1983009808
      %v2171 = vunpack.c.0.s8 %v2170
      %v2172 = vlaneseq
      %v2173 = vshrl.u32 %v2172, 7
      %v2174 = vsub.s32 %v2171, %v2173
      %v2175 = vrot.slane %v2168, %v2174
      %v2176 = vcombine.low %v2151, %v2159
      %v2177 = vcombine.high %v2151, %v2159
      %v2179 = vunpack.c.l.s4 1934713408
      %v2180 = vunpack.c.0.s8 %v2179
      %v2181 = vlaneseq
      %v2182 = vshrl.u32 %v2181, 7
      %v2183 = vsub.s32 %v2180, %v2182
      %v2184 = vrot.slane %v2176, %v2183
      %v2186 = vunpack.c.l.s4 1934713408
      %v2187 = vunpack.c.0.s8 %v2186
      %v2188 = vlaneseq
      %v2189 = vshrl.u32 %v2188, 7
      %v2190 = vsub.s32 %v2187, %v2189
      %v2191 = vrot.slane %v2177, %v2190
      %v2192 = vcombine.low %v2167, %v2175
      %v2193 = vcombine.high %v2167, %v2175
      %v2195 = vunpack.c.l.s4 1934713408
      %v2196 = vunpack.c.0.s8 %v2195
      %v2197 = vlaneseq
      %v2198 = vshrl.u32 %v2197, 7
      %v2199 = vsub.s32 %v2196, %v2198
      %v2200 = vrot.slane %v2192, %v2199
      %v2202 = vunpack.c.l.s4 1934713408
      %v2203 = vunpack.c.0.s8 %v2202
      %v2204 = vlaneseq
      %v2205 = vshrl.u32 %v2204, 7
      %v2206 = vsub.s32 %v2203, %v2205
      %v2207 = vrot.slane %v2193, %v2206
      %v2208 = vcombine.low %v2184, %v2200
      %v2209 = vcombine.high %v2184, %v2200
      %v2210 = vcombine.low %v2191, %v2207
      %v2211 = vcombine.high %v2191, %v2207
      %v2212 = vcombine.low %v1164, %v1171
      %v2214 = vunpack.c.l.s4 1983009808
      %v2215 = vunpack.c.0.s8 %v2214
      %v2216 = vlaneseq
      %v2217 = vshrl.u32 %v2216, 7
      %v2218 = vsub.s32 %v2215, %v2217
      %v2219 = vrot.slane %v2212, %v2218
      %v2220 = vcombine.low %v1188, %v1189
      %v2222 = vunpack.c.l.s4 1983009808
      %v2223 = vunpack.c.0.s8 %v2222
      %v2224 = vlaneseq
      %v2225 = vshrl.u32 %v2224, 7
      %v2226 = vsub.s32 %v2223, %v2225
      %v2227 = vrot.slane %v2220, %v2226
      %v2228 = vcombine.low %v1180, %v1187
      %v2230 = vunpack.c.l.s4 1983009808
      %v2231 = vunpack.c.0.s8 %v2230
      %v2232 = vlaneseq
      %v2233 = vshrl.u32 %v2232, 7
      %v2234 = vsub.s32 %v2231, %v2233
      %v2235 = vrot.slane %v2228, %v2234
      %v2236 = vcombine.low %v1190, %v1191
      %v2238 = vunpack.c.l.s4 1983009808
      %v2239 = vunpack.c.0.s8 %v2238
      %v2240 = vlaneseq
      %v2241 = vshrl.u32 %v2240, 7
      %v2242 = vsub.s32 %v2239, %v2241
      %v2243 = vrot.slane %v2236, %v2242
      %v2244 = vcombine.low %v2219, %v2227
      %v2245 = vcombine.high %v2219, %v2227
      %v2247 = vunpack.c.l.s4 1934713408
      %v2248 = vunpack.c.0.s8 %v2247
      %v2249 = vlaneseq
      %v2250 = vshrl.u32 %v2249, 7
      %v2251 = vsub.s32 %v2248, %v2250
      %v2252 = vrot.slane %v2244, %v2251
      %v2254 = vunpack.c.l.s4 1934713408
      %v2255 = vunpack.c.0.s8 %v2254
      %v2256 = vlaneseq
      %v2257 = vshrl.u32 %v2256, 7
      %v2258 = vsub.s32 %v2255, %v2257
      %v2259 = vrot.slane %v2245, %v2258
      %v2260 = vcombine.low %v2235, %v2243
      %v2261 = vcombine.high %v2235, %v2243
      %v2263 = vunpack.c.l.s4 1934713408
      %v2264 = vunpack.c.0.s8 %v2263
      %v2265 = vlaneseq
      %v2266 = vshrl.u32 %v2265, 7
      %v2267 = vsub.s32 %v2264, %v2266
      %v2268 = vrot.slane %v2260, %v2267
      %v2270 = vunpack.c.l.s4 1934713408
      %v2271 = vunpack.c.0.s8 %v2270
      %v2272 = vlaneseq
      %v2273 = vshrl.u32 %v2272, 7
      %v2274 = vsub.s32 %v2271, %v2273
      %v2275 = vrot.slane %v2261, %v2274
      %v2276 = vcombine.low %v2252, %v2268
      %v2277 = vcombine.high %v2252, %v2268
      %v2278 = vcombine.low %v2259, %v2275
      %v2279 = vcombine.high %v2259, %v2275
      %v2280 = vcombine.low %v1232, %v1239
      %v2282 = vunpack.c.l.s4 1983009808
      %v2283 = vunpack.c.0.s8 %v2282
      %v2284 = vlaneseq
      %v2285 = vshrl.u32 %v2284, 7
      %v2286 = vsub.s32 %v2283, %v2285
      %v2287 = vrot.slane %v2280, %v2286
      %v2288 = vcombine.low %v1256, %v1257
      %v2290 = vunpack.c.l.s4 1983009808
      %v2291 = vunpack.c.0.s8 %v2290
      %v2292 = vlaneseq
      %v2293 = vshrl.u32 %v2292, 7
      %v2294 = vsub.s32 %v2291, %v2293
      %v2295 = vrot.slane %v2288, %v2294
      %v2296 = vcombine.low %v1248, %v1255
      %v2298 = vunpack.c.l.s4 1983009808
      %v2299 = vunpack.c.0.s8 %v2298
      %v2300 = vlaneseq
      %v2301 = vshrl.u32 %v2300, 7
      %v2302 = vsub.s32 %v2299, %v2301
      %v2303 = vrot.slane %v2296, %v2302
      %v2304 = vcombine.low %v1258, %v1259
      %v2306 = vunpack.c.l.s4 1983009808
      %v2307 = vunpack.c.0.s8 %v2306
      %v2308 = vlaneseq
      %v2309 = vshrl.u32 %v2308, 7
      %v2310 = vsub.s32 %v2307, %v2309
      %v2311 = vrot.slane %v2304, %v2310
      %v2312 = vcombine.low %v2287, %v2295
      %v2313 = vcombine.high %v2287, %v2295
      %v2315 = vunpack.c.l.s4 1934713408
      %v2316 = vunpack.c.0.s8 %v2315
      %v2317 = vlaneseq
      %v2318 = vshrl.u32 %v2317, 7
      %v2319 = vsub.s32 %v2316, %v2318
      %v2320 = vrot.slane %v2312, %v2319
      %v2322 = vunpack.c.l.s4 1934713408
      %v2323 = vunpack.c.0.s8 %v2322
      %v2324 = vlaneseq
      %v2325 = vshrl.u32 %v2324, 7
      %v2326 = vsub.s32 %v2323, %v2325
      %v2327 = vrot.slane %v2313, %v2326
      %v2328 = vcombine.low %v2303, %v2311
      %v2329 = vcombine.high %v2303, %v2311
      %v2331 = vunpack.c.l.s4 1934713408
      %v2332 = vunpack.c.0.s8 %v2331
      %v2333 = vlaneseq
      %v2334 = vshrl.u32 %v2333, 7
      %v2335 = vsub.s32 %v2332, %v2334
      %v2336 = vrot.slane %v2328, %v2335
      %v2338 = vunpack.c.l.s4 1934713408
      %v2339 = vunpack.c.0.s8 %v2338
      %v2340 = vlaneseq
      %v2341 = vshrl.u32 %v2340, 7
      %v2342 = vsub.s32 %v2339, %v2341
      %v2343 = vrot.slane %v2329, %v2342
      %v2344 = vcombine.low %v2320, %v2336
      %v2345 = vcombine.high %v2320, %v2336
      %v2346 = vcombine.low %v2327, %v2343
      %v2347 = vcombine.high %v2327, %v2343
      %v2348 = vcombine.low %v1300, %v1307
      %v2350 = vunpack.c.l.s4 1983009808
      %v2351 = vunpack.c.0.s8 %v2350
      %v2352 = vlaneseq
      %v2353 = vshrl.u32 %v2352, 7
      %v2354 = vsub.s32 %v2351, %v2353
      %v2355 = vrot.slane %v2348, %v2354
      %v2356 = vcombine.low %v1324, %v1325
      %v2358 = vunpack.c.l.s4 1983009808
      %v2359 = vunpack.c.0.s8 %v2358
      %v2360 = vlaneseq
      %v2361 = vshrl.u32 %v2360, 7
      %v2362 = vsub.s32 %v2359, %v2361
      %v2363 = vrot.slane %v2356, %v2362
      %v2364 = vcombine.low %v1316, %v1323
      %v2366 = vunpack.c.l.s4 1983009808
      %v2367 = vunpack.c.0.s8 %v2366
      %v2368 = vlaneseq
      %v2369 = vshrl.u32 %v2368, 7
      %v2370 = vsub.s32 %v2367, %v2369
      %v2371 = vrot.slane %v2364, %v2370
      %v2372 = vcombine.low %v1326, %v1327
      %v2374 = vunpack.c.l.s4 1983009808
      %v2375 = vunpack.c.0.s8 %v2374
      %v2376 = vlaneseq
      %v2377 = vshrl.u32 %v2376, 7
      %v2378 = vsub.s32 %v2375, %v2377
      %v2379 = vrot.slane %v2372, %v2378
      %v2380 = vcombine.low %v2355, %v2363
      %v2381 = vcombine.high %v2355, %v2363
      %v2383 = vunpack.c.l.s4 1934713408
      %v2384 = vunpack.c.0.s8 %v2383
      %v2385 = vlaneseq
      %v2386 = vshrl.u32 %v2385, 7
      %v2387 = vsub.s32 %v2384, %v2386
      %v2388 = vrot.slane %v2380, %v2387
      %v2390 = vunpack.c.l.s4 1934713408
      %v2391 = vunpack.c.0.s8 %v2390
      %v2392 = vlaneseq
      %v2393 = vshrl.u32 %v2392, 7
      %v2394 = vsub.s32 %v2391, %v2393
      %v2395 = vrot.slane %v2381, %v2394
      %v2396 = vcombine.low %v2371, %v2379
      %v2397 = vcombine.high %v2371, %v2379
      %v2399 = vunpack.c.l.s4 1934713408
      %v2400 = vunpack.c.0.s8 %v2399
      %v2401 = vlaneseq
      %v2402 = vshrl.u32 %v2401, 7
      %v2403 = vsub.s32 %v2400, %v2402
      %v2404 = vrot.slane %v2396, %v2403
      %v2406 = vunpack.c.l.s4 1934713408
      %v2407 = vunpack.c.0.s8 %v2406
      %v2408 = vlaneseq
      %v2409 = vshrl.u32 %v2408, 7
      %v2410 = vsub.s32 %v2407, %v2409
      %v2411 = vrot.slane %v2397, %v2410
      %v2412 = vcombine.low %v2388, %v2404
      %v2413 = vcombine.high %v2388, %v2404
      %v2414 = vcombine.low %v2395, %v2411
      %v2415 = vcombine.high %v2395, %v2411
      %v2416 = vcombine.low %v1368, %v1375
      %v2418 = vunpack.c.l.s4 1983009808
      %v2419 = vunpack.c.0.s8 %v2418
      %v2420 = vlaneseq
      %v2421 = vshrl.u32 %v2420, 7
      %v2422 = vsub.s32 %v2419, %v2421
      %v2423 = vrot.slane %v2416, %v2422
      %v2424 = vcombine.low %v1392, %v1393
      %v2426 = vunpack.c.l.s4 1983009808
      %v2427 = vunpack.c.0.s8 %v2426
      %v2428 = vlaneseq
      %v2429 = vshrl.u32 %v2428, 7
      %v2430 = vsub.s32 %v2427, %v2429
      %v2431 = vrot.slane %v2424, %v2430
      %v2432 = vcombine.low %v1384, %v1391
      %v2434 = vunpack.c.l.s4 1983009808
      %v2435 = vunpack.c.0.s8 %v2434
      %v2436 = vlaneseq
      %v2437 = vshrl.u32 %v2436, 7
      %v2438 = vsub.s32 %v2435, %v2437
      %v2439 = vrot.slane %v2432, %v2438
      %v2440 = vcombine.low %v1394, %v1395
      %v2442 = vunpack.c.l.s4 1983009808
      %v2443 = vunpack.c.0.s8 %v2442
      %v2444 = vlaneseq
      %v2445 = vshrl.u32 %v2444, 7
      %v2446 = vsub.s32 %v2443, %v2445
      %v2447 = vrot.slane %v2440, %v2446
      %v2448 = vcombine.low %v2423, %v2431
      %v2449 = vcombine.high %v2423, %v2431
      %v2451 = vunpack.c.l.s4 1934713408
      %v2452 = vunpack.c.0.s8 %v2451
      %v2453 = vlaneseq
      %v2454 = vshrl.u32 %v2453, 7
      %v2455 = vsub.s32 %v2452, %v2454
      %v2456 = vrot.slane %v2448, %v2455
      %v2458 = vunpack.c.l.s4 1934713408
      %v2459 = vunpack.c.0.s8 %v2458
      %v2460 = vlaneseq
      %v2461 = vshrl.u32 %v2460, 7
      %v2462 = vsub.s32 %v2459, %v2461
      %v2463 = vrot.slane %v2449, %v2462
      %v2464 = vcombine.low %v2439, %v2447
      %v2465 = vcombine.high %v2439, %v2447
      %v2467 = vunpack.c.l.s4 1934713408
      %v2468 = vunpack.c.0.s8 %v2467
      %v2469 = vlaneseq
      %v2470 = vshrl.u32 %v2469, 7
      %v2471 = vsub.s32 %v2468, %v2470
      %v2472 = vrot.slane %v2464, %v2471
      %v2474 = vunpack.c.l.s4 1934713408
      %v2475 = vunpack.c.0.s8 %v2474
      %v2476 = vlaneseq
      %v2477 = vshrl.u32 %v2476, 7
      %v2478 = vsub.s32 %v2475, %v2477
      %v2479 = vrot.slane %v2465, %v2478
      %v2480 = vcombine.low %v2456, %v2472
      %v2481 = vcombine.high %v2456, %v2472
      %v2482 = vcombine.low %v2463, %v2479
      %v2483 = vcombine.high %v2463, %v2479
      %v2484 = vcombine.low %v1436, %v1443
      %v2486 = vunpack.c.l.s4 1983009808
      %v2487 = vunpack.c.0.s8 %v2486
      %v2488 = vlaneseq
      %v2489 = vshrl.u32 %v2488, 7
      %v2490 = vsub.s32 %v2487, %v2489
      %v2491 = vrot.slane %v2484, %v2490
      %v2492 = vcombine.low %v1460, %v1461
      %v2494 = vunpack.c.l.s4 1983009808
      %v2495 = vunpack.c.0.s8 %v2494
      %v2496 = vlaneseq
      %v2497 = vshrl.u32 %v2496, 7
      %v2498 = vsub.s32 %v2495, %v2497
      %v2499 = vrot.slane %v2492, %v2498
      %v2500 = vcombine.low %v1452, %v1459
      %v2502 = vunpack.c.l.s4 1983009808
      %v2503 = vunpack.c.0.s8 %v2502
      %v2504 = vlaneseq
      %v2505 = vshrl.u32 %v2504, 7
      %v2506 = vsub.s32 %v2503, %v2505
      %v2507 = vrot.slane %v2500, %v2506
      %v2508 = vcombine.low %v1462, %v1463
      %v2510 = vunpack.c.l.s4 1983009808
      %v2511 = vunpack.c.0.s8 %v2510
      %v2512 = vlaneseq
      %v2513 = vshrl.u32 %v2512, 7
      %v2514 = vsub.s32 %v2511, %v2513
      %v2515 = vrot.slane %v2508, %v2514
      %v2516 = vcombine.low %v2491, %v2499
      %v2517 = vcombine.high %v2491, %v2499
      %v2519 = vunpack.c.l.s4 1934713408
      %v2520 = vunpack.c.0.s8 %v2519
      %v2521 = vlaneseq
      %v2522 = vshrl.u32 %v2521, 7
      %v2523 = vsub.s32 %v2520, %v2522
      %v2524 = vrot.slane %v2516, %v2523
      %v2526 = vunpack.c.l.s4 1934713408
      %v2527 = vunpack.c.0.s8 %v2526
      %v2528 = vlaneseq
      %v2529 = vshrl.u32 %v2528, 7
      %v2530 = vsub.s32 %v2527, %v2529
      %v2531 = vrot.slane %v2517, %v2530
      %v2532 = vcombine.low %v2507, %v2515
      %v2533 = vcombine.high %v2507, %v2515
      %v2535 = vunpack.c.l.s4 1934713408
      %v2536 = vunpack.c.0.s8 %v2535
      %v2537 = vlaneseq
      %v2538 = vshrl.u32 %v2537, 7
      %v2539 = vsub.s32 %v2536, %v2538
      %v2540 = vrot.slane %v2532, %v2539
      %v2542 = vunpack.c.l.s4 1934713408
      %v2543 = vunpack.c.0.s8 %v2542
      %v2544 = vlaneseq
      %v2545 = vshrl.u32 %v2544, 7
      %v2546 = vsub.s32 %v2543, %v2545
      %v2547 = vrot.slane %v2533, %v2546
      %v2548 = vcombine.low %v2524, %v2540
      %v2549 = vcombine.high %v2524, %v2540
      %v2550 = vcombine.low %v2531, %v2547
      %v2551 = vcombine.high %v2531, %v2547
      %v2552 = vcombine.low %v1504, %v1511
      %v2554 = vunpack.c.l.s4 1983009808
      %v2555 = vunpack.c.0.s8 %v2554
      %v2556 = vlaneseq
      %v2557 = vshrl.u32 %v2556, 7
      %v2558 = vsub.s32 %v2555, %v2557
      %v2559 = vrot.slane %v2552, %v2558
      %v2560 = vcombine.low %v1528, %v1529
      %v2562 = vunpack.c.l.s4 1983009808
      %v2563 = vunpack.c.0.s8 %v2562
      %v2564 = vlaneseq
      %v2565 = vshrl.u32 %v2564, 7
      %v2566 = vsub.s32 %v2563, %v2565
      %v2567 = vrot.slane %v2560, %v2566
      %v2568 = vcombine.low %v1520, %v1527
      %v2570 = vunpack.c.l.s4 1983009808
      %v2571 = vunpack.c.0.s8 %v2570
      %v2572 = vlaneseq
      %v2573 = vshrl.u32 %v2572, 7
      %v2574 = vsub.s32 %v2571, %v2573
      %v2575 = vrot.slane %v2568, %v2574
      %v2576 = vcombine.low %v1530, %v1531
      %v2578 = vunpack.c.l.s4 1983009808
      %v2579 = vunpack.c.0.s8 %v2578
      %v2580 = vlaneseq
      %v2581 = vshrl.u32 %v2580, 7
      %v2582 = vsub.s32 %v2579, %v2581
      %v2583 = vrot.slane %v2576, %v2582
      %v2584 = vcombine.low %v2559, %v2567
      %v2585 = vcombine.high %v2559, %v2567
      %v2587 = vunpack.c.l.s4 1934713408
      %v2588 = vunpack.c.0.s8 %v2587
      %v2589 = vlaneseq
      %v2590 = vshrl.u32 %v2589, 7
      %v2591 = vsub.s32 %v2588, %v2590
      %v2592 = vrot.slane %v2584, %v2591
      %v2594 = vunpack.c.l.s4 1934713408
      %v2595 = vunpack.c.0.s8 %v2594
      %v2596 = vlaneseq
      %v2597 = vshrl.u32 %v2596, 7
      %v2598 = vsub.s32 %v2595, %v2597
      %v2599 = vrot.slane %v2585, %v2598
      %v2600 = vcombine.low %v2575, %v2583
      %v2601 = vcombine.high %v2575, %v2583
      %v2603 = vunpack.c.l.s4 1934713408
      %v2604 = vunpack.c.0.s8 %v2603
      %v2605 = vlaneseq
      %v2606 = vshrl.u32 %v2605, 7
      %v2607 = vsub.s32 %v2604, %v2606
      %v2608 = vrot.slane %v2600, %v2607
      %v2610 = vunpack.c.l.s4 1934713408
      %v2611 = vunpack.c.0.s8 %v2610
      %v2612 = vlaneseq
      %v2613 = vshrl.u32 %v2612, 7
      %v2614 = vsub.s32 %v2611, %v2613
      %v2615 = vrot.slane %v2601, %v2614
      %v2616 = vcombine.low %v2592, %v2608
      %v2617 = vcombine.high %v2592, %v2608
      %v2618 = vcombine.low %v2599, %v2615
      %v2619 = vcombine.high %v2599, %v2615
      %v2620 = vcombine.low %v1572, %v1579
      %v2622 = vunpack.c.l.s4 1983009808
      %v2623 = vunpack.c.0.s8 %v2622
      %v2624 = vlaneseq
      %v2625 = vshrl.u32 %v2624, 7
      %v2626 = vsub.s32 %v2623, %v2625
      %v2627 = vrot.slane %v2620, %v2626
      %v2628 = vcombine.low %v1596, %v1597
      %v2630 = vunpack.c.l.s4 1983009808
      %v2631 = vunpack.c.0.s8 %v2630
      %v2632 = vlaneseq
      %v2633 = vshrl.u32 %v2632, 7
      %v2634 = vsub.s32 %v2631, %v2633
      %v2635 = vrot.slane %v2628, %v2634
      %v2636 = vcombine.low %v1588, %v1595
      %v2638 = vunpack.c.l.s4 1983009808
      %v2639 = vunpack.c.0.s8 %v2638
      %v2640 = vlaneseq
      %v2641 = vshrl.u32 %v2640, 7
      %v2642 = vsub.s32 %v2639, %v2641
      %v2643 = vrot.slane %v2636, %v2642
      %v2644 = vcombine.low %v1598, %v1599
      %v2646 = vunpack.c.l.s4 1983009808
      %v2647 = vunpack.c.0.s8 %v2646
      %v2648 = vlaneseq
      %v2649 = vshrl.u32 %v2648, 7
      %v2650 = vsub.s32 %v2647, %v2649
      %v2651 = vrot.slane %v2644, %v2650
      %v2652 = vcombine.low %v2627, %v2635
      %v2653 = vcombine.high %v2627, %v2635
      %v2655 = vunpack.c.l.s4 1934713408
      %v2656 = vunpack.c.0.s8 %v2655
      %v2657 = vlaneseq
      %v2658 = vshrl.u32 %v2657, 7
      %v2659 = vsub.s32 %v2656, %v2658
      %v2660 = vrot.slane %v2652, %v2659
      %v2662 = vunpack.c.l.s4 1934713408
      %v2663 = vunpack.c.0.s8 %v2662
      %v2664 = vlaneseq
      %v2665 = vshrl.u32 %v2664, 7
      %v2666 = vsub.s32 %v2663, %v2665
      %v2667 = vrot.slane %v2653, %v2666
      %v2668 = vcombine.low %v2643, %v2651
      %v2669 = vcombine.high %v2643, %v2651
      %v2671 = vunpack.c.l.s4 1934713408
      %v2672 = vunpack.c.0.s8 %v2671
      %v2673 = vlaneseq
      %v2674 = vshrl.u32 %v2673, 7
      %v2675 = vsub.s32 %v2672, %v2674
      %v2676 = vrot.slane %v2668, %v2675
      %v2678 = vunpack.c.l.s4 1934713408
      %v2679 = vunpack.c.0.s8 %v2678
      %v2680 = vlaneseq
      %v2681 = vshrl.u32 %v2680, 7
      %v2682 = vsub.s32 %v2679, %v2681
      %v2683 = vrot.slane %v2669, %v2682
      %v2684 = vcombine.low %v2660, %v2676
      %v2685 = vcombine.high %v2660, %v2676
      %v2686 = vcombine.low %v2667, %v2683
      %v2687 = vcombine.high %v2667, %v2683
      %v2688 = vcombine.low %v1640, %v1647
      %v2690 = vunpack.c.l.s4 1983009808
      %v2691 = vunpack.c.0.s8 %v2690
      %v2692 = vlaneseq
      %v2693 = vshrl.u32 %v2692, 7
      %v2694 = vsub.s32 %v2691, %v2693
      %v2695 = vrot.slane %v2688, %v2694
      %v2696 = vcombine.low %v1664, %v1665
      %v2698 = vunpack.c.l.s4 1983009808
      %v2699 = vunpack.c.0.s8 %v2698
      %v2700 = vlaneseq
      %v2701 = vshrl.u32 %v2700, 7
      %v2702 = vsub.s32 %v2699, %v2701
      %v2703 = vrot.slane %v2696, %v2702
      %v2704 = vcombine.low %v1656, %v1663
      %v2706 = vunpack.c.l.s4 1983009808
      %v2707 = vunpack.c.0.s8 %v2706
      %v2708 = vlaneseq
      %v2709 = vshrl.u32 %v2708, 7
      %v2710 = vsub.s32 %v2707, %v2709
      %v2711 = vrot.slane %v2704, %v2710
      %v2712 = vcombine.low %v1666, %v1667
      %v2714 = vunpack.c.l.s4 1983009808
      %v2715 = vunpack.c.0.s8 %v2714
      %v2716 = vlaneseq
      %v2717 = vshrl.u32 %v2716, 7
      %v2718 = vsub.s32 %v2715, %v2717
      %v2719 = vrot.slane %v2712, %v2718
      %v2720 = vcombine.low %v2695, %v2703
      %v2721 = vcombine.high %v2695, %v2703
      %v2723 = vunpack.c.l.s4 1934713408
      %v2724 = vunpack.c.0.s8 %v2723
      %v2725 = vlaneseq
      %v2726 = vshrl.u32 %v2725, 7
      %v2727 = vsub.s32 %v2724, %v2726
      %v2728 = vrot.slane %v2720, %v2727
      %v2730 = vunpack.c.l.s4 1934713408
      %v2731 = vunpack.c.0.s8 %v2730
      %v2732 = vlaneseq
      %v2733 = vshrl.u32 %v2732, 7
      %v2734 = vsub.s32 %v2731, %v2733
      %v2735 = vrot.slane %v2721, %v2734
      %v2736 = vcombine.low %v2711, %v2719
      %v2737 = vcombine.high %v2711, %v2719
      %v2739 = vunpack.c.l.s4 1934713408
      %v2740 = vunpack.c.0.s8 %v2739
      %v2741 = vlaneseq
      %v2742 = vshrl.u32 %v2741, 7
      %v2743 = vsub.s32 %v2740, %v2742
      %v2744 = vrot.slane %v2736, %v2743
      %v2746 = vunpack.c.l.s4 1934713408
      %v2747 = vunpack.c.0.s8 %v2746
      %v2748 = vlaneseq
      %v2749 = vshrl.u32 %v2748, 7
      %v2750 = vsub.s32 %v2747, %v2749
      %v2751 = vrot.slane %v2737, %v2750
      %v2752 = vcombine.low %v2728, %v2744
      %v2753 = vcombine.high %v2728, %v2744
      %v2754 = vcombine.low %v2735, %v2751
      %v2755 = vcombine.high %v2735, %v2751
      %v2756 = vcombine.low %v1708, %v1715
      %v2758 = vunpack.c.l.s4 1983009808
      %v2759 = vunpack.c.0.s8 %v2758
      %v2760 = vlaneseq
      %v2761 = vshrl.u32 %v2760, 7
      %v2762 = vsub.s32 %v2759, %v2761
      %v2763 = vrot.slane %v2756, %v2762
      %v2764 = vcombine.low %v1732, %v1733
      %v2766 = vunpack.c.l.s4 1983009808
      %v2767 = vunpack.c.0.s8 %v2766
      %v2768 = vlaneseq
      %v2769 = vshrl.u32 %v2768, 7
      %v2770 = vsub.s32 %v2767, %v2769
      %v2771 = vrot.slane %v2764, %v2770
      %v2772 = vcombine.low %v1724, %v1731
      %v2774 = vunpack.c.l.s4 1983009808
      %v2775 = vunpack.c.0.s8 %v2774
      %v2776 = vlaneseq
      %v2777 = vshrl.u32 %v2776, 7
      %v2778 = vsub.s32 %v2775, %v2777
      %v2779 = vrot.slane %v2772, %v2778
      %v2780 = vcombine.low %v1734, %v1735
      %v2782 = vunpack.c.l.s4 1983009808
      %v2783 = vunpack.c.0.s8 %v2782
      %v2784 = vlaneseq
      %v2785 = vshrl.u32 %v2784, 7
      %v2786 = vsub.s32 %v2783, %v2785
      %v2787 = vrot.slane %v2780, %v2786
      %v2788 = vcombine.low %v2763, %v2771
      %v2789 = vcombine.high %v2763, %v2771
      %v2791 = vunpack.c.l.s4 1934713408
      %v2792 = vunpack.c.0.s8 %v2791
      %v2793 = vlaneseq
      %v2794 = vshrl.u32 %v2793, 7
      %v2795 = vsub.s32 %v2792, %v2794
      %v2796 = vrot.slane %v2788, %v2795
      %v2798 = vunpack.c.l.s4 1934713408
      %v2799 = vunpack.c.0.s8 %v2798
      %v2800 = vlaneseq
      %v2801 = vshrl.u32 %v2800, 7
      %v2802 = vsub.s32 %v2799, %v2801
      %v2803 = vrot.slane %v2789, %v2802
      %v2804 = vcombine.low %v2779, %v2787
      %v2805 = vcombine.high %v2779, %v2787
      %v2807 = vunpack.c.l.s4 1934713408
      %v2808 = vunpack.c.0.s8 %v2807
      %v2809 = vlaneseq
      %v2810 = vshrl.u32 %v2809, 7
      %v2811 = vsub.s32 %v2808, %v2810
      %v2812 = vrot.slane %v2804, %v2811
      %v2814 = vunpack.c.l.s4 1934713408
      %v2815 = vunpack.c.0.s8 %v2814
      %v2816 = vlaneseq
      %v2817 = vshrl.u32 %v2816, 7
      %v2818 = vsub.s32 %v2815, %v2817
      %v2819 = vrot.slane %v2805, %v2818
      %v2820 = vcombine.low %v2796, %v2812
      %v2821 = vcombine.high %v2796, %v2812
      %v2822 = vcombine.low %v2803, %v2819
      %v2823 = vcombine.high %v2803, %v2819
      %v2824 = vcombine.low %v1776, %v1783
      %v2826 = vunpack.c.l.s4 1983009808
      %v2827 = vunpack.c.0.s8 %v2826
      %v2828 = vlaneseq
      %v2829 = vshrl.u32 %v2828, 7
      %v2830 = vsub.s32 %v2827, %v2829
      %v2831 = vrot.slane %v2824, %v2830
      %v2832 = vcombine.low %v1800, %v1801
      %v2834 = vunpack.c.l.s4 1983009808
      %v2835 = vunpack.c.0.s8 %v2834
      %v2836 = vlaneseq
      %v2837 = vshrl.u32 %v2836, 7
      %v2838 = vsub.s32 %v2835, %v2837
      %v2839 = vrot.slane %v2832, %v2838
      %v2840 = vcombine.low %v1792, %v1799
      %v2842 = vunpack.c.l.s4 1983009808
      %v2843 = vunpack.c.0.s8 %v2842
      %v2844 = vlaneseq
      %v2845 = vshrl.u32 %v2844, 7
      %v2846 = vsub.s32 %v2843, %v2845
      %v2847 = vrot.slane %v2840, %v2846
      %v2848 = vcombine.low %v1802, %v1803
      %v2850 = vunpack.c.l.s4 1983009808
      %v2851 = vunpack.c.0.s8 %v2850
      %v2852 = vlaneseq
      %v2853 = vshrl.u32 %v2852, 7
      %v2854 = vsub.s32 %v2851, %v2853
      %v2855 = vrot.slane %v2848, %v2854
      %v2856 = vcombine.low %v2831, %v2839
      %v2857 = vcombine.high %v2831, %v2839
      %v2859 = vunpack.c.l.s4 1934713408
      %v2860 = vunpack.c.0.s8 %v2859
      %v2861 = vlaneseq
      %v2862 = vshrl.u32 %v2861, 7
      %v2863 = vsub.s32 %v2860, %v2862
      %v2864 = vrot.slane %v2856, %v2863
      %v2866 = vunpack.c.l.s4 1934713408
      %v2867 = vunpack.c.0.s8 %v2866
      %v2868 = vlaneseq
      %v2869 = vshrl.u32 %v2868, 7
      %v2870 = vsub.s32 %v2867, %v2869
      %v2871 = vrot.slane %v2857, %v2870
      %v2872 = vcombine.low %v2847, %v2855
      %v2873 = vcombine.high %v2847, %v2855
      %v2875 = vunpack.c.l.s4 1934713408
      %v2876 = vunpack.c.0.s8 %v2875
      %v2877 = vlaneseq
      %v2878 = vshrl.u32 %v2877, 7
      %v2879 = vsub.s32 %v2876, %v2878
      %v2880 = vrot.slane %v2872, %v2879
      %v2882 = vunpack.c.l.s4 1934713408
      %v2883 = vunpack.c.0.s8 %v2882
      %v2884 = vlaneseq
      %v2885 = vshrl.u32 %v2884, 7
      %v2886 = vsub.s32 %v2883, %v2885
      %v2887 = vrot.slane %v2873, %v2886
      %v2888 = vcombine.low %v2864, %v2880
      %v2889 = vcombine.high %v2864, %v2880
      %v2890 = vcombine.low %v2871, %v2887
      %v2891 = vcombine.high %v2871, %v2887
      %v2892 = vcombine.low %v1844, %v1851
      %v2894 = vunpack.c.l.s4 1983009808
      %v2895 = vunpack.c.0.s8 %v2894
      %v2896 = vlaneseq
      %v2897 = vshrl.u32 %v2896, 7
      %v2898 = vsub.s32 %v2895, %v2897
      %v2899 = vrot.slane %v2892, %v2898
      %v2900 = vcombine.low %v1868, %v1869
      %v2902 = vunpack.c.l.s4 1983009808
      %v2903 = vunpack.c.0.s8 %v2902
      %v2904 = vlaneseq
      %v2905 = vshrl.u32 %v2904, 7
      %v2906 = vsub.s32 %v2903, %v2905
      %v2907 = vrot.slane %v2900, %v2906
      %v2908 = vcombine.low %v1860, %v1867
      %v2910 = vunpack.c.l.s4 1983009808
      %v2911 = vunpack.c.0.s8 %v2910
      %v2912 = vlaneseq
      %v2913 = vshrl.u32 %v2912, 7
      %v2914 = vsub.s32 %v2911, %v2913
      %v2915 = vrot.slane %v2908, %v2914
      %v2916 = vcombine.low %v1870, %v1871
      %v2918 = vunpack.c.l.s4 1983009808
      %v2919 = vunpack.c.0.s8 %v2918
      %v2920 = vlaneseq
      %v2921 = vshrl.u32 %v2920, 7
      %v2922 = vsub.s32 %v2919, %v2921
      %v2923 = vrot.slane %v2916, %v2922
      %v2924 = vcombine.low %v2899, %v2907
      %v2925 = vcombine.high %v2899, %v2907
      %v2927 = vunpack.c.l.s4 1934713408
      %v2928 = vunpack.c.0.s8 %v2927
      %v2929 = vlaneseq
      %v2930 = vshrl.u32 %v2929, 7
      %v2931 = vsub.s32 %v2928, %v2930
      %v2932 = vrot.slane %v2924, %v2931
      %v2934 = vunpack.c.l.s4 1934713408
      %v2935 = vunpack.c.0.s8 %v2934
      %v2936 = vlaneseq
      %v2937 = vshrl.u32 %v2936, 7
      %v2938 = vsub.s32 %v2935, %v2937
      %v2939 = vrot.slane %v2925, %v2938
      %v2940 = vcombine.low %v2915, %v2923
      %v2941 = vcombine.high %v2915, %v2923
      %v2943 = vunpack.c.l.s4 1934713408
      %v2944 = vunpack.c.0.s8 %v2943
      %v2945 = vlaneseq
      %v2946 = vshrl.u32 %v2945, 7
      %v2947 = vsub.s32 %v2944, %v2946
      %v2948 = vrot.slane %v2940, %v2947
      %v2950 = vunpack.c.l.s4 1934713408
      %v2951 = vunpack.c.0.s8 %v2950
      %v2952 = vlaneseq
      %v2953 = vshrl.u32 %v2952, 7
      %v2954 = vsub.s32 %v2951, %v2953
      %v2955 = vrot.slane %v2941, %v2954
      %v2956 = vcombine.low %v2932, %v2948
      %v2957 = vcombine.high %v2932, %v2948
      %v2958 = vcombine.low %v2939, %v2955
      %v2959 = vcombine.high %v2939, %v2955
      %v2960 = vcombine.low %v1912, %v1919
      %v2962 = vunpack.c.l.s4 1983009808
      %v2963 = vunpack.c.0.s8 %v2962
      %v2964 = vlaneseq
      %v2965 = vshrl.u32 %v2964, 7
      %v2966 = vsub.s32 %v2963, %v2965
      %v2967 = vrot.slane %v2960, %v2966
      %v2968 = vcombine.low %v1936, %v1937
      %v2970 = vunpack.c.l.s4 1983009808
      %v2971 = vunpack.c.0.s8 %v2970
      %v2972 = vlaneseq
      %v2973 = vshrl.u32 %v2972, 7
      %v2974 = vsub.s32 %v2971, %v2973
      %v2975 = vrot.slane %v2968, %v2974
      %v2976 = vcombine.low %v1928, %v1935
      %v2978 = vunpack.c.l.s4 1983009808
      %v2979 = vunpack.c.0.s8 %v2978
      %v2980 = vlaneseq
      %v2981 = vshrl.u32 %v2980, 7
      %v2982 = vsub.s32 %v2979, %v2981
      %v2983 = vrot.slane %v2976, %v2982
      %v2984 = vcombine.low %v1938, %v1939
      %v2986 = vunpack.c.l.s4 1983009808
      %v2987 = vunpack.c.0.s8 %v2986
      %v2988 = vlaneseq
      %v2989 = vshrl.u32 %v2988, 7
      %v2990 = vsub.s32 %v2987, %v2989
      %v2991 = vrot.slane %v2984, %v2990
      %v2992 = vcombine.low %v2967, %v2975
      %v2993 = vcombine.high %v2967, %v2975
      %v2995 = vunpack.c.l.s4 1934713408
      %v2996 = vunpack.c.0.s8 %v2995
      %v2997 = vlaneseq
      %v2998 = vshrl.u32 %v2997, 7
      %v2999 = vsub.s32 %v2996, %v2998
      %v3000 = vrot.slane %v2992, %v2999
      %v3002 = vunpack.c.l.s4 1934713408
      %v3003 = vunpack.c.0.s8 %v3002
      %v3004 = vlaneseq
      %v3005 = vshrl.u32 %v3004, 7
      %v3006 = vsub.s32 %v3003, %v3005
      %v3007 = vrot.slane %v2993, %v3006
      %v3008 = vcombine.low %v2983, %v2991
      %v3009 = vcombine.high %v2983, %v2991
      %v3011 = vunpack.c.l.s4 1934713408
      %v3012 = vunpack.c.0.s8 %v3011
      %v3013 = vlaneseq
      %v3014 = vshrl.u32 %v3013, 7
      %v3015 = vsub.s32 %v3012, %v3014
      %v3016 = vrot.slane %v3008, %v3015
      %v3018 = vunpack.c.l.s4 1934713408
      %v3019 = vunpack.c.0.s8 %v3018
      %v3020 = vlaneseq
      %v3021 = vshrl.u32 %v3020, 7
      %v3022 = vsub.s32 %v3019, %v3021
      %v3023 = vrot.slane %v3009, %v3022
      %v3024 = vcombine.low %v3000, %v3016
      %v3025 = vcombine.high %v3000, %v3016
      %v3026 = vcombine.low %v3007, %v3023
      %v3027 = vcombine.high %v3007, %v3023
      %v3028 = vcombine.low %v1980, %v1987
      %v3030 = vunpack.c.l.s4 1983009808
      %v3031 = vunpack.c.0.s8 %v3030
      %v3032 = vlaneseq
      %v3033 = vshrl.u32 %v3032, 7
      %v3034 = vsub.s32 %v3031, %v3033
      %v3035 = vrot.slane %v3028, %v3034
      %v3036 = vcombine.low %v2004, %v2005
      %v3038 = vunpack.c.l.s4 1983009808
      %v3039 = vunpack.c.0.s8 %v3038
      %v3040 = vlaneseq
      %v3041 = vshrl.u32 %v3040, 7
      %v3042 = vsub.s32 %v3039, %v3041
      %v3043 = vrot.slane %v3036, %v3042
      %v3044 = vcombine.low %v1996, %v2003
      %v3046 = vunpack.c.l.s4 1983009808
      %v3047 = vunpack.c.0.s8 %v3046
      %v3048 = vlaneseq
      %v3049 = vshrl.u32 %v3048, 7
      %v3050 = vsub.s32 %v3047, %v3049
      %v3051 = vrot.slane %v3044, %v3050
      %v3052 = vcombine.low %v2006, %v2007
      %v3054 = vunpack.c.l.s4 1983009808
      %v3055 = vunpack.c.0.s8 %v3054
      %v3056 = vlaneseq
      %v3057 = vshrl.u32 %v3056, 7
      %v3058 = vsub.s32 %v3055, %v3057
      %v3059 = vrot.slane %v3052, %v3058
      %v3060 = vcombine.low %v3035, %v3043
      %v3061 = vcombine.high %v3035, %v3043
      %v3063 = vunpack.c.l.s4 1934713408
      %v3064 = vunpack.c.0.s8 %v3063
      %v3065 = vlaneseq
      %v3066 = vshrl.u32 %v3065, 7
      %v3067 = vsub.s32 %v3064, %v3066
      %v3068 = vrot.slane %v3060, %v3067
      %v3070 = vunpack.c.l.s4 1934713408
      %v3071 = vunpack.c.0.s8 %v3070
      %v3072 = vlaneseq
      %v3073 = vshrl.u32 %v3072, 7
      %v3074 = vsub.s32 %v3071, %v3073
      %v3075 = vrot.slane %v3061, %v3074
      %v3076 = vcombine.low %v3051, %v3059
      %v3077 = vcombine.high %v3051, %v3059
      %v3079 = vunpack.c.l.s4 1934713408
      %v3080 = vunpack.c.0.s8 %v3079
      %v3081 = vlaneseq
      %v3082 = vshrl.u32 %v3081, 7
      %v3083 = vsub.s32 %v3080, %v3082
      %v3084 = vrot.slane %v3076, %v3083
      %v3086 = vunpack.c.l.s4 1934713408
      %v3087 = vunpack.c.0.s8 %v3086
      %v3088 = vlaneseq
      %v3089 = vshrl.u32 %v3088, 7
      %v3090 = vsub.s32 %v3087, %v3089
      %v3091 = vrot.slane %v3077, %v3090
      %v3092 = vcombine.low %v3068, %v3084
      %v3093 = vcombine.high %v3068, %v3084
      %v3094 = vcombine.low %v3075, %v3091
      %v3095 = vcombine.high %v3075, %v3091
      %v3096 = vcombine.low %v2048, %v2055
      %v3098 = vunpack.c.l.s4 1983009808
      %v3099 = vunpack.c.0.s8 %v3098
      %v3100 = vlaneseq
      %v3101 = vshrl.u32 %v3100, 7
      %v3102 = vsub.s32 %v3099, %v3101
      %v3103 = vrot.slane %v3096, %v3102
      %v3104 = vcombine.low %v2072, %v2073
      %v3106 = vunpack.c.l.s4 1983009808
      %v3107 = vunpack.c.0.s8 %v3106
      %v3108 = vlaneseq
      %v3109 = vshrl.u32 %v3108, 7
      %v3110 = vsub.s32 %v3107, %v3109
      %v3111 = vrot.slane %v3104, %v3110
      %v3112 = vcombine.low %v2064, %v2071
      %v3114 = vunpack.c.l.s4 1983009808
      %v3115 = vunpack.c.0.s8 %v3114
      %v3116 = vlaneseq
      %v3117 = vshrl.u32 %v3116, 7
      %v3118 = vsub.s32 %v3115, %v3117
      %v3119 = vrot.slane %v3112, %v3118
      %v3120 = vcombine.low %v2074, %v2075
      %v3122 = vunpack.c.l.s4 1983009808
      %v3123 = vunpack.c.0.s8 %v3122
      %v3124 = vlaneseq
      %v3125 = vshrl.u32 %v3124, 7
      %v3126 = vsub.s32 %v3123, %v3125
      %v3127 = vrot.slane %v3120, %v3126
      %v3128 = vcombine.low %v3103, %v3111
      %v3129 = vcombine.high %v3103, %v3111
      %v3131 = vunpack.c.l.s4 1934713408
      %v3132 = vunpack.c.0.s8 %v3131
      %v3133 = vlaneseq
      %v3134 = vshrl.u32 %v3133, 7
      %v3135 = vsub.s32 %v3132, %v3134
      %v3136 = vrot.slane %v3128, %v3135
      %v3138 = vunpack.c.l.s4 1934713408
      %v3139 = vunpack.c.0.s8 %v3138
      %v3140 = vlaneseq
      %v3141 = vshrl.u32 %v3140, 7
      %v3142 = vsub.s32 %v3139, %v3141
      %v3143 = vrot.slane %v3129, %v3142
      %v3144 = vcombine.low %v3119, %v3127
      %v3145 = vcombine.high %v3119, %v3127
      %v3147 = vunpack.c.l.s4 1934713408
      %v3148 = vunpack.c.0.s8 %v3147
      %v3149 = vlaneseq
      %v3150 = vshrl.u32 %v3149, 7
      %v3151 = vsub.s32 %v3148, %v3150
      %v3152 = vrot.slane %v3144, %v3151
      %v3154 = vunpack.c.l.s4 1934713408
      %v3155 = vunpack.c.0.s8 %v3154
      %v3156 = vlaneseq
      %v3157 = vshrl.u32 %v3156, 7
      %v3158 = vsub.s32 %v3155, %v3157
      %v3159 = vrot.slane %v3145, %v3158
      %v3160 = vcombine.low %v3136, %v3152
      %v3161 = vcombine.high %v3136, %v3152
      %v3162 = vcombine.low %v3143, %v3159
      %v3163 = vcombine.high %v3143, %v3159
      %v3164 = vcombine.low %v2116, %v2123
      %v3166 = vunpack.c.l.s4 1983009808
      %v3167 = vunpack.c.0.s8 %v3166
      %v3168 = vlaneseq
      %v3169 = vshrl.u32 %v3168, 7
      %v3170 = vsub.s32 %v3167, %v3169
      %v3171 = vrot.slane %v3164, %v3170
      %v3172 = vcombine.low %v2140, %v2141
      %v3174 = vunpack.c.l.s4 1983009808
      %v3175 = vunpack.c.0.s8 %v3174
      %v3176 = vlaneseq
      %v3177 = vshrl.u32 %v3176, 7
      %v3178 = vsub.s32 %v3175, %v3177
      %v3179 = vrot.slane %v3172, %v3178
      %v3180 = vcombine.low %v2132, %v2139
      %v3182 = vunpack.c.l.s4 1983009808
      %v3183 = vunpack.c.0.s8 %v3182
      %v3184 = vlaneseq
      %v3185 = vshrl.u32 %v3184, 7
      %v3186 = vsub.s32 %v3183, %v3185
      %v3187 = vrot.slane %v3180, %v3186
      %v3188 = vcombine.low %v2142, %v2143
      %v3190 = vunpack.c.l.s4 1983009808
      %v3191 = vunpack.c.0.s8 %v3190
      %v3192 = vlaneseq
      %v3193 = vshrl.u32 %v3192, 7
      %v3194 = vsub.s32 %v3191, %v3193
      %v3195 = vrot.slane %v3188, %v3194
      %v3196 = vcombine.low %v3171, %v3179
      %v3197 = vcombine.high %v3171, %v3179
      %v3199 = vunpack.c.l.s4 1934713408
      %v3200 = vunpack.c.0.s8 %v3199
      %v3201 = vlaneseq
      %v3202 = vshrl.u32 %v3201, 7
      %v3203 = vsub.s32 %v3200, %v3202
      %v3204 = vrot.slane %v3196, %v3203
      %v3206 = vunpack.c.l.s4 1934713408
      %v3207 = vunpack.c.0.s8 %v3206
      %v3208 = vlaneseq
      %v3209 = vshrl.u32 %v3208, 7
      %v3210 = vsub.s32 %v3207, %v3209
      %v3211 = vrot.slane %v3197, %v3210
      %v3212 = vcombine.low %v3187, %v3195
      %v3213 = vcombine.high %v3187, %v3195
      %v3215 = vunpack.c.l.s4 1934713408
      %v3216 = vunpack.c.0.s8 %v3215
      %v3217 = vlaneseq
      %v3218 = vshrl.u32 %v3217, 7
      %v3219 = vsub.s32 %v3216, %v3218
      %v3220 = vrot.slane %v3212, %v3219
      %v3222 = vunpack.c.l.s4 1934713408
      %v3223 = vunpack.c.0.s8 %v3222
      %v3224 = vlaneseq
      %v3225 = vshrl.u32 %v3224, 7
      %v3226 = vsub.s32 %v3223, %v3225
      %v3227 = vrot.slane %v3213, %v3226
      %v3228 = vcombine.low %v3204, %v3220
      %v3229 = vcombine.high %v3204, %v3220
      %v3230 = vcombine.low %v3211, %v3227
      %v3231 = vcombine.high %v3211, %v3227
      %v3232 = vpack.c.bf16 %v2276, %v2208
      %v3233 = vpack.c.bf16 %v2412, %v2344
      %v3234 = vpack.c.bf16 %v2548, %v2480
      %v3235 = vpack.c.bf16 %v2684, %v2616
      %v3236 = vpack.c.bf16 %v2820, %v2752
      %v3237 = vpack.c.bf16 %v2956, %v2888
      %v3238 = vpack.c.bf16 %v3092, %v3024
      %v3239 = vpack.c.bf16 %v3228, %v3160
      %v3240 = vpack.c.bf16 %v2277, %v2209
      %v3241 = vpack.c.bf16 %v2413, %v2345
      %v3242 = vpack.c.bf16 %v2549, %v2481
      %v3243 = vpack.c.bf16 %v2685, %v2617
      %v3244 = vpack.c.bf16 %v2821, %v2753
      %v3245 = vpack.c.bf16 %v2957, %v2889
      %v3246 = vpack.c.bf16 %v3093, %v3025
      %v3247 = vpack.c.bf16 %v3229, %v3161
      %v3248 = vpack.c.bf16 %v2278, %v2210
      %v3249 = vpack.c.bf16 %v2414, %v2346
      %v3250 = vpack.c.bf16 %v2550, %v2482
      %v3251 = vpack.c.bf16 %v2686, %v2618
      %v3252 = vpack.c.bf16 %v2822, %v2754
      %v3253 = vpack.c.bf16 %v2958, %v2890
      %v3254 = vpack.c.bf16 %v3094, %v3026
      %v3255 = vpack.c.bf16 %v3230, %v3162
      %v3256 = vpack.c.bf16 %v2279, %v2211
      %v3257 = vpack.c.bf16 %v2415, %v2347
      %v3258 = vpack.c.bf16 %v2551, %v2483
      %v3259 = vpack.c.bf16 %v2687, %v2619
      %v3260 = vpack.c.bf16 %v2823, %v2755
      %v3261 = vpack.c.bf16 %v2959, %v2891
      %v3262 = vpack.c.bf16 %v3095, %v3027
      %v3263 = vpack.c.bf16 %v3231, %v3163
      %v3296 = vunpack.c.l.b16 %v3232
      %v3297 = vunpack.c.h.b16 %v3232
      %v3298 = vunpack.c.l.b16 %v3233
      %v3299 = vunpack.c.h.b16 %v3233
      %v3300 = vunpack.c.l.b16 %v3234
      %v3301 = vunpack.c.h.b16 %v3234
      %v3302 = vunpack.c.l.b16 %v3235
      %v3303 = vunpack.c.h.b16 %v3235
      %v3304 = vunpack.c.l.b16 %v3236
      %v3305 = vunpack.c.h.b16 %v3236
      %v3306 = vunpack.c.l.b16 %v3237
      %v3307 = vunpack.c.h.b16 %v3237
      %v3308 = vunpack.c.l.b16 %v3238
      %v3309 = vunpack.c.h.b16 %v3238
      %v3310 = vunpack.c.l.b16 %v3239
      %v3311 = vunpack.c.h.b16 %v3239
      %v3312 = vunpack.c.l.b16 %v3240
      %v3313 = vunpack.c.h.b16 %v3240
      %v3314 = vunpack.c.l.b16 %v3241
      %v3315 = vunpack.c.h.b16 %v3241
      %v3316 = vunpack.c.l.b16 %v3242
      %v3317 = vunpack.c.h.b16 %v3242
      %v3318 = vunpack.c.l.b16 %v3243
      %v3319 = vunpack.c.h.b16 %v3243
      %v3320 = vunpack.c.l.b16 %v3244
      %v3321 = vunpack.c.h.b16 %v3244
      %v3322 = vunpack.c.l.b16 %v3245
      %v3323 = vunpack.c.h.b16 %v3245
      %v3324 = vunpack.c.l.b16 %v3246
      %v3325 = vunpack.c.h.b16 %v3246
      %v3326 = vunpack.c.l.b16 %v3247
      %v3327 = vunpack.c.h.b16 %v3247
      %v3328 = vunpack.c.l.b16 %v3248
      %v3329 = vunpack.c.h.b16 %v3248
      %v3330 = vunpack.c.l.b16 %v3249
      %v3331 = vunpack.c.h.b16 %v3249
      %v3332 = vunpack.c.l.b16 %v3250
      %v3333 = vunpack.c.h.b16 %v3250
      %v3334 = vunpack.c.l.b16 %v3251
      %v3335 = vunpack.c.h.b16 %v3251
      %v3336 = vunpack.c.l.b16 %v3252
      %v3337 = vunpack.c.h.b16 %v3252
      %v3338 = vunpack.c.l.b16 %v3253
      %v3339 = vunpack.c.h.b16 %v3253
      %v3340 = vunpack.c.l.b16 %v3254
      %v3341 = vunpack.c.h.b16 %v3254
      %v3342 = vunpack.c.l.b16 %v3255
      %v3343 = vunpack.c.h.b16 %v3255
      %v3344 = vunpack.c.l.b16 %v3256
      %v3345 = vunpack.c.h.b16 %v3256
      %v3346 = vunpack.c.l.b16 %v3257
      %v3347 = vunpack.c.h.b16 %v3257
      %v3348 = vunpack.c.l.b16 %v3258
      %v3349 = vunpack.c.h.b16 %v3258
      %v3350 = vunpack.c.l.b16 %v3259
      %v3351 = vunpack.c.h.b16 %v3259
      %v3352 = vunpack.c.l.b16 %v3260
      %v3353 = vunpack.c.h.b16 %v3260
      %v3354 = vunpack.c.l.b16 %v3261
      %v3355 = vunpack.c.h.b16 %v3261
      %v3356 = vunpack.c.l.b16 %v3262
      %v3357 = vunpack.c.h.b16 %v3262
      %v3358 = vunpack.c.l.b16 %v3263
      %v3359 = vunpack.c.h.b16 %v3263
      %v3360 = vpack.c.b16 %v3296, %v3296
      %v3361 = vpack.c.b16 %v3297, %v3297
      %v3362 = vpack.c.b16 %v3298, %v3298
      %v3363 = vpack.c.b16 %v3299, %v3299
      %v3364 = vpack.c.b16 %v3300, %v3300
      %v3365 = vpack.c.b16 %v3301, %v3301
      %v3366 = vpack.c.b16 %v3302, %v3302
      %v3367 = vpack.c.b16 %v3303, %v3303
      %v3368 = vpack.c.b16 %v3304, %v3304
      %v3369 = vpack.c.b16 %v3305, %v3305
      %v3370 = vpack.c.b16 %v3306, %v3306
      %v3371 = vpack.c.b16 %v3307, %v3307
      %v3372 = vpack.c.b16 %v3308, %v3308
      %v3373 = vpack.c.b16 %v3309, %v3309
      %v3374 = vpack.c.b16 %v3310, %v3310
      %v3375 = vpack.c.b16 %v3311, %v3311
      %v3376 = vpack.c.b16 %v3312, %v3312
      %v3377 = vpack.c.b16 %v3313, %v3313
      %v3378 = vpack.c.b16 %v3314, %v3314
      %v3379 = vpack.c.b16 %v3315, %v3315
      %v3380 = vpack.c.b16 %v3316, %v3316
      %v3381 = vpack.c.b16 %v3317, %v3317
      %v3382 = vpack.c.b16 %v3318, %v3318
      %v3383 = vpack.c.b16 %v3319, %v3319
      %v3384 = vpack.c.b16 %v3320, %v3320
      %v3385 = vpack.c.b16 %v3321, %v3321
      %v3386 = vpack.c.b16 %v3322, %v3322
      %v3387 = vpack.c.b16 %v3323, %v3323
      %v3388 = vpack.c.b16 %v3324, %v3324
      %v3389 = vpack.c.b16 %v3325, %v3325
      %v3390 = vpack.c.b16 %v3326, %v3326
      %v3391 = vpack.c.b16 %v3327, %v3327
      %v3392 = vpack.c.b16 %v3328, %v3328
      %v3393 = vpack.c.b16 %v3329, %v3329
      %v3394 = vpack.c.b16 %v3330, %v3330
      %v3395 = vpack.c.b16 %v3331, %v3331
      %v3396 = vpack.c.b16 %v3332, %v3332
      %v3397 = vpack.c.b16 %v3333, %v3333
      %v3398 = vpack.c.b16 %v3334, %v3334
      %v3399 = vpack.c.b16 %v3335, %v3335
      %v3400 = vpack.c.b16 %v3336, %v3336
      %v3401 = vpack.c.b16 %v3337, %v3337
      %v3402 = vpack.c.b16 %v3338, %v3338
      %v3403 = vpack.c.b16 %v3339, %v3339
      %v3404 = vpack.c.b16 %v3340, %v3340
      %v3405 = vpack.c.b16 %v3341, %v3341
      %v3406 = vpack.c.b16 %v3342, %v3342
      %v3407 = vpack.c.b16 %v3343, %v3343
      %v3408 = vpack.c.b16 %v3344, %v3344
      %v3409 = vpack.c.b16 %v3345, %v3345
      %v3410 = vpack.c.b16 %v3346, %v3346
      %v3411 = vpack.c.b16 %v3347, %v3347
      %v3412 = vpack.c.b16 %v3348, %v3348
      %v3413 = vpack.c.b16 %v3349, %v3349
      %v3414 = vpack.c.b16 %v3350, %v3350
      %v3415 = vpack.c.b16 %v3351, %v3351
      %v3416 = vpack.c.b16 %v3352, %v3352
      %v3417 = vpack.c.b16 %v3353, %v3353
      %v3418 = vpack.c.b16 %v3354, %v3354
      %v3419 = vpack.c.b16 %v3355, %v3355
      %v3420 = vpack.c.b16 %v3356, %v3356
      %v3421 = vpack.c.b16 %v3357, %v3357
      %v3422 = vpack.c.b16 %v3358, %v3358
      %v3423 = vpack.c.b16 %v3359, %v3359
      %vm3488 = vcmask 60416
      %3489 = vst.msk [vmem:[%s343] sm:$0xf] %vm3488, %v3360
      %3490 = vst.msk [vmem:[%s343 + $0x4] sm:$0xf] %vm3488, %v3361
      %3491 = vst.msk [vmem:[%s343 + $0x8] sm:$0xf] %vm3488, %v3362
      %3492 = vst.msk [vmem:[%s343 + $0xc] sm:$0xf] %vm3488, %v3363
      %3493 = vst.msk [vmem:[%s343 + $0x10] sm:$0xf] %vm3488, %v3364
      %3494 = vst.msk [vmem:[%s343 + $0x14] sm:$0xf] %vm3488, %v3365
      %3495 = vst.msk [vmem:[%s343 + $0x18] sm:$0xf] %vm3488, %v3366
      %3496 = vst.msk [vmem:[%s343 + $0x1c] sm:$0xf] %vm3488, %v3367
      %3497 = vst.msk [vmem:[%s343 + $0x20] sm:$0xf] %vm3488, %v3368
      %3498 = vst.msk [vmem:[%s343 + $0x24] sm:$0xf] %vm3488, %v3369
      %3499 = vst.msk [vmem:[%s343 + $0x28] sm:$0xf] %vm3488, %v3370
      %3500 = vst.msk [vmem:[%s343 + $0x2c] sm:$0xf] %vm3488, %v3371
      %3501 = vst.msk [vmem:[%s343 + $0x30] sm:$0xf] %vm3488, %v3372
      %3502 = vst.msk [vmem:[%s343 + $0x34] sm:$0xf] %vm3488, %v3373
      %3503 = vst.msk [vmem:[%s343 + $0x38] sm:$0xf] %vm3488, %v3374
      %3504 = vst.msk [vmem:[%s343 + $0x3c] sm:$0xf] %vm3488, %v3375
      %3505 = vst.msk [vmem:[%s343 + $0x40] sm:$0xf] %vm3488, %v3376
      %3506 = vst.msk [vmem:[%s343 + $0x44] sm:$0xf] %vm3488, %v3377
      %3507 = vst.msk [vmem:[%s343 + $0x48] sm:$0xf] %vm3488, %v3378
      %3508 = vst.msk [vmem:[%s343 + $0x4c] sm:$0xf] %vm3488, %v3379
      %3509 = vst.msk [vmem:[%s343 + $0x50] sm:$0xf] %vm3488, %v3380
      %3510 = vst.msk [vmem:[%s343 + $0x54] sm:$0xf] %vm3488, %v3381
      %3511 = vst.msk [vmem:[%s343 + $0x58] sm:$0xf] %vm3488, %v3382
      %3512 = vst.msk [vmem:[%s343 + $0x5c] sm:$0xf] %vm3488, %v3383
      %3513 = vst.msk [vmem:[%s343 + $0x60] sm:$0xf] %vm3488, %v3384
      %3514 = vst.msk [vmem:[%s343 + $0x64] sm:$0xf] %vm3488, %v3385
      %3515 = vst.msk [vmem:[%s343 + $0x68] sm:$0xf] %vm3488, %v3386
      %3516 = vst.msk [vmem:[%s343 + $0x6c] sm:$0xf] %vm3488, %v3387
      %3517 = vst.msk [vmem:[%s343 + $0x70] sm:$0xf] %vm3488, %v3388
      %3518 = vst.msk [vmem:[%s343 + $0x74] sm:$0xf] %vm3488, %v3389
      %3519 = vst.msk [vmem:[%s343 + $0x78] sm:$0xf] %vm3488, %v3390
      %3520 = vst.msk [vmem:[%s343 + $0x7c] sm:$0xf] %vm3488, %v3391
      %3521 = vst.msk [vmem:[%s343 + $0x80] sm:$0xf] %vm3488, %v3392
      %3522 = vst.msk [vmem:[%s343 + $0x84] sm:$0xf] %vm3488, %v3393
      %3523 = vst.msk [vmem:[%s343 + $0x88] sm:$0xf] %vm3488, %v3394
      %3524 = vst.msk [vmem:[%s343 + $0x8c] sm:$0xf] %vm3488, %v3395
      %3525 = vst.msk [vmem:[%s343 + $0x90] sm:$0xf] %vm3488, %v3396
      %3526 = vst.msk [vmem:[%s343 + $0x94] sm:$0xf] %vm3488, %v3397
      %3527 = vst.msk [vmem:[%s343 + $0x98] sm:$0xf] %vm3488, %v3398
      %3528 = vst.msk [vmem:[%s343 + $0x9c] sm:$0xf] %vm3488, %v3399
      %3529 = vst.msk [vmem:[%s343 + $0xa0] sm:$0xf] %vm3488, %v3400
      %3530 = vst.msk [vmem:[%s343 + $0xa4] sm:$0xf] %vm3488, %v3401
      %3531 = vst.msk [vmem:[%s343 + $0xa8] sm:$0xf] %vm3488, %v3402
      %3532 = vst.msk [vmem:[%s343 + $0xac] sm:$0xf] %vm3488, %v3403
      %3533 = vst.msk [vmem:[%s343 + $0xb0] sm:$0xf] %vm3488, %v3404
      %3534 = vst.msk [vmem:[%s343 + $0xb4] sm:$0xf] %vm3488, %v3405
      %3535 = vst.msk [vmem:[%s343 + $0xb8] sm:$0xf] %vm3488, %v3406
      %3536 = vst.msk [vmem:[%s343 + $0xbc] sm:$0xf] %vm3488, %v3407
      %3537 = vst.msk [vmem:[%s343 + $0xc0] sm:$0xf] %vm3488, %v3408
      %3538 = vst.msk [vmem:[%s343 + $0xc4] sm:$0xf] %vm3488, %v3409
      %3539 = vst.msk [vmem:[%s343 + $0xc8] sm:$0xf] %vm3488, %v3410
      %3540 = vst.msk [vmem:[%s343 + $0xcc] sm:$0xf] %vm3488, %v3411
      %3541 = vst.msk [vmem:[%s343 + $0xd0] sm:$0xf] %vm3488, %v3412
      %3542 = vst.msk [vmem:[%s343 + $0xd4] sm:$0xf] %vm3488, %v3413
      %3543 = vst.msk [vmem:[%s343 + $0xd8] sm:$0xf] %vm3488, %v3414
      %3544 = vst.msk [vmem:[%s343 + $0xdc] sm:$0xf] %vm3488, %v3415
      %3545 = vst.msk [vmem:[%s343 + $0xe0] sm:$0xf] %vm3488, %v3416
      %3546 = vst.msk [vmem:[%s343 + $0xe4] sm:$0xf] %vm3488, %v3417
      %3547 = vst.msk [vmem:[%s343 + $0xe8] sm:$0xf] %vm3488, %v3418
      %3548 = vst.msk [vmem:[%s343 + $0xec] sm:$0xf] %vm3488, %v3419
      %3549 = vst.msk [vmem:[%s343 + $0xf0] sm:$0xf] %vm3488, %v3420
      %3550 = vst.msk [vmem:[%s343 + $0xf4] sm:$0xf] %vm3488, %v3421
      %3551 = vst.msk [vmem:[%s343 + $0xf8] sm:$0xf] %vm3488, %v3422
      %3552 = vst.msk [vmem:[%s343 + $0xfc] sm:$0xf] %vm3488, %v3423
      %3569 = vrot.lane.b32.xlu0 %v834, 120
      %v3570 = vpop.permute.xlu0 %3569
      %3571 = vrot.lane.b32.xlu0 %v837, 120
      %v3572 = vpop.permute.xlu0 %3571
      %3573 = vrot.lane.b32.xlu0 %v842, 120
      %v3574 = vpop.permute.xlu0 %3573
      %3575 = vrot.lane.b32.xlu0 %v845, 120
      %v3576 = vpop.permute.xlu0 %3575
      %3577 = vrot.lane.b32.xlu0 %v850, 120
      %v3578 = vpop.permute.xlu0 %3577
      %3579 = vrot.lane.b32.xlu0 %v853, 120
      %v3580 = vpop.permute.xlu0 %3579
      %3581 = vrot.lane.b32.xlu0 %v858, 120
      %v3582 = vpop.permute.xlu0 %3581
      %3583 = vrot.lane.b32.xlu0 %v861, 120
      %v3584 = vpop.permute.xlu0 %3583
      %3585 = vrot.lane.b32.xlu0 %v866, 120
      %v3586 = vpop.permute.xlu0 %3585
      %3587 = vrot.lane.b32.xlu0 %v869, 120
      %v3588 = vpop.permute.xlu0 %3587
      %3589 = vrot.lane.b32.xlu0 %v874, 120
      %v3590 = vpop.permute.xlu0 %3589
      %3591 = vrot.lane.b32.xlu0 %v877, 120
      %v3592 = vpop.permute.xlu0 %3591
      %3593 = vrot.lane.b32.xlu0 %v882, 120
      %v3594 = vpop.permute.xlu0 %3593
      %3595 = vrot.lane.b32.xlu0 %v885, 120
      %v3596 = vpop.permute.xlu0 %3595
      %3597 = vrot.lane.b32.xlu0 %v890, 120
      %v3598 = vpop.permute.xlu0 %3597
      %3599 = vrot.lane.b32.xlu0 %v893, 120
      %v3600 = vpop.permute.xlu0 %3599
      %3617 = vrot.lane.b32.xlu0 %v834, 112
      %v3618 = vpop.permute.xlu0 %3617
      %3619 = vrot.lane.b32.xlu0 %v837, 112
      %v3620 = vpop.permute.xlu0 %3619
      %3621 = vrot.lane.b32.xlu0 %v842, 112
      %v3622 = vpop.permute.xlu0 %3621
      %3623 = vrot.lane.b32.xlu0 %v845, 112
      %v3624 = vpop.permute.xlu0 %3623
      %3625 = vrot.lane.b32.xlu0 %v850, 112
      %v3626 = vpop.permute.xlu0 %3625
      %3627 = vrot.lane.b32.xlu0 %v853, 112
      %v3628 = vpop.permute.xlu0 %3627
      %3629 = vrot.lane.b32.xlu0 %v858, 112
      %v3630 = vpop.permute.xlu0 %3629
      %3631 = vrot.lane.b32.xlu0 %v861, 112
      %v3632 = vpop.permute.xlu0 %3631
      %3633 = vrot.lane.b32.xlu0 %v866, 112
      %v3634 = vpop.permute.xlu0 %3633
      %3635 = vrot.lane.b32.xlu0 %v869, 112
      %v3636 = vpop.permute.xlu0 %3635
      %3637 = vrot.lane.b32.xlu0 %v874, 112
      %v3638 = vpop.permute.xlu0 %3637
      %3639 = vrot.lane.b32.xlu0 %v877, 112
      %v3640 = vpop.permute.xlu0 %3639
      %3641 = vrot.lane.b32.xlu0 %v882, 112
      %v3642 = vpop.permute.xlu0 %3641
      %3643 = vrot.lane.b32.xlu0 %v885, 112
      %v3644 = vpop.permute.xlu0 %3643
      %3645 = vrot.lane.b32.xlu0 %v890, 112
      %v3646 = vpop.permute.xlu0 %3645
      %3647 = vrot.lane.b32.xlu0 %v893, 112
      %v3648 = vpop.permute.xlu0 %3647
      %3665 = vrot.lane.b32.xlu0 %v834, 104
      %v3666 = vpop.permute.xlu0 %3665
      %3667 = vrot.lane.b32.xlu0 %v837, 104
      %v3668 = vpop.permute.xlu0 %3667
      %3669 = vrot.lane.b32.xlu0 %v842, 104
      %v3670 = vpop.permute.xlu0 %3669
      %3671 = vrot.lane.b32.xlu0 %v845, 104
      %v3672 = vpop.permute.xlu0 %3671
      %3673 = vrot.lane.b32.xlu0 %v850, 104
      %v3674 = vpop.permute.xlu0 %3673
      %3675 = vrot.lane.b32.xlu0 %v853, 104
      %v3676 = vpop.permute.xlu0 %3675
      %3677 = vrot.lane.b32.xlu0 %v858, 104
      %v3678 = vpop.permute.xlu0 %3677
      %3679 = vrot.lane.b32.xlu0 %v861, 104
      %v3680 = vpop.permute.xlu0 %3679
      %3681 = vrot.lane.b32.xlu0 %v866, 104
      %v3682 = vpop.permute.xlu0 %3681
      %3683 = vrot.lane.b32.xlu0 %v869, 104
      %v3684 = vpop.permute.xlu0 %3683
      %3685 = vrot.lane.b32.xlu0 %v874, 104
      %v3686 = vpop.permute.xlu0 %3685
      %3687 = vrot.lane.b32.xlu0 %v877, 104
      %v3688 = vpop.permute.xlu0 %3687
      %3689 = vrot.lane.b32.xlu0 %v882, 104
      %v3690 = vpop.permute.xlu0 %3689
      %3691 = vrot.lane.b32.xlu0 %v885, 104
      %v3692 = vpop.permute.xlu0 %3691
      %3693 = vrot.lane.b32.xlu0 %v890, 104
      %v3694 = vpop.permute.xlu0 %3693
      %3695 = vrot.lane.b32.xlu0 %v893, 104
      %v3696 = vpop.permute.xlu0 %3695
      %v3713 = vcombine.low %v834, %v3618
      %v3714 = vcombine.high %v834, %v3618
      %v3716 = vunpack.c.l.s4 1983009808
      %v3717 = vunpack.c.0.s8 %v3716
      %v3718 = vlaneseq
      %v3719 = vshrl.u32 %v3718, 7
      %v3720 = vsub.s32 %v3717, %v3719
      %v3721 = vrot.slane %v3713, %v3720
      %v3723 = vunpack.c.l.s4 1983009808
      %v3724 = vunpack.c.0.s8 %v3723
      %v3725 = vlaneseq
      %v3726 = vshrl.u32 %v3725, 7
      %v3727 = vsub.s32 %v3724, %v3726
      %v3728 = vrot.slane %v3714, %v3727
      %v3729 = vcombine.low %v3570, %v3666
      %v3730 = vcombine.high %v3570, %v3666
      %v3732 = vunpack.c.l.s4 1983009808
      %v3733 = vunpack.c.0.s8 %v3732
      %v3734 = vlaneseq
      %v3735 = vshrl.u32 %v3734, 7
      %v3736 = vsub.s32 %v3733, %v3735
      %v3737 = vrot.slane %v3729, %v3736
      %v3739 = vunpack.c.l.s4 1983009808
      %v3740 = vunpack.c.0.s8 %v3739
      %v3741 = vlaneseq
      %v3742 = vshrl.u32 %v3741, 7
      %v3743 = vsub.s32 %v3740, %v3742
      %v3744 = vrot.slane %v3730, %v3743
      %v3745 = vcombine.low %v3721, %v3737
      %v3746 = vcombine.high %v3721, %v3737
      %v3748 = vunpack.c.l.s4 1934713408
      %v3749 = vunpack.c.0.s8 %v3748
      %v3750 = vlaneseq
      %v3751 = vshrl.u32 %v3750, 7
      %v3752 = vsub.s32 %v3749, %v3751
      %v3753 = vrot.slane %v3745, %v3752
      %v3755 = vunpack.c.l.s4 1934713408
      %v3756 = vunpack.c.0.s8 %v3755
      %v3757 = vlaneseq
      %v3758 = vshrl.u32 %v3757, 7
      %v3759 = vsub.s32 %v3756, %v3758
      %v3760 = vrot.slane %v3746, %v3759
      %v3761 = vcombine.low %v3728, %v3744
      %v3762 = vcombine.high %v3728, %v3744
      %v3764 = vunpack.c.l.s4 1934713408
      %v3765 = vunpack.c.0.s8 %v3764
      %v3766 = vlaneseq
      %v3767 = vshrl.u32 %v3766, 7
      %v3768 = vsub.s32 %v3765, %v3767
      %v3769 = vrot.slane %v3761, %v3768
      %v3771 = vunpack.c.l.s4 1934713408
      %v3772 = vunpack.c.0.s8 %v3771
      %v3773 = vlaneseq
      %v3774 = vshrl.u32 %v3773, 7
      %v3775 = vsub.s32 %v3772, %v3774
      %v3776 = vrot.slane %v3762, %v3775
      %v3777 = vcombine.high %v3753, 0.0
      %v3778 = vcombine.high %v3760, 0.0
      %v3779 = vcombine.high %v3769, 0.0
      %v3780 = vcombine.high %v3776, 0.0
      %v3781 = vcombine.low %v837, %v3620
      %v3782 = vcombine.high %v837, %v3620
      %v3784 = vunpack.c.l.s4 1983009808
      %v3785 = vunpack.c.0.s8 %v3784
      %v3786 = vlaneseq
      %v3787 = vshrl.u32 %v3786, 7
      %v3788 = vsub.s32 %v3785, %v3787
      %v3789 = vrot.slane %v3781, %v3788
      %v3791 = vunpack.c.l.s4 1983009808
      %v3792 = vunpack.c.0.s8 %v3791
      %v3793 = vlaneseq
      %v3794 = vshrl.u32 %v3793, 7
      %v3795 = vsub.s32 %v3792, %v3794
      %v3796 = vrot.slane %v3782, %v3795
      %v3797 = vcombine.low %v3572, %v3668
      %v3798 = vcombine.high %v3572, %v3668
      %v3800 = vunpack.c.l.s4 1983009808
      %v3801 = vunpack.c.0.s8 %v3800
      %v3802 = vlaneseq
      %v3803 = vshrl.u32 %v3802, 7
      %v3804 = vsub.s32 %v3801, %v3803
      %v3805 = vrot.slane %v3797, %v3804
      %v3807 = vunpack.c.l.s4 1983009808
      %v3808 = vunpack.c.0.s8 %v3807
      %v3809 = vlaneseq
      %v3810 = vshrl.u32 %v3809, 7
      %v3811 = vsub.s32 %v3808, %v3810
      %v3812 = vrot.slane %v3798, %v3811
      %v3813 = vcombine.low %v3789, %v3805
      %v3814 = vcombine.high %v3789, %v3805
      %v3816 = vunpack.c.l.s4 1934713408
      %v3817 = vunpack.c.0.s8 %v3816
      %v3818 = vlaneseq
      %v3819 = vshrl.u32 %v3818, 7
      %v3820 = vsub.s32 %v3817, %v3819
      %v3821 = vrot.slane %v3813, %v3820
      %v3823 = vunpack.c.l.s4 1934713408
      %v3824 = vunpack.c.0.s8 %v3823
      %v3825 = vlaneseq
      %v3826 = vshrl.u32 %v3825, 7
      %v3827 = vsub.s32 %v3824, %v3826
      %v3828 = vrot.slane %v3814, %v3827
      %v3829 = vcombine.low %v3796, %v3812
      %v3830 = vcombine.high %v3796, %v3812
      %v3832 = vunpack.c.l.s4 1934713408
      %v3833 = vunpack.c.0.s8 %v3832
      %v3834 = vlaneseq
      %v3835 = vshrl.u32 %v3834, 7
      %v3836 = vsub.s32 %v3833, %v3835
      %v3837 = vrot.slane %v3829, %v3836
      %v3839 = vunpack.c.l.s4 1934713408
      %v3840 = vunpack.c.0.s8 %v3839
      %v3841 = vlaneseq
      %v3842 = vshrl.u32 %v3841, 7
      %v3843 = vsub.s32 %v3840, %v3842
      %v3844 = vrot.slane %v3830, %v3843
      %v3845 = vcombine.high %v3821, 0.0
      %v3846 = vcombine.high %v3828, 0.0
      %v3847 = vcombine.high %v3837, 0.0
      %v3848 = vcombine.high %v3844, 0.0
      %v3849 = vcombine.low %v842, %v3622
      %v3850 = vcombine.high %v842, %v3622
      %v3852 = vunpack.c.l.s4 1983009808
      %v3853 = vunpack.c.0.s8 %v3852
      %v3854 = vlaneseq
      %v3855 = vshrl.u32 %v3854, 7
      %v3856 = vsub.s32 %v3853, %v3855
      %v3857 = vrot.slane %v3849, %v3856
      %v3859 = vunpack.c.l.s4 1983009808
      %v3860 = vunpack.c.0.s8 %v3859
      %v3861 = vlaneseq
      %v3862 = vshrl.u32 %v3861, 7
      %v3863 = vsub.s32 %v3860, %v3862
      %v3864 = vrot.slane %v3850, %v3863
      %v3865 = vcombine.low %v3574, %v3670
      %v3866 = vcombine.high %v3574, %v3670
      %v3868 = vunpack.c.l.s4 1983009808
      %v3869 = vunpack.c.0.s8 %v3868
      %v3870 = vlaneseq
      %v3871 = vshrl.u32 %v3870, 7
      %v3872 = vsub.s32 %v3869, %v3871
      %v3873 = vrot.slane %v3865, %v3872
      %v3875 = vunpack.c.l.s4 1983009808
      %v3876 = vunpack.c.0.s8 %v3875
      %v3877 = vlaneseq
      %v3878 = vshrl.u32 %v3877, 7
      %v3879 = vsub.s32 %v3876, %v3878
      %v3880 = vrot.slane %v3866, %v3879
      %v3881 = vcombine.low %v3857, %v3873
      %v3882 = vcombine.high %v3857, %v3873
      %v3884 = vunpack.c.l.s4 1934713408
      %v3885 = vunpack.c.0.s8 %v3884
      %v3886 = vlaneseq
      %v3887 = vshrl.u32 %v3886, 7
      %v3888 = vsub.s32 %v3885, %v3887
      %v3889 = vrot.slane %v3881, %v3888
      %v3891 = vunpack.c.l.s4 1934713408
      %v3892 = vunpack.c.0.s8 %v3891
      %v3893 = vlaneseq
      %v3894 = vshrl.u32 %v3893, 7
      %v3895 = vsub.s32 %v3892, %v3894
      %v3896 = vrot.slane %v3882, %v3895
      %v3897 = vcombine.low %v3864, %v3880
      %v3898 = vcombine.high %v3864, %v3880
      %v3900 = vunpack.c.l.s4 1934713408
      %v3901 = vunpack.c.0.s8 %v3900
      %v3902 = vlaneseq
      %v3903 = vshrl.u32 %v3902, 7
      %v3904 = vsub.s32 %v3901, %v3903
      %v3905 = vrot.slane %v3897, %v3904
      %v3907 = vunpack.c.l.s4 1934713408
      %v3908 = vunpack.c.0.s8 %v3907
      %v3909 = vlaneseq
      %v3910 = vshrl.u32 %v3909, 7
      %v3911 = vsub.s32 %v3908, %v3910
      %v3912 = vrot.slane %v3898, %v3911
      %v3913 = vcombine.high %v3889, 0.0
      %v3914 = vcombine.high %v3896, 0.0
      %v3915 = vcombine.high %v3905, 0.0
      %v3916 = vcombine.high %v3912, 0.0
      %v3917 = vcombine.low %v845, %v3624
      %v3918 = vcombine.high %v845, %v3624
      %v3920 = vunpack.c.l.s4 1983009808
      %v3921 = vunpack.c.0.s8 %v3920
      %v3922 = vlaneseq
      %v3923 = vshrl.u32 %v3922, 7
      %v3924 = vsub.s32 %v3921, %v3923
      %v3925 = vrot.slane %v3917, %v3924
      %v3927 = vunpack.c.l.s4 1983009808
      %v3928 = vunpack.c.0.s8 %v3927
      %v3929 = vlaneseq
      %v3930 = vshrl.u32 %v3929, 7
      %v3931 = vsub.s32 %v3928, %v3930
      %v3932 = vrot.slane %v3918, %v3931
      %v3933 = vcombine.low %v3576, %v3672
      %v3934 = vcombine.high %v3576, %v3672
      %v3936 = vunpack.c.l.s4 1983009808
      %v3937 = vunpack.c.0.s8 %v3936
      %v3938 = vlaneseq
      %v3939 = vshrl.u32 %v3938, 7
      %v3940 = vsub.s32 %v3937, %v3939
      %v3941 = vrot.slane %v3933, %v3940
      %v3943 = vunpack.c.l.s4 1983009808
      %v3944 = vunpack.c.0.s8 %v3943
      %v3945 = vlaneseq
      %v3946 = vshrl.u32 %v3945, 7
      %v3947 = vsub.s32 %v3944, %v3946
      %v3948 = vrot.slane %v3934, %v3947
      %v3949 = vcombine.low %v3925, %v3941
      %v3950 = vcombine.high %v3925, %v3941
      %v3952 = vunpack.c.l.s4 1934713408
      %v3953 = vunpack.c.0.s8 %v3952
      %v3954 = vlaneseq
      %v3955 = vshrl.u32 %v3954, 7
      %v3956 = vsub.s32 %v3953, %v3955
      %v3957 = vrot.slane %v3949, %v3956
      %v3959 = vunpack.c.l.s4 1934713408
      %v3960 = vunpack.c.0.s8 %v3959
      %v3961 = vlaneseq
      %v3962 = vshrl.u32 %v3961, 7
      %v3963 = vsub.s32 %v3960, %v3962
      %v3964 = vrot.slane %v3950, %v3963
      %v3965 = vcombine.low %v3932, %v3948
      %v3966 = vcombine.high %v3932, %v3948
      %v3968 = vunpack.c.l.s4 1934713408
      %v3969 = vunpack.c.0.s8 %v3968
      %v3970 = vlaneseq
      %v3971 = vshrl.u32 %v3970, 7
      %v3972 = vsub.s32 %v3969, %v3971
      %v3973 = vrot.slane %v3965, %v3972
      %v3975 = vunpack.c.l.s4 1934713408
      %v3976 = vunpack.c.0.s8 %v3975
      %v3977 = vlaneseq
      %v3978 = vshrl.u32 %v3977, 7
      %v3979 = vsub.s32 %v3976, %v3978
      %v3980 = vrot.slane %v3966, %v3979
      %v3981 = vcombine.high %v3957, 0.0
      %v3982 = vcombine.high %v3964, 0.0
      %v3983 = vcombine.high %v3973, 0.0
      %v3984 = vcombine.high %v3980, 0.0
      %v3985 = vcombine.low %v850, %v3626
      %v3986 = vcombine.high %v850, %v3626
      %v3988 = vunpack.c.l.s4 1983009808
      %v3989 = vunpack.c.0.s8 %v3988
      %v3990 = vlaneseq
      %v3991 = vshrl.u32 %v3990, 7
      %v3992 = vsub.s32 %v3989, %v3991
      %v3993 = vrot.slane %v3985, %v3992
      %v3995 = vunpack.c.l.s4 1983009808
      %v3996 = vunpack.c.0.s8 %v3995
      %v3997 = vlaneseq
      %v3998 = vshrl.u32 %v3997, 7
      %v3999 = vsub.s32 %v3996, %v3998
      %v4000 = vrot.slane %v3986, %v3999
      %v4001 = vcombine.low %v3578, %v3674
      %v4002 = vcombine.high %v3578, %v3674
      %v4004 = vunpack.c.l.s4 1983009808
      %v4005 = vunpack.c.0.s8 %v4004
      %v4006 = vlaneseq
      %v4007 = vshrl.u32 %v4006, 7
      %v4008 = vsub.s32 %v4005, %v4007
      %v4009 = vrot.slane %v4001, %v4008
      %v4011 = vunpack.c.l.s4 1983009808
      %v4012 = vunpack.c.0.s8 %v4011
      %v4013 = vlaneseq
      %v4014 = vshrl.u32 %v4013, 7
      %v4015 = vsub.s32 %v4012, %v4014
      %v4016 = vrot.slane %v4002, %v4015
      %v4017 = vcombine.low %v3993, %v4009
      %v4018 = vcombine.high %v3993, %v4009
      %v4020 = vunpack.c.l.s4 1934713408
      %v4021 = vunpack.c.0.s8 %v4020
      %v4022 = vlaneseq
      %v4023 = vshrl.u32 %v4022, 7
      %v4024 = vsub.s32 %v4021, %v4023
      %v4025 = vrot.slane %v4017, %v4024
      %v4027 = vunpack.c.l.s4 1934713408
      %v4028 = vunpack.c.0.s8 %v4027
      %v4029 = vlaneseq
      %v4030 = vshrl.u32 %v4029, 7
      %v4031 = vsub.s32 %v4028, %v4030
      %v4032 = vrot.slane %v4018, %v4031
      %v4033 = vcombine.low %v4000, %v4016
      %v4034 = vcombine.high %v4000, %v4016
      %v4036 = vunpack.c.l.s4 1934713408
      %v4037 = vunpack.c.0.s8 %v4036
      %v4038 = vlaneseq
      %v4039 = vshrl.u32 %v4038, 7
      %v4040 = vsub.s32 %v4037, %v4039
      %v4041 = vrot.slane %v4033, %v4040
      %v4043 = vunpack.c.l.s4 1934713408
      %v4044 = vunpack.c.0.s8 %v4043
      %v4045 = vlaneseq
      %v4046 = vshrl.u32 %v4045, 7
      %v4047 = vsub.s32 %v4044, %v4046
      %v4048 = vrot.slane %v4034, %v4047
      %v4049 = vcombine.high %v4025, 0.0
      %v4050 = vcombine.high %v4032, 0.0
      %v4051 = vcombine.high %v4041, 0.0
      %v4052 = vcombine.high %v4048, 0.0
      %v4053 = vcombine.low %v853, %v3628
      %v4054 = vcombine.high %v853, %v3628
      %v4056 = vunpack.c.l.s4 1983009808
      %v4057 = vunpack.c.0.s8 %v4056
      %v4058 = vlaneseq
      %v4059 = vshrl.u32 %v4058, 7
      %v4060 = vsub.s32 %v4057, %v4059
      %v4061 = vrot.slane %v4053, %v4060
      %v4063 = vunpack.c.l.s4 1983009808
      %v4064 = vunpack.c.0.s8 %v4063
      %v4065 = vlaneseq
      %v4066 = vshrl.u32 %v4065, 7
      %v4067 = vsub.s32 %v4064, %v4066
      %v4068 = vrot.slane %v4054, %v4067
      %v4069 = vcombine.low %v3580, %v3676
      %v4070 = vcombine.high %v3580, %v3676
      %v4072 = vunpack.c.l.s4 1983009808
      %v4073 = vunpack.c.0.s8 %v4072
      %v4074 = vlaneseq
      %v4075 = vshrl.u32 %v4074, 7
      %v4076 = vsub.s32 %v4073, %v4075
      %v4077 = vrot.slane %v4069, %v4076
      %v4079 = vunpack.c.l.s4 1983009808
      %v4080 = vunpack.c.0.s8 %v4079
      %v4081 = vlaneseq
      %v4082 = vshrl.u32 %v4081, 7
      %v4083 = vsub.s32 %v4080, %v4082
      %v4084 = vrot.slane %v4070, %v4083
      %v4085 = vcombine.low %v4061, %v4077
      %v4086 = vcombine.high %v4061, %v4077
      %v4088 = vunpack.c.l.s4 1934713408
      %v4089 = vunpack.c.0.s8 %v4088
      %v4090 = vlaneseq
      %v4091 = vshrl.u32 %v4090, 7
      %v4092 = vsub.s32 %v4089, %v4091
      %v4093 = vrot.slane %v4085, %v4092
      %v4095 = vunpack.c.l.s4 1934713408
      %v4096 = vunpack.c.0.s8 %v4095
      %v4097 = vlaneseq
      %v4098 = vshrl.u32 %v4097, 7
      %v4099 = vsub.s32 %v4096, %v4098
      %v4100 = vrot.slane %v4086, %v4099
      %v4101 = vcombine.low %v4068, %v4084
      %v4102 = vcombine.high %v4068, %v4084
      %v4104 = vunpack.c.l.s4 1934713408
      %v4105 = vunpack.c.0.s8 %v4104
      %v4106 = vlaneseq
      %v4107 = vshrl.u32 %v4106, 7
      %v4108 = vsub.s32 %v4105, %v4107
      %v4109 = vrot.slane %v4101, %v4108
      %v4111 = vunpack.c.l.s4 1934713408
      %v4112 = vunpack.c.0.s8 %v4111
      %v4113 = vlaneseq
      %v4114 = vshrl.u32 %v4113, 7
      %v4115 = vsub.s32 %v4112, %v4114
      %v4116 = vrot.slane %v4102, %v4115
      %v4117 = vcombine.high %v4093, 0.0
      %v4118 = vcombine.high %v4100, 0.0
      %v4119 = vcombine.high %v4109, 0.0
      %v4120 = vcombine.high %v4116, 0.0
      %v4121 = vcombine.low %v858, %v3630
      %v4122 = vcombine.high %v858, %v3630
      %v4124 = vunpack.c.l.s4 1983009808
      %v4125 = vunpack.c.0.s8 %v4124
      %v4126 = vlaneseq
      %v4127 = vshrl.u32 %v4126, 7
      %v4128 = vsub.s32 %v4125, %v4127
      %v4129 = vrot.slane %v4121, %v4128
      %v4131 = vunpack.c.l.s4 1983009808
      %v4132 = vunpack.c.0.s8 %v4131
      %v4133 = vlaneseq
      %v4134 = vshrl.u32 %v4133, 7
      %v4135 = vsub.s32 %v4132, %v4134
      %v4136 = vrot.slane %v4122, %v4135
      %v4137 = vcombine.low %v3582, %v3678
      %v4138 = vcombine.high %v3582, %v3678
      %v4140 = vunpack.c.l.s4 1983009808
      %v4141 = vunpack.c.0.s8 %v4140
      %v4142 = vlaneseq
      %v4143 = vshrl.u32 %v4142, 7
      %v4144 = vsub.s32 %v4141, %v4143
      %v4145 = vrot.slane %v4137, %v4144
      %v4147 = vunpack.c.l.s4 1983009808
      %v4148 = vunpack.c.0.s8 %v4147
      %v4149 = vlaneseq
      %v4150 = vshrl.u32 %v4149, 7
      %v4151 = vsub.s32 %v4148, %v4150
      %v4152 = vrot.slane %v4138, %v4151
      %v4153 = vcombine.low %v4129, %v4145
      %v4154 = vcombine.high %v4129, %v4145
      %v4156 = vunpack.c.l.s4 1934713408
      %v4157 = vunpack.c.0.s8 %v4156
      %v4158 = vlaneseq
      %v4159 = vshrl.u32 %v4158, 7
      %v4160 = vsub.s32 %v4157, %v4159
      %v4161 = vrot.slane %v4153, %v4160
      %v4163 = vunpack.c.l.s4 1934713408
      %v4164 = vunpack.c.0.s8 %v4163
      %v4165 = vlaneseq
      %v4166 = vshrl.u32 %v4165, 7
      %v4167 = vsub.s32 %v4164, %v4166
      %v4168 = vrot.slane %v4154, %v4167
      %v4169 = vcombine.low %v4136, %v4152
      %v4170 = vcombine.high %v4136, %v4152
      %v4172 = vunpack.c.l.s4 1934713408
      %v4173 = vunpack.c.0.s8 %v4172
      %v4174 = vlaneseq
      %v4175 = vshrl.u32 %v4174, 7
      %v4176 = vsub.s32 %v4173, %v4175
      %v4177 = vrot.slane %v4169, %v4176
      %v4179 = vunpack.c.l.s4 1934713408
      %v4180 = vunpack.c.0.s8 %v4179
      %v4181 = vlaneseq
      %v4182 = vshrl.u32 %v4181, 7
      %v4183 = vsub.s32 %v4180, %v4182
      %v4184 = vrot.slane %v4170, %v4183
      %v4185 = vcombine.high %v4161, 0.0
      %v4186 = vcombine.high %v4168, 0.0
      %v4187 = vcombine.high %v4177, 0.0
      %v4188 = vcombine.high %v4184, 0.0
      %v4189 = vcombine.low %v861, %v3632
      %v4190 = vcombine.high %v861, %v3632
      %v4192 = vunpack.c.l.s4 1983009808
      %v4193 = vunpack.c.0.s8 %v4192
      %v4194 = vlaneseq
      %v4195 = vshrl.u32 %v4194, 7
      %v4196 = vsub.s32 %v4193, %v4195
      %v4197 = vrot.slane %v4189, %v4196
      %v4199 = vunpack.c.l.s4 1983009808
      %v4200 = vunpack.c.0.s8 %v4199
      %v4201 = vlaneseq
      %v4202 = vshrl.u32 %v4201, 7
      %v4203 = vsub.s32 %v4200, %v4202
      %v4204 = vrot.slane %v4190, %v4203
      %v4205 = vcombine.low %v3584, %v3680
      %v4206 = vcombine.high %v3584, %v3680
      %v4208 = vunpack.c.l.s4 1983009808
      %v4209 = vunpack.c.0.s8 %v4208
      %v4210 = vlaneseq
      %v4211 = vshrl.u32 %v4210, 7
      %v4212 = vsub.s32 %v4209, %v4211
      %v4213 = vrot.slane %v4205, %v4212
      %v4215 = vunpack.c.l.s4 1983009808
      %v4216 = vunpack.c.0.s8 %v4215
      %v4217 = vlaneseq
      %v4218 = vshrl.u32 %v4217, 7
      %v4219 = vsub.s32 %v4216, %v4218
      %v4220 = vrot.slane %v4206, %v4219
      %v4221 = vcombine.low %v4197, %v4213
      %v4222 = vcombine.high %v4197, %v4213
      %v4224 = vunpack.c.l.s4 1934713408
      %v4225 = vunpack.c.0.s8 %v4224
      %v4226 = vlaneseq
      %v4227 = vshrl.u32 %v4226, 7
      %v4228 = vsub.s32 %v4225, %v4227
      %v4229 = vrot.slane %v4221, %v4228
      %v4231 = vunpack.c.l.s4 1934713408
      %v4232 = vunpack.c.0.s8 %v4231
      %v4233 = vlaneseq
      %v4234 = vshrl.u32 %v4233, 7
      %v4235 = vsub.s32 %v4232, %v4234
      %v4236 = vrot.slane %v4222, %v4235
      %v4237 = vcombine.low %v4204, %v4220
      %v4238 = vcombine.high %v4204, %v4220
      %v4240 = vunpack.c.l.s4 1934713408
      %v4241 = vunpack.c.0.s8 %v4240
      %v4242 = vlaneseq
      %v4243 = vshrl.u32 %v4242, 7
      %v4244 = vsub.s32 %v4241, %v4243
      %v4245 = vrot.slane %v4237, %v4244
      %v4247 = vunpack.c.l.s4 1934713408
      %v4248 = vunpack.c.0.s8 %v4247
      %v4249 = vlaneseq
      %v4250 = vshrl.u32 %v4249, 7
      %v4251 = vsub.s32 %v4248, %v4250
      %v4252 = vrot.slane %v4238, %v4251
      %v4253 = vcombine.high %v4229, 0.0
      %v4254 = vcombine.high %v4236, 0.0
      %v4255 = vcombine.high %v4245, 0.0
      %v4256 = vcombine.high %v4252, 0.0
      %v4257 = vcombine.low %v866, %v3634
      %v4258 = vcombine.high %v866, %v3634
      %v4260 = vunpack.c.l.s4 1983009808
      %v4261 = vunpack.c.0.s8 %v4260
      %v4262 = vlaneseq
      %v4263 = vshrl.u32 %v4262, 7
      %v4264 = vsub.s32 %v4261, %v4263
      %v4265 = vrot.slane %v4257, %v4264
      %v4267 = vunpack.c.l.s4 1983009808
      %v4268 = vunpack.c.0.s8 %v4267
      %v4269 = vlaneseq
      %v4270 = vshrl.u32 %v4269, 7
      %v4271 = vsub.s32 %v4268, %v4270
      %v4272 = vrot.slane %v4258, %v4271
      %v4273 = vcombine.low %v3586, %v3682
      %v4274 = vcombine.high %v3586, %v3682
      %v4276 = vunpack.c.l.s4 1983009808
      %v4277 = vunpack.c.0.s8 %v4276
      %v4278 = vlaneseq
      %v4279 = vshrl.u32 %v4278, 7
      %v4280 = vsub.s32 %v4277, %v4279
      %v4281 = vrot.slane %v4273, %v4280
      %v4283 = vunpack.c.l.s4 1983009808
      %v4284 = vunpack.c.0.s8 %v4283
      %v4285 = vlaneseq
      %v4286 = vshrl.u32 %v4285, 7
      %v4287 = vsub.s32 %v4284, %v4286
      %v4288 = vrot.slane %v4274, %v4287
      %v4289 = vcombine.low %v4265, %v4281
      %v4290 = vcombine.high %v4265, %v4281
      %v4292 = vunpack.c.l.s4 1934713408
      %v4293 = vunpack.c.0.s8 %v4292
      %v4294 = vlaneseq
      %v4295 = vshrl.u32 %v4294, 7
      %v4296 = vsub.s32 %v4293, %v4295
      %v4297 = vrot.slane %v4289, %v4296
      %v4299 = vunpack.c.l.s4 1934713408
      %v4300 = vunpack.c.0.s8 %v4299
      %v4301 = vlaneseq
      %v4302 = vshrl.u32 %v4301, 7
      %v4303 = vsub.s32 %v4300, %v4302
      %v4304 = vrot.slane %v4290, %v4303
      %v4305 = vcombine.low %v4272, %v4288
      %v4306 = vcombine.high %v4272, %v4288
      %v4308 = vunpack.c.l.s4 1934713408
      %v4309 = vunpack.c.0.s8 %v4308
      %v4310 = vlaneseq
      %v4311 = vshrl.u32 %v4310, 7
      %v4312 = vsub.s32 %v4309, %v4311
      %v4313 = vrot.slane %v4305, %v4312
      %v4315 = vunpack.c.l.s4 1934713408
      %v4316 = vunpack.c.0.s8 %v4315
      %v4317 = vlaneseq
      %v4318 = vshrl.u32 %v4317, 7
      %v4319 = vsub.s32 %v4316, %v4318
      %v4320 = vrot.slane %v4306, %v4319
      %v4321 = vcombine.high %v4297, 0.0
      %v4322 = vcombine.high %v4304, 0.0
      %v4323 = vcombine.high %v4313, 0.0
      %v4324 = vcombine.high %v4320, 0.0
      %v4325 = vcombine.low %v869, %v3636
      %v4326 = vcombine.high %v869, %v3636
      %v4328 = vunpack.c.l.s4 1983009808
      %v4329 = vunpack.c.0.s8 %v4328
      %v4330 = vlaneseq
      %v4331 = vshrl.u32 %v4330, 7
      %v4332 = vsub.s32 %v4329, %v4331
      %v4333 = vrot.slane %v4325, %v4332
      %v4335 = vunpack.c.l.s4 1983009808
      %v4336 = vunpack.c.0.s8 %v4335
      %v4337 = vlaneseq
      %v4338 = vshrl.u32 %v4337, 7
      %v4339 = vsub.s32 %v4336, %v4338
      %v4340 = vrot.slane %v4326, %v4339
      %v4341 = vcombine.low %v3588, %v3684
      %v4342 = vcombine.high %v3588, %v3684
      %v4344 = vunpack.c.l.s4 1983009808
      %v4345 = vunpack.c.0.s8 %v4344
      %v4346 = vlaneseq
      %v4347 = vshrl.u32 %v4346, 7
      %v4348 = vsub.s32 %v4345, %v4347
      %v4349 = vrot.slane %v4341, %v4348
      %v4351 = vunpack.c.l.s4 1983009808
      %v4352 = vunpack.c.0.s8 %v4351
      %v4353 = vlaneseq
      %v4354 = vshrl.u32 %v4353, 7
      %v4355 = vsub.s32 %v4352, %v4354
      %v4356 = vrot.slane %v4342, %v4355
      %v4357 = vcombine.low %v4333, %v4349
      %v4358 = vcombine.high %v4333, %v4349
      %v4360 = vunpack.c.l.s4 1934713408
      %v4361 = vunpack.c.0.s8 %v4360
      %v4362 = vlaneseq
      %v4363 = vshrl.u32 %v4362, 7
      %v4364 = vsub.s32 %v4361, %v4363
      %v4365 = vrot.slane %v4357, %v4364
      %v4367 = vunpack.c.l.s4 1934713408
      %v4368 = vunpack.c.0.s8 %v4367
      %v4369 = vlaneseq
      %v4370 = vshrl.u32 %v4369, 7
      %v4371 = vsub.s32 %v4368, %v4370
      %v4372 = vrot.slane %v4358, %v4371
      %v4373 = vcombine.low %v4340, %v4356
      %v4374 = vcombine.high %v4340, %v4356
      %v4376 = vunpack.c.l.s4 1934713408
      %v4377 = vunpack.c.0.s8 %v4376
      %v4378 = vlaneseq
      %v4379 = vshrl.u32 %v4378, 7
      %v4380 = vsub.s32 %v4377, %v4379
      %v4381 = vrot.slane %v4373, %v4380
      %v4383 = vunpack.c.l.s4 1934713408
      %v4384 = vunpack.c.0.s8 %v4383
      %v4385 = vlaneseq
      %v4386 = vshrl.u32 %v4385, 7
      %v4387 = vsub.s32 %v4384, %v4386
      %v4388 = vrot.slane %v4374, %v4387
      %v4389 = vcombine.high %v4365, 0.0
      %v4390 = vcombine.high %v4372, 0.0
      %v4391 = vcombine.high %v4381, 0.0
      %v4392 = vcombine.high %v4388, 0.0
      %v4393 = vcombine.low %v874, %v3638
      %v4394 = vcombine.high %v874, %v3638
      %v4396 = vunpack.c.l.s4 1983009808
      %v4397 = vunpack.c.0.s8 %v4396
      %v4398 = vlaneseq
      %v4399 = vshrl.u32 %v4398, 7
      %v4400 = vsub.s32 %v4397, %v4399
      %v4401 = vrot.slane %v4393, %v4400
      %v4403 = vunpack.c.l.s4 1983009808
      %v4404 = vunpack.c.0.s8 %v4403
      %v4405 = vlaneseq
      %v4406 = vshrl.u32 %v4405, 7
      %v4407 = vsub.s32 %v4404, %v4406
      %v4408 = vrot.slane %v4394, %v4407
      %v4409 = vcombine.low %v3590, %v3686
      %v4410 = vcombine.high %v3590, %v3686
      %v4412 = vunpack.c.l.s4 1983009808
      %v4413 = vunpack.c.0.s8 %v4412
      %v4414 = vlaneseq
      %v4415 = vshrl.u32 %v4414, 7
      %v4416 = vsub.s32 %v4413, %v4415
      %v4417 = vrot.slane %v4409, %v4416
      %v4419 = vunpack.c.l.s4 1983009808
      %v4420 = vunpack.c.0.s8 %v4419
      %v4421 = vlaneseq
      %v4422 = vshrl.u32 %v4421, 7
      %v4423 = vsub.s32 %v4420, %v4422
      %v4424 = vrot.slane %v4410, %v4423
      %v4425 = vcombine.low %v4401, %v4417
      %v4426 = vcombine.high %v4401, %v4417
      %v4428 = vunpack.c.l.s4 1934713408
      %v4429 = vunpack.c.0.s8 %v4428
      %v4430 = vlaneseq
      %v4431 = vshrl.u32 %v4430, 7
      %v4432 = vsub.s32 %v4429, %v4431
      %v4433 = vrot.slane %v4425, %v4432
      %v4435 = vunpack.c.l.s4 1934713408
      %v4436 = vunpack.c.0.s8 %v4435
      %v4437 = vlaneseq
      %v4438 = vshrl.u32 %v4437, 7
      %v4439 = vsub.s32 %v4436, %v4438
      %v4440 = vrot.slane %v4426, %v4439
      %v4441 = vcombine.low %v4408, %v4424
      %v4442 = vcombine.high %v4408, %v4424
      %v4444 = vunpack.c.l.s4 1934713408
      %v4445 = vunpack.c.0.s8 %v4444
      %v4446 = vlaneseq
      %v4447 = vshrl.u32 %v4446, 7
      %v4448 = vsub.s32 %v4445, %v4447
      %v4449 = vrot.slane %v4441, %v4448
      %v4451 = vunpack.c.l.s4 1934713408
      %v4452 = vunpack.c.0.s8 %v4451
      %v4453 = vlaneseq
      %v4454 = vshrl.u32 %v4453, 7
      %v4455 = vsub.s32 %v4452, %v4454
      %v4456 = vrot.slane %v4442, %v4455
      %v4457 = vcombine.high %v4433, 0.0
      %v4458 = vcombine.high %v4440, 0.0
      %v4459 = vcombine.high %v4449, 0.0
      %v4460 = vcombine.high %v4456, 0.0
      %v4461 = vcombine.low %v877, %v3640
      %v4462 = vcombine.high %v877, %v3640
      %v4464 = vunpack.c.l.s4 1983009808
      %v4465 = vunpack.c.0.s8 %v4464
      %v4466 = vlaneseq
      %v4467 = vshrl.u32 %v4466, 7
      %v4468 = vsub.s32 %v4465, %v4467
      %v4469 = vrot.slane %v4461, %v4468
      %v4471 = vunpack.c.l.s4 1983009808
      %v4472 = vunpack.c.0.s8 %v4471
      %v4473 = vlaneseq
      %v4474 = vshrl.u32 %v4473, 7
      %v4475 = vsub.s32 %v4472, %v4474
      %v4476 = vrot.slane %v4462, %v4475
      %v4477 = vcombine.low %v3592, %v3688
      %v4478 = vcombine.high %v3592, %v3688
      %v4480 = vunpack.c.l.s4 1983009808
      %v4481 = vunpack.c.0.s8 %v4480
      %v4482 = vlaneseq
      %v4483 = vshrl.u32 %v4482, 7
      %v4484 = vsub.s32 %v4481, %v4483
      %v4485 = vrot.slane %v4477, %v4484
      %v4487 = vunpack.c.l.s4 1983009808
      %v4488 = vunpack.c.0.s8 %v4487
      %v4489 = vlaneseq
      %v4490 = vshrl.u32 %v4489, 7
      %v4491 = vsub.s32 %v4488, %v4490
      %v4492 = vrot.slane %v4478, %v4491
      %v4493 = vcombine.low %v4469, %v4485
      %v4494 = vcombine.high %v4469, %v4485
      %v4496 = vunpack.c.l.s4 1934713408
      %v4497 = vunpack.c.0.s8 %v4496
      %v4498 = vlaneseq
      %v4499 = vshrl.u32 %v4498, 7
      %v4500 = vsub.s32 %v4497, %v4499
      %v4501 = vrot.slane %v4493, %v4500
      %v4503 = vunpack.c.l.s4 1934713408
      %v4504 = vunpack.c.0.s8 %v4503
      %v4505 = vlaneseq
      %v4506 = vshrl.u32 %v4505, 7
      %v4507 = vsub.s32 %v4504, %v4506
      %v4508 = vrot.slane %v4494, %v4507
      %v4509 = vcombine.low %v4476, %v4492
      %v4510 = vcombine.high %v4476, %v4492
      %v4512 = vunpack.c.l.s4 1934713408
      %v4513 = vunpack.c.0.s8 %v4512
      %v4514 = vlaneseq
      %v4515 = vshrl.u32 %v4514, 7
      %v4516 = vsub.s32 %v4513, %v4515
      %v4517 = vrot.slane %v4509, %v4516
      %v4519 = vunpack.c.l.s4 1934713408
      %v4520 = vunpack.c.0.s8 %v4519
      %v4521 = vlaneseq
      %v4522 = vshrl.u32 %v4521, 7
      %v4523 = vsub.s32 %v4520, %v4522
      %v4524 = vrot.slane %v4510, %v4523
      %v4525 = vcombine.high %v4501, 0.0
      %v4526 = vcombine.high %v4508, 0.0
      %v4527 = vcombine.high %v4517, 0.0
      %v4528 = vcombine.high %v4524, 0.0
      %v4529 = vcombine.low %v882, %v3642
      %v4530 = vcombine.high %v882, %v3642
      %v4532 = vunpack.c.l.s4 1983009808
      %v4533 = vunpack.c.0.s8 %v4532
      %v4534 = vlaneseq
      %v4535 = vshrl.u32 %v4534, 7
      %v4536 = vsub.s32 %v4533, %v4535
      %v4537 = vrot.slane %v4529, %v4536
      %v4539 = vunpack.c.l.s4 1983009808
      %v4540 = vunpack.c.0.s8 %v4539
      %v4541 = vlaneseq
      %v4542 = vshrl.u32 %v4541, 7
      %v4543 = vsub.s32 %v4540, %v4542
      %v4544 = vrot.slane %v4530, %v4543
      %v4545 = vcombine.low %v3594, %v3690
      %v4546 = vcombine.high %v3594, %v3690
      %v4548 = vunpack.c.l.s4 1983009808
      %v4549 = vunpack.c.0.s8 %v4548
      %v4550 = vlaneseq
      %v4551 = vshrl.u32 %v4550, 7
      %v4552 = vsub.s32 %v4549, %v4551
      %v4553 = vrot.slane %v4545, %v4552
      %v4555 = vunpack.c.l.s4 1983009808
      %v4556 = vunpack.c.0.s8 %v4555
      %v4557 = vlaneseq
      %v4558 = vshrl.u32 %v4557, 7
      %v4559 = vsub.s32 %v4556, %v4558
      %v4560 = vrot.slane %v4546, %v4559
      %v4561 = vcombine.low %v4537, %v4553
      %v4562 = vcombine.high %v4537, %v4553
      %v4564 = vunpack.c.l.s4 1934713408
      %v4565 = vunpack.c.0.s8 %v4564
      %v4566 = vlaneseq
      %v4567 = vshrl.u32 %v4566, 7
      %v4568 = vsub.s32 %v4565, %v4567
      %v4569 = vrot.slane %v4561, %v4568
      %v4571 = vunpack.c.l.s4 1934713408
      %v4572 = vunpack.c.0.s8 %v4571
      %v4573 = vlaneseq
      %v4574 = vshrl.u32 %v4573, 7
      %v4575 = vsub.s32 %v4572, %v4574
      %v4576 = vrot.slane %v4562, %v4575
      %v4577 = vcombine.low %v4544, %v4560
      %v4578 = vcombine.high %v4544, %v4560
      %v4580 = vunpack.c.l.s4 1934713408
      %v4581 = vunpack.c.0.s8 %v4580
      %v4582 = vlaneseq
      %v4583 = vshrl.u32 %v4582, 7
      %v4584 = vsub.s32 %v4581, %v4583
      %v4585 = vrot.slane %v4577, %v4584
      %v4587 = vunpack.c.l.s4 1934713408
      %v4588 = vunpack.c.0.s8 %v4587
      %v4589 = vlaneseq
      %v4590 = vshrl.u32 %v4589, 7
      %v4591 = vsub.s32 %v4588, %v4590
      %v4592 = vrot.slane %v4578, %v4591
      %v4593 = vcombine.high %v4569, 0.0
      %v4594 = vcombine.high %v4576, 0.0
      %v4595 = vcombine.high %v4585, 0.0
      %v4596 = vcombine.high %v4592, 0.0
      %v4597 = vcombine.low %v885, %v3644
      %v4598 = vcombine.high %v885, %v3644
      %v4600 = vunpack.c.l.s4 1983009808
      %v4601 = vunpack.c.0.s8 %v4600
      %v4602 = vlaneseq
      %v4603 = vshrl.u32 %v4602, 7
      %v4604 = vsub.s32 %v4601, %v4603
      %v4605 = vrot.slane %v4597, %v4604
      %v4607 = vunpack.c.l.s4 1983009808
      %v4608 = vunpack.c.0.s8 %v4607
      %v4609 = vlaneseq
      %v4610 = vshrl.u32 %v4609, 7
      %v4611 = vsub.s32 %v4608, %v4610
      %v4612 = vrot.slane %v4598, %v4611
      %v4613 = vcombine.low %v3596, %v3692
      %v4614 = vcombine.high %v3596, %v3692
      %v4616 = vunpack.c.l.s4 1983009808
      %v4617 = vunpack.c.0.s8 %v4616
      %v4618 = vlaneseq
      %v4619 = vshrl.u32 %v4618, 7
      %v4620 = vsub.s32 %v4617, %v4619
      %v4621 = vrot.slane %v4613, %v4620
      %v4623 = vunpack.c.l.s4 1983009808
      %v4624 = vunpack.c.0.s8 %v4623
      %v4625 = vlaneseq
      %v4626 = vshrl.u32 %v4625, 7
      %v4627 = vsub.s32 %v4624, %v4626
      %v4628 = vrot.slane %v4614, %v4627
      %v4629 = vcombine.low %v4605, %v4621
      %v4630 = vcombine.high %v4605, %v4621
      %v4632 = vunpack.c.l.s4 1934713408
      %v4633 = vunpack.c.0.s8 %v4632
      %v4634 = vlaneseq
      %v4635 = vshrl.u32 %v4634, 7
      %v4636 = vsub.s32 %v4633, %v4635
      %v4637 = vrot.slane %v4629, %v4636
      %v4639 = vunpack.c.l.s4 1934713408
      %v4640 = vunpack.c.0.s8 %v4639
      %v4641 = vlaneseq
      %v4642 = vshrl.u32 %v4641, 7
      %v4643 = vsub.s32 %v4640, %v4642
      %v4644 = vrot.slane %v4630, %v4643
      %v4645 = vcombine.low %v4612, %v4628
      %v4646 = vcombine.high %v4612, %v4628
      %v4648 = vunpack.c.l.s4 1934713408
      %v4649 = vunpack.c.0.s8 %v4648
      %v4650 = vlaneseq
      %v4651 = vshrl.u32 %v4650, 7
      %v4652 = vsub.s32 %v4649, %v4651
      %v4653 = vrot.slane %v4645, %v4652
      %v4655 = vunpack.c.l.s4 1934713408
      %v4656 = vunpack.c.0.s8 %v4655
      %v4657 = vlaneseq
      %v4658 = vshrl.u32 %v4657, 7
      %v4659 = vsub.s32 %v4656, %v4658
      %v4660 = vrot.slane %v4646, %v4659
      %v4661 = vcombine.high %v4637, 0.0
      %v4662 = vcombine.high %v4644, 0.0
      %v4663 = vcombine.high %v4653, 0.0
      %v4664 = vcombine.high %v4660, 0.0
      %v4665 = vcombine.low %v890, %v3646
      %v4666 = vcombine.high %v890, %v3646
      %v4668 = vunpack.c.l.s4 1983009808
      %v4669 = vunpack.c.0.s8 %v4668
      %v4670 = vlaneseq
      %v4671 = vshrl.u32 %v4670, 7
      %v4672 = vsub.s32 %v4669, %v4671
      %v4673 = vrot.slane %v4665, %v4672
      %v4675 = vunpack.c.l.s4 1983009808
      %v4676 = vunpack.c.0.s8 %v4675
      %v4677 = vlaneseq
      %v4678 = vshrl.u32 %v4677, 7
      %v4679 = vsub.s32 %v4676, %v4678
      %v4680 = vrot.slane %v4666, %v4679
      %v4681 = vcombine.low %v3598, %v3694
      %v4682 = vcombine.high %v3598, %v3694
      %v4684 = vunpack.c.l.s4 1983009808
      %v4685 = vunpack.c.0.s8 %v4684
      %v4686 = vlaneseq
      %v4687 = vshrl.u32 %v4686, 7
      %v4688 = vsub.s32 %v4685, %v4687
      %v4689 = vrot.slane %v4681, %v4688
      %v4691 = vunpack.c.l.s4 1983009808
      %v4692 = vunpack.c.0.s8 %v4691
      %v4693 = vlaneseq
      %v4694 = vshrl.u32 %v4693, 7
      %v4695 = vsub.s32 %v4692, %v4694
      %v4696 = vrot.slane %v4682, %v4695
      %v4697 = vcombine.low %v4673, %v4689
      %v4698 = vcombine.high %v4673, %v4689
      %v4700 = vunpack.c.l.s4 1934713408
      %v4701 = vunpack.c.0.s8 %v4700
      %v4702 = vlaneseq
      %v4703 = vshrl.u32 %v4702, 7
      %v4704 = vsub.s32 %v4701, %v4703
      %v4705 = vrot.slane %v4697, %v4704
      %v4707 = vunpack.c.l.s4 1934713408
      %v4708 = vunpack.c.0.s8 %v4707
      %v4709 = vlaneseq
      %v4710 = vshrl.u32 %v4709, 7
      %v4711 = vsub.s32 %v4708, %v4710
      %v4712 = vrot.slane %v4698, %v4711
      %v4713 = vcombine.low %v4680, %v4696
      %v4714 = vcombine.high %v4680, %v4696
      %v4716 = vunpack.c.l.s4 1934713408
      %v4717 = vunpack.c.0.s8 %v4716
      %v4718 = vlaneseq
      %v4719 = vshrl.u32 %v4718, 7
      %v4720 = vsub.s32 %v4717, %v4719
      %v4721 = vrot.slane %v4713, %v4720
      %v4723 = vunpack.c.l.s4 1934713408
      %v4724 = vunpack.c.0.s8 %v4723
      %v4725 = vlaneseq
      %v4726 = vshrl.u32 %v4725, 7
      %v4727 = vsub.s32 %v4724, %v4726
      %v4728 = vrot.slane %v4714, %v4727
      %v4729 = vcombine.high %v4705, 0.0
      %v4730 = vcombine.high %v4712, 0.0
      %v4731 = vcombine.high %v4721, 0.0
      %v4732 = vcombine.high %v4728, 0.0
      %v4733 = vcombine.low %v893, %v3648
      %v4734 = vcombine.high %v893, %v3648
      %v4736 = vunpack.c.l.s4 1983009808
      %v4737 = vunpack.c.0.s8 %v4736
      %v4738 = vlaneseq
      %v4739 = vshrl.u32 %v4738, 7
      %v4740 = vsub.s32 %v4737, %v4739
      %v4741 = vrot.slane %v4733, %v4740
      %v4743 = vunpack.c.l.s4 1983009808
      %v4744 = vunpack.c.0.s8 %v4743
      %v4745 = vlaneseq
      %v4746 = vshrl.u32 %v4745, 7
      %v4747 = vsub.s32 %v4744, %v4746
      %v4748 = vrot.slane %v4734, %v4747
      %v4749 = vcombine.low %v3600, %v3696
      %v4750 = vcombine.high %v3600, %v3696
      %v4752 = vunpack.c.l.s4 1983009808
      %v4753 = vunpack.c.0.s8 %v4752
      %v4754 = vlaneseq
      %v4755 = vshrl.u32 %v4754, 7
      %v4756 = vsub.s32 %v4753, %v4755
      %v4757 = vrot.slane %v4749, %v4756
      %v4759 = vunpack.c.l.s4 1983009808
      %v4760 = vunpack.c.0.s8 %v4759
      %v4761 = vlaneseq
      %v4762 = vshrl.u32 %v4761, 7
      %v4763 = vsub.s32 %v4760, %v4762
      %v4764 = vrot.slane %v4750, %v4763
      %v4765 = vcombine.low %v4741, %v4757
      %v4766 = vcombine.high %v4741, %v4757
      %v4768 = vunpack.c.l.s4 1934713408
      %v4769 = vunpack.c.0.s8 %v4768
      %v4770 = vlaneseq
      %v4771 = vshrl.u32 %v4770, 7
      %v4772 = vsub.s32 %v4769, %v4771
      %v4773 = vrot.slane %v4765, %v4772
      %v4775 = vunpack.c.l.s4 1934713408
      %v4776 = vunpack.c.0.s8 %v4775
      %v4777 = vlaneseq
      %v4778 = vshrl.u32 %v4777, 7
      %v4779 = vsub.s32 %v4776, %v4778
      %v4780 = vrot.slane %v4766, %v4779
      %v4781 = vcombine.low %v4748, %v4764
      %v4782 = vcombine.high %v4748, %v4764
      %v4784 = vunpack.c.l.s4 1934713408
      %v4785 = vunpack.c.0.s8 %v4784
      %v4786 = vlaneseq
      %v4787 = vshrl.u32 %v4786, 7
      %v4788 = vsub.s32 %v4785, %v4787
      %v4789 = vrot.slane %v4781, %v4788
      %v4791 = vunpack.c.l.s4 1934713408
      %v4792 = vunpack.c.0.s8 %v4791
      %v4793 = vlaneseq
      %v4794 = vshrl.u32 %v4793, 7
      %v4795 = vsub.s32 %v4792, %v4794
      %v4796 = vrot.slane %v4782, %v4795
      %v4797 = vcombine.high %v4773, 0.0
      %v4798 = vcombine.high %v4780, 0.0
      %v4799 = vcombine.high %v4789, 0.0
      %v4800 = vcombine.high %v4796, 0.0
      %v4801 = vcombine.low %v3753, %v3760
      %v4803 = vunpack.c.l.s4 1983009808
      %v4804 = vunpack.c.0.s8 %v4803
      %v4805 = vlaneseq
      %v4806 = vshrl.u32 %v4805, 7
      %v4807 = vsub.s32 %v4804, %v4806
      %v4808 = vrot.slane %v4801, %v4807
      %v4809 = vcombine.low %v3777, %v3778
      %v4811 = vunpack.c.l.s4 1983009808
      %v4812 = vunpack.c.0.s8 %v4811
      %v4813 = vlaneseq
      %v4814 = vshrl.u32 %v4813, 7
      %v4815 = vsub.s32 %v4812, %v4814
      %v4816 = vrot.slane %v4809, %v4815
      %v4817 = vcombine.low %v3769, %v3776
      %v4819 = vunpack.c.l.s4 1983009808
      %v4820 = vunpack.c.0.s8 %v4819
      %v4821 = vlaneseq
      %v4822 = vshrl.u32 %v4821, 7
      %v4823 = vsub.s32 %v4820, %v4822
      %v4824 = vrot.slane %v4817, %v4823
      %v4825 = vcombine.low %v3779, %v3780
      %v4827 = vunpack.c.l.s4 1983009808
      %v4828 = vunpack.c.0.s8 %v4827
      %v4829 = vlaneseq
      %v4830 = vshrl.u32 %v4829, 7
      %v4831 = vsub.s32 %v4828, %v4830
      %v4832 = vrot.slane %v4825, %v4831
      %v4833 = vcombine.low %v4808, %v4816
      %v4834 = vcombine.high %v4808, %v4816
      %v4836 = vunpack.c.l.s4 1934713408
      %v4837 = vunpack.c.0.s8 %v4836
      %v4838 = vlaneseq
      %v4839 = vshrl.u32 %v4838, 7
      %v4840 = vsub.s32 %v4837, %v4839
      %v4841 = vrot.slane %v4833, %v4840
      %v4843 = vunpack.c.l.s4 1934713408
      %v4844 = vunpack.c.0.s8 %v4843
      %v4845 = vlaneseq
      %v4846 = vshrl.u32 %v4845, 7
      %v4847 = vsub.s32 %v4844, %v4846
      %v4848 = vrot.slane %v4834, %v4847
      %v4849 = vcombine.low %v4824, %v4832
      %v4850 = vcombine.high %v4824, %v4832
      %v4852 = vunpack.c.l.s4 1934713408
      %v4853 = vunpack.c.0.s8 %v4852
      %v4854 = vlaneseq
      %v4855 = vshrl.u32 %v4854, 7
      %v4856 = vsub.s32 %v4853, %v4855
      %v4857 = vrot.slane %v4849, %v4856
      %v4859 = vunpack.c.l.s4 1934713408
      %v4860 = vunpack.c.0.s8 %v4859
      %v4861 = vlaneseq
      %v4862 = vshrl.u32 %v4861, 7
      %v4863 = vsub.s32 %v4860, %v4862
      %v4864 = vrot.slane %v4850, %v4863
      %v4865 = vcombine.low %v4841, %v4857
      %v4866 = vcombine.high %v4841, %v4857
      %v4867 = vcombine.low %v4848, %v4864
      %v4868 = vcombine.high %v4848, %v4864
      %v4869 = vcombine.low %v3821, %v3828
      %v4871 = vunpack.c.l.s4 1983009808
      %v4872 = vunpack.c.0.s8 %v4871
      %v4873 = vlaneseq
      %v4874 = vshrl.u32 %v4873, 7
      %v4875 = vsub.s32 %v4872, %v4874
      %v4876 = vrot.slane %v4869, %v4875
      %v4877 = vcombine.low %v3845, %v3846
      %v4879 = vunpack.c.l.s4 1983009808
      %v4880 = vunpack.c.0.s8 %v4879
      %v4881 = vlaneseq
      %v4882 = vshrl.u32 %v4881, 7
      %v4883 = vsub.s32 %v4880, %v4882
      %v4884 = vrot.slane %v4877, %v4883
      %v4885 = vcombine.low %v3837, %v3844
      %v4887 = vunpack.c.l.s4 1983009808
      %v4888 = vunpack.c.0.s8 %v4887
      %v4889 = vlaneseq
      %v4890 = vshrl.u32 %v4889, 7
      %v4891 = vsub.s32 %v4888, %v4890
      %v4892 = vrot.slane %v4885, %v4891
      %v4893 = vcombine.low %v3847, %v3848
      %v4895 = vunpack.c.l.s4 1983009808
      %v4896 = vunpack.c.0.s8 %v4895
      %v4897 = vlaneseq
      %v4898 = vshrl.u32 %v4897, 7
      %v4899 = vsub.s32 %v4896, %v4898
      %v4900 = vrot.slane %v4893, %v4899
      %v4901 = vcombine.low %v4876, %v4884
      %v4902 = vcombine.high %v4876, %v4884
      %v4904 = vunpack.c.l.s4 1934713408
      %v4905 = vunpack.c.0.s8 %v4904
      %v4906 = vlaneseq
      %v4907 = vshrl.u32 %v4906, 7
      %v4908 = vsub.s32 %v4905, %v4907
      %v4909 = vrot.slane %v4901, %v4908
      %v4911 = vunpack.c.l.s4 1934713408
      %v4912 = vunpack.c.0.s8 %v4911
      %v4913 = vlaneseq
      %v4914 = vshrl.u32 %v4913, 7
      %v4915 = vsub.s32 %v4912, %v4914
      %v4916 = vrot.slane %v4902, %v4915
      %v4917 = vcombine.low %v4892, %v4900
      %v4918 = vcombine.high %v4892, %v4900
      %v4920 = vunpack.c.l.s4 1934713408
      %v4921 = vunpack.c.0.s8 %v4920
      %v4922 = vlaneseq
      %v4923 = vshrl.u32 %v4922, 7
      %v4924 = vsub.s32 %v4921, %v4923
      %v4925 = vrot.slane %v4917, %v4924
      %v4927 = vunpack.c.l.s4 1934713408
      %v4928 = vunpack.c.0.s8 %v4927
      %v4929 = vlaneseq
      %v4930 = vshrl.u32 %v4929, 7
      %v4931 = vsub.s32 %v4928, %v4930
      %v4932 = vrot.slane %v4918, %v4931
      %v4933 = vcombine.low %v4909, %v4925
      %v4934 = vcombine.high %v4909, %v4925
      %v4935 = vcombine.low %v4916, %v4932
      %v4936 = vcombine.high %v4916, %v4932
      %v4937 = vcombine.low %v3889, %v3896
      %v4939 = vunpack.c.l.s4 1983009808
      %v4940 = vunpack.c.0.s8 %v4939
      %v4941 = vlaneseq
      %v4942 = vshrl.u32 %v4941, 7
      %v4943 = vsub.s32 %v4940, %v4942
      %v4944 = vrot.slane %v4937, %v4943
      %v4945 = vcombine.low %v3913, %v3914
      %v4947 = vunpack.c.l.s4 1983009808
      %v4948 = vunpack.c.0.s8 %v4947
      %v4949 = vlaneseq
      %v4950 = vshrl.u32 %v4949, 7
      %v4951 = vsub.s32 %v4948, %v4950
      %v4952 = vrot.slane %v4945, %v4951
      %v4953 = vcombine.low %v3905, %v3912
      %v4955 = vunpack.c.l.s4 1983009808
      %v4956 = vunpack.c.0.s8 %v4955
      %v4957 = vlaneseq
      %v4958 = vshrl.u32 %v4957, 7
      %v4959 = vsub.s32 %v4956, %v4958
      %v4960 = vrot.slane %v4953, %v4959
      %v4961 = vcombine.low %v3915, %v3916
      %v4963 = vunpack.c.l.s4 1983009808
      %v4964 = vunpack.c.0.s8 %v4963
      %v4965 = vlaneseq
      %v4966 = vshrl.u32 %v4965, 7
      %v4967 = vsub.s32 %v4964, %v4966
      %v4968 = vrot.slane %v4961, %v4967
      %v4969 = vcombine.low %v4944, %v4952
      %v4970 = vcombine.high %v4944, %v4952
      %v4972 = vunpack.c.l.s4 1934713408
      %v4973 = vunpack.c.0.s8 %v4972
      %v4974 = vlaneseq
      %v4975 = vshrl.u32 %v4974, 7
      %v4976 = vsub.s32 %v4973, %v4975
      %v4977 = vrot.slane %v4969, %v4976
      %v4979 = vunpack.c.l.s4 1934713408
      %v4980 = vunpack.c.0.s8 %v4979
      %v4981 = vlaneseq
      %v4982 = vshrl.u32 %v4981, 7
      %v4983 = vsub.s32 %v4980, %v4982
      %v4984 = vrot.slane %v4970, %v4983
      %v4985 = vcombine.low %v4960, %v4968
      %v4986 = vcombine.high %v4960, %v4968
      %v4988 = vunpack.c.l.s4 1934713408
      %v4989 = vunpack.c.0.s8 %v4988
      %v4990 = vlaneseq
      %v4991 = vshrl.u32 %v4990, 7
      %v4992 = vsub.s32 %v4989, %v4991
      %v4993 = vrot.slane %v4985, %v4992
      %v4995 = vunpack.c.l.s4 1934713408
      %v4996 = vunpack.c.0.s8 %v4995
      %v4997 = vlaneseq
      %v4998 = vshrl.u32 %v4997, 7
      %v4999 = vsub.s32 %v4996, %v4998
      %v5000 = vrot.slane %v4986, %v4999
      %v5001 = vcombine.low %v4977, %v4993
      %v5002 = vcombine.high %v4977, %v4993
      %v5003 = vcombine.low %v4984, %v5000
      %v5004 = vcombine.high %v4984, %v5000
      %v5005 = vcombine.low %v3957, %v3964
      %v5007 = vunpack.c.l.s4 1983009808
      %v5008 = vunpack.c.0.s8 %v5007
      %v5009 = vlaneseq
      %v5010 = vshrl.u32 %v5009, 7
      %v5011 = vsub.s32 %v5008, %v5010
      %v5012 = vrot.slane %v5005, %v5011
      %v5013 = vcombine.low %v3981, %v3982
      %v5015 = vunpack.c.l.s4 1983009808
      %v5016 = vunpack.c.0.s8 %v5015
      %v5017 = vlaneseq
      %v5018 = vshrl.u32 %v5017, 7
      %v5019 = vsub.s32 %v5016, %v5018
      %v5020 = vrot.slane %v5013, %v5019
      %v5021 = vcombine.low %v3973, %v3980
      %v5023 = vunpack.c.l.s4 1983009808
      %v5024 = vunpack.c.0.s8 %v5023
      %v5025 = vlaneseq
      %v5026 = vshrl.u32 %v5025, 7
      %v5027 = vsub.s32 %v5024, %v5026
      %v5028 = vrot.slane %v5021, %v5027
      %v5029 = vcombine.low %v3983, %v3984
      %v5031 = vunpack.c.l.s4 1983009808
      %v5032 = vunpack.c.0.s8 %v5031
      %v5033 = vlaneseq
      %v5034 = vshrl.u32 %v5033, 7
      %v5035 = vsub.s32 %v5032, %v5034
      %v5036 = vrot.slane %v5029, %v5035
      %v5037 = vcombine.low %v5012, %v5020
      %v5038 = vcombine.high %v5012, %v5020
      %v5040 = vunpack.c.l.s4 1934713408
      %v5041 = vunpack.c.0.s8 %v5040
      %v5042 = vlaneseq
      %v5043 = vshrl.u32 %v5042, 7
      %v5044 = vsub.s32 %v5041, %v5043
      %v5045 = vrot.slane %v5037, %v5044
      %v5047 = vunpack.c.l.s4 1934713408
      %v5048 = vunpack.c.0.s8 %v5047
      %v5049 = vlaneseq
      %v5050 = vshrl.u32 %v5049, 7
      %v5051 = vsub.s32 %v5048, %v5050
      %v5052 = vrot.slane %v5038, %v5051
      %v5053 = vcombine.low %v5028, %v5036
      %v5054 = vcombine.high %v5028, %v5036
      %v5056 = vunpack.c.l.s4 1934713408
      %v5057 = vunpack.c.0.s8 %v5056
      %v5058 = vlaneseq
      %v5059 = vshrl.u32 %v5058, 7
      %v5060 = vsub.s32 %v5057, %v5059
      %v5061 = vrot.slane %v5053, %v5060
      %v5063 = vunpack.c.l.s4 1934713408
      %v5064 = vunpack.c.0.s8 %v5063
      %v5065 = vlaneseq
      %v5066 = vshrl.u32 %v5065, 7
      %v5067 = vsub.s32 %v5064, %v5066
      %v5068 = vrot.slane %v5054, %v5067
      %v5069 = vcombine.low %v5045, %v5061
      %v5070 = vcombine.high %v5045, %v5061
      %v5071 = vcombine.low %v5052, %v5068
      %v5072 = vcombine.high %v5052, %v5068
      %v5073 = vcombine.low %v4025, %v4032
      %v5075 = vunpack.c.l.s4 1983009808
      %v5076 = vunpack.c.0.s8 %v5075
      %v5077 = vlaneseq
      %v5078 = vshrl.u32 %v5077, 7
      %v5079 = vsub.s32 %v5076, %v5078
      %v5080 = vrot.slane %v5073, %v5079
      %v5081 = vcombine.low %v4049, %v4050
      %v5083 = vunpack.c.l.s4 1983009808
      %v5084 = vunpack.c.0.s8 %v5083
      %v5085 = vlaneseq
      %v5086 = vshrl.u32 %v5085, 7
      %v5087 = vsub.s32 %v5084, %v5086
      %v5088 = vrot.slane %v5081, %v5087
      %v5089 = vcombine.low %v4041, %v4048
      %v5091 = vunpack.c.l.s4 1983009808
      %v5092 = vunpack.c.0.s8 %v5091
      %v5093 = vlaneseq
      %v5094 = vshrl.u32 %v5093, 7
      %v5095 = vsub.s32 %v5092, %v5094
      %v5096 = vrot.slane %v5089, %v5095
      %v5097 = vcombine.low %v4051, %v4052
      %v5099 = vunpack.c.l.s4 1983009808
      %v5100 = vunpack.c.0.s8 %v5099
      %v5101 = vlaneseq
      %v5102 = vshrl.u32 %v5101, 7
      %v5103 = vsub.s32 %v5100, %v5102
      %v5104 = vrot.slane %v5097, %v5103
      %v5105 = vcombine.low %v5080, %v5088
      %v5106 = vcombine.high %v5080, %v5088
      %v5108 = vunpack.c.l.s4 1934713408
      %v5109 = vunpack.c.0.s8 %v5108
      %v5110 = vlaneseq
      %v5111 = vshrl.u32 %v5110, 7
      %v5112 = vsub.s32 %v5109, %v5111
      %v5113 = vrot.slane %v5105, %v5112
      %v5115 = vunpack.c.l.s4 1934713408
      %v5116 = vunpack.c.0.s8 %v5115
      %v5117 = vlaneseq
      %v5118 = vshrl.u32 %v5117, 7
      %v5119 = vsub.s32 %v5116, %v5118
      %v5120 = vrot.slane %v5106, %v5119
      %v5121 = vcombine.low %v5096, %v5104
      %v5122 = vcombine.high %v5096, %v5104
      %v5124 = vunpack.c.l.s4 1934713408
      %v5125 = vunpack.c.0.s8 %v5124
      %v5126 = vlaneseq
      %v5127 = vshrl.u32 %v5126, 7
      %v5128 = vsub.s32 %v5125, %v5127
      %v5129 = vrot.slane %v5121, %v5128
      %v5131 = vunpack.c.l.s4 1934713408
      %v5132 = vunpack.c.0.s8 %v5131
      %v5133 = vlaneseq
      %v5134 = vshrl.u32 %v5133, 7
      %v5135 = vsub.s32 %v5132, %v5134
      %v5136 = vrot.slane %v5122, %v5135
      %v5137 = vcombine.low %v5113, %v5129
      %v5138 = vcombine.high %v5113, %v5129
      %v5139 = vcombine.low %v5120, %v5136
      %v5140 = vcombine.high %v5120, %v5136
      %v5141 = vcombine.low %v4093, %v4100
      %v5143 = vunpack.c.l.s4 1983009808
      %v5144 = vunpack.c.0.s8 %v5143
      %v5145 = vlaneseq
      %v5146 = vshrl.u32 %v5145, 7
      %v5147 = vsub.s32 %v5144, %v5146
      %v5148 = vrot.slane %v5141, %v5147
      %v5149 = vcombine.low %v4117, %v4118
      %v5151 = vunpack.c.l.s4 1983009808
      %v5152 = vunpack.c.0.s8 %v5151
      %v5153 = vlaneseq
      %v5154 = vshrl.u32 %v5153, 7
      %v5155 = vsub.s32 %v5152, %v5154
      %v5156 = vrot.slane %v5149, %v5155
      %v5157 = vcombine.low %v4109, %v4116
      %v5159 = vunpack.c.l.s4 1983009808
      %v5160 = vunpack.c.0.s8 %v5159
      %v5161 = vlaneseq
      %v5162 = vshrl.u32 %v5161, 7
      %v5163 = vsub.s32 %v5160, %v5162
      %v5164 = vrot.slane %v5157, %v5163
      %v5165 = vcombine.low %v4119, %v4120
      %v5167 = vunpack.c.l.s4 1983009808
      %v5168 = vunpack.c.0.s8 %v5167
      %v5169 = vlaneseq
      %v5170 = vshrl.u32 %v5169, 7
      %v5171 = vsub.s32 %v5168, %v5170
      %v5172 = vrot.slane %v5165, %v5171
      %v5173 = vcombine.low %v5148, %v5156
      %v5174 = vcombine.high %v5148, %v5156
      %v5176 = vunpack.c.l.s4 1934713408
      %v5177 = vunpack.c.0.s8 %v5176
      %v5178 = vlaneseq
      %v5179 = vshrl.u32 %v5178, 7
      %v5180 = vsub.s32 %v5177, %v5179
      %v5181 = vrot.slane %v5173, %v5180
      %v5183 = vunpack.c.l.s4 1934713408
      %v5184 = vunpack.c.0.s8 %v5183
      %v5185 = vlaneseq
      %v5186 = vshrl.u32 %v5185, 7
      %v5187 = vsub.s32 %v5184, %v5186
      %v5188 = vrot.slane %v5174, %v5187
      %v5189 = vcombine.low %v5164, %v5172
      %v5190 = vcombine.high %v5164, %v5172
      %v5192 = vunpack.c.l.s4 1934713408
      %v5193 = vunpack.c.0.s8 %v5192
      %v5194 = vlaneseq
      %v5195 = vshrl.u32 %v5194, 7
      %v5196 = vsub.s32 %v5193, %v5195
      %v5197 = vrot.slane %v5189, %v5196
      %v5199 = vunpack.c.l.s4 1934713408
      %v5200 = vunpack.c.0.s8 %v5199
      %v5201 = vlaneseq
      %v5202 = vshrl.u32 %v5201, 7
      %v5203 = vsub.s32 %v5200, %v5202
      %v5204 = vrot.slane %v5190, %v5203
      %v5205 = vcombine.low %v5181, %v5197
      %v5206 = vcombine.high %v5181, %v5197
      %v5207 = vcombine.low %v5188, %v5204
      %v5208 = vcombine.high %v5188, %v5204
      %v5209 = vcombine.low %v4161, %v4168
      %v5211 = vunpack.c.l.s4 1983009808
      %v5212 = vunpack.c.0.s8 %v5211
      %v5213 = vlaneseq
      %v5214 = vshrl.u32 %v5213, 7
      %v5215 = vsub.s32 %v5212, %v5214
      %v5216 = vrot.slane %v5209, %v5215
      %v5217 = vcombine.low %v4185, %v4186
      %v5219 = vunpack.c.l.s4 1983009808
      %v5220 = vunpack.c.0.s8 %v5219
      %v5221 = vlaneseq
      %v5222 = vshrl.u32 %v5221, 7
      %v5223 = vsub.s32 %v5220, %v5222
      %v5224 = vrot.slane %v5217, %v5223
      %v5225 = vcombine.low %v4177, %v4184
      %v5227 = vunpack.c.l.s4 1983009808
      %v5228 = vunpack.c.0.s8 %v5227
      %v5229 = vlaneseq
      %v5230 = vshrl.u32 %v5229, 7
      %v5231 = vsub.s32 %v5228, %v5230
      %v5232 = vrot.slane %v5225, %v5231
      %v5233 = vcombine.low %v4187, %v4188
      %v5235 = vunpack.c.l.s4 1983009808
      %v5236 = vunpack.c.0.s8 %v5235
      %v5237 = vlaneseq
      %v5238 = vshrl.u32 %v5237, 7
      %v5239 = vsub.s32 %v5236, %v5238
      %v5240 = vrot.slane %v5233, %v5239
      %v5241 = vcombine.low %v5216, %v5224
      %v5242 = vcombine.high %v5216, %v5224
      %v5244 = vunpack.c.l.s4 1934713408
      %v5245 = vunpack.c.0.s8 %v5244
      %v5246 = vlaneseq
      %v5247 = vshrl.u32 %v5246, 7
      %v5248 = vsub.s32 %v5245, %v5247
      %v5249 = vrot.slane %v5241, %v5248
      %v5251 = vunpack.c.l.s4 1934713408
      %v5252 = vunpack.c.0.s8 %v5251
      %v5253 = vlaneseq
      %v5254 = vshrl.u32 %v5253, 7
      %v5255 = vsub.s32 %v5252, %v5254
      %v5256 = vrot.slane %v5242, %v5255
      %v5257 = vcombine.low %v5232, %v5240
      %v5258 = vcombine.high %v5232, %v5240
      %v5260 = vunpack.c.l.s4 1934713408
      %v5261 = vunpack.c.0.s8 %v5260
      %v5262 = vlaneseq
      %v5263 = vshrl.u32 %v5262, 7
      %v5264 = vsub.s32 %v5261, %v5263
      %v5265 = vrot.slane %v5257, %v5264
      %v5267 = vunpack.c.l.s4 1934713408
      %v5268 = vunpack.c.0.s8 %v5267
      %v5269 = vlaneseq
      %v5270 = vshrl.u32 %v5269, 7
      %v5271 = vsub.s32 %v5268, %v5270
      %v5272 = vrot.slane %v5258, %v5271
      %v5273 = vcombine.low %v5249, %v5265
      %v5274 = vcombine.high %v5249, %v5265
      %v5275 = vcombine.low %v5256, %v5272
      %v5276 = vcombine.high %v5256, %v5272
      %v5277 = vcombine.low %v4229, %v4236
      %v5279 = vunpack.c.l.s4 1983009808
      %v5280 = vunpack.c.0.s8 %v5279
      %v5281 = vlaneseq
      %v5282 = vshrl.u32 %v5281, 7
      %v5283 = vsub.s32 %v5280, %v5282
      %v5284 = vrot.slane %v5277, %v5283
      %v5285 = vcombine.low %v4253, %v4254
      %v5287 = vunpack.c.l.s4 1983009808
      %v5288 = vunpack.c.0.s8 %v5287
      %v5289 = vlaneseq
      %v5290 = vshrl.u32 %v5289, 7
      %v5291 = vsub.s32 %v5288, %v5290
      %v5292 = vrot.slane %v5285, %v5291
      %v5293 = vcombine.low %v4245, %v4252
      %v5295 = vunpack.c.l.s4 1983009808
      %v5296 = vunpack.c.0.s8 %v5295
      %v5297 = vlaneseq
      %v5298 = vshrl.u32 %v5297, 7
      %v5299 = vsub.s32 %v5296, %v5298
      %v5300 = vrot.slane %v5293, %v5299
      %v5301 = vcombine.low %v4255, %v4256
      %v5303 = vunpack.c.l.s4 1983009808
      %v5304 = vunpack.c.0.s8 %v5303
      %v5305 = vlaneseq
      %v5306 = vshrl.u32 %v5305, 7
      %v5307 = vsub.s32 %v5304, %v5306
      %v5308 = vrot.slane %v5301, %v5307
      %v5309 = vcombine.low %v5284, %v5292
      %v5310 = vcombine.high %v5284, %v5292
      %v5312 = vunpack.c.l.s4 1934713408
      %v5313 = vunpack.c.0.s8 %v5312
      %v5314 = vlaneseq
      %v5315 = vshrl.u32 %v5314, 7
      %v5316 = vsub.s32 %v5313, %v5315
      %v5317 = vrot.slane %v5309, %v5316
      %v5319 = vunpack.c.l.s4 1934713408
      %v5320 = vunpack.c.0.s8 %v5319
      %v5321 = vlaneseq
      %v5322 = vshrl.u32 %v5321, 7
      %v5323 = vsub.s32 %v5320, %v5322
      %v5324 = vrot.slane %v5310, %v5323
      %v5325 = vcombine.low %v5300, %v5308
      %v5326 = vcombine.high %v5300, %v5308
      %v5328 = vunpack.c.l.s4 1934713408
      %v5329 = vunpack.c.0.s8 %v5328
      %v5330 = vlaneseq
      %v5331 = vshrl.u32 %v5330, 7
      %v5332 = vsub.s32 %v5329, %v5331
      %v5333 = vrot.slane %v5325, %v5332
      %v5335 = vunpack.c.l.s4 1934713408
      %v5336 = vunpack.c.0.s8 %v5335
      %v5337 = vlaneseq
      %v5338 = vshrl.u32 %v5337, 7
      %v5339 = vsub.s32 %v5336, %v5338
      %v5340 = vrot.slane %v5326, %v5339
      %v5341 = vcombine.low %v5317, %v5333
      %v5342 = vcombine.high %v5317, %v5333
      %v5343 = vcombine.low %v5324, %v5340
      %v5344 = vcombine.high %v5324, %v5340
      %v5345 = vcombine.low %v4297, %v4304
      %v5347 = vunpack.c.l.s4 1983009808
      %v5348 = vunpack.c.0.s8 %v5347
      %v5349 = vlaneseq
      %v5350 = vshrl.u32 %v5349, 7
      %v5351 = vsub.s32 %v5348, %v5350
      %v5352 = vrot.slane %v5345, %v5351
      %v5353 = vcombine.low %v4321, %v4322
      %v5355 = vunpack.c.l.s4 1983009808
      %v5356 = vunpack.c.0.s8 %v5355
      %v5357 = vlaneseq
      %v5358 = vshrl.u32 %v5357, 7
      %v5359 = vsub.s32 %v5356, %v5358
      %v5360 = vrot.slane %v5353, %v5359
      %v5361 = vcombine.low %v4313, %v4320
      %v5363 = vunpack.c.l.s4 1983009808
      %v5364 = vunpack.c.0.s8 %v5363
      %v5365 = vlaneseq
      %v5366 = vshrl.u32 %v5365, 7
      %v5367 = vsub.s32 %v5364, %v5366
      %v5368 = vrot.slane %v5361, %v5367
      %v5369 = vcombine.low %v4323, %v4324
      %v5371 = vunpack.c.l.s4 1983009808
      %v5372 = vunpack.c.0.s8 %v5371
      %v5373 = vlaneseq
      %v5374 = vshrl.u32 %v5373, 7
      %v5375 = vsub.s32 %v5372, %v5374
      %v5376 = vrot.slane %v5369, %v5375
      %v5377 = vcombine.low %v5352, %v5360
      %v5378 = vcombine.high %v5352, %v5360
      %v5380 = vunpack.c.l.s4 1934713408
      %v5381 = vunpack.c.0.s8 %v5380
      %v5382 = vlaneseq
      %v5383 = vshrl.u32 %v5382, 7
      %v5384 = vsub.s32 %v5381, %v5383
      %v5385 = vrot.slane %v5377, %v5384
      %v5387 = vunpack.c.l.s4 1934713408
      %v5388 = vunpack.c.0.s8 %v5387
      %v5389 = vlaneseq
      %v5390 = vshrl.u32 %v5389, 7
      %v5391 = vsub.s32 %v5388, %v5390
      %v5392 = vrot.slane %v5378, %v5391
      %v5393 = vcombine.low %v5368, %v5376
      %v5394 = vcombine.high %v5368, %v5376
      %v5396 = vunpack.c.l.s4 1934713408
      %v5397 = vunpack.c.0.s8 %v5396
      %v5398 = vlaneseq
      %v5399 = vshrl.u32 %v5398, 7
      %v5400 = vsub.s32 %v5397, %v5399
      %v5401 = vrot.slane %v5393, %v5400
      %v5403 = vunpack.c.l.s4 1934713408
      %v5404 = vunpack.c.0.s8 %v5403
      %v5405 = vlaneseq
      %v5406 = vshrl.u32 %v5405, 7
      %v5407 = vsub.s32 %v5404, %v5406
      %v5408 = vrot.slane %v5394, %v5407
      %v5409 = vcombine.low %v5385, %v5401
      %v5410 = vcombine.high %v5385, %v5401
      %v5411 = vcombine.low %v5392, %v5408
      %v5412 = vcombine.high %v5392, %v5408
      %v5413 = vcombine.low %v4365, %v4372
      %v5415 = vunpack.c.l.s4 1983009808
      %v5416 = vunpack.c.0.s8 %v5415
      %v5417 = vlaneseq
      %v5418 = vshrl.u32 %v5417, 7
      %v5419 = vsub.s32 %v5416, %v5418
      %v5420 = vrot.slane %v5413, %v5419
      %v5421 = vcombine.low %v4389, %v4390
      %v5423 = vunpack.c.l.s4 1983009808
      %v5424 = vunpack.c.0.s8 %v5423
      %v5425 = vlaneseq
      %v5426 = vshrl.u32 %v5425, 7
      %v5427 = vsub.s32 %v5424, %v5426
      %v5428 = vrot.slane %v5421, %v5427
      %v5429 = vcombine.low %v4381, %v4388
      %v5431 = vunpack.c.l.s4 1983009808
      %v5432 = vunpack.c.0.s8 %v5431
      %v5433 = vlaneseq
      %v5434 = vshrl.u32 %v5433, 7
      %v5435 = vsub.s32 %v5432, %v5434
      %v5436 = vrot.slane %v5429, %v5435
      %v5437 = vcombine.low %v4391, %v4392
      %v5439 = vunpack.c.l.s4 1983009808
      %v5440 = vunpack.c.0.s8 %v5439
      %v5441 = vlaneseq
      %v5442 = vshrl.u32 %v5441, 7
      %v5443 = vsub.s32 %v5440, %v5442
      %v5444 = vrot.slane %v5437, %v5443
      %v5445 = vcombine.low %v5420, %v5428
      %v5446 = vcombine.high %v5420, %v5428
      %v5448 = vunpack.c.l.s4 1934713408
      %v5449 = vunpack.c.0.s8 %v5448
      %v5450 = vlaneseq
      %v5451 = vshrl.u32 %v5450, 7
      %v5452 = vsub.s32 %v5449, %v5451
      %v5453 = vrot.slane %v5445, %v5452
      %v5455 = vunpack.c.l.s4 1934713408
      %v5456 = vunpack.c.0.s8 %v5455
      %v5457 = vlaneseq
      %v5458 = vshrl.u32 %v5457, 7
      %v5459 = vsub.s32 %v5456, %v5458
      %v5460 = vrot.slane %v5446, %v5459
      %v5461 = vcombine.low %v5436, %v5444
      %v5462 = vcombine.high %v5436, %v5444
      %v5464 = vunpack.c.l.s4 1934713408
      %v5465 = vunpack.c.0.s8 %v5464
      %v5466 = vlaneseq
      %v5467 = vshrl.u32 %v5466, 7
      %v5468 = vsub.s32 %v5465, %v5467
      %v5469 = vrot.slane %v5461, %v5468
      %v5471 = vunpack.c.l.s4 1934713408
      %v5472 = vunpack.c.0.s8 %v5471
      %v5473 = vlaneseq
      %v5474 = vshrl.u32 %v5473, 7
      %v5475 = vsub.s32 %v5472, %v5474
      %v5476 = vrot.slane %v5462, %v5475
      %v5477 = vcombine.low %v5453, %v5469
      %v5478 = vcombine.high %v5453, %v5469
      %v5479 = vcombine.low %v5460, %v5476
      %v5480 = vcombine.high %v5460, %v5476
      %v5481 = vcombine.low %v4433, %v4440
      %v5483 = vunpack.c.l.s4 1983009808
      %v5484 = vunpack.c.0.s8 %v5483
      %v5485 = vlaneseq
      %v5486 = vshrl.u32 %v5485, 7
      %v5487 = vsub.s32 %v5484, %v5486
      %v5488 = vrot.slane %v5481, %v5487
      %v5489 = vcombine.low %v4457, %v4458
      %v5491 = vunpack.c.l.s4 1983009808
      %v5492 = vunpack.c.0.s8 %v5491
      %v5493 = vlaneseq
      %v5494 = vshrl.u32 %v5493, 7
      %v5495 = vsub.s32 %v5492, %v5494
      %v5496 = vrot.slane %v5489, %v5495
      %v5497 = vcombine.low %v4449, %v4456
      %v5499 = vunpack.c.l.s4 1983009808
      %v5500 = vunpack.c.0.s8 %v5499
      %v5501 = vlaneseq
      %v5502 = vshrl.u32 %v5501, 7
      %v5503 = vsub.s32 %v5500, %v5502
      %v5504 = vrot.slane %v5497, %v5503
      %v5505 = vcombine.low %v4459, %v4460
      %v5507 = vunpack.c.l.s4 1983009808
      %v5508 = vunpack.c.0.s8 %v5507
      %v5509 = vlaneseq
      %v5510 = vshrl.u32 %v5509, 7
      %v5511 = vsub.s32 %v5508, %v5510
      %v5512 = vrot.slane %v5505, %v5511
      %v5513 = vcombine.low %v5488, %v5496
      %v5514 = vcombine.high %v5488, %v5496
      %v5516 = vunpack.c.l.s4 1934713408
      %v5517 = vunpack.c.0.s8 %v5516
      %v5518 = vlaneseq
      %v5519 = vshrl.u32 %v5518, 7
      %v5520 = vsub.s32 %v5517, %v5519
      %v5521 = vrot.slane %v5513, %v5520
      %v5523 = vunpack.c.l.s4 1934713408
      %v5524 = vunpack.c.0.s8 %v5523
      %v5525 = vlaneseq
      %v5526 = vshrl.u32 %v5525, 7
      %v5527 = vsub.s32 %v5524, %v5526
      %v5528 = vrot.slane %v5514, %v5527
      %v5529 = vcombine.low %v5504, %v5512
      %v5530 = vcombine.high %v5504, %v5512
      %v5532 = vunpack.c.l.s4 1934713408
      %v5533 = vunpack.c.0.s8 %v5532
      %v5534 = vlaneseq
      %v5535 = vshrl.u32 %v5534, 7
      %v5536 = vsub.s32 %v5533, %v5535
      %v5537 = vrot.slane %v5529, %v5536
      %v5539 = vunpack.c.l.s4 1934713408
      %v5540 = vunpack.c.0.s8 %v5539
      %v5541 = vlaneseq
      %v5542 = vshrl.u32 %v5541, 7
      %v5543 = vsub.s32 %v5540, %v5542
      %v5544 = vrot.slane %v5530, %v5543
      %v5545 = vcombine.low %v5521, %v5537
      %v5546 = vcombine.high %v5521, %v5537
      %v5547 = vcombine.low %v5528, %v5544
      %v5548 = vcombine.high %v5528, %v5544
      %v5549 = vcombine.low %v4501, %v4508
      %v5551 = vunpack.c.l.s4 1983009808
      %v5552 = vunpack.c.0.s8 %v5551
      %v5553 = vlaneseq
      %v5554 = vshrl.u32 %v5553, 7
      %v5555 = vsub.s32 %v5552, %v5554
      %v5556 = vrot.slane %v5549, %v5555
      %v5557 = vcombine.low %v4525, %v4526
      %v5559 = vunpack.c.l.s4 1983009808
      %v5560 = vunpack.c.0.s8 %v5559
      %v5561 = vlaneseq
      %v5562 = vshrl.u32 %v5561, 7
      %v5563 = vsub.s32 %v5560, %v5562
      %v5564 = vrot.slane %v5557, %v5563
      %v5565 = vcombine.low %v4517, %v4524
      %v5567 = vunpack.c.l.s4 1983009808
      %v5568 = vunpack.c.0.s8 %v5567
      %v5569 = vlaneseq
      %v5570 = vshrl.u32 %v5569, 7
      %v5571 = vsub.s32 %v5568, %v5570
      %v5572 = vrot.slane %v5565, %v5571
      %v5573 = vcombine.low %v4527, %v4528
      %v5575 = vunpack.c.l.s4 1983009808
      %v5576 = vunpack.c.0.s8 %v5575
      %v5577 = vlaneseq
      %v5578 = vshrl.u32 %v5577, 7
      %v5579 = vsub.s32 %v5576, %v5578
      %v5580 = vrot.slane %v5573, %v5579
      %v5581 = vcombine.low %v5556, %v5564
      %v5582 = vcombine.high %v5556, %v5564
      %v5584 = vunpack.c.l.s4 1934713408
      %v5585 = vunpack.c.0.s8 %v5584
      %v5586 = vlaneseq
      %v5587 = vshrl.u32 %v5586, 7
      %v5588 = vsub.s32 %v5585, %v5587
      %v5589 = vrot.slane %v5581, %v5588
      %v5591 = vunpack.c.l.s4 1934713408
      %v5592 = vunpack.c.0.s8 %v5591
      %v5593 = vlaneseq
      %v5594 = vshrl.u32 %v5593, 7
      %v5595 = vsub.s32 %v5592, %v5594
      %v5596 = vrot.slane %v5582, %v5595
      %v5597 = vcombine.low %v5572, %v5580
      %v5598 = vcombine.high %v5572, %v5580
      %v5600 = vunpack.c.l.s4 1934713408
      %v5601 = vunpack.c.0.s8 %v5600
      %v5602 = vlaneseq
      %v5603 = vshrl.u32 %v5602, 7
      %v5604 = vsub.s32 %v5601, %v5603
      %v5605 = vrot.slane %v5597, %v5604
      %v5607 = vunpack.c.l.s4 1934713408
      %v5608 = vunpack.c.0.s8 %v5607
      %v5609 = vlaneseq
      %v5610 = vshrl.u32 %v5609, 7
      %v5611 = vsub.s32 %v5608, %v5610
      %v5612 = vrot.slane %v5598, %v5611
      %v5613 = vcombine.low %v5589, %v5605
      %v5614 = vcombine.high %v5589, %v5605
      %v5615 = vcombine.low %v5596, %v5612
      %v5616 = vcombine.high %v5596, %v5612
      %v5617 = vcombine.low %v4569, %v4576
      %v5619 = vunpack.c.l.s4 1983009808
      %v5620 = vunpack.c.0.s8 %v5619
      %v5621 = vlaneseq
      %v5622 = vshrl.u32 %v5621, 7
      %v5623 = vsub.s32 %v5620, %v5622
      %v5624 = vrot.slane %v5617, %v5623
      %v5625 = vcombine.low %v4593, %v4594
      %v5627 = vunpack.c.l.s4 1983009808
      %v5628 = vunpack.c.0.s8 %v5627
      %v5629 = vlaneseq
      %v5630 = vshrl.u32 %v5629, 7
      %v5631 = vsub.s32 %v5628, %v5630
      %v5632 = vrot.slane %v5625, %v5631
      %v5633 = vcombine.low %v4585, %v4592
      %v5635 = vunpack.c.l.s4 1983009808
      %v5636 = vunpack.c.0.s8 %v5635
      %v5637 = vlaneseq
      %v5638 = vshrl.u32 %v5637, 7
      %v5639 = vsub.s32 %v5636, %v5638
      %v5640 = vrot.slane %v5633, %v5639
      %v5641 = vcombine.low %v4595, %v4596
      %v5643 = vunpack.c.l.s4 1983009808
      %v5644 = vunpack.c.0.s8 %v5643
      %v5645 = vlaneseq
      %v5646 = vshrl.u32 %v5645, 7
      %v5647 = vsub.s32 %v5644, %v5646
      %v5648 = vrot.slane %v5641, %v5647
      %v5649 = vcombine.low %v5624, %v5632
      %v5650 = vcombine.high %v5624, %v5632
      %v5652 = vunpack.c.l.s4 1934713408
      %v5653 = vunpack.c.0.s8 %v5652
      %v5654 = vlaneseq
      %v5655 = vshrl.u32 %v5654, 7
      %v5656 = vsub.s32 %v5653, %v5655
      %v5657 = vrot.slane %v5649, %v5656
      %v5659 = vunpack.c.l.s4 1934713408
      %v5660 = vunpack.c.0.s8 %v5659
      %v5661 = vlaneseq
      %v5662 = vshrl.u32 %v5661, 7
      %v5663 = vsub.s32 %v5660, %v5662
      %v5664 = vrot.slane %v5650, %v5663
      %v5665 = vcombine.low %v5640, %v5648
      %v5666 = vcombine.high %v5640, %v5648
      %v5668 = vunpack.c.l.s4 1934713408
      %v5669 = vunpack.c.0.s8 %v5668
      %v5670 = vlaneseq
      %v5671 = vshrl.u32 %v5670, 7
      %v5672 = vsub.s32 %v5669, %v5671
      %v5673 = vrot.slane %v5665, %v5672
      %v5675 = vunpack.c.l.s4 1934713408
      %v5676 = vunpack.c.0.s8 %v5675
      %v5677 = vlaneseq
      %v5678 = vshrl.u32 %v5677, 7
      %v5679 = vsub.s32 %v5676, %v5678
      %v5680 = vrot.slane %v5666, %v5679
      %v5681 = vcombine.low %v5657, %v5673
      %v5682 = vcombine.high %v5657, %v5673
      %v5683 = vcombine.low %v5664, %v5680
      %v5684 = vcombine.high %v5664, %v5680
      %v5685 = vcombine.low %v4637, %v4644
      %v5687 = vunpack.c.l.s4 1983009808
      %v5688 = vunpack.c.0.s8 %v5687
      %v5689 = vlaneseq
      %v5690 = vshrl.u32 %v5689, 7
      %v5691 = vsub.s32 %v5688, %v5690
      %v5692 = vrot.slane %v5685, %v5691
      %v5693 = vcombine.low %v4661, %v4662
      %v5695 = vunpack.c.l.s4 1983009808
      %v5696 = vunpack.c.0.s8 %v5695
      %v5697 = vlaneseq
      %v5698 = vshrl.u32 %v5697, 7
      %v5699 = vsub.s32 %v5696, %v5698
      %v5700 = vrot.slane %v5693, %v5699
      %v5701 = vcombine.low %v4653, %v4660
      %v5703 = vunpack.c.l.s4 1983009808
      %v5704 = vunpack.c.0.s8 %v5703
      %v5705 = vlaneseq
      %v5706 = vshrl.u32 %v5705, 7
      %v5707 = vsub.s32 %v5704, %v5706
      %v5708 = vrot.slane %v5701, %v5707
      %v5709 = vcombine.low %v4663, %v4664
      %v5711 = vunpack.c.l.s4 1983009808
      %v5712 = vunpack.c.0.s8 %v5711
      %v5713 = vlaneseq
      %v5714 = vshrl.u32 %v5713, 7
      %v5715 = vsub.s32 %v5712, %v5714
      %v5716 = vrot.slane %v5709, %v5715
      %v5717 = vcombine.low %v5692, %v5700
      %v5718 = vcombine.high %v5692, %v5700
      %v5720 = vunpack.c.l.s4 1934713408
      %v5721 = vunpack.c.0.s8 %v5720
      %v5722 = vlaneseq
      %v5723 = vshrl.u32 %v5722, 7
      %v5724 = vsub.s32 %v5721, %v5723
      %v5725 = vrot.slane %v5717, %v5724
      %v5727 = vunpack.c.l.s4 1934713408
      %v5728 = vunpack.c.0.s8 %v5727
      %v5729 = vlaneseq
      %v5730 = vshrl.u32 %v5729, 7
      %v5731 = vsub.s32 %v5728, %v5730
      %v5732 = vrot.slane %v5718, %v5731
      %v5733 = vcombine.low %v5708, %v5716
      %v5734 = vcombine.high %v5708, %v5716
      %v5736 = vunpack.c.l.s4 1934713408
      %v5737 = vunpack.c.0.s8 %v5736
      %v5738 = vlaneseq
      %v5739 = vshrl.u32 %v5738, 7
      %v5740 = vsub.s32 %v5737, %v5739
      %v5741 = vrot.slane %v5733, %v5740
      %v5743 = vunpack.c.l.s4 1934713408
      %v5744 = vunpack.c.0.s8 %v5743
      %v5745 = vlaneseq
      %v5746 = vshrl.u32 %v5745, 7
      %v5747 = vsub.s32 %v5744, %v5746
      %v5748 = vrot.slane %v5734, %v5747
      %v5749 = vcombine.low %v5725, %v5741
      %v5750 = vcombine.high %v5725, %v5741
      %v5751 = vcombine.low %v5732, %v5748
      %v5752 = vcombine.high %v5732, %v5748
      %v5753 = vcombine.low %v4705, %v4712
      %v5755 = vunpack.c.l.s4 1983009808
      %v5756 = vunpack.c.0.s8 %v5755
      %v5757 = vlaneseq
      %v5758 = vshrl.u32 %v5757, 7
      %v5759 = vsub.s32 %v5756, %v5758
      %v5760 = vrot.slane %v5753, %v5759
      %v5761 = vcombine.low %v4729, %v4730
      %v5763 = vunpack.c.l.s4 1983009808
      %v5764 = vunpack.c.0.s8 %v5763
      %v5765 = vlaneseq
      %v5766 = vshrl.u32 %v5765, 7
      %v5767 = vsub.s32 %v5764, %v5766
      %v5768 = vrot.slane %v5761, %v5767
      %v5769 = vcombine.low %v4721, %v4728
      %v5771 = vunpack.c.l.s4 1983009808
      %v5772 = vunpack.c.0.s8 %v5771
      %v5773 = vlaneseq
      %v5774 = vshrl.u32 %v5773, 7
      %v5775 = vsub.s32 %v5772, %v5774
      %v5776 = vrot.slane %v5769, %v5775
      %v5777 = vcombine.low %v4731, %v4732
      %v5779 = vunpack.c.l.s4 1983009808
      %v5780 = vunpack.c.0.s8 %v5779
      %v5781 = vlaneseq
      %v5782 = vshrl.u32 %v5781, 7
      %v5783 = vsub.s32 %v5780, %v5782
      %v5784 = vrot.slane %v5777, %v5783
      %v5785 = vcombine.low %v5760, %v5768
      %v5786 = vcombine.high %v5760, %v5768
      %v5788 = vunpack.c.l.s4 1934713408
      %v5789 = vunpack.c.0.s8 %v5788
      %v5790 = vlaneseq
      %v5791 = vshrl.u32 %v5790, 7
      %v5792 = vsub.s32 %v5789, %v5791
      %v5793 = vrot.slane %v5785, %v5792
      %v5795 = vunpack.c.l.s4 1934713408
      %v5796 = vunpack.c.0.s8 %v5795
      %v5797 = vlaneseq
      %v5798 = vshrl.u32 %v5797, 7
      %v5799 = vsub.s32 %v5796, %v5798
      %v5800 = vrot.slane %v5786, %v5799
      %v5801 = vcombine.low %v5776, %v5784
      %v5802 = vcombine.high %v5776, %v5784
      %v5804 = vunpack.c.l.s4 1934713408
      %v5805 = vunpack.c.0.s8 %v5804
      %v5806 = vlaneseq
      %v5807 = vshrl.u32 %v5806, 7
      %v5808 = vsub.s32 %v5805, %v5807
      %v5809 = vrot.slane %v5801, %v5808
      %v5811 = vunpack.c.l.s4 1934713408
      %v5812 = vunpack.c.0.s8 %v5811
      %v5813 = vlaneseq
      %v5814 = vshrl.u32 %v5813, 7
      %v5815 = vsub.s32 %v5812, %v5814
      %v5816 = vrot.slane %v5802, %v5815
      %v5817 = vcombine.low %v5793, %v5809
      %v5818 = vcombine.high %v5793, %v5809
      %v5819 = vcombine.low %v5800, %v5816
      %v5820 = vcombine.high %v5800, %v5816
      %v5821 = vcombine.low %v4773, %v4780
      %v5823 = vunpack.c.l.s4 1983009808
      %v5824 = vunpack.c.0.s8 %v5823
      %v5825 = vlaneseq
      %v5826 = vshrl.u32 %v5825, 7
      %v5827 = vsub.s32 %v5824, %v5826
      %v5828 = vrot.slane %v5821, %v5827
      %v5829 = vcombine.low %v4797, %v4798
      %v5831 = vunpack.c.l.s4 1983009808
      %v5832 = vunpack.c.0.s8 %v5831
      %v5833 = vlaneseq
      %v5834 = vshrl.u32 %v5833, 7
      %v5835 = vsub.s32 %v5832, %v5834
      %v5836 = vrot.slane %v5829, %v5835
      %v5837 = vcombine.low %v4789, %v4796
      %v5839 = vunpack.c.l.s4 1983009808
      %v5840 = vunpack.c.0.s8 %v5839
      %v5841 = vlaneseq
      %v5842 = vshrl.u32 %v5841, 7
      %v5843 = vsub.s32 %v5840, %v5842
      %v5844 = vrot.slane %v5837, %v5843
      %v5845 = vcombine.low %v4799, %v4800
      %v5847 = vunpack.c.l.s4 1983009808
      %v5848 = vunpack.c.0.s8 %v5847
      %v5849 = vlaneseq
      %v5850 = vshrl.u32 %v5849, 7
      %v5851 = vsub.s32 %v5848, %v5850
      %v5852 = vrot.slane %v5845, %v5851
      %v5853 = vcombine.low %v5828, %v5836
      %v5854 = vcombine.high %v5828, %v5836
      %v5856 = vunpack.c.l.s4 1934713408
      %v5857 = vunpack.c.0.s8 %v5856
      %v5858 = vlaneseq
      %v5859 = vshrl.u32 %v5858, 7
      %v5860 = vsub.s32 %v5857, %v5859
      %v5861 = vrot.slane %v5853, %v5860
      %v5863 = vunpack.c.l.s4 1934713408
      %v5864 = vunpack.c.0.s8 %v5863
      %v5865 = vlaneseq
      %v5866 = vshrl.u32 %v5865, 7
      %v5867 = vsub.s32 %v5864, %v5866
      %v5868 = vrot.slane %v5854, %v5867
      %v5869 = vcombine.low %v5844, %v5852
      %v5870 = vcombine.high %v5844, %v5852
      %v5872 = vunpack.c.l.s4 1934713408
      %v5873 = vunpack.c.0.s8 %v5872
      %v5874 = vlaneseq
      %v5875 = vshrl.u32 %v5874, 7
      %v5876 = vsub.s32 %v5873, %v5875
      %v5877 = vrot.slane %v5869, %v5876
      %v5879 = vunpack.c.l.s4 1934713408
      %v5880 = vunpack.c.0.s8 %v5879
      %v5881 = vlaneseq
      %v5882 = vshrl.u32 %v5881, 7
      %v5883 = vsub.s32 %v5880, %v5882
      %v5884 = vrot.slane %v5870, %v5883
      %v5885 = vcombine.low %v5861, %v5877
      %v5886 = vcombine.high %v5861, %v5877
      %v5887 = vcombine.low %v5868, %v5884
      %v5888 = vcombine.high %v5868, %v5884
      %v5889 = vpack.c.bf16 %v4933, %v4865
      %v5890 = vpack.c.bf16 %v5069, %v5001
      %v5891 = vpack.c.bf16 %v5205, %v5137
      %v5892 = vpack.c.bf16 %v5341, %v5273
      %v5893 = vpack.c.bf16 %v5477, %v5409
      %v5894 = vpack.c.bf16 %v5613, %v5545
      %v5895 = vpack.c.bf16 %v5749, %v5681
      %v5896 = vpack.c.bf16 %v5885, %v5817
      %v5897 = vpack.c.bf16 %v4934, %v4866
      %v5898 = vpack.c.bf16 %v5070, %v5002
      %v5899 = vpack.c.bf16 %v5206, %v5138
      %v5900 = vpack.c.bf16 %v5342, %v5274
      %v5901 = vpack.c.bf16 %v5478, %v5410
      %v5902 = vpack.c.bf16 %v5614, %v5546
      %v5903 = vpack.c.bf16 %v5750, %v5682
      %v5904 = vpack.c.bf16 %v5886, %v5818
      %v5905 = vpack.c.bf16 %v4935, %v4867
      %v5906 = vpack.c.bf16 %v5071, %v5003
      %v5907 = vpack.c.bf16 %v5207, %v5139
      %v5908 = vpack.c.bf16 %v5343, %v5275
      %v5909 = vpack.c.bf16 %v5479, %v5411
      %v5910 = vpack.c.bf16 %v5615, %v5547
      %v5911 = vpack.c.bf16 %v5751, %v5683
      %v5912 = vpack.c.bf16 %v5887, %v5819
      %v5913 = vpack.c.bf16 %v4936, %v4868
      %v5914 = vpack.c.bf16 %v5072, %v5004
      %v5915 = vpack.c.bf16 %v5208, %v5140
      %v5916 = vpack.c.bf16 %v5344, %v5276
      %v5917 = vpack.c.bf16 %v5480, %v5412
      %v5918 = vpack.c.bf16 %v5616, %v5548
      %v5919 = vpack.c.bf16 %v5752, %v5684
      %v5920 = vpack.c.bf16 %v5888, %v5820
      %v5953 = vunpack.c.l.b16 %v5889
      %v5954 = vunpack.c.h.b16 %v5889
      %v5955 = vunpack.c.l.b16 %v5890
      %v5956 = vunpack.c.h.b16 %v5890
      %v5957 = vunpack.c.l.b16 %v5891
      %v5958 = vunpack.c.h.b16 %v5891
      %v5959 = vunpack.c.l.b16 %v5892
      %v5960 = vunpack.c.h.b16 %v5892
      %v5961 = vunpack.c.l.b16 %v5893
      %v5962 = vunpack.c.h.b16 %v5893
      %v5963 = vunpack.c.l.b16 %v5894
      %v5964 = vunpack.c.h.b16 %v5894
      %v5965 = vunpack.c.l.b16 %v5895
      %v5966 = vunpack.c.h.b16 %v5895
      %v5967 = vunpack.c.l.b16 %v5896
      %v5968 = vunpack.c.h.b16 %v5896
      %v5969 = vunpack.c.l.b16 %v5897
      %v5970 = vunpack.c.h.b16 %v5897
      %v5971 = vunpack.c.l.b16 %v5898
      %v5972 = vunpack.c.h.b16 %v5898
      %v5973 = vunpack.c.l.b16 %v5899
      %v5974 = vunpack.c.h.b16 %v5899
      %v5975 = vunpack.c.l.b16 %v5900
      %v5976 = vunpack.c.h.b16 %v5900
      %v5977 = vunpack.c.l.b16 %v5901
      %v5978 = vunpack.c.h.b16 %v5901
      %v5979 = vunpack.c.l.b16 %v5902
      %v5980 = vunpack.c.h.b16 %v5902
      %v5981 = vunpack.c.l.b16 %v5903
      %v5982 = vunpack.c.h.b16 %v5903
      %v5983 = vunpack.c.l.b16 %v5904
      %v5984 = vunpack.c.h.b16 %v5904
      %v5985 = vunpack.c.l.b16 %v5905
      %v5986 = vunpack.c.h.b16 %v5905
      %v5987 = vunpack.c.l.b16 %v5906
      %v5988 = vunpack.c.h.b16 %v5906
      %v5989 = vunpack.c.l.b16 %v5907
      %v5990 = vunpack.c.h.b16 %v5907
      %v5991 = vunpack.c.l.b16 %v5908
      %v5992 = vunpack.c.h.b16 %v5908
      %v5993 = vunpack.c.l.b16 %v5909
      %v5994 = vunpack.c.h.b16 %v5909
      %v5995 = vunpack.c.l.b16 %v5910
      %v5996 = vunpack.c.h.b16 %v5910
      %v5997 = vunpack.c.l.b16 %v5911
      %v5998 = vunpack.c.h.b16 %v5911
      %v5999 = vunpack.c.l.b16 %v5912
      %v6000 = vunpack.c.h.b16 %v5912
      %v6001 = vunpack.c.l.b16 %v5913
      %v6002 = vunpack.c.h.b16 %v5913
      %v6003 = vunpack.c.l.b16 %v5914
      %v6004 = vunpack.c.h.b16 %v5914
      %v6005 = vunpack.c.l.b16 %v5915
      %v6006 = vunpack.c.h.b16 %v5915
      %v6007 = vunpack.c.l.b16 %v5916
      %v6008 = vunpack.c.h.b16 %v5916
      %v6009 = vunpack.c.l.b16 %v5917
      %v6010 = vunpack.c.h.b16 %v5917
      %v6011 = vunpack.c.l.b16 %v5918
      %v6012 = vunpack.c.h.b16 %v5918
      %v6013 = vunpack.c.l.b16 %v5919
      %v6014 = vunpack.c.h.b16 %v5919
      %v6015 = vunpack.c.l.b16 %v5920
      %v6016 = vunpack.c.h.b16 %v5920
      %v6017 = vpack.c.b16 %v5953, %v5953
      %v6018 = vpack.c.b16 %v5954, %v5954
      %v6019 = vpack.c.b16 %v5955, %v5955
      %v6020 = vpack.c.b16 %v5956, %v5956
      %v6021 = vpack.c.b16 %v5957, %v5957
      %v6022 = vpack.c.b16 %v5958, %v5958
      %v6023 = vpack.c.b16 %v5959, %v5959
      %v6024 = vpack.c.b16 %v5960, %v5960
      %v6025 = vpack.c.b16 %v5961, %v5961
      %v6026 = vpack.c.b16 %v5962, %v5962
      %v6027 = vpack.c.b16 %v5963, %v5963
      %v6028 = vpack.c.b16 %v5964, %v5964
      %v6029 = vpack.c.b16 %v5965, %v5965
      %v6030 = vpack.c.b16 %v5966, %v5966
      %v6031 = vpack.c.b16 %v5967, %v5967
      %v6032 = vpack.c.b16 %v5968, %v5968
      %v6033 = vpack.c.b16 %v5969, %v5969
      %v6034 = vpack.c.b16 %v5970, %v5970
      %v6035 = vpack.c.b16 %v5971, %v5971
      %v6036 = vpack.c.b16 %v5972, %v5972
      %v6037 = vpack.c.b16 %v5973, %v5973
      %v6038 = vpack.c.b16 %v5974, %v5974
      %v6039 = vpack.c.b16 %v5975, %v5975
      %v6040 = vpack.c.b16 %v5976, %v5976
      %v6041 = vpack.c.b16 %v5977, %v5977
      %v6042 = vpack.c.b16 %v5978, %v5978
      %v6043 = vpack.c.b16 %v5979, %v5979
      %v6044 = vpack.c.b16 %v5980, %v5980
      %v6045 = vpack.c.b16 %v5981, %v5981
      %v6046 = vpack.c.b16 %v5982, %v5982
      %v6047 = vpack.c.b16 %v5983, %v5983
      %v6048 = vpack.c.b16 %v5984, %v5984
      %v6049 = vpack.c.b16 %v5985, %v5985
      %v6050 = vpack.c.b16 %v5986, %v5986
      %v6051 = vpack.c.b16 %v5987, %v5987
      %v6052 = vpack.c.b16 %v5988, %v5988
      %v6053 = vpack.c.b16 %v5989, %v5989
      %v6054 = vpack.c.b16 %v5990, %v5990
      %v6055 = vpack.c.b16 %v5991, %v5991
      %v6056 = vpack.c.b16 %v5992, %v5992
      %v6057 = vpack.c.b16 %v5993, %v5993
      %v6058 = vpack.c.b16 %v5994, %v5994
      %v6059 = vpack.c.b16 %v5995, %v5995
      %v6060 = vpack.c.b16 %v5996, %v5996
      %v6061 = vpack.c.b16 %v5997, %v5997
      %v6062 = vpack.c.b16 %v5998, %v5998
      %v6063 = vpack.c.b16 %v5999, %v5999
      %v6064 = vpack.c.b16 %v6000, %v6000
      %v6065 = vpack.c.b16 %v6001, %v6001
      %v6066 = vpack.c.b16 %v6002, %v6002
      %v6067 = vpack.c.b16 %v6003, %v6003
      %v6068 = vpack.c.b16 %v6004, %v6004
      %v6069 = vpack.c.b16 %v6005, %v6005
      %v6070 = vpack.c.b16 %v6006, %v6006
      %v6071 = vpack.c.b16 %v6007, %v6007
      %v6072 = vpack.c.b16 %v6008, %v6008
      %v6073 = vpack.c.b16 %v6009, %v6009
      %v6074 = vpack.c.b16 %v6010, %v6010
      %v6075 = vpack.c.b16 %v6011, %v6011
      %v6076 = vpack.c.b16 %v6012, %v6012
      %v6077 = vpack.c.b16 %v6013, %v6013
      %v6078 = vpack.c.b16 %v6014, %v6014
      %v6079 = vpack.c.b16 %v6015, %v6015
      %v6080 = vpack.c.b16 %v6016, %v6016
      %6145 = vst.msk [vmem:[%s353] sm:$0xf] %vm3488, %v6017
      %6146 = vst.msk [vmem:[%s353 + $0x4] sm:$0xf] %vm3488, %v6018
      %6147 = vst.msk [vmem:[%s353 + $0x8] sm:$0xf] %vm3488, %v6019
      %6148 = vst.msk [vmem:[%s353 + $0xc] sm:$0xf] %vm3488, %v6020
      %6149 = vst.msk [vmem:[%s353 + $0x10] sm:$0xf] %vm3488, %v6021
      %6150 = vst.msk [vmem:[%s353 + $0x14] sm:$0xf] %vm3488, %v6022
      %6151 = vst.msk [vmem:[%s353 + $0x18] sm:$0xf] %vm3488, %v6023
      %6152 = vst.msk [vmem:[%s353 + $0x1c] sm:$0xf] %vm3488, %v6024
      %6153 = vst.msk [vmem:[%s353 + $0x20] sm:$0xf] %vm3488, %v6025
      %6154 = vst.msk [vmem:[%s353 + $0x24] sm:$0xf] %vm3488, %v6026
      %6155 = vst.msk [vmem:[%s353 + $0x28] sm:$0xf] %vm3488, %v6027
      %6156 = vst.msk [vmem:[%s353 + $0x2c] sm:$0xf] %vm3488, %v6028
      %6157 = vst.msk [vmem:[%s353 + $0x30] sm:$0xf] %vm3488, %v6029
      %6158 = vst.msk [vmem:[%s353 + $0x34] sm:$0xf] %vm3488, %v6030
      %6159 = vst.msk [vmem:[%s353 + $0x38] sm:$0xf] %vm3488, %v6031
      %6160 = vst.msk [vmem:[%s353 + $0x3c] sm:$0xf] %vm3488, %v6032
      %6161 = vst.msk [vmem:[%s353 + $0x40] sm:$0xf] %vm3488, %v6033
      %6162 = vst.msk [vmem:[%s353 + $0x44] sm:$0xf] %vm3488, %v6034
      %6163 = vst.msk [vmem:[%s353 + $0x48] sm:$0xf] %vm3488, %v6035
      %6164 = vst.msk [vmem:[%s353 + $0x4c] sm:$0xf] %vm3488, %v6036
      %6165 = vst.msk [vmem:[%s353 + $0x50] sm:$0xf] %vm3488, %v6037
      %6166 = vst.msk [vmem:[%s353 + $0x54] sm:$0xf] %vm3488, %v6038
      %6167 = vst.msk [vmem:[%s353 + $0x58] sm:$0xf] %vm3488, %v6039
      %6168 = vst.msk [vmem:[%s353 + $0x5c] sm:$0xf] %vm3488, %v6040
      %6169 = vst.msk [vmem:[%s353 + $0x60] sm:$0xf] %vm3488, %v6041
      %6170 = vst.msk [vmem:[%s353 + $0x64] sm:$0xf] %vm3488, %v6042
      %6171 = vst.msk [vmem:[%s353 + $0x68] sm:$0xf] %vm3488, %v6043
      %6172 = vst.msk [vmem:[%s353 + $0x6c] sm:$0xf] %vm3488, %v6044
      %6173 = vst.msk [vmem:[%s353 + $0x70] sm:$0xf] %vm3488, %v6045
      %6174 = vst.msk [vmem:[%s353 + $0x74] sm:$0xf] %vm3488, %v6046
      %6175 = vst.msk [vmem:[%s353 + $0x78] sm:$0xf] %vm3488, %v6047
      %6176 = vst.msk [vmem:[%s353 + $0x7c] sm:$0xf] %vm3488, %v6048
      %6177 = vst.msk [vmem:[%s353 + $0x80] sm:$0xf] %vm3488, %v6049
      %6178 = vst.msk [vmem:[%s353 + $0x84] sm:$0xf] %vm3488, %v6050
      %6179 = vst.msk [vmem:[%s353 + $0x88] sm:$0xf] %vm3488, %v6051
      %6180 = vst.msk [vmem:[%s353 + $0x8c] sm:$0xf] %vm3488, %v6052
      %6181 = vst.msk [vmem:[%s353 + $0x90] sm:$0xf] %vm3488, %v6053
      %6182 = vst.msk [vmem:[%s353 + $0x94] sm:$0xf] %vm3488, %v6054
      %6183 = vst.msk [vmem:[%s353 + $0x98] sm:$0xf] %vm3488, %v6055
      %6184 = vst.msk [vmem:[%s353 + $0x9c] sm:$0xf] %vm3488, %v6056
      %6185 = vst.msk [vmem:[%s353 + $0xa0] sm:$0xf] %vm3488, %v6057
      %6186 = vst.msk [vmem:[%s353 + $0xa4] sm:$0xf] %vm3488, %v6058
      %6187 = vst.msk [vmem:[%s353 + $0xa8] sm:$0xf] %vm3488, %v6059
      %6188 = vst.msk [vmem:[%s353 + $0xac] sm:$0xf] %vm3488, %v6060
      %6189 = vst.msk [vmem:[%s353 + $0xb0] sm:$0xf] %vm3488, %v6061
      %6190 = vst.msk [vmem:[%s353 + $0xb4] sm:$0xf] %vm3488, %v6062
      %6191 = vst.msk [vmem:[%s353 + $0xb8] sm:$0xf] %vm3488, %v6063
      %6192 = vst.msk [vmem:[%s353 + $0xbc] sm:$0xf] %vm3488, %v6064
      %6193 = vst.msk [vmem:[%s353 + $0xc0] sm:$0xf] %vm3488, %v6065
      %6194 = vst.msk [vmem:[%s353 + $0xc4] sm:$0xf] %vm3488, %v6066
      %6195 = vst.msk [vmem:[%s353 + $0xc8] sm:$0xf] %vm3488, %v6067
      %6196 = vst.msk [vmem:[%s353 + $0xcc] sm:$0xf] %vm3488, %v6068
      %6197 = vst.msk [vmem:[%s353 + $0xd0] sm:$0xf] %vm3488, %v6069
      %6198 = vst.msk [vmem:[%s353 + $0xd4] sm:$0xf] %vm3488, %v6070
      %6199 = vst.msk [vmem:[%s353 + $0xd8] sm:$0xf] %vm3488, %v6071
      %6200 = vst.msk [vmem:[%s353 + $0xdc] sm:$0xf] %vm3488, %v6072
      %6201 = vst.msk [vmem:[%s353 + $0xe0] sm:$0xf] %vm3488, %v6073
      %6202 = vst.msk [vmem:[%s353 + $0xe4] sm:$0xf] %vm3488, %v6074
      %6203 = vst.msk [vmem:[%s353 + $0xe8] sm:$0xf] %vm3488, %v6075
      %6204 = vst.msk [vmem:[%s353 + $0xec] sm:$0xf] %vm3488, %v6076
      %6205 = vst.msk [vmem:[%s353 + $0xf0] sm:$0xf] %vm3488, %v6077
      %6206 = vst.msk [vmem:[%s353 + $0xf4] sm:$0xf] %vm3488, %v6078
      %6207 = vst.msk [vmem:[%s353 + $0xf8] sm:$0xf] %vm3488, %v6079
      %6208 = vst.msk [vmem:[%s353 + $0xfc] sm:$0xf] %vm3488, %v6080
      %6209 = vrot.lane.b32.xlu0 %v834, 96
      %v6210 = vpop.permute.xlu0 %6209
      %6211 = vrot.lane.b32.xlu0 %v837, 96
      %v6212 = vpop.permute.xlu0 %6211
      %6213 = vrot.lane.b32.xlu0 %v842, 96
      %v6214 = vpop.permute.xlu0 %6213
      %6215 = vrot.lane.b32.xlu0 %v845, 96
      %v6216 = vpop.permute.xlu0 %6215
      %6217 = vrot.lane.b32.xlu0 %v850, 96
      %v6218 = vpop.permute.xlu0 %6217
      %6219 = vrot.lane.b32.xlu0 %v853, 96
      %v6220 = vpop.permute.xlu0 %6219
      %6221 = vrot.lane.b32.xlu0 %v858, 96
      %v6222 = vpop.permute.xlu0 %6221
      %6223 = vrot.lane.b32.xlu0 %v861, 96
      %v6224 = vpop.permute.xlu0 %6223
      %6225 = vrot.lane.b32.xlu0 %v866, 96
      %v6226 = vpop.permute.xlu0 %6225
      %6227 = vrot.lane.b32.xlu0 %v869, 96
      %v6228 = vpop.permute.xlu0 %6227
      %6229 = vrot.lane.b32.xlu0 %v874, 96
      %v6230 = vpop.permute.xlu0 %6229
      %6231 = vrot.lane.b32.xlu0 %v877, 96
      %v6232 = vpop.permute.xlu0 %6231
      %6233 = vrot.lane.b32.xlu0 %v882, 96
      %v6234 = vpop.permute.xlu0 %6233
      %6235 = vrot.lane.b32.xlu0 %v885, 96
      %v6236 = vpop.permute.xlu0 %6235
      %6237 = vrot.lane.b32.xlu0 %v890, 96
      %v6238 = vpop.permute.xlu0 %6237
      %6239 = vrot.lane.b32.xlu0 %v893, 96
      %v6240 = vpop.permute.xlu0 %6239
      %6241 = vrot.lane.b32.xlu0 %v3570, 96
      %v6242 = vpop.permute.xlu0 %6241
      %6243 = vrot.lane.b32.xlu0 %v3572, 96
      %v6244 = vpop.permute.xlu0 %6243
      %6245 = vrot.lane.b32.xlu0 %v3574, 96
      %v6246 = vpop.permute.xlu0 %6245
      %6247 = vrot.lane.b32.xlu0 %v3576, 96
      %v6248 = vpop.permute.xlu0 %6247
      %6249 = vrot.lane.b32.xlu0 %v3578, 96
      %v6250 = vpop.permute.xlu0 %6249
      %6251 = vrot.lane.b32.xlu0 %v3580, 96
      %v6252 = vpop.permute.xlu0 %6251
      %6253 = vrot.lane.b32.xlu0 %v3582, 96
      %v6254 = vpop.permute.xlu0 %6253
      %6255 = vrot.lane.b32.xlu0 %v3584, 96
      %v6256 = vpop.permute.xlu0 %6255
      %6257 = vrot.lane.b32.xlu0 %v3586, 96
      %v6258 = vpop.permute.xlu0 %6257
      %6259 = vrot.lane.b32.xlu0 %v3588, 96
      %v6260 = vpop.permute.xlu0 %6259
      %6261 = vrot.lane.b32.xlu0 %v3590, 96
      %v6262 = vpop.permute.xlu0 %6261
      %6263 = vrot.lane.b32.xlu0 %v3592, 96
      %v6264 = vpop.permute.xlu0 %6263
      %6265 = vrot.lane.b32.xlu0 %v3594, 96
      %v6266 = vpop.permute.xlu0 %6265
      %6267 = vrot.lane.b32.xlu0 %v3596, 96
      %v6268 = vpop.permute.xlu0 %6267
      %6269 = vrot.lane.b32.xlu0 %v3598, 96
      %v6270 = vpop.permute.xlu0 %6269
      %6271 = vrot.lane.b32.xlu0 %v3600, 96
      %v6272 = vpop.permute.xlu0 %6271
      %6273 = vrot.lane.b32.xlu0 %v3618, 96
      %v6274 = vpop.permute.xlu0 %6273
      %6275 = vrot.lane.b32.xlu0 %v3620, 96
      %v6276 = vpop.permute.xlu0 %6275
      %6277 = vrot.lane.b32.xlu0 %v3622, 96
      %v6278 = vpop.permute.xlu0 %6277
      %6279 = vrot.lane.b32.xlu0 %v3624, 96
      %v6280 = vpop.permute.xlu0 %6279
      %6281 = vrot.lane.b32.xlu0 %v3626, 96
      %v6282 = vpop.permute.xlu0 %6281
      %6283 = vrot.lane.b32.xlu0 %v3628, 96
      %v6284 = vpop.permute.xlu0 %6283
      %6285 = vrot.lane.b32.xlu0 %v3630, 96
      %v6286 = vpop.permute.xlu0 %6285
      %6287 = vrot.lane.b32.xlu0 %v3632, 96
      %v6288 = vpop.permute.xlu0 %6287
      %6289 = vrot.lane.b32.xlu0 %v3634, 96
      %v6290 = vpop.permute.xlu0 %6289
      %6291 = vrot.lane.b32.xlu0 %v3636, 96
      %v6292 = vpop.permute.xlu0 %6291
      %6293 = vrot.lane.b32.xlu0 %v3638, 96
      %v6294 = vpop.permute.xlu0 %6293
      %6295 = vrot.lane.b32.xlu0 %v3640, 96
      %v6296 = vpop.permute.xlu0 %6295
      %6297 = vrot.lane.b32.xlu0 %v3642, 96
      %v6298 = vpop.permute.xlu0 %6297
      %6299 = vrot.lane.b32.xlu0 %v3644, 96
      %v6300 = vpop.permute.xlu0 %6299
      %6301 = vrot.lane.b32.xlu0 %v3646, 96
      %v6302 = vpop.permute.xlu0 %6301
      %6303 = vrot.lane.b32.xlu0 %v3648, 96
      %v6304 = vpop.permute.xlu0 %6303
      %6305 = vrot.lane.b32.xlu0 %v3666, 96
      %v6306 = vpop.permute.xlu0 %6305
      %6307 = vrot.lane.b32.xlu0 %v3668, 96
      %v6308 = vpop.permute.xlu0 %6307
      %6309 = vrot.lane.b32.xlu0 %v3670, 96
      %v6310 = vpop.permute.xlu0 %6309
      %6311 = vrot.lane.b32.xlu0 %v3672, 96
      %v6312 = vpop.permute.xlu0 %6311
      %6313 = vrot.lane.b32.xlu0 %v3674, 96
      %v6314 = vpop.permute.xlu0 %6313
      %6315 = vrot.lane.b32.xlu0 %v3676, 96
      %v6316 = vpop.permute.xlu0 %6315
      %6317 = vrot.lane.b32.xlu0 %v3678, 96
      %v6318 = vpop.permute.xlu0 %6317
      %6319 = vrot.lane.b32.xlu0 %v3680, 96
      %v6320 = vpop.permute.xlu0 %6319
      %6321 = vrot.lane.b32.xlu0 %v3682, 96
      %v6322 = vpop.permute.xlu0 %6321
      %6323 = vrot.lane.b32.xlu0 %v3684, 96
      %v6324 = vpop.permute.xlu0 %6323
      %6325 = vrot.lane.b32.xlu0 %v3686, 96
      %v6326 = vpop.permute.xlu0 %6325
      %6327 = vrot.lane.b32.xlu0 %v3688, 96
      %v6328 = vpop.permute.xlu0 %6327
      %6329 = vrot.lane.b32.xlu0 %v3690, 96
      %v6330 = vpop.permute.xlu0 %6329
      %6331 = vrot.lane.b32.xlu0 %v3692, 96
      %v6332 = vpop.permute.xlu0 %6331
      %6333 = vrot.lane.b32.xlu0 %v3694, 96
      %v6334 = vpop.permute.xlu0 %6333
      %6335 = vrot.lane.b32.xlu0 %v3696, 96
      %v6336 = vpop.permute.xlu0 %6335
      %v6401 = vcombine.low %v6210, %v6274
      %v6402 = vcombine.high %v6210, %v6274
      %v6404 = vunpack.c.l.s4 1983009808
      %v6405 = vunpack.c.0.s8 %v6404
      %v6406 = vlaneseq
      %v6407 = vshrl.u32 %v6406, 7
      %v6408 = vsub.s32 %v6405, %v6407
      %v6409 = vrot.slane %v6401, %v6408
      %v6411 = vunpack.c.l.s4 1983009808
      %v6412 = vunpack.c.0.s8 %v6411
      %v6413 = vlaneseq
      %v6414 = vshrl.u32 %v6413, 7
      %v6415 = vsub.s32 %v6412, %v6414
      %v6416 = vrot.slane %v6402, %v6415
      %v6417 = vcombine.low %v6242, %v6306
      %v6418 = vcombine.high %v6242, %v6306
      %v6420 = vunpack.c.l.s4 1983009808
      %v6421 = vunpack.c.0.s8 %v6420
      %v6422 = vlaneseq
      %v6423 = vshrl.u32 %v6422, 7
      %v6424 = vsub.s32 %v6421, %v6423
      %v6425 = vrot.slane %v6417, %v6424
      %v6427 = vunpack.c.l.s4 1983009808
      %v6428 = vunpack.c.0.s8 %v6427
      %v6429 = vlaneseq
      %v6430 = vshrl.u32 %v6429, 7
      %v6431 = vsub.s32 %v6428, %v6430
      %v6432 = vrot.slane %v6418, %v6431
      %v6433 = vcombine.low %v6409, %v6425
      %v6434 = vcombine.high %v6409, %v6425
      %v6436 = vunpack.c.l.s4 1934713408
      %v6437 = vunpack.c.0.s8 %v6436
      %v6438 = vlaneseq
      %v6439 = vshrl.u32 %v6438, 7
      %v6440 = vsub.s32 %v6437, %v6439
      %v6441 = vrot.slane %v6433, %v6440
      %v6443 = vunpack.c.l.s4 1934713408
      %v6444 = vunpack.c.0.s8 %v6443
      %v6445 = vlaneseq
      %v6446 = vshrl.u32 %v6445, 7
      %v6447 = vsub.s32 %v6444, %v6446
      %v6448 = vrot.slane %v6434, %v6447
      %v6449 = vcombine.low %v6416, %v6432
      %v6450 = vcombine.high %v6416, %v6432
      %v6452 = vunpack.c.l.s4 1934713408
      %v6453 = vunpack.c.0.s8 %v6452
      %v6454 = vlaneseq
      %v6455 = vshrl.u32 %v6454, 7
      %v6456 = vsub.s32 %v6453, %v6455
      %v6457 = vrot.slane %v6449, %v6456
      %v6459 = vunpack.c.l.s4 1934713408
      %v6460 = vunpack.c.0.s8 %v6459
      %v6461 = vlaneseq
      %v6462 = vshrl.u32 %v6461, 7
      %v6463 = vsub.s32 %v6460, %v6462
      %v6464 = vrot.slane %v6450, %v6463
      %v6465 = vcombine.high %v6441, 0.0
      %v6466 = vcombine.high %v6448, 0.0
      %v6467 = vcombine.high %v6457, 0.0
      %v6468 = vcombine.high %v6464, 0.0
      %v6469 = vcombine.low %v6212, %v6276
      %v6470 = vcombine.high %v6212, %v6276
      %v6472 = vunpack.c.l.s4 1983009808
      %v6473 = vunpack.c.0.s8 %v6472
      %v6474 = vlaneseq
      %v6475 = vshrl.u32 %v6474, 7
      %v6476 = vsub.s32 %v6473, %v6475
      %v6477 = vrot.slane %v6469, %v6476
      %v6479 = vunpack.c.l.s4 1983009808
      %v6480 = vunpack.c.0.s8 %v6479
      %v6481 = vlaneseq
      %v6482 = vshrl.u32 %v6481, 7
      %v6483 = vsub.s32 %v6480, %v6482
      %v6484 = vrot.slane %v6470, %v6483
      %v6485 = vcombine.low %v6244, %v6308
      %v6486 = vcombine.high %v6244, %v6308
      %v6488 = vunpack.c.l.s4 1983009808
      %v6489 = vunpack.c.0.s8 %v6488
      %v6490 = vlaneseq
      %v6491 = vshrl.u32 %v6490, 7
      %v6492 = vsub.s32 %v6489, %v6491
      %v6493 = vrot.slane %v6485, %v6492
      %v6495 = vunpack.c.l.s4 1983009808
      %v6496 = vunpack.c.0.s8 %v6495
      %v6497 = vlaneseq
      %v6498 = vshrl.u32 %v6497, 7
      %v6499 = vsub.s32 %v6496, %v6498
      %v6500 = vrot.slane %v6486, %v6499
      %v6501 = vcombine.low %v6477, %v6493
      %v6502 = vcombine.high %v6477, %v6493
      %v6504 = vunpack.c.l.s4 1934713408
      %v6505 = vunpack.c.0.s8 %v6504
      %v6506 = vlaneseq
      %v6507 = vshrl.u32 %v6506, 7
      %v6508 = vsub.s32 %v6505, %v6507
      %v6509 = vrot.slane %v6501, %v6508
      %v6511 = vunpack.c.l.s4 1934713408
      %v6512 = vunpack.c.0.s8 %v6511
      %v6513 = vlaneseq
      %v6514 = vshrl.u32 %v6513, 7
      %v6515 = vsub.s32 %v6512, %v6514
      %v6516 = vrot.slane %v6502, %v6515
      %v6517 = vcombine.low %v6484, %v6500
      %v6518 = vcombine.high %v6484, %v6500
      %v6520 = vunpack.c.l.s4 1934713408
      %v6521 = vunpack.c.0.s8 %v6520
      %v6522 = vlaneseq
      %v6523 = vshrl.u32 %v6522, 7
      %v6524 = vsub.s32 %v6521, %v6523
      %v6525 = vrot.slane %v6517, %v6524
      %v6527 = vunpack.c.l.s4 1934713408
      %v6528 = vunpack.c.0.s8 %v6527
      %v6529 = vlaneseq
      %v6530 = vshrl.u32 %v6529, 7
      %v6531 = vsub.s32 %v6528, %v6530
      %v6532 = vrot.slane %v6518, %v6531
      %v6533 = vcombine.high %v6509, 0.0
      %v6534 = vcombine.high %v6516, 0.0
      %v6535 = vcombine.high %v6525, 0.0
      %v6536 = vcombine.high %v6532, 0.0
      %v6537 = vcombine.low %v6214, %v6278
      %v6538 = vcombine.high %v6214, %v6278
      %v6540 = vunpack.c.l.s4 1983009808
      %v6541 = vunpack.c.0.s8 %v6540
      %v6542 = vlaneseq
      %v6543 = vshrl.u32 %v6542, 7
      %v6544 = vsub.s32 %v6541, %v6543
      %v6545 = vrot.slane %v6537, %v6544
      %v6547 = vunpack.c.l.s4 1983009808
      %v6548 = vunpack.c.0.s8 %v6547
      %v6549 = vlaneseq
      %v6550 = vshrl.u32 %v6549, 7
      %v6551 = vsub.s32 %v6548, %v6550
      %v6552 = vrot.slane %v6538, %v6551
      %v6553 = vcombine.low %v6246, %v6310
      %v6554 = vcombine.high %v6246, %v6310
      %v6556 = vunpack.c.l.s4 1983009808
      %v6557 = vunpack.c.0.s8 %v6556
      %v6558 = vlaneseq
      %v6559 = vshrl.u32 %v6558, 7
      %v6560 = vsub.s32 %v6557, %v6559
      %v6561 = vrot.slane %v6553, %v6560
      %v6563 = vunpack.c.l.s4 1983009808
      %v6564 = vunpack.c.0.s8 %v6563
      %v6565 = vlaneseq
      %v6566 = vshrl.u32 %v6565, 7
      %v6567 = vsub.s32 %v6564, %v6566
      %v6568 = vrot.slane %v6554, %v6567
      %v6569 = vcombine.low %v6545, %v6561
      %v6570 = vcombine.high %v6545, %v6561
      %v6572 = vunpack.c.l.s4 1934713408
      %v6573 = vunpack.c.0.s8 %v6572
      %v6574 = vlaneseq
      %v6575 = vshrl.u32 %v6574, 7
      %v6576 = vsub.s32 %v6573, %v6575
      %v6577 = vrot.slane %v6569, %v6576
      %v6579 = vunpack.c.l.s4 1934713408
      %v6580 = vunpack.c.0.s8 %v6579
      %v6581 = vlaneseq
      %v6582 = vshrl.u32 %v6581, 7
      %v6583 = vsub.s32 %v6580, %v6582
      %v6584 = vrot.slane %v6570, %v6583
      %v6585 = vcombine.low %v6552, %v6568
      %v6586 = vcombine.high %v6552, %v6568
      %v6588 = vunpack.c.l.s4 1934713408
      %v6589 = vunpack.c.0.s8 %v6588
      %v6590 = vlaneseq
      %v6591 = vshrl.u32 %v6590, 7
      %v6592 = vsub.s32 %v6589, %v6591
      %v6593 = vrot.slane %v6585, %v6592
      %v6595 = vunpack.c.l.s4 1934713408
      %v6596 = vunpack.c.0.s8 %v6595
      %v6597 = vlaneseq
      %v6598 = vshrl.u32 %v6597, 7
      %v6599 = vsub.s32 %v6596, %v6598
      %v6600 = vrot.slane %v6586, %v6599
      %v6601 = vcombine.high %v6577, 0.0
      %v6602 = vcombine.high %v6584, 0.0
      %v6603 = vcombine.high %v6593, 0.0
      %v6604 = vcombine.high %v6600, 0.0
      %v6605 = vcombine.low %v6216, %v6280
      %v6606 = vcombine.high %v6216, %v6280
      %v6608 = vunpack.c.l.s4 1983009808
      %v6609 = vunpack.c.0.s8 %v6608
      %v6610 = vlaneseq
      %v6611 = vshrl.u32 %v6610, 7
      %v6612 = vsub.s32 %v6609, %v6611
      %v6613 = vrot.slane %v6605, %v6612
      %v6615 = vunpack.c.l.s4 1983009808
      %v6616 = vunpack.c.0.s8 %v6615
      %v6617 = vlaneseq
      %v6618 = vshrl.u32 %v6617, 7
      %v6619 = vsub.s32 %v6616, %v6618
      %v6620 = vrot.slane %v6606, %v6619
      %v6621 = vcombine.low %v6248, %v6312
      %v6622 = vcombine.high %v6248, %v6312
      %v6624 = vunpack.c.l.s4 1983009808
      %v6625 = vunpack.c.0.s8 %v6624
      %v6626 = vlaneseq
      %v6627 = vshrl.u32 %v6626, 7
      %v6628 = vsub.s32 %v6625, %v6627
      %v6629 = vrot.slane %v6621, %v6628
      %v6631 = vunpack.c.l.s4 1983009808
      %v6632 = vunpack.c.0.s8 %v6631
      %v6633 = vlaneseq
      %v6634 = vshrl.u32 %v6633, 7
      %v6635 = vsub.s32 %v6632, %v6634
      %v6636 = vrot.slane %v6622, %v6635
      %v6637 = vcombine.low %v6613, %v6629
      %v6638 = vcombine.high %v6613, %v6629
      %v6640 = vunpack.c.l.s4 1934713408
      %v6641 = vunpack.c.0.s8 %v6640
      %v6642 = vlaneseq
      %v6643 = vshrl.u32 %v6642, 7
      %v6644 = vsub.s32 %v6641, %v6643
      %v6645 = vrot.slane %v6637, %v6644
      %v6647 = vunpack.c.l.s4 1934713408
      %v6648 = vunpack.c.0.s8 %v6647
      %v6649 = vlaneseq
      %v6650 = vshrl.u32 %v6649, 7
      %v6651 = vsub.s32 %v6648, %v6650
      %v6652 = vrot.slane %v6638, %v6651
      %v6653 = vcombine.low %v6620, %v6636
      %v6654 = vcombine.high %v6620, %v6636
      %v6656 = vunpack.c.l.s4 1934713408
      %v6657 = vunpack.c.0.s8 %v6656
      %v6658 = vlaneseq
      %v6659 = vshrl.u32 %v6658, 7
      %v6660 = vsub.s32 %v6657, %v6659
      %v6661 = vrot.slane %v6653, %v6660
      %v6663 = vunpack.c.l.s4 1934713408
      %v6664 = vunpack.c.0.s8 %v6663
      %v6665 = vlaneseq
      %v6666 = vshrl.u32 %v6665, 7
      %v6667 = vsub.s32 %v6664, %v6666
      %v6668 = vrot.slane %v6654, %v6667
      %v6669 = vcombine.high %v6645, 0.0
      %v6670 = vcombine.high %v6652, 0.0
      %v6671 = vcombine.high %v6661, 0.0
      %v6672 = vcombine.high %v6668, 0.0
      %v6673 = vcombine.low %v6218, %v6282
      %v6674 = vcombine.high %v6218, %v6282
      %v6676 = vunpack.c.l.s4 1983009808
      %v6677 = vunpack.c.0.s8 %v6676
      %v6678 = vlaneseq
      %v6679 = vshrl.u32 %v6678, 7
      %v6680 = vsub.s32 %v6677, %v6679
      %v6681 = vrot.slane %v6673, %v6680
      %v6683 = vunpack.c.l.s4 1983009808
      %v6684 = vunpack.c.0.s8 %v6683
      %v6685 = vlaneseq
      %v6686 = vshrl.u32 %v6685, 7
      %v6687 = vsub.s32 %v6684, %v6686
      %v6688 = vrot.slane %v6674, %v6687
      %v6689 = vcombine.low %v6250, %v6314
      %v6690 = vcombine.high %v6250, %v6314
      %v6692 = vunpack.c.l.s4 1983009808
      %v6693 = vunpack.c.0.s8 %v6692
      %v6694 = vlaneseq
      %v6695 = vshrl.u32 %v6694, 7
      %v6696 = vsub.s32 %v6693, %v6695
      %v6697 = vrot.slane %v6689, %v6696
      %v6699 = vunpack.c.l.s4 1983009808
      %v6700 = vunpack.c.0.s8 %v6699
      %v6701 = vlaneseq
      %v6702 = vshrl.u32 %v6701, 7
      %v6703 = vsub.s32 %v6700, %v6702
      %v6704 = vrot.slane %v6690, %v6703
      %v6705 = vcombine.low %v6681, %v6697
      %v6706 = vcombine.high %v6681, %v6697
      %v6708 = vunpack.c.l.s4 1934713408
      %v6709 = vunpack.c.0.s8 %v6708
      %v6710 = vlaneseq
      %v6711 = vshrl.u32 %v6710, 7
      %v6712 = vsub.s32 %v6709, %v6711
      %v6713 = vrot.slane %v6705, %v6712
      %v6715 = vunpack.c.l.s4 1934713408
      %v6716 = vunpack.c.0.s8 %v6715
      %v6717 = vlaneseq
      %v6718 = vshrl.u32 %v6717, 7
      %v6719 = vsub.s32 %v6716, %v6718
      %v6720 = vrot.slane %v6706, %v6719
      %v6721 = vcombine.low %v6688, %v6704
      %v6722 = vcombine.high %v6688, %v6704
      %v6724 = vunpack.c.l.s4 1934713408
      %v6725 = vunpack.c.0.s8 %v6724
      %v6726 = vlaneseq
      %v6727 = vshrl.u32 %v6726, 7
      %v6728 = vsub.s32 %v6725, %v6727
      %v6729 = vrot.slane %v6721, %v6728
      %v6731 = vunpack.c.l.s4 1934713408
      %v6732 = vunpack.c.0.s8 %v6731
      %v6733 = vlaneseq
      %v6734 = vshrl.u32 %v6733, 7
      %v6735 = vsub.s32 %v6732, %v6734
      %v6736 = vrot.slane %v6722, %v6735
      %v6737 = vcombine.high %v6713, 0.0
      %v6738 = vcombine.high %v6720, 0.0
      %v6739 = vcombine.high %v6729, 0.0
      %v6740 = vcombine.high %v6736, 0.0
      %v6741 = vcombine.low %v6220, %v6284
      %v6742 = vcombine.high %v6220, %v6284
      %v6744 = vunpack.c.l.s4 1983009808
      %v6745 = vunpack.c.0.s8 %v6744
      %v6746 = vlaneseq
      %v6747 = vshrl.u32 %v6746, 7
      %v6748 = vsub.s32 %v6745, %v6747
      %v6749 = vrot.slane %v6741, %v6748
      %v6751 = vunpack.c.l.s4 1983009808
      %v6752 = vunpack.c.0.s8 %v6751
      %v6753 = vlaneseq
      %v6754 = vshrl.u32 %v6753, 7
      %v6755 = vsub.s32 %v6752, %v6754
      %v6756 = vrot.slane %v6742, %v6755
      %v6757 = vcombine.low %v6252, %v6316
      %v6758 = vcombine.high %v6252, %v6316
      %v6760 = vunpack.c.l.s4 1983009808
      %v6761 = vunpack.c.0.s8 %v6760
      %v6762 = vlaneseq
      %v6763 = vshrl.u32 %v6762, 7
      %v6764 = vsub.s32 %v6761, %v6763
      %v6765 = vrot.slane %v6757, %v6764
      %v6767 = vunpack.c.l.s4 1983009808
      %v6768 = vunpack.c.0.s8 %v6767
      %v6769 = vlaneseq
      %v6770 = vshrl.u32 %v6769, 7
      %v6771 = vsub.s32 %v6768, %v6770
      %v6772 = vrot.slane %v6758, %v6771
      %v6773 = vcombine.low %v6749, %v6765
      %v6774 = vcombine.high %v6749, %v6765
      %v6776 = vunpack.c.l.s4 1934713408
      %v6777 = vunpack.c.0.s8 %v6776
      %v6778 = vlaneseq
      %v6779 = vshrl.u32 %v6778, 7
      %v6780 = vsub.s32 %v6777, %v6779
      %v6781 = vrot.slane %v6773, %v6780
      %v6783 = vunpack.c.l.s4 1934713408
      %v6784 = vunpack.c.0.s8 %v6783
      %v6785 = vlaneseq
      %v6786 = vshrl.u32 %v6785, 7
      %v6787 = vsub.s32 %v6784, %v6786
      %v6788 = vrot.slane %v6774, %v6787
      %v6789 = vcombine.low %v6756, %v6772
      %v6790 = vcombine.high %v6756, %v6772
      %v6792 = vunpack.c.l.s4 1934713408
      %v6793 = vunpack.c.0.s8 %v6792
      %v6794 = vlaneseq
      %v6795 = vshrl.u32 %v6794, 7
      %v6796 = vsub.s32 %v6793, %v6795
      %v6797 = vrot.slane %v6789, %v6796
      %v6799 = vunpack.c.l.s4 1934713408
      %v6800 = vunpack.c.0.s8 %v6799
      %v6801 = vlaneseq
      %v6802 = vshrl.u32 %v6801, 7
      %v6803 = vsub.s32 %v6800, %v6802
      %v6804 = vrot.slane %v6790, %v6803
      %v6805 = vcombine.high %v6781, 0.0
      %v6806 = vcombine.high %v6788, 0.0
      %v6807 = vcombine.high %v6797, 0.0
      %v6808 = vcombine.high %v6804, 0.0
      %v6809 = vcombine.low %v6222, %v6286
      %v6810 = vcombine.high %v6222, %v6286
      %v6812 = vunpack.c.l.s4 1983009808
      %v6813 = vunpack.c.0.s8 %v6812
      %v6814 = vlaneseq
      %v6815 = vshrl.u32 %v6814, 7
      %v6816 = vsub.s32 %v6813, %v6815
      %v6817 = vrot.slane %v6809, %v6816
      %v6819 = vunpack.c.l.s4 1983009808
      %v6820 = vunpack.c.0.s8 %v6819
      %v6821 = vlaneseq
      %v6822 = vshrl.u32 %v6821, 7
      %v6823 = vsub.s32 %v6820, %v6822
      %v6824 = vrot.slane %v6810, %v6823
      %v6825 = vcombine.low %v6254, %v6318
      %v6826 = vcombine.high %v6254, %v6318
      %v6828 = vunpack.c.l.s4 1983009808
      %v6829 = vunpack.c.0.s8 %v6828
      %v6830 = vlaneseq
      %v6831 = vshrl.u32 %v6830, 7
      %v6832 = vsub.s32 %v6829, %v6831
      %v6833 = vrot.slane %v6825, %v6832
      %v6835 = vunpack.c.l.s4 1983009808
      %v6836 = vunpack.c.0.s8 %v6835
      %v6837 = vlaneseq
      %v6838 = vshrl.u32 %v6837, 7
      %v6839 = vsub.s32 %v6836, %v6838
      %v6840 = vrot.slane %v6826, %v6839
      %v6841 = vcombine.low %v6817, %v6833
      %v6842 = vcombine.high %v6817, %v6833
      %v6844 = vunpack.c.l.s4 1934713408
      %v6845 = vunpack.c.0.s8 %v6844
      %v6846 = vlaneseq
      %v6847 = vshrl.u32 %v6846, 7
      %v6848 = vsub.s32 %v6845, %v6847
      %v6849 = vrot.slane %v6841, %v6848
      %v6851 = vunpack.c.l.s4 1934713408
      %v6852 = vunpack.c.0.s8 %v6851
      %v6853 = vlaneseq
      %v6854 = vshrl.u32 %v6853, 7
      %v6855 = vsub.s32 %v6852, %v6854
      %v6856 = vrot.slane %v6842, %v6855
      %v6857 = vcombine.low %v6824, %v6840
      %v6858 = vcombine.high %v6824, %v6840
      %v6860 = vunpack.c.l.s4 1934713408
      %v6861 = vunpack.c.0.s8 %v6860
      %v6862 = vlaneseq
      %v6863 = vshrl.u32 %v6862, 7
      %v6864 = vsub.s32 %v6861, %v6863
      %v6865 = vrot.slane %v6857, %v6864
      %v6867 = vunpack.c.l.s4 1934713408
      %v6868 = vunpack.c.0.s8 %v6867
      %v6869 = vlaneseq
      %v6870 = vshrl.u32 %v6869, 7
      %v6871 = vsub.s32 %v6868, %v6870
      %v6872 = vrot.slane %v6858, %v6871
      %v6873 = vcombine.high %v6849, 0.0
      %v6874 = vcombine.high %v6856, 0.0
      %v6875 = vcombine.high %v6865, 0.0
      %v6876 = vcombine.high %v6872, 0.0
      %v6877 = vcombine.low %v6224, %v6288
      %v6878 = vcombine.high %v6224, %v6288
      %v6880 = vunpack.c.l.s4 1983009808
      %v6881 = vunpack.c.0.s8 %v6880
      %v6882 = vlaneseq
      %v6883 = vshrl.u32 %v6882, 7
      %v6884 = vsub.s32 %v6881, %v6883
      %v6885 = vrot.slane %v6877, %v6884
      %v6887 = vunpack.c.l.s4 1983009808
      %v6888 = vunpack.c.0.s8 %v6887
      %v6889 = vlaneseq
      %v6890 = vshrl.u32 %v6889, 7
      %v6891 = vsub.s32 %v6888, %v6890
      %v6892 = vrot.slane %v6878, %v6891
      %v6893 = vcombine.low %v6256, %v6320
      %v6894 = vcombine.high %v6256, %v6320
      %v6896 = vunpack.c.l.s4 1983009808
      %v6897 = vunpack.c.0.s8 %v6896
      %v6898 = vlaneseq
      %v6899 = vshrl.u32 %v6898, 7
      %v6900 = vsub.s32 %v6897, %v6899
      %v6901 = vrot.slane %v6893, %v6900
      %v6903 = vunpack.c.l.s4 1983009808
      %v6904 = vunpack.c.0.s8 %v6903
      %v6905 = vlaneseq
      %v6906 = vshrl.u32 %v6905, 7
      %v6907 = vsub.s32 %v6904, %v6906
      %v6908 = vrot.slane %v6894, %v6907
      %v6909 = vcombine.low %v6885, %v6901
      %v6910 = vcombine.high %v6885, %v6901
      %v6912 = vunpack.c.l.s4 1934713408
      %v6913 = vunpack.c.0.s8 %v6912
      %v6914 = vlaneseq
      %v6915 = vshrl.u32 %v6914, 7
      %v6916 = vsub.s32 %v6913, %v6915
      %v6917 = vrot.slane %v6909, %v6916
      %v6919 = vunpack.c.l.s4 1934713408
      %v6920 = vunpack.c.0.s8 %v6919
      %v6921 = vlaneseq
      %v6922 = vshrl.u32 %v6921, 7
      %v6923 = vsub.s32 %v6920, %v6922
      %v6924 = vrot.slane %v6910, %v6923
      %v6925 = vcombine.low %v6892, %v6908
      %v6926 = vcombine.high %v6892, %v6908
      %v6928 = vunpack.c.l.s4 1934713408
      %v6929 = vunpack.c.0.s8 %v6928
      %v6930 = vlaneseq
      %v6931 = vshrl.u32 %v6930, 7
      %v6932 = vsub.s32 %v6929, %v6931
      %v6933 = vrot.slane %v6925, %v6932
      %v6935 = vunpack.c.l.s4 1934713408
      %v6936 = vunpack.c.0.s8 %v6935
      %v6937 = vlaneseq
      %v6938 = vshrl.u32 %v6937, 7
      %v6939 = vsub.s32 %v6936, %v6938
      %v6940 = vrot.slane %v6926, %v6939
      %v6941 = vcombine.high %v6917, 0.0
      %v6942 = vcombine.high %v6924, 0.0
      %v6943 = vcombine.high %v6933, 0.0
      %v6944 = vcombine.high %v6940, 0.0
      %v6945 = vcombine.low %v6226, %v6290
      %v6946 = vcombine.high %v6226, %v6290
      %v6948 = vunpack.c.l.s4 1983009808
      %v6949 = vunpack.c.0.s8 %v6948
      %v6950 = vlaneseq
      %v6951 = vshrl.u32 %v6950, 7
      %v6952 = vsub.s32 %v6949, %v6951
      %v6953 = vrot.slane %v6945, %v6952
      %v6955 = vunpack.c.l.s4 1983009808
      %v6956 = vunpack.c.0.s8 %v6955
      %v6957 = vlaneseq
      %v6958 = vshrl.u32 %v6957, 7
      %v6959 = vsub.s32 %v6956, %v6958
      %v6960 = vrot.slane %v6946, %v6959
      %v6961 = vcombine.low %v6258, %v6322
      %v6962 = vcombine.high %v6258, %v6322
      %v6964 = vunpack.c.l.s4 1983009808
      %v6965 = vunpack.c.0.s8 %v6964
      %v6966 = vlaneseq
      %v6967 = vshrl.u32 %v6966, 7
      %v6968 = vsub.s32 %v6965, %v6967
      %v6969 = vrot.slane %v6961, %v6968
      %v6971 = vunpack.c.l.s4 1983009808
      %v6972 = vunpack.c.0.s8 %v6971
      %v6973 = vlaneseq
      %v6974 = vshrl.u32 %v6973, 7
      %v6975 = vsub.s32 %v6972, %v6974
      %v6976 = vrot.slane %v6962, %v6975
      %v6977 = vcombine.low %v6953, %v6969
      %v6978 = vcombine.high %v6953, %v6969
      %v6980 = vunpack.c.l.s4 1934713408
      %v6981 = vunpack.c.0.s8 %v6980
      %v6982 = vlaneseq
      %v6983 = vshrl.u32 %v6982, 7
      %v6984 = vsub.s32 %v6981, %v6983
      %v6985 = vrot.slane %v6977, %v6984
      %v6987 = vunpack.c.l.s4 1934713408
      %v6988 = vunpack.c.0.s8 %v6987
      %v6989 = vlaneseq
      %v6990 = vshrl.u32 %v6989, 7
      %v6991 = vsub.s32 %v6988, %v6990
      %v6992 = vrot.slane %v6978, %v6991
      %v6993 = vcombine.low %v6960, %v6976
      %v6994 = vcombine.high %v6960, %v6976
      %v6996 = vunpack.c.l.s4 1934713408
      %v6997 = vunpack.c.0.s8 %v6996
      %v6998 = vlaneseq
      %v6999 = vshrl.u32 %v6998, 7
      %v7000 = vsub.s32 %v6997, %v6999
      %v7001 = vrot.slane %v6993, %v7000
      %v7003 = vunpack.c.l.s4 1934713408
      %v7004 = vunpack.c.0.s8 %v7003
      %v7005 = vlaneseq
      %v7006 = vshrl.u32 %v7005, 7
      %v7007 = vsub.s32 %v7004, %v7006
      %v7008 = vrot.slane %v6994, %v7007
      %v7009 = vcombine.high %v6985, 0.0
      %v7010 = vcombine.high %v6992, 0.0
      %v7011 = vcombine.high %v7001, 0.0
      %v7012 = vcombine.high %v7008, 0.0
      %v7013 = vcombine.low %v6228, %v6292
      %v7014 = vcombine.high %v6228, %v6292
      %v7016 = vunpack.c.l.s4 1983009808
      %v7017 = vunpack.c.0.s8 %v7016
      %v7018 = vlaneseq
      %v7019 = vshrl.u32 %v7018, 7
      %v7020 = vsub.s32 %v7017, %v7019
      %v7021 = vrot.slane %v7013, %v7020
      %v7023 = vunpack.c.l.s4 1983009808
      %v7024 = vunpack.c.0.s8 %v7023
      %v7025 = vlaneseq
      %v7026 = vshrl.u32 %v7025, 7
      %v7027 = vsub.s32 %v7024, %v7026
      %v7028 = vrot.slane %v7014, %v7027
      %v7029 = vcombine.low %v6260, %v6324
      %v7030 = vcombine.high %v6260, %v6324
      %v7032 = vunpack.c.l.s4 1983009808
      %v7033 = vunpack.c.0.s8 %v7032
      %v7034 = vlaneseq
      %v7035 = vshrl.u32 %v7034, 7
      %v7036 = vsub.s32 %v7033, %v7035
      %v7037 = vrot.slane %v7029, %v7036
      %v7039 = vunpack.c.l.s4 1983009808
      %v7040 = vunpack.c.0.s8 %v7039
      %v7041 = vlaneseq
      %v7042 = vshrl.u32 %v7041, 7
      %v7043 = vsub.s32 %v7040, %v7042
      %v7044 = vrot.slane %v7030, %v7043
      %v7045 = vcombine.low %v7021, %v7037
      %v7046 = vcombine.high %v7021, %v7037
      %v7048 = vunpack.c.l.s4 1934713408
      %v7049 = vunpack.c.0.s8 %v7048
      %v7050 = vlaneseq
      %v7051 = vshrl.u32 %v7050, 7
      %v7052 = vsub.s32 %v7049, %v7051
      %v7053 = vrot.slane %v7045, %v7052
      %v7055 = vunpack.c.l.s4 1934713408
      %v7056 = vunpack.c.0.s8 %v7055
      %v7057 = vlaneseq
      %v7058 = vshrl.u32 %v7057, 7
      %v7059 = vsub.s32 %v7056, %v7058
      %v7060 = vrot.slane %v7046, %v7059
      %v7061 = vcombine.low %v7028, %v7044
      %v7062 = vcombine.high %v7028, %v7044
      %v7064 = vunpack.c.l.s4 1934713408
      %v7065 = vunpack.c.0.s8 %v7064
      %v7066 = vlaneseq
      %v7067 = vshrl.u32 %v7066, 7
      %v7068 = vsub.s32 %v7065, %v7067
      %v7069 = vrot.slane %v7061, %v7068
      %v7071 = vunpack.c.l.s4 1934713408
      %v7072 = vunpack.c.0.s8 %v7071
      %v7073 = vlaneseq
      %v7074 = vshrl.u32 %v7073, 7
      %v7075 = vsub.s32 %v7072, %v7074
      %v7076 = vrot.slane %v7062, %v7075
      %v7077 = vcombine.high %v7053, 0.0
      %v7078 = vcombine.high %v7060, 0.0
      %v7079 = vcombine.high %v7069, 0.0
      %v7080 = vcombine.high %v7076, 0.0
      %v7081 = vcombine.low %v6230, %v6294
      %v7082 = vcombine.high %v6230, %v6294
      %v7084 = vunpack.c.l.s4 1983009808
      %v7085 = vunpack.c.0.s8 %v7084
      %v7086 = vlaneseq
      %v7087 = vshrl.u32 %v7086, 7
      %v7088 = vsub.s32 %v7085, %v7087
      %v7089 = vrot.slane %v7081, %v7088
      %v7091 = vunpack.c.l.s4 1983009808
      %v7092 = vunpack.c.0.s8 %v7091
      %v7093 = vlaneseq
      %v7094 = vshrl.u32 %v7093, 7
      %v7095 = vsub.s32 %v7092, %v7094
      %v7096 = vrot.slane %v7082, %v7095
      %v7097 = vcombine.low %v6262, %v6326
      %v7098 = vcombine.high %v6262, %v6326
      %v7100 = vunpack.c.l.s4 1983009808
      %v7101 = vunpack.c.0.s8 %v7100
      %v7102 = vlaneseq
      %v7103 = vshrl.u32 %v7102, 7
      %v7104 = vsub.s32 %v7101, %v7103
      %v7105 = vrot.slane %v7097, %v7104
      %v7107 = vunpack.c.l.s4 1983009808
      %v7108 = vunpack.c.0.s8 %v7107
      %v7109 = vlaneseq
      %v7110 = vshrl.u32 %v7109, 7
      %v7111 = vsub.s32 %v7108, %v7110
      %v7112 = vrot.slane %v7098, %v7111
      %v7113 = vcombine.low %v7089, %v7105
      %v7114 = vcombine.high %v7089, %v7105
      %v7116 = vunpack.c.l.s4 1934713408
      %v7117 = vunpack.c.0.s8 %v7116
      %v7118 = vlaneseq
      %v7119 = vshrl.u32 %v7118, 7
      %v7120 = vsub.s32 %v7117, %v7119
      %v7121 = vrot.slane %v7113, %v7120
      %v7123 = vunpack.c.l.s4 1934713408
      %v7124 = vunpack.c.0.s8 %v7123
      %v7125 = vlaneseq
      %v7126 = vshrl.u32 %v7125, 7
      %v7127 = vsub.s32 %v7124, %v7126
      %v7128 = vrot.slane %v7114, %v7127
      %v7129 = vcombine.low %v7096, %v7112
      %v7130 = vcombine.high %v7096, %v7112
      %v7132 = vunpack.c.l.s4 1934713408
      %v7133 = vunpack.c.0.s8 %v7132
      %v7134 = vlaneseq
      %v7135 = vshrl.u32 %v7134, 7
      %v7136 = vsub.s32 %v7133, %v7135
      %v7137 = vrot.slane %v7129, %v7136
      %v7139 = vunpack.c.l.s4 1934713408
      %v7140 = vunpack.c.0.s8 %v7139
      %v7141 = vlaneseq
      %v7142 = vshrl.u32 %v7141, 7
      %v7143 = vsub.s32 %v7140, %v7142
      %v7144 = vrot.slane %v7130, %v7143
      %v7145 = vcombine.high %v7121, 0.0
      %v7146 = vcombine.high %v7128, 0.0
      %v7147 = vcombine.high %v7137, 0.0
      %v7148 = vcombine.high %v7144, 0.0
      %v7149 = vcombine.low %v6232, %v6296
      %v7150 = vcombine.high %v6232, %v6296
      %v7152 = vunpack.c.l.s4 1983009808
      %v7153 = vunpack.c.0.s8 %v7152
      %v7154 = vlaneseq
      %v7155 = vshrl.u32 %v7154, 7
      %v7156 = vsub.s32 %v7153, %v7155
      %v7157 = vrot.slane %v7149, %v7156
      %v7159 = vunpack.c.l.s4 1983009808
      %v7160 = vunpack.c.0.s8 %v7159
      %v7161 = vlaneseq
      %v7162 = vshrl.u32 %v7161, 7
      %v7163 = vsub.s32 %v7160, %v7162
      %v7164 = vrot.slane %v7150, %v7163
      %v7165 = vcombine.low %v6264, %v6328
      %v7166 = vcombine.high %v6264, %v6328
      %v7168 = vunpack.c.l.s4 1983009808
      %v7169 = vunpack.c.0.s8 %v7168
      %v7170 = vlaneseq
      %v7171 = vshrl.u32 %v7170, 7
      %v7172 = vsub.s32 %v7169, %v7171
      %v7173 = vrot.slane %v7165, %v7172
      %v7175 = vunpack.c.l.s4 1983009808
      %v7176 = vunpack.c.0.s8 %v7175
      %v7177 = vlaneseq
      %v7178 = vshrl.u32 %v7177, 7
      %v7179 = vsub.s32 %v7176, %v7178
      %v7180 = vrot.slane %v7166, %v7179
      %v7181 = vcombine.low %v7157, %v7173
      %v7182 = vcombine.high %v7157, %v7173
      %v7184 = vunpack.c.l.s4 1934713408
      %v7185 = vunpack.c.0.s8 %v7184
      %v7186 = vlaneseq
      %v7187 = vshrl.u32 %v7186, 7
      %v7188 = vsub.s32 %v7185, %v7187
      %v7189 = vrot.slane %v7181, %v7188
      %v7191 = vunpack.c.l.s4 1934713408
      %v7192 = vunpack.c.0.s8 %v7191
      %v7193 = vlaneseq
      %v7194 = vshrl.u32 %v7193, 7
      %v7195 = vsub.s32 %v7192, %v7194
      %v7196 = vrot.slane %v7182, %v7195
      %v7197 = vcombine.low %v7164, %v7180
      %v7198 = vcombine.high %v7164, %v7180
      %v7200 = vunpack.c.l.s4 1934713408
      %v7201 = vunpack.c.0.s8 %v7200
      %v7202 = vlaneseq
      %v7203 = vshrl.u32 %v7202, 7
      %v7204 = vsub.s32 %v7201, %v7203
      %v7205 = vrot.slane %v7197, %v7204
      %v7207 = vunpack.c.l.s4 1934713408
      %v7208 = vunpack.c.0.s8 %v7207
      %v7209 = vlaneseq
      %v7210 = vshrl.u32 %v7209, 7
      %v7211 = vsub.s32 %v7208, %v7210
      %v7212 = vrot.slane %v7198, %v7211
      %v7213 = vcombine.high %v7189, 0.0
      %v7214 = vcombine.high %v7196, 0.0
      %v7215 = vcombine.high %v7205, 0.0
      %v7216 = vcombine.high %v7212, 0.0
      %v7217 = vcombine.low %v6234, %v6298
      %v7218 = vcombine.high %v6234, %v6298
      %v7220 = vunpack.c.l.s4 1983009808
      %v7221 = vunpack.c.0.s8 %v7220
      %v7222 = vlaneseq
      %v7223 = vshrl.u32 %v7222, 7
      %v7224 = vsub.s32 %v7221, %v7223
      %v7225 = vrot.slane %v7217, %v7224
      %v7227 = vunpack.c.l.s4 1983009808
      %v7228 = vunpack.c.0.s8 %v7227
      %v7229 = vlaneseq
      %v7230 = vshrl.u32 %v7229, 7
      %v7231 = vsub.s32 %v7228, %v7230
      %v7232 = vrot.slane %v7218, %v7231
      %v7233 = vcombine.low %v6266, %v6330
      %v7234 = vcombine.high %v6266, %v6330
      %v7236 = vunpack.c.l.s4 1983009808
      %v7237 = vunpack.c.0.s8 %v7236
      %v7238 = vlaneseq
      %v7239 = vshrl.u32 %v7238, 7
      %v7240 = vsub.s32 %v7237, %v7239
      %v7241 = vrot.slane %v7233, %v7240
      %v7243 = vunpack.c.l.s4 1983009808
      %v7244 = vunpack.c.0.s8 %v7243
      %v7245 = vlaneseq
      %v7246 = vshrl.u32 %v7245, 7
      %v7247 = vsub.s32 %v7244, %v7246
      %v7248 = vrot.slane %v7234, %v7247
      %v7249 = vcombine.low %v7225, %v7241
      %v7250 = vcombine.high %v7225, %v7241
      %v7252 = vunpack.c.l.s4 1934713408
      %v7253 = vunpack.c.0.s8 %v7252
      %v7254 = vlaneseq
      %v7255 = vshrl.u32 %v7254, 7
      %v7256 = vsub.s32 %v7253, %v7255
      %v7257 = vrot.slane %v7249, %v7256
      %v7259 = vunpack.c.l.s4 1934713408
      %v7260 = vunpack.c.0.s8 %v7259
      %v7261 = vlaneseq
      %v7262 = vshrl.u32 %v7261, 7
      %v7263 = vsub.s32 %v7260, %v7262
      %v7264 = vrot.slane %v7250, %v7263
      %v7265 = vcombine.low %v7232, %v7248
      %v7266 = vcombine.high %v7232, %v7248
      %v7268 = vunpack.c.l.s4 1934713408
      %v7269 = vunpack.c.0.s8 %v7268
      %v7270 = vlaneseq
      %v7271 = vshrl.u32 %v7270, 7
      %v7272 = vsub.s32 %v7269, %v7271
      %v7273 = vrot.slane %v7265, %v7272
      %v7275 = vunpack.c.l.s4 1934713408
      %v7276 = vunpack.c.0.s8 %v7275
      %v7277 = vlaneseq
      %v7278 = vshrl.u32 %v7277, 7
      %v7279 = vsub.s32 %v7276, %v7278
      %v7280 = vrot.slane %v7266, %v7279
      %v7281 = vcombine.high %v7257, 0.0
      %v7282 = vcombine.high %v7264, 0.0
      %v7283 = vcombine.high %v7273, 0.0
      %v7284 = vcombine.high %v7280, 0.0
      %v7285 = vcombine.low %v6236, %v6300
      %v7286 = vcombine.high %v6236, %v6300
      %v7288 = vunpack.c.l.s4 1983009808
      %v7289 = vunpack.c.0.s8 %v7288
      %v7290 = vlaneseq
      %v7291 = vshrl.u32 %v7290, 7
      %v7292 = vsub.s32 %v7289, %v7291
      %v7293 = vrot.slane %v7285, %v7292
      %v7295 = vunpack.c.l.s4 1983009808
      %v7296 = vunpack.c.0.s8 %v7295
      %v7297 = vlaneseq
      %v7298 = vshrl.u32 %v7297, 7
      %v7299 = vsub.s32 %v7296, %v7298
      %v7300 = vrot.slane %v7286, %v7299
      %v7301 = vcombine.low %v6268, %v6332
      %v7302 = vcombine.high %v6268, %v6332
      %v7304 = vunpack.c.l.s4 1983009808
      %v7305 = vunpack.c.0.s8 %v7304
      %v7306 = vlaneseq
      %v7307 = vshrl.u32 %v7306, 7
      %v7308 = vsub.s32 %v7305, %v7307
      %v7309 = vrot.slane %v7301, %v7308
      %v7311 = vunpack.c.l.s4 1983009808
      %v7312 = vunpack.c.0.s8 %v7311
      %v7313 = vlaneseq
      %v7314 = vshrl.u32 %v7313, 7
      %v7315 = vsub.s32 %v7312, %v7314
      %v7316 = vrot.slane %v7302, %v7315
      %v7317 = vcombine.low %v7293, %v7309
      %v7318 = vcombine.high %v7293, %v7309
      %v7320 = vunpack.c.l.s4 1934713408
      %v7321 = vunpack.c.0.s8 %v7320
      %v7322 = vlaneseq
      %v7323 = vshrl.u32 %v7322, 7
      %v7324 = vsub.s32 %v7321, %v7323
      %v7325 = vrot.slane %v7317, %v7324
      %v7327 = vunpack.c.l.s4 1934713408
      %v7328 = vunpack.c.0.s8 %v7327
      %v7329 = vlaneseq
      %v7330 = vshrl.u32 %v7329, 7
      %v7331 = vsub.s32 %v7328, %v7330
      %v7332 = vrot.slane %v7318, %v7331
      %v7333 = vcombine.low %v7300, %v7316
      %v7334 = vcombine.high %v7300, %v7316
      %v7336 = vunpack.c.l.s4 1934713408
      %v7337 = vunpack.c.0.s8 %v7336
      %v7338 = vlaneseq
      %v7339 = vshrl.u32 %v7338, 7
      %v7340 = vsub.s32 %v7337, %v7339
      %v7341 = vrot.slane %v7333, %v7340
      %v7343 = vunpack.c.l.s4 1934713408
      %v7344 = vunpack.c.0.s8 %v7343
      %v7345 = vlaneseq
      %v7346 = vshrl.u32 %v7345, 7
      %v7347 = vsub.s32 %v7344, %v7346
      %v7348 = vrot.slane %v7334, %v7347
      %v7349 = vcombine.high %v7325, 0.0
      %v7350 = vcombine.high %v7332, 0.0
      %v7351 = vcombine.high %v7341, 0.0
      %v7352 = vcombine.high %v7348, 0.0
      %v7353 = vcombine.low %v6238, %v6302
      %v7354 = vcombine.high %v6238, %v6302
      %v7356 = vunpack.c.l.s4 1983009808
      %v7357 = vunpack.c.0.s8 %v7356
      %v7358 = vlaneseq
      %v7359 = vshrl.u32 %v7358, 7
      %v7360 = vsub.s32 %v7357, %v7359
      %v7361 = vrot.slane %v7353, %v7360
      %v7363 = vunpack.c.l.s4 1983009808
      %v7364 = vunpack.c.0.s8 %v7363
      %v7365 = vlaneseq
      %v7366 = vshrl.u32 %v7365, 7
      %v7367 = vsub.s32 %v7364, %v7366
      %v7368 = vrot.slane %v7354, %v7367
      %v7369 = vcombine.low %v6270, %v6334
      %v7370 = vcombine.high %v6270, %v6334
      %v7372 = vunpack.c.l.s4 1983009808
      %v7373 = vunpack.c.0.s8 %v7372
      %v7374 = vlaneseq
      %v7375 = vshrl.u32 %v7374, 7
      %v7376 = vsub.s32 %v7373, %v7375
      %v7377 = vrot.slane %v7369, %v7376
      %v7379 = vunpack.c.l.s4 1983009808
      %v7380 = vunpack.c.0.s8 %v7379
      %v7381 = vlaneseq
      %v7382 = vshrl.u32 %v7381, 7
      %v7383 = vsub.s32 %v7380, %v7382
      %v7384 = vrot.slane %v7370, %v7383
      %v7385 = vcombine.low %v7361, %v7377
      %v7386 = vcombine.high %v7361, %v7377
      %v7388 = vunpack.c.l.s4 1934713408
      %v7389 = vunpack.c.0.s8 %v7388
      %v7390 = vlaneseq
      %v7391 = vshrl.u32 %v7390, 7
      %v7392 = vsub.s32 %v7389, %v7391
      %v7393 = vrot.slane %v7385, %v7392
      %v7395 = vunpack.c.l.s4 1934713408
      %v7396 = vunpack.c.0.s8 %v7395
      %v7397 = vlaneseq
      %v7398 = vshrl.u32 %v7397, 7
      %v7399 = vsub.s32 %v7396, %v7398
      %v7400 = vrot.slane %v7386, %v7399
      %v7401 = vcombine.low %v7368, %v7384
      %v7402 = vcombine.high %v7368, %v7384
      %v7404 = vunpack.c.l.s4 1934713408
      %v7405 = vunpack.c.0.s8 %v7404
      %v7406 = vlaneseq
      %v7407 = vshrl.u32 %v7406, 7
      %v7408 = vsub.s32 %v7405, %v7407
      %v7409 = vrot.slane %v7401, %v7408
      %v7411 = vunpack.c.l.s4 1934713408
      %v7412 = vunpack.c.0.s8 %v7411
      %v7413 = vlaneseq
      %v7414 = vshrl.u32 %v7413, 7
      %v7415 = vsub.s32 %v7412, %v7414
      %v7416 = vrot.slane %v7402, %v7415
      %v7417 = vcombine.high %v7393, 0.0
      %v7418 = vcombine.high %v7400, 0.0
      %v7419 = vcombine.high %v7409, 0.0
      %v7420 = vcombine.high %v7416, 0.0
      %v7421 = vcombine.low %v6240, %v6304
      %v7422 = vcombine.high %v6240, %v6304
      %v7424 = vunpack.c.l.s4 1983009808
      %v7425 = vunpack.c.0.s8 %v7424
      %v7426 = vlaneseq
      %v7427 = vshrl.u32 %v7426, 7
      %v7428 = vsub.s32 %v7425, %v7427
      %v7429 = vrot.slane %v7421, %v7428
      %v7431 = vunpack.c.l.s4 1983009808
      %v7432 = vunpack.c.0.s8 %v7431
      %v7433 = vlaneseq
      %v7434 = vshrl.u32 %v7433, 7
      %v7435 = vsub.s32 %v7432, %v7434
      %v7436 = vrot.slane %v7422, %v7435
      %v7437 = vcombine.low %v6272, %v6336
      %v7438 = vcombine.high %v6272, %v6336
      %v7440 = vunpack.c.l.s4 1983009808
      %v7441 = vunpack.c.0.s8 %v7440
      %v7442 = vlaneseq
      %v7443 = vshrl.u32 %v7442, 7
      %v7444 = vsub.s32 %v7441, %v7443
      %v7445 = vrot.slane %v7437, %v7444
      %v7447 = vunpack.c.l.s4 1983009808
      %v7448 = vunpack.c.0.s8 %v7447
      %v7449 = vlaneseq
      %v7450 = vshrl.u32 %v7449, 7
      %v7451 = vsub.s32 %v7448, %v7450
      %v7452 = vrot.slane %v7438, %v7451
      %v7453 = vcombine.low %v7429, %v7445
      %v7454 = vcombine.high %v7429, %v7445
      %v7456 = vunpack.c.l.s4 1934713408
      %v7457 = vunpack.c.0.s8 %v7456
      %v7458 = vlaneseq
      %v7459 = vshrl.u32 %v7458, 7
      %v7460 = vsub.s32 %v7457, %v7459
      %v7461 = vrot.slane %v7453, %v7460
      %v7463 = vunpack.c.l.s4 1934713408
      %v7464 = vunpack.c.0.s8 %v7463
      %v7465 = vlaneseq
      %v7466 = vshrl.u32 %v7465, 7
      %v7467 = vsub.s32 %v7464, %v7466
      %v7468 = vrot.slane %v7454, %v7467
      %v7469 = vcombine.low %v7436, %v7452
      %v7470 = vcombine.high %v7436, %v7452
      %v7472 = vunpack.c.l.s4 1934713408
      %v7473 = vunpack.c.0.s8 %v7472
      %v7474 = vlaneseq
      %v7475 = vshrl.u32 %v7474, 7
      %v7476 = vsub.s32 %v7473, %v7475
      %v7477 = vrot.slane %v7469, %v7476
      %v7479 = vunpack.c.l.s4 1934713408
      %v7480 = vunpack.c.0.s8 %v7479
      %v7481 = vlaneseq
      %v7482 = vshrl.u32 %v7481, 7
      %v7483 = vsub.s32 %v7480, %v7482
      %v7484 = vrot.slane %v7470, %v7483
      %v7485 = vcombine.high %v7461, 0.0
      %v7486 = vcombine.high %v7468, 0.0
      %v7487 = vcombine.high %v7477, 0.0
      %v7488 = vcombine.high %v7484, 0.0
      %v7489 = vcombine.low %v6441, %v6448
      %v7491 = vunpack.c.l.s4 1983009808
      %v7492 = vunpack.c.0.s8 %v7491
      %v7493 = vlaneseq
      %v7494 = vshrl.u32 %v7493, 7
      %v7495 = vsub.s32 %v7492, %v7494
      %v7496 = vrot.slane %v7489, %v7495
      %v7497 = vcombine.low %v6465, %v6466
      %v7499 = vunpack.c.l.s4 1983009808
      %v7500 = vunpack.c.0.s8 %v7499
      %v7501 = vlaneseq
      %v7502 = vshrl.u32 %v7501, 7
      %v7503 = vsub.s32 %v7500, %v7502
      %v7504 = vrot.slane %v7497, %v7503
      %v7505 = vcombine.low %v6457, %v6464
      %v7507 = vunpack.c.l.s4 1983009808
      %v7508 = vunpack.c.0.s8 %v7507
      %v7509 = vlaneseq
      %v7510 = vshrl.u32 %v7509, 7
      %v7511 = vsub.s32 %v7508, %v7510
      %v7512 = vrot.slane %v7505, %v7511
      %v7513 = vcombine.low %v6467, %v6468
      %v7515 = vunpack.c.l.s4 1983009808
      %v7516 = vunpack.c.0.s8 %v7515
      %v7517 = vlaneseq
      %v7518 = vshrl.u32 %v7517, 7
      %v7519 = vsub.s32 %v7516, %v7518
      %v7520 = vrot.slane %v7513, %v7519
      %v7521 = vcombine.low %v7496, %v7504
      %v7522 = vcombine.high %v7496, %v7504
      %v7524 = vunpack.c.l.s4 1934713408
      %v7525 = vunpack.c.0.s8 %v7524
      %v7526 = vlaneseq
      %v7527 = vshrl.u32 %v7526, 7
      %v7528 = vsub.s32 %v7525, %v7527
      %v7529 = vrot.slane %v7521, %v7528
      %v7531 = vunpack.c.l.s4 1934713408
      %v7532 = vunpack.c.0.s8 %v7531
      %v7533 = vlaneseq
      %v7534 = vshrl.u32 %v7533, 7
      %v7535 = vsub.s32 %v7532, %v7534
      %v7536 = vrot.slane %v7522, %v7535
      %v7537 = vcombine.low %v7512, %v7520
      %v7538 = vcombine.high %v7512, %v7520
      %v7540 = vunpack.c.l.s4 1934713408
      %v7541 = vunpack.c.0.s8 %v7540
      %v7542 = vlaneseq
      %v7543 = vshrl.u32 %v7542, 7
      %v7544 = vsub.s32 %v7541, %v7543
      %v7545 = vrot.slane %v7537, %v7544
      %v7547 = vunpack.c.l.s4 1934713408
      %v7548 = vunpack.c.0.s8 %v7547
      %v7549 = vlaneseq
      %v7550 = vshrl.u32 %v7549, 7
      %v7551 = vsub.s32 %v7548, %v7550
      %v7552 = vrot.slane %v7538, %v7551
      %v7553 = vcombine.low %v7529, %v7545
      %v7554 = vcombine.high %v7529, %v7545
      %v7555 = vcombine.low %v7536, %v7552
      %v7556 = vcombine.high %v7536, %v7552
      %v7557 = vcombine.low %v6509, %v6516
      %v7559 = vunpack.c.l.s4 1983009808
      %v7560 = vunpack.c.0.s8 %v7559
      %v7561 = vlaneseq
      %v7562 = vshrl.u32 %v7561, 7
      %v7563 = vsub.s32 %v7560, %v7562
      %v7564 = vrot.slane %v7557, %v7563
      %v7565 = vcombine.low %v6533, %v6534
      %v7567 = vunpack.c.l.s4 1983009808
      %v7568 = vunpack.c.0.s8 %v7567
      %v7569 = vlaneseq
      %v7570 = vshrl.u32 %v7569, 7
      %v7571 = vsub.s32 %v7568, %v7570
      %v7572 = vrot.slane %v7565, %v7571
      %v7573 = vcombine.low %v6525, %v6532
      %v7575 = vunpack.c.l.s4 1983009808
      %v7576 = vunpack.c.0.s8 %v7575
      %v7577 = vlaneseq
      %v7578 = vshrl.u32 %v7577, 7
      %v7579 = vsub.s32 %v7576, %v7578
      %v7580 = vrot.slane %v7573, %v7579
      %v7581 = vcombine.low %v6535, %v6536
      %v7583 = vunpack.c.l.s4 1983009808
      %v7584 = vunpack.c.0.s8 %v7583
      %v7585 = vlaneseq
      %v7586 = vshrl.u32 %v7585, 7
      %v7587 = vsub.s32 %v7584, %v7586
      %v7588 = vrot.slane %v7581, %v7587
      %v7589 = vcombine.low %v7564, %v7572
      %v7590 = vcombine.high %v7564, %v7572
      %v7592 = vunpack.c.l.s4 1934713408
      %v7593 = vunpack.c.0.s8 %v7592
      %v7594 = vlaneseq
      %v7595 = vshrl.u32 %v7594, 7
      %v7596 = vsub.s32 %v7593, %v7595
      %v7597 = vrot.slane %v7589, %v7596
      %v7599 = vunpack.c.l.s4 1934713408
      %v7600 = vunpack.c.0.s8 %v7599
      %v7601 = vlaneseq
      %v7602 = vshrl.u32 %v7601, 7
      %v7603 = vsub.s32 %v7600, %v7602
      %v7604 = vrot.slane %v7590, %v7603
      %v7605 = vcombine.low %v7580, %v7588
      %v7606 = vcombine.high %v7580, %v7588
      %v7608 = vunpack.c.l.s4 1934713408
      %v7609 = vunpack.c.0.s8 %v7608
      %v7610 = vlaneseq
      %v7611 = vshrl.u32 %v7610, 7
      %v7612 = vsub.s32 %v7609, %v7611
      %v7613 = vrot.slane %v7605, %v7612
      %v7615 = vunpack.c.l.s4 1934713408
      %v7616 = vunpack.c.0.s8 %v7615
      %v7617 = vlaneseq
      %v7618 = vshrl.u32 %v7617, 7
      %v7619 = vsub.s32 %v7616, %v7618
      %v7620 = vrot.slane %v7606, %v7619
      %v7621 = vcombine.low %v7597, %v7613
      %v7622 = vcombine.high %v7597, %v7613
      %v7623 = vcombine.low %v7604, %v7620
      %v7624 = vcombine.high %v7604, %v7620
      %v7625 = vcombine.low %v6577, %v6584
      %v7627 = vunpack.c.l.s4 1983009808
      %v7628 = vunpack.c.0.s8 %v7627
      %v7629 = vlaneseq
      %v7630 = vshrl.u32 %v7629, 7
      %v7631 = vsub.s32 %v7628, %v7630
      %v7632 = vrot.slane %v7625, %v7631
      %v7633 = vcombine.low %v6601, %v6602
      %v7635 = vunpack.c.l.s4 1983009808
      %v7636 = vunpack.c.0.s8 %v7635
      %v7637 = vlaneseq
      %v7638 = vshrl.u32 %v7637, 7
      %v7639 = vsub.s32 %v7636, %v7638
      %v7640 = vrot.slane %v7633, %v7639
      %v7641 = vcombine.low %v6593, %v6600
      %v7643 = vunpack.c.l.s4 1983009808
      %v7644 = vunpack.c.0.s8 %v7643
      %v7645 = vlaneseq
      %v7646 = vshrl.u32 %v7645, 7
      %v7647 = vsub.s32 %v7644, %v7646
      %v7648 = vrot.slane %v7641, %v7647
      %v7649 = vcombine.low %v6603, %v6604
      %v7651 = vunpack.c.l.s4 1983009808
      %v7652 = vunpack.c.0.s8 %v7651
      %v7653 = vlaneseq
      %v7654 = vshrl.u32 %v7653, 7
      %v7655 = vsub.s32 %v7652, %v7654
      %v7656 = vrot.slane %v7649, %v7655
      %v7657 = vcombine.low %v7632, %v7640
      %v7658 = vcombine.high %v7632, %v7640
      %v7660 = vunpack.c.l.s4 1934713408
      %v7661 = vunpack.c.0.s8 %v7660
      %v7662 = vlaneseq
      %v7663 = vshrl.u32 %v7662, 7
      %v7664 = vsub.s32 %v7661, %v7663
      %v7665 = vrot.slane %v7657, %v7664
      %v7667 = vunpack.c.l.s4 1934713408
      %v7668 = vunpack.c.0.s8 %v7667
      %v7669 = vlaneseq
      %v7670 = vshrl.u32 %v7669, 7
      %v7671 = vsub.s32 %v7668, %v7670
      %v7672 = vrot.slane %v7658, %v7671
      %v7673 = vcombine.low %v7648, %v7656
      %v7674 = vcombine.high %v7648, %v7656
      %v7676 = vunpack.c.l.s4 1934713408
      %v7677 = vunpack.c.0.s8 %v7676
      %v7678 = vlaneseq
      %v7679 = vshrl.u32 %v7678, 7
      %v7680 = vsub.s32 %v7677, %v7679
      %v7681 = vrot.slane %v7673, %v7680
      %v7683 = vunpack.c.l.s4 1934713408
      %v7684 = vunpack.c.0.s8 %v7683
      %v7685 = vlaneseq
      %v7686 = vshrl.u32 %v7685, 7
      %v7687 = vsub.s32 %v7684, %v7686
      %v7688 = vrot.slane %v7674, %v7687
      %v7689 = vcombine.low %v7665, %v7681
      %v7690 = vcombine.high %v7665, %v7681
      %v7691 = vcombine.low %v7672, %v7688
      %v7692 = vcombine.high %v7672, %v7688
      %v7693 = vcombine.low %v6645, %v6652
      %v7695 = vunpack.c.l.s4 1983009808
      %v7696 = vunpack.c.0.s8 %v7695
      %v7697 = vlaneseq
      %v7698 = vshrl.u32 %v7697, 7
      %v7699 = vsub.s32 %v7696, %v7698
      %v7700 = vrot.slane %v7693, %v7699
      %v7701 = vcombine.low %v6669, %v6670
      %v7703 = vunpack.c.l.s4 1983009808
      %v7704 = vunpack.c.0.s8 %v7703
      %v7705 = vlaneseq
      %v7706 = vshrl.u32 %v7705, 7
      %v7707 = vsub.s32 %v7704, %v7706
      %v7708 = vrot.slane %v7701, %v7707
      %v7709 = vcombine.low %v6661, %v6668
      %v7711 = vunpack.c.l.s4 1983009808
      %v7712 = vunpack.c.0.s8 %v7711
      %v7713 = vlaneseq
      %v7714 = vshrl.u32 %v7713, 7
      %v7715 = vsub.s32 %v7712, %v7714
      %v7716 = vrot.slane %v7709, %v7715
      %v7717 = vcombine.low %v6671, %v6672
      %v7719 = vunpack.c.l.s4 1983009808
      %v7720 = vunpack.c.0.s8 %v7719
      %v7721 = vlaneseq
      %v7722 = vshrl.u32 %v7721, 7
      %v7723 = vsub.s32 %v7720, %v7722
      %v7724 = vrot.slane %v7717, %v7723
      %v7725 = vcombine.low %v7700, %v7708
      %v7726 = vcombine.high %v7700, %v7708
      %v7728 = vunpack.c.l.s4 1934713408
      %v7729 = vunpack.c.0.s8 %v7728
      %v7730 = vlaneseq
      %v7731 = vshrl.u32 %v7730, 7
      %v7732 = vsub.s32 %v7729, %v7731
      %v7733 = vrot.slane %v7725, %v7732
      %v7735 = vunpack.c.l.s4 1934713408
      %v7736 = vunpack.c.0.s8 %v7735
      %v7737 = vlaneseq
      %v7738 = vshrl.u32 %v7737, 7
      %v7739 = vsub.s32 %v7736, %v7738
      %v7740 = vrot.slane %v7726, %v7739
      %v7741 = vcombine.low %v7716, %v7724
      %v7742 = vcombine.high %v7716, %v7724
      %v7744 = vunpack.c.l.s4 1934713408
      %v7745 = vunpack.c.0.s8 %v7744
      %v7746 = vlaneseq
      %v7747 = vshrl.u32 %v7746, 7
      %v7748 = vsub.s32 %v7745, %v7747
      %v7749 = vrot.slane %v7741, %v7748
      %v7751 = vunpack.c.l.s4 1934713408
      %v7752 = vunpack.c.0.s8 %v7751
      %v7753 = vlaneseq
      %v7754 = vshrl.u32 %v7753, 7
      %v7755 = vsub.s32 %v7752, %v7754
      %v7756 = vrot.slane %v7742, %v7755
      %v7757 = vcombine.low %v7733, %v7749
      %v7758 = vcombine.high %v7733, %v7749
      %v7759 = vcombine.low %v7740, %v7756
      %v7760 = vcombine.high %v7740, %v7756
      %v7761 = vcombine.low %v6713, %v6720
      %v7763 = vunpack.c.l.s4 1983009808
      %v7764 = vunpack.c.0.s8 %v7763
      %v7765 = vlaneseq
      %v7766 = vshrl.u32 %v7765, 7
      %v7767 = vsub.s32 %v7764, %v7766
      %v7768 = vrot.slane %v7761, %v7767
      %v7769 = vcombine.low %v6737, %v6738
      %v7771 = vunpack.c.l.s4 1983009808
      %v7772 = vunpack.c.0.s8 %v7771
      %v7773 = vlaneseq
      %v7774 = vshrl.u32 %v7773, 7
      %v7775 = vsub.s32 %v7772, %v7774
      %v7776 = vrot.slane %v7769, %v7775
      %v7777 = vcombine.low %v6729, %v6736
      %v7779 = vunpack.c.l.s4 1983009808
      %v7780 = vunpack.c.0.s8 %v7779
      %v7781 = vlaneseq
      %v7782 = vshrl.u32 %v7781, 7
      %v7783 = vsub.s32 %v7780, %v7782
      %v7784 = vrot.slane %v7777, %v7783
      %v7785 = vcombine.low %v6739, %v6740
      %v7787 = vunpack.c.l.s4 1983009808
      %v7788 = vunpack.c.0.s8 %v7787
      %v7789 = vlaneseq
      %v7790 = vshrl.u32 %v7789, 7
      %v7791 = vsub.s32 %v7788, %v7790
      %v7792 = vrot.slane %v7785, %v7791
      %v7793 = vcombine.low %v7768, %v7776
      %v7794 = vcombine.high %v7768, %v7776
      %v7796 = vunpack.c.l.s4 1934713408
      %v7797 = vunpack.c.0.s8 %v7796
      %v7798 = vlaneseq
      %v7799 = vshrl.u32 %v7798, 7
      %v7800 = vsub.s32 %v7797, %v7799
      %v7801 = vrot.slane %v7793, %v7800
      %v7803 = vunpack.c.l.s4 1934713408
      %v7804 = vunpack.c.0.s8 %v7803
      %v7805 = vlaneseq
      %v7806 = vshrl.u32 %v7805, 7
      %v7807 = vsub.s32 %v7804, %v7806
      %v7808 = vrot.slane %v7794, %v7807
      %v7809 = vcombine.low %v7784, %v7792
      %v7810 = vcombine.high %v7784, %v7792
      %v7812 = vunpack.c.l.s4 1934713408
      %v7813 = vunpack.c.0.s8 %v7812
      %v7814 = vlaneseq
      %v7815 = vshrl.u32 %v7814, 7
      %v7816 = vsub.s32 %v7813, %v7815
      %v7817 = vrot.slane %v7809, %v7816
      %v7819 = vunpack.c.l.s4 1934713408
      %v7820 = vunpack.c.0.s8 %v7819
      %v7821 = vlaneseq
      %v7822 = vshrl.u32 %v7821, 7
      %v7823 = vsub.s32 %v7820, %v7822
      %v7824 = vrot.slane %v7810, %v7823
      %v7825 = vcombine.low %v7801, %v7817
      %v7826 = vcombine.high %v7801, %v7817
      %v7827 = vcombine.low %v7808, %v7824
      %v7828 = vcombine.high %v7808, %v7824
      %v7829 = vcombine.low %v6781, %v6788
      %v7831 = vunpack.c.l.s4 1983009808
      %v7832 = vunpack.c.0.s8 %v7831
      %v7833 = vlaneseq
      %v7834 = vshrl.u32 %v7833, 7
      %v7835 = vsub.s32 %v7832, %v7834
      %v7836 = vrot.slane %v7829, %v7835
      %v7837 = vcombine.low %v6805, %v6806
      %v7839 = vunpack.c.l.s4 1983009808
      %v7840 = vunpack.c.0.s8 %v7839
      %v7841 = vlaneseq
      %v7842 = vshrl.u32 %v7841, 7
      %v7843 = vsub.s32 %v7840, %v7842
      %v7844 = vrot.slane %v7837, %v7843
      %v7845 = vcombine.low %v6797, %v6804
      %v7847 = vunpack.c.l.s4 1983009808
      %v7848 = vunpack.c.0.s8 %v7847
      %v7849 = vlaneseq
      %v7850 = vshrl.u32 %v7849, 7
      %v7851 = vsub.s32 %v7848, %v7850
      %v7852 = vrot.slane %v7845, %v7851
      %v7853 = vcombine.low %v6807, %v6808
      %v7855 = vunpack.c.l.s4 1983009808
      %v7856 = vunpack.c.0.s8 %v7855
      %v7857 = vlaneseq
      %v7858 = vshrl.u32 %v7857, 7
      %v7859 = vsub.s32 %v7856, %v7858
      %v7860 = vrot.slane %v7853, %v7859
      %v7861 = vcombine.low %v7836, %v7844
      %v7862 = vcombine.high %v7836, %v7844
      %v7864 = vunpack.c.l.s4 1934713408
      %v7865 = vunpack.c.0.s8 %v7864
      %v7866 = vlaneseq
      %v7867 = vshrl.u32 %v7866, 7
      %v7868 = vsub.s32 %v7865, %v7867
      %v7869 = vrot.slane %v7861, %v7868
      %v7871 = vunpack.c.l.s4 1934713408
      %v7872 = vunpack.c.0.s8 %v7871
      %v7873 = vlaneseq
      %v7874 = vshrl.u32 %v7873, 7
      %v7875 = vsub.s32 %v7872, %v7874
      %v7876 = vrot.slane %v7862, %v7875
      %v7877 = vcombine.low %v7852, %v7860
      %v7878 = vcombine.high %v7852, %v7860
      %v7880 = vunpack.c.l.s4 1934713408
      %v7881 = vunpack.c.0.s8 %v7880
      %v7882 = vlaneseq
      %v7883 = vshrl.u32 %v7882, 7
      %v7884 = vsub.s32 %v7881, %v7883
      %v7885 = vrot.slane %v7877, %v7884
      %v7887 = vunpack.c.l.s4 1934713408
      %v7888 = vunpack.c.0.s8 %v7887
      %v7889 = vlaneseq
      %v7890 = vshrl.u32 %v7889, 7
      %v7891 = vsub.s32 %v7888, %v7890
      %v7892 = vrot.slane %v7878, %v7891
      %v7893 = vcombine.low %v7869, %v7885
      %v7894 = vcombine.high %v7869, %v7885
      %v7895 = vcombine.low %v7876, %v7892
      %v7896 = vcombine.high %v7876, %v7892
      %v7897 = vcombine.low %v6849, %v6856
      %v7899 = vunpack.c.l.s4 1983009808
      %v7900 = vunpack.c.0.s8 %v7899
      %v7901 = vlaneseq
      %v7902 = vshrl.u32 %v7901, 7
      %v7903 = vsub.s32 %v7900, %v7902
      %v7904 = vrot.slane %v7897, %v7903
      %v7905 = vcombine.low %v6873, %v6874
      %v7907 = vunpack.c.l.s4 1983009808
      %v7908 = vunpack.c.0.s8 %v7907
      %v7909 = vlaneseq
      %v7910 = vshrl.u32 %v7909, 7
      %v7911 = vsub.s32 %v7908, %v7910
      %v7912 = vrot.slane %v7905, %v7911
      %v7913 = vcombine.low %v6865, %v6872
      %v7915 = vunpack.c.l.s4 1983009808
      %v7916 = vunpack.c.0.s8 %v7915
      %v7917 = vlaneseq
      %v7918 = vshrl.u32 %v7917, 7
      %v7919 = vsub.s32 %v7916, %v7918
      %v7920 = vrot.slane %v7913, %v7919
      %v7921 = vcombine.low %v6875, %v6876
      %v7923 = vunpack.c.l.s4 1983009808
      %v7924 = vunpack.c.0.s8 %v7923
      %v7925 = vlaneseq
      %v7926 = vshrl.u32 %v7925, 7
      %v7927 = vsub.s32 %v7924, %v7926
      %v7928 = vrot.slane %v7921, %v7927
      %v7929 = vcombine.low %v7904, %v7912
      %v7930 = vcombine.high %v7904, %v7912
      %v7932 = vunpack.c.l.s4 1934713408
      %v7933 = vunpack.c.0.s8 %v7932
      %v7934 = vlaneseq
      %v7935 = vshrl.u32 %v7934, 7
      %v7936 = vsub.s32 %v7933, %v7935
      %v7937 = vrot.slane %v7929, %v7936
      %v7939 = vunpack.c.l.s4 1934713408
      %v7940 = vunpack.c.0.s8 %v7939
      %v7941 = vlaneseq
      %v7942 = vshrl.u32 %v7941, 7
      %v7943 = vsub.s32 %v7940, %v7942
      %v7944 = vrot.slane %v7930, %v7943
      %v7945 = vcombine.low %v7920, %v7928
      %v7946 = vcombine.high %v7920, %v7928
      %v7948 = vunpack.c.l.s4 1934713408
      %v7949 = vunpack.c.0.s8 %v7948
      %v7950 = vlaneseq
      %v7951 = vshrl.u32 %v7950, 7
      %v7952 = vsub.s32 %v7949, %v7951
      %v7953 = vrot.slane %v7945, %v7952
      %v7955 = vunpack.c.l.s4 1934713408
      %v7956 = vunpack.c.0.s8 %v7955
      %v7957 = vlaneseq
      %v7958 = vshrl.u32 %v7957, 7
      %v7959 = vsub.s32 %v7956, %v7958
      %v7960 = vrot.slane %v7946, %v7959
      %v7961 = vcombine.low %v7937, %v7953
      %v7962 = vcombine.high %v7937, %v7953
      %v7963 = vcombine.low %v7944, %v7960
      %v7964 = vcombine.high %v7944, %v7960
      %v7965 = vcombine.low %v6917, %v6924
      %v7967 = vunpack.c.l.s4 1983009808
      %v7968 = vunpack.c.0.s8 %v7967
      %v7969 = vlaneseq
      %v7970 = vshrl.u32 %v7969, 7
      %v7971 = vsub.s32 %v7968, %v7970
      %v7972 = vrot.slane %v7965, %v7971
      %v7973 = vcombine.low %v6941, %v6942
      %v7975 = vunpack.c.l.s4 1983009808
      %v7976 = vunpack.c.0.s8 %v7975
      %v7977 = vlaneseq
      %v7978 = vshrl.u32 %v7977, 7
      %v7979 = vsub.s32 %v7976, %v7978
      %v7980 = vrot.slane %v7973, %v7979
      %v7981 = vcombine.low %v6933, %v6940
      %v7983 = vunpack.c.l.s4 1983009808
      %v7984 = vunpack.c.0.s8 %v7983
      %v7985 = vlaneseq
      %v7986 = vshrl.u32 %v7985, 7
      %v7987 = vsub.s32 %v7984, %v7986
      %v7988 = vrot.slane %v7981, %v7987
      %v7989 = vcombine.low %v6943, %v6944
      %v7991 = vunpack.c.l.s4 1983009808
      %v7992 = vunpack.c.0.s8 %v7991
      %v7993 = vlaneseq
      %v7994 = vshrl.u32 %v7993, 7
      %v7995 = vsub.s32 %v7992, %v7994
      %v7996 = vrot.slane %v7989, %v7995
      %v7997 = vcombine.low %v7972, %v7980
      %v7998 = vcombine.high %v7972, %v7980
      %v8000 = vunpack.c.l.s4 1934713408
      %v8001 = vunpack.c.0.s8 %v8000
      %v8002 = vlaneseq
      %v8003 = vshrl.u32 %v8002, 7
      %v8004 = vsub.s32 %v8001, %v8003
      %v8005 = vrot.slane %v7997, %v8004
      %v8007 = vunpack.c.l.s4 1934713408
      %v8008 = vunpack.c.0.s8 %v8007
      %v8009 = vlaneseq
      %v8010 = vshrl.u32 %v8009, 7
      %v8011 = vsub.s32 %v8008, %v8010
      %v8012 = vrot.slane %v7998, %v8011
      %v8013 = vcombine.low %v7988, %v7996
      %v8014 = vcombine.high %v7988, %v7996
      %v8016 = vunpack.c.l.s4 1934713408
      %v8017 = vunpack.c.0.s8 %v8016
      %v8018 = vlaneseq
      %v8019 = vshrl.u32 %v8018, 7
      %v8020 = vsub.s32 %v8017, %v8019
      %v8021 = vrot.slane %v8013, %v8020
      %v8023 = vunpack.c.l.s4 1934713408
      %v8024 = vunpack.c.0.s8 %v8023
      %v8025 = vlaneseq
      %v8026 = vshrl.u32 %v8025, 7
      %v8027 = vsub.s32 %v8024, %v8026
      %v8028 = vrot.slane %v8014, %v8027
      %v8029 = vcombine.low %v8005, %v8021
      %v8030 = vcombine.high %v8005, %v8021
      %v8031 = vcombine.low %v8012, %v8028
      %v8032 = vcombine.high %v8012, %v8028
      %v8033 = vcombine.low %v6985, %v6992
      %v8035 = vunpack.c.l.s4 1983009808
      %v8036 = vunpack.c.0.s8 %v8035
      %v8037 = vlaneseq
      %v8038 = vshrl.u32 %v8037, 7
      %v8039 = vsub.s32 %v8036, %v8038
      %v8040 = vrot.slane %v8033, %v8039
      %v8041 = vcombine.low %v7009, %v7010
      %v8043 = vunpack.c.l.s4 1983009808
      %v8044 = vunpack.c.0.s8 %v8043
      %v8045 = vlaneseq
      %v8046 = vshrl.u32 %v8045, 7
      %v8047 = vsub.s32 %v8044, %v8046
      %v8048 = vrot.slane %v8041, %v8047
      %v8049 = vcombine.low %v7001, %v7008
      %v8051 = vunpack.c.l.s4 1983009808
      %v8052 = vunpack.c.0.s8 %v8051
      %v8053 = vlaneseq
      %v8054 = vshrl.u32 %v8053, 7
      %v8055 = vsub.s32 %v8052, %v8054
      %v8056 = vrot.slane %v8049, %v8055
      %v8057 = vcombine.low %v7011, %v7012
      %v8059 = vunpack.c.l.s4 1983009808
      %v8060 = vunpack.c.0.s8 %v8059
      %v8061 = vlaneseq
      %v8062 = vshrl.u32 %v8061, 7
      %v8063 = vsub.s32 %v8060, %v8062
      %v8064 = vrot.slane %v8057, %v8063
      %v8065 = vcombine.low %v8040, %v8048
      %v8066 = vcombine.high %v8040, %v8048
      %v8068 = vunpack.c.l.s4 1934713408
      %v8069 = vunpack.c.0.s8 %v8068
      %v8070 = vlaneseq
      %v8071 = vshrl.u32 %v8070, 7
      %v8072 = vsub.s32 %v8069, %v8071
      %v8073 = vrot.slane %v8065, %v8072
      %v8075 = vunpack.c.l.s4 1934713408
      %v8076 = vunpack.c.0.s8 %v8075
      %v8077 = vlaneseq
      %v8078 = vshrl.u32 %v8077, 7
      %v8079 = vsub.s32 %v8076, %v8078
      %v8080 = vrot.slane %v8066, %v8079
      %v8081 = vcombine.low %v8056, %v8064
      %v8082 = vcombine.high %v8056, %v8064
      %v8084 = vunpack.c.l.s4 1934713408
      %v8085 = vunpack.c.0.s8 %v8084
      %v8086 = vlaneseq
      %v8087 = vshrl.u32 %v8086, 7
      %v8088 = vsub.s32 %v8085, %v8087
      %v8089 = vrot.slane %v8081, %v8088
      %v8091 = vunpack.c.l.s4 1934713408
      %v8092 = vunpack.c.0.s8 %v8091
      %v8093 = vlaneseq
      %v8094 = vshrl.u32 %v8093, 7
      %v8095 = vsub.s32 %v8092, %v8094
      %v8096 = vrot.slane %v8082, %v8095
      %v8097 = vcombine.low %v8073, %v8089
      %v8098 = vcombine.high %v8073, %v8089
      %v8099 = vcombine.low %v8080, %v8096
      %v8100 = vcombine.high %v8080, %v8096
      %v8101 = vcombine.low %v7053, %v7060
      %v8103 = vunpack.c.l.s4 1983009808
      %v8104 = vunpack.c.0.s8 %v8103
      %v8105 = vlaneseq
      %v8106 = vshrl.u32 %v8105, 7
      %v8107 = vsub.s32 %v8104, %v8106
      %v8108 = vrot.slane %v8101, %v8107
      %v8109 = vcombine.low %v7077, %v7078
      %v8111 = vunpack.c.l.s4 1983009808
      %v8112 = vunpack.c.0.s8 %v8111
      %v8113 = vlaneseq
      %v8114 = vshrl.u32 %v8113, 7
      %v8115 = vsub.s32 %v8112, %v8114
      %v8116 = vrot.slane %v8109, %v8115
      %v8117 = vcombine.low %v7069, %v7076
      %v8119 = vunpack.c.l.s4 1983009808
      %v8120 = vunpack.c.0.s8 %v8119
      %v8121 = vlaneseq
      %v8122 = vshrl.u32 %v8121, 7
      %v8123 = vsub.s32 %v8120, %v8122
      %v8124 = vrot.slane %v8117, %v8123
      %v8125 = vcombine.low %v7079, %v7080
      %v8127 = vunpack.c.l.s4 1983009808
      %v8128 = vunpack.c.0.s8 %v8127
      %v8129 = vlaneseq
      %v8130 = vshrl.u32 %v8129, 7
      %v8131 = vsub.s32 %v8128, %v8130
      %v8132 = vrot.slane %v8125, %v8131
      %v8133 = vcombine.low %v8108, %v8116
      %v8134 = vcombine.high %v8108, %v8116
      %v8136 = vunpack.c.l.s4 1934713408
      %v8137 = vunpack.c.0.s8 %v8136
      %v8138 = vlaneseq
      %v8139 = vshrl.u32 %v8138, 7
      %v8140 = vsub.s32 %v8137, %v8139
      %v8141 = vrot.slane %v8133, %v8140
      %v8143 = vunpack.c.l.s4 1934713408
      %v8144 = vunpack.c.0.s8 %v8143
      %v8145 = vlaneseq
      %v8146 = vshrl.u32 %v8145, 7
      %v8147 = vsub.s32 %v8144, %v8146
      %v8148 = vrot.slane %v8134, %v8147
      %v8149 = vcombine.low %v8124, %v8132
      %v8150 = vcombine.high %v8124, %v8132
      %v8152 = vunpack.c.l.s4 1934713408
      %v8153 = vunpack.c.0.s8 %v8152
      %v8154 = vlaneseq
      %v8155 = vshrl.u32 %v8154, 7
      %v8156 = vsub.s32 %v8153, %v8155
      %v8157 = vrot.slane %v8149, %v8156
      %v8159 = vunpack.c.l.s4 1934713408
      %v8160 = vunpack.c.0.s8 %v8159
      %v8161 = vlaneseq
      %v8162 = vshrl.u32 %v8161, 7
      %v8163 = vsub.s32 %v8160, %v8162
      %v8164 = vrot.slane %v8150, %v8163
      %v8165 = vcombine.low %v8141, %v8157
      %v8166 = vcombine.high %v8141, %v8157
      %v8167 = vcombine.low %v8148, %v8164
      %v8168 = vcombine.high %v8148, %v8164
      %v8169 = vcombine.low %v7121, %v7128
      %v8171 = vunpack.c.l.s4 1983009808
      %v8172 = vunpack.c.0.s8 %v8171
      %v8173 = vlaneseq
      %v8174 = vshrl.u32 %v8173, 7
      %v8175 = vsub.s32 %v8172, %v8174
      %v8176 = vrot.slane %v8169, %v8175
      %v8177 = vcombine.low %v7145, %v7146
      %v8179 = vunpack.c.l.s4 1983009808
      %v8180 = vunpack.c.0.s8 %v8179
      %v8181 = vlaneseq
      %v8182 = vshrl.u32 %v8181, 7
      %v8183 = vsub.s32 %v8180, %v8182
      %v8184 = vrot.slane %v8177, %v8183
      %v8185 = vcombine.low %v7137, %v7144
      %v8187 = vunpack.c.l.s4 1983009808
      %v8188 = vunpack.c.0.s8 %v8187
      %v8189 = vlaneseq
      %v8190 = vshrl.u32 %v8189, 7
      %v8191 = vsub.s32 %v8188, %v8190
      %v8192 = vrot.slane %v8185, %v8191
      %v8193 = vcombine.low %v7147, %v7148
      %v8195 = vunpack.c.l.s4 1983009808
      %v8196 = vunpack.c.0.s8 %v8195
      %v8197 = vlaneseq
      %v8198 = vshrl.u32 %v8197, 7
      %v8199 = vsub.s32 %v8196, %v8198
      %v8200 = vrot.slane %v8193, %v8199
      %v8201 = vcombine.low %v8176, %v8184
      %v8202 = vcombine.high %v8176, %v8184
      %v8204 = vunpack.c.l.s4 1934713408
      %v8205 = vunpack.c.0.s8 %v8204
      %v8206 = vlaneseq
      %v8207 = vshrl.u32 %v8206, 7
      %v8208 = vsub.s32 %v8205, %v8207
      %v8209 = vrot.slane %v8201, %v8208
      %v8211 = vunpack.c.l.s4 1934713408
      %v8212 = vunpack.c.0.s8 %v8211
      %v8213 = vlaneseq
      %v8214 = vshrl.u32 %v8213, 7
      %v8215 = vsub.s32 %v8212, %v8214
      %v8216 = vrot.slane %v8202, %v8215
      %v8217 = vcombine.low %v8192, %v8200
      %v8218 = vcombine.high %v8192, %v8200
      %v8220 = vunpack.c.l.s4 1934713408
      %v8221 = vunpack.c.0.s8 %v8220
      %v8222 = vlaneseq
      %v8223 = vshrl.u32 %v8222, 7
      %v8224 = vsub.s32 %v8221, %v8223
      %v8225 = vrot.slane %v8217, %v8224
      %v8227 = vunpack.c.l.s4 1934713408
      %v8228 = vunpack.c.0.s8 %v8227
      %v8229 = vlaneseq
      %v8230 = vshrl.u32 %v8229, 7
      %v8231 = vsub.s32 %v8228, %v8230
      %v8232 = vrot.slane %v8218, %v8231
      %v8233 = vcombine.low %v8209, %v8225
      %v8234 = vcombine.high %v8209, %v8225
      %v8235 = vcombine.low %v8216, %v8232
      %v8236 = vcombine.high %v8216, %v8232
      %v8237 = vcombine.low %v7189, %v7196
      %v8239 = vunpack.c.l.s4 1983009808
      %v8240 = vunpack.c.0.s8 %v8239
      %v8241 = vlaneseq
      %v8242 = vshrl.u32 %v8241, 7
      %v8243 = vsub.s32 %v8240, %v8242
      %v8244 = vrot.slane %v8237, %v8243
      %v8245 = vcombine.low %v7213, %v7214
      %v8247 = vunpack.c.l.s4 1983009808
      %v8248 = vunpack.c.0.s8 %v8247
      %v8249 = vlaneseq
      %v8250 = vshrl.u32 %v8249, 7
      %v8251 = vsub.s32 %v8248, %v8250
      %v8252 = vrot.slane %v8245, %v8251
      %v8253 = vcombine.low %v7205, %v7212
      %v8255 = vunpack.c.l.s4 1983009808
      %v8256 = vunpack.c.0.s8 %v8255
      %v8257 = vlaneseq
      %v8258 = vshrl.u32 %v8257, 7
      %v8259 = vsub.s32 %v8256, %v8258
      %v8260 = vrot.slane %v8253, %v8259
      %v8261 = vcombine.low %v7215, %v7216
      %v8263 = vunpack.c.l.s4 1983009808
      %v8264 = vunpack.c.0.s8 %v8263
      %v8265 = vlaneseq
      %v8266 = vshrl.u32 %v8265, 7
      %v8267 = vsub.s32 %v8264, %v8266
      %v8268 = vrot.slane %v8261, %v8267
      %v8269 = vcombine.low %v8244, %v8252
      %v8270 = vcombine.high %v8244, %v8252
      %v8272 = vunpack.c.l.s4 1934713408
      %v8273 = vunpack.c.0.s8 %v8272
      %v8274 = vlaneseq
      %v8275 = vshrl.u32 %v8274, 7
      %v8276 = vsub.s32 %v8273, %v8275
      %v8277 = vrot.slane %v8269, %v8276
      %v8279 = vunpack.c.l.s4 1934713408
      %v8280 = vunpack.c.0.s8 %v8279
      %v8281 = vlaneseq
      %v8282 = vshrl.u32 %v8281, 7
      %v8283 = vsub.s32 %v8280, %v8282
      %v8284 = vrot.slane %v8270, %v8283
      %v8285 = vcombine.low %v8260, %v8268
      %v8286 = vcombine.high %v8260, %v8268
      %v8288 = vunpack.c.l.s4 1934713408
      %v8289 = vunpack.c.0.s8 %v8288
      %v8290 = vlaneseq
      %v8291 = vshrl.u32 %v8290, 7
      %v8292 = vsub.s32 %v8289, %v8291
      %v8293 = vrot.slane %v8285, %v8292
      %v8295 = vunpack.c.l.s4 1934713408
      %v8296 = vunpack.c.0.s8 %v8295
      %v8297 = vlaneseq
      %v8298 = vshrl.u32 %v8297, 7
      %v8299 = vsub.s32 %v8296, %v8298
      %v8300 = vrot.slane %v8286, %v8299
      %v8301 = vcombine.low %v8277, %v8293
      %v8302 = vcombine.high %v8277, %v8293
      %v8303 = vcombine.low %v8284, %v8300
      %v8304 = vcombine.high %v8284, %v8300
      %v8305 = vcombine.low %v7257, %v7264
      %v8307 = vunpack.c.l.s4 1983009808
      %v8308 = vunpack.c.0.s8 %v8307
      %v8309 = vlaneseq
      %v8310 = vshrl.u32 %v8309, 7
      %v8311 = vsub.s32 %v8308, %v8310
      %v8312 = vrot.slane %v8305, %v8311
      %v8313 = vcombine.low %v7281, %v7282
      %v8315 = vunpack.c.l.s4 1983009808
      %v8316 = vunpack.c.0.s8 %v8315
      %v8317 = vlaneseq
      %v8318 = vshrl.u32 %v8317, 7
      %v8319 = vsub.s32 %v8316, %v8318
      %v8320 = vrot.slane %v8313, %v8319
      %v8321 = vcombine.low %v7273, %v7280
      %v8323 = vunpack.c.l.s4 1983009808
      %v8324 = vunpack.c.0.s8 %v8323
      %v8325 = vlaneseq
      %v8326 = vshrl.u32 %v8325, 7
      %v8327 = vsub.s32 %v8324, %v8326
      %v8328 = vrot.slane %v8321, %v8327
      %v8329 = vcombine.low %v7283, %v7284
      %v8331 = vunpack.c.l.s4 1983009808
      %v8332 = vunpack.c.0.s8 %v8331
      %v8333 = vlaneseq
      %v8334 = vshrl.u32 %v8333, 7
      %v8335 = vsub.s32 %v8332, %v8334
      %v8336 = vrot.slane %v8329, %v8335
      %v8337 = vcombine.low %v8312, %v8320
      %v8338 = vcombine.high %v8312, %v8320
      %v8340 = vunpack.c.l.s4 1934713408
      %v8341 = vunpack.c.0.s8 %v8340
      %v8342 = vlaneseq
      %v8343 = vshrl.u32 %v8342, 7
      %v8344 = vsub.s32 %v8341, %v8343
      %v8345 = vrot.slane %v8337, %v8344
      %v8347 = vunpack.c.l.s4 1934713408
      %v8348 = vunpack.c.0.s8 %v8347
      %v8349 = vlaneseq
      %v8350 = vshrl.u32 %v8349, 7
      %v8351 = vsub.s32 %v8348, %v8350
      %v8352 = vrot.slane %v8338, %v8351
      %v8353 = vcombine.low %v8328, %v8336
      %v8354 = vcombine.high %v8328, %v8336
      %v8356 = vunpack.c.l.s4 1934713408
      %v8357 = vunpack.c.0.s8 %v8356
      %v8358 = vlaneseq
      %v8359 = vshrl.u32 %v8358, 7
      %v8360 = vsub.s32 %v8357, %v8359
      %v8361 = vrot.slane %v8353, %v8360
      %v8363 = vunpack.c.l.s4 1934713408
      %v8364 = vunpack.c.0.s8 %v8363
      %v8365 = vlaneseq
      %v8366 = vshrl.u32 %v8365, 7
      %v8367 = vsub.s32 %v8364, %v8366
      %v8368 = vrot.slane %v8354, %v8367
      %v8369 = vcombine.low %v8345, %v8361
      %v8370 = vcombine.high %v8345, %v8361
      %v8371 = vcombine.low %v8352, %v8368
      %v8372 = vcombine.high %v8352, %v8368
      %v8373 = vcombine.low %v7325, %v7332
      %v8375 = vunpack.c.l.s4 1983009808
      %v8376 = vunpack.c.0.s8 %v8375
      %v8377 = vlaneseq
      %v8378 = vshrl.u32 %v8377, 7
      %v8379 = vsub.s32 %v8376, %v8378
      %v8380 = vrot.slane %v8373, %v8379
      %v8381 = vcombine.low %v7349, %v7350
      %v8383 = vunpack.c.l.s4 1983009808
      %v8384 = vunpack.c.0.s8 %v8383
      %v8385 = vlaneseq
      %v8386 = vshrl.u32 %v8385, 7
      %v8387 = vsub.s32 %v8384, %v8386
      %v8388 = vrot.slane %v8381, %v8387
      %v8389 = vcombine.low %v7341, %v7348
      %v8391 = vunpack.c.l.s4 1983009808
      %v8392 = vunpack.c.0.s8 %v8391
      %v8393 = vlaneseq
      %v8394 = vshrl.u32 %v8393, 7
      %v8395 = vsub.s32 %v8392, %v8394
      %v8396 = vrot.slane %v8389, %v8395
      %v8397 = vcombine.low %v7351, %v7352
      %v8399 = vunpack.c.l.s4 1983009808
      %v8400 = vunpack.c.0.s8 %v8399
      %v8401 = vlaneseq
      %v8402 = vshrl.u32 %v8401, 7
      %v8403 = vsub.s32 %v8400, %v8402
      %v8404 = vrot.slane %v8397, %v8403
      %v8405 = vcombine.low %v8380, %v8388
      %v8406 = vcombine.high %v8380, %v8388
      %v8408 = vunpack.c.l.s4 1934713408
      %v8409 = vunpack.c.0.s8 %v8408
      %v8410 = vlaneseq
      %v8411 = vshrl.u32 %v8410, 7
      %v8412 = vsub.s32 %v8409, %v8411
      %v8413 = vrot.slane %v8405, %v8412
      %v8415 = vunpack.c.l.s4 1934713408
      %v8416 = vunpack.c.0.s8 %v8415
      %v8417 = vlaneseq
      %v8418 = vshrl.u32 %v8417, 7
      %v8419 = vsub.s32 %v8416, %v8418
      %v8420 = vrot.slane %v8406, %v8419
      %v8421 = vcombine.low %v8396, %v8404
      %v8422 = vcombine.high %v8396, %v8404
      %v8424 = vunpack.c.l.s4 1934713408
      %v8425 = vunpack.c.0.s8 %v8424
      %v8426 = vlaneseq
      %v8427 = vshrl.u32 %v8426, 7
      %v8428 = vsub.s32 %v8425, %v8427
      %v8429 = vrot.slane %v8421, %v8428
      %v8431 = vunpack.c.l.s4 1934713408
      %v8432 = vunpack.c.0.s8 %v8431
      %v8433 = vlaneseq
      %v8434 = vshrl.u32 %v8433, 7
      %v8435 = vsub.s32 %v8432, %v8434
      %v8436 = vrot.slane %v8422, %v8435
      %v8437 = vcombine.low %v8413, %v8429
      %v8438 = vcombine.high %v8413, %v8429
      %v8439 = vcombine.low %v8420, %v8436
      %v8440 = vcombine.high %v8420, %v8436
      %v8441 = vcombine.low %v7393, %v7400
      %v8443 = vunpack.c.l.s4 1983009808
      %v8444 = vunpack.c.0.s8 %v8443
      %v8445 = vlaneseq
      %v8446 = vshrl.u32 %v8445, 7
      %v8447 = vsub.s32 %v8444, %v8446
      %v8448 = vrot.slane %v8441, %v8447
      %v8449 = vcombine.low %v7417, %v7418
      %v8451 = vunpack.c.l.s4 1983009808
      %v8452 = vunpack.c.0.s8 %v8451
      %v8453 = vlaneseq
      %v8454 = vshrl.u32 %v8453, 7
      %v8455 = vsub.s32 %v8452, %v8454
      %v8456 = vrot.slane %v8449, %v8455
      %v8457 = vcombine.low %v7409, %v7416
      %v8459 = vunpack.c.l.s4 1983009808
      %v8460 = vunpack.c.0.s8 %v8459
      %v8461 = vlaneseq
      %v8462 = vshrl.u32 %v8461, 7
      %v8463 = vsub.s32 %v8460, %v8462
      %v8464 = vrot.slane %v8457, %v8463
      %v8465 = vcombine.low %v7419, %v7420
      %v8467 = vunpack.c.l.s4 1983009808
      %v8468 = vunpack.c.0.s8 %v8467
      %v8469 = vlaneseq
      %v8470 = vshrl.u32 %v8469, 7
      %v8471 = vsub.s32 %v8468, %v8470
      %v8472 = vrot.slane %v8465, %v8471
      %v8473 = vcombine.low %v8448, %v8456
      %v8474 = vcombine.high %v8448, %v8456
      %v8476 = vunpack.c.l.s4 1934713408
      %v8477 = vunpack.c.0.s8 %v8476
      %v8478 = vlaneseq
      %v8479 = vshrl.u32 %v8478, 7
      %v8480 = vsub.s32 %v8477, %v8479
      %v8481 = vrot.slane %v8473, %v8480
      %v8483 = vunpack.c.l.s4 1934713408
      %v8484 = vunpack.c.0.s8 %v8483
      %v8485 = vlaneseq
      %v8486 = vshrl.u32 %v8485, 7
      %v8487 = vsub.s32 %v8484, %v8486
      %v8488 = vrot.slane %v8474, %v8487
      %v8489 = vcombine.low %v8464, %v8472
      %v8490 = vcombine.high %v8464, %v8472
      %v8492 = vunpack.c.l.s4 1934713408
      %v8493 = vunpack.c.0.s8 %v8492
      %v8494 = vlaneseq
      %v8495 = vshrl.u32 %v8494, 7
      %v8496 = vsub.s32 %v8493, %v8495
      %v8497 = vrot.slane %v8489, %v8496
      %v8499 = vunpack.c.l.s4 1934713408
      %v8500 = vunpack.c.0.s8 %v8499
      %v8501 = vlaneseq
      %v8502 = vshrl.u32 %v8501, 7
      %v8503 = vsub.s32 %v8500, %v8502
      %v8504 = vrot.slane %v8490, %v8503
      %v8505 = vcombine.low %v8481, %v8497
      %v8506 = vcombine.high %v8481, %v8497
      %v8507 = vcombine.low %v8488, %v8504
      %v8508 = vcombine.high %v8488, %v8504
      %v8509 = vcombine.low %v7461, %v7468
      %v8511 = vunpack.c.l.s4 1983009808
      %v8512 = vunpack.c.0.s8 %v8511
      %v8513 = vlaneseq
      %v8514 = vshrl.u32 %v8513, 7
      %v8515 = vsub.s32 %v8512, %v8514
      %v8516 = vrot.slane %v8509, %v8515
      %v8517 = vcombine.low %v7485, %v7486
      %v8519 = vunpack.c.l.s4 1983009808
      %v8520 = vunpack.c.0.s8 %v8519
      %v8521 = vlaneseq
      %v8522 = vshrl.u32 %v8521, 7
      %v8523 = vsub.s32 %v8520, %v8522
      %v8524 = vrot.slane %v8517, %v8523
      %v8525 = vcombine.low %v7477, %v7484
      %v8527 = vunpack.c.l.s4 1983009808
      %v8528 = vunpack.c.0.s8 %v8527
      %v8529 = vlaneseq
      %v8530 = vshrl.u32 %v8529, 7
      %v8531 = vsub.s32 %v8528, %v8530
      %v8532 = vrot.slane %v8525, %v8531
      %v8533 = vcombine.low %v7487, %v7488
      %v8535 = vunpack.c.l.s4 1983009808
      %v8536 = vunpack.c.0.s8 %v8535
      %v8537 = vlaneseq
      %v8538 = vshrl.u32 %v8537, 7
      %v8539 = vsub.s32 %v8536, %v8538
      %v8540 = vrot.slane %v8533, %v8539
      %v8541 = vcombine.low %v8516, %v8524
      %v8542 = vcombine.high %v8516, %v8524
      %v8544 = vunpack.c.l.s4 1934713408
      %v8545 = vunpack.c.0.s8 %v8544
      %v8546 = vlaneseq
      %v8547 = vshrl.u32 %v8546, 7
      %v8548 = vsub.s32 %v8545, %v8547
      %v8549 = vrot.slane %v8541, %v8548
      %v8551 = vunpack.c.l.s4 1934713408
      %v8552 = vunpack.c.0.s8 %v8551
      %v8553 = vlaneseq
      %v8554 = vshrl.u32 %v8553, 7
      %v8555 = vsub.s32 %v8552, %v8554
      %v8556 = vrot.slane %v8542, %v8555
      %v8557 = vcombine.low %v8532, %v8540
      %v8558 = vcombine.high %v8532, %v8540
      %v8560 = vunpack.c.l.s4 1934713408
      %v8561 = vunpack.c.0.s8 %v8560
      %v8562 = vlaneseq
      %v8563 = vshrl.u32 %v8562, 7
      %v8564 = vsub.s32 %v8561, %v8563
      %v8565 = vrot.slane %v8557, %v8564
      %v8567 = vunpack.c.l.s4 1934713408
      %v8568 = vunpack.c.0.s8 %v8567
      %v8569 = vlaneseq
      %v8570 = vshrl.u32 %v8569, 7
      %v8571 = vsub.s32 %v8568, %v8570
      %v8572 = vrot.slane %v8558, %v8571
      %v8573 = vcombine.low %v8549, %v8565
      %v8574 = vcombine.high %v8549, %v8565
      %v8575 = vcombine.low %v8556, %v8572
      %v8576 = vcombine.high %v8556, %v8572
      %v8577 = vpack.c.bf16 %v7621, %v7553
      %v8578 = vpack.c.bf16 %v7757, %v7689
      %v8579 = vpack.c.bf16 %v7893, %v7825
      %v8580 = vpack.c.bf16 %v8029, %v7961
      %v8581 = vpack.c.bf16 %v8165, %v8097
      %v8582 = vpack.c.bf16 %v8301, %v8233
      %v8583 = vpack.c.bf16 %v8437, %v8369
      %v8584 = vpack.c.bf16 %v8573, %v8505
      %v8585 = vpack.c.bf16 %v7622, %v7554
      %v8586 = vpack.c.bf16 %v7758, %v7690
      %v8587 = vpack.c.bf16 %v7894, %v7826
      %v8588 = vpack.c.bf16 %v8030, %v7962
      %v8589 = vpack.c.bf16 %v8166, %v8098
      %v8590 = vpack.c.bf16 %v8302, %v8234
      %v8591 = vpack.c.bf16 %v8438, %v8370
      %v8592 = vpack.c.bf16 %v8574, %v8506
      %v8593 = vpack.c.bf16 %v7623, %v7555
      %v8594 = vpack.c.bf16 %v7759, %v7691
      %v8595 = vpack.c.bf16 %v7895, %v7827
      %v8596 = vpack.c.bf16 %v8031, %v7963
      %v8597 = vpack.c.bf16 %v8167, %v8099
      %v8598 = vpack.c.bf16 %v8303, %v8235
      %v8599 = vpack.c.bf16 %v8439, %v8371
      %v8600 = vpack.c.bf16 %v8575, %v8507
      %v8601 = vpack.c.bf16 %v7624, %v7556
      %v8602 = vpack.c.bf16 %v7760, %v7692
      %v8603 = vpack.c.bf16 %v7896, %v7828
      %v8604 = vpack.c.bf16 %v8032, %v7964
      %v8605 = vpack.c.bf16 %v8168, %v8100
      %v8606 = vpack.c.bf16 %v8304, %v8236
      %v8607 = vpack.c.bf16 %v8440, %v8372
      %v8608 = vpack.c.bf16 %v8576, %v8508
      %v8641 = vunpack.c.l.b16 %v8577
      %v8642 = vunpack.c.h.b16 %v8577
      %v8643 = vunpack.c.l.b16 %v8578
      %v8644 = vunpack.c.h.b16 %v8578
      %v8645 = vunpack.c.l.b16 %v8579
      %v8646 = vunpack.c.h.b16 %v8579
      %v8647 = vunpack.c.l.b16 %v8580
      %v8648 = vunpack.c.h.b16 %v8580
      %v8649 = vunpack.c.l.b16 %v8581
      %v8650 = vunpack.c.h.b16 %v8581
      %v8651 = vunpack.c.l.b16 %v8582
      %v8652 = vunpack.c.h.b16 %v8582
      %v8653 = vunpack.c.l.b16 %v8583
      %v8654 = vunpack.c.h.b16 %v8583
      %v8655 = vunpack.c.l.b16 %v8584
      %v8656 = vunpack.c.h.b16 %v8584
      %v8657 = vunpack.c.l.b16 %v8585
      %v8658 = vunpack.c.h.b16 %v8585
      %v8659 = vunpack.c.l.b16 %v8586
      %v8660 = vunpack.c.h.b16 %v8586
      %v8661 = vunpack.c.l.b16 %v8587
      %v8662 = vunpack.c.h.b16 %v8587
      %v8663 = vunpack.c.l.b16 %v8588
      %v8664 = vunpack.c.h.b16 %v8588
      %v8665 = vunpack.c.l.b16 %v8589
      %v8666 = vunpack.c.h.b16 %v8589
      %v8667 = vunpack.c.l.b16 %v8590
      %v8668 = vunpack.c.h.b16 %v8590
      %v8669 = vunpack.c.l.b16 %v8591
      %v8670 = vunpack.c.h.b16 %v8591
      %v8671 = vunpack.c.l.b16 %v8592
      %v8672 = vunpack.c.h.b16 %v8592
      %v8673 = vunpack.c.l.b16 %v8593
      %v8674 = vunpack.c.h.b16 %v8593
      %v8675 = vunpack.c.l.b16 %v8594
      %v8676 = vunpack.c.h.b16 %v8594
      %v8677 = vunpack.c.l.b16 %v8595
      %v8678 = vunpack.c.h.b16 %v8595
      %v8679 = vunpack.c.l.b16 %v8596
      %v8680 = vunpack.c.h.b16 %v8596
      %v8681 = vunpack.c.l.b16 %v8597
      %v8682 = vunpack.c.h.b16 %v8597
      %v8683 = vunpack.c.l.b16 %v8598
      %v8684 = vunpack.c.h.b16 %v8598
      %v8685 = vunpack.c.l.b16 %v8599
      %v8686 = vunpack.c.h.b16 %v8599
      %v8687 = vunpack.c.l.b16 %v8600
      %v8688 = vunpack.c.h.b16 %v8600
      %v8689 = vunpack.c.l.b16 %v8601
      %v8690 = vunpack.c.h.b16 %v8601
      %v8691 = vunpack.c.l.b16 %v8602
      %v8692 = vunpack.c.h.b16 %v8602
      %v8693 = vunpack.c.l.b16 %v8603
      %v8694 = vunpack.c.h.b16 %v8603
      %v8695 = vunpack.c.l.b16 %v8604
      %v8696 = vunpack.c.h.b16 %v8604
      %v8697 = vunpack.c.l.b16 %v8605
      %v8698 = vunpack.c.h.b16 %v8605
      %v8699 = vunpack.c.l.b16 %v8606
      %v8700 = vunpack.c.h.b16 %v8606
      %v8701 = vunpack.c.l.b16 %v8607
      %v8702 = vunpack.c.h.b16 %v8607
      %v8703 = vunpack.c.l.b16 %v8608
      %v8704 = vunpack.c.h.b16 %v8608
      %v8705 = vpack.c.b16 %v8641, %v8641
      %v8706 = vpack.c.b16 %v8642, %v8642
      %v8707 = vpack.c.b16 %v8643, %v8643
      %v8708 = vpack.c.b16 %v8644, %v8644
      %v8709 = vpack.c.b16 %v8645, %v8645
      %v8710 = vpack.c.b16 %v8646, %v8646
      %v8711 = vpack.c.b16 %v8647, %v8647
      %v8712 = vpack.c.b16 %v8648, %v8648
      %v8713 = vpack.c.b16 %v8649, %v8649
      %v8714 = vpack.c.b16 %v8650, %v8650
      %v8715 = vpack.c.b16 %v8651, %v8651
      %v8716 = vpack.c.b16 %v8652, %v8652
      %v8717 = vpack.c.b16 %v8653, %v8653
      %v8718 = vpack.c.b16 %v8654, %v8654
      %v8719 = vpack.c.b16 %v8655, %v8655
      %v8720 = vpack.c.b16 %v8656, %v8656
      %v8721 = vpack.c.b16 %v8657, %v8657
      %v8722 = vpack.c.b16 %v8658, %v8658
      %v8723 = vpack.c.b16 %v8659, %v8659
      %v8724 = vpack.c.b16 %v8660, %v8660
      %v8725 = vpack.c.b16 %v8661, %v8661
      %v8726 = vpack.c.b16 %v8662, %v8662
      %v8727 = vpack.c.b16 %v8663, %v8663
      %v8728 = vpack.c.b16 %v8664, %v8664
      %v8729 = vpack.c.b16 %v8665, %v8665
      %v8730 = vpack.c.b16 %v8666, %v8666
      %v8731 = vpack.c.b16 %v8667, %v8667
      %v8732 = vpack.c.b16 %v8668, %v8668
      %v8733 = vpack.c.b16 %v8669, %v8669
      %v8734 = vpack.c.b16 %v8670, %v8670
      %v8735 = vpack.c.b16 %v8671, %v8671
      %v8736 = vpack.c.b16 %v8672, %v8672
      %v8737 = vpack.c.b16 %v8673, %v8673
      %v8738 = vpack.c.b16 %v8674, %v8674
      %v8739 = vpack.c.b16 %v8675, %v8675
      %v8740 = vpack.c.b16 %v8676, %v8676
      %v8741 = vpack.c.b16 %v8677, %v8677
      %v8742 = vpack.c.b16 %v8678, %v8678
      %v8743 = vpack.c.b16 %v8679, %v8679
      %v8744 = vpack.c.b16 %v8680, %v8680
      %v8745 = vpack.c.b16 %v8681, %v8681
      %v8746 = vpack.c.b16 %v8682, %v8682
      %v8747 = vpack.c.b16 %v8683, %v8683
      %v8748 = vpack.c.b16 %v8684, %v8684
      %v8749 = vpack.c.b16 %v8685, %v8685
      %v8750 = vpack.c.b16 %v8686, %v8686
      %v8751 = vpack.c.b16 %v8687, %v8687
      %v8752 = vpack.c.b16 %v8688, %v8688
      %v8753 = vpack.c.b16 %v8689, %v8689
      %v8754 = vpack.c.b16 %v8690, %v8690
      %v8755 = vpack.c.b16 %v8691, %v8691
      %v8756 = vpack.c.b16 %v8692, %v8692
      %v8757 = vpack.c.b16 %v8693, %v8693
      %v8758 = vpack.c.b16 %v8694, %v8694
      %v8759 = vpack.c.b16 %v8695, %v8695
      %v8760 = vpack.c.b16 %v8696, %v8696
      %v8761 = vpack.c.b16 %v8697, %v8697
      %v8762 = vpack.c.b16 %v8698, %v8698
      %v8763 = vpack.c.b16 %v8699, %v8699
      %v8764 = vpack.c.b16 %v8700, %v8700
      %v8765 = vpack.c.b16 %v8701, %v8701
      %v8766 = vpack.c.b16 %v8702, %v8702
      %v8767 = vpack.c.b16 %v8703, %v8703
      %v8768 = vpack.c.b16 %v8704, %v8704
      %8833 = vst.msk [vmem:[%s363] sm:$0xf] %vm3488, %v8705
      %8834 = vst.msk [vmem:[%s363 + $0x4] sm:$0xf] %vm3488, %v8706
      %8835 = vst.msk [vmem:[%s363 + $0x8] sm:$0xf] %vm3488, %v8707
      %8836 = vst.msk [vmem:[%s363 + $0xc] sm:$0xf] %vm3488, %v8708
      %8837 = vst.msk [vmem:[%s363 + $0x10] sm:$0xf] %vm3488, %v8709
      %8838 = vst.msk [vmem:[%s363 + $0x14] sm:$0xf] %vm3488, %v8710
      %8839 = vst.msk [vmem:[%s363 + $0x18] sm:$0xf] %vm3488, %v8711
      %8840 = vst.msk [vmem:[%s363 + $0x1c] sm:$0xf] %vm3488, %v8712
      %8841 = vst.msk [vmem:[%s363 + $0x20] sm:$0xf] %vm3488, %v8713
      %8842 = vst.msk [vmem:[%s363 + $0x24] sm:$0xf] %vm3488, %v8714
      %8843 = vst.msk [vmem:[%s363 + $0x28] sm:$0xf] %vm3488, %v8715
      %8844 = vst.msk [vmem:[%s363 + $0x2c] sm:$0xf] %vm3488, %v8716
      %8845 = vst.msk [vmem:[%s363 + $0x30] sm:$0xf] %vm3488, %v8717
      %8846 = vst.msk [vmem:[%s363 + $0x34] sm:$0xf] %vm3488, %v8718
      %8847 = vst.msk [vmem:[%s363 + $0x38] sm:$0xf] %vm3488, %v8719
      %8848 = vst.msk [vmem:[%s363 + $0x3c] sm:$0xf] %vm3488, %v8720
      %8849 = vst.msk [vmem:[%s363 + $0x40] sm:$0xf] %vm3488, %v8721
      %8850 = vst.msk [vmem:[%s363 + $0x44] sm:$0xf] %vm3488, %v8722
      %8851 = vst.msk [vmem:[%s363 + $0x48] sm:$0xf] %vm3488, %v8723
      %8852 = vst.msk [vmem:[%s363 + $0x4c] sm:$0xf] %vm3488, %v8724
      %8853 = vst.msk [vmem:[%s363 + $0x50] sm:$0xf] %vm3488, %v8725
      %8854 = vst.msk [vmem:[%s363 + $0x54] sm:$0xf] %vm3488, %v8726
      %8855 = vst.msk [vmem:[%s363 + $0x58] sm:$0xf] %vm3488, %v8727
      %8856 = vst.msk [vmem:[%s363 + $0x5c] sm:$0xf] %vm3488, %v8728
      %8857 = vst.msk [vmem:[%s363 + $0x60] sm:$0xf] %vm3488, %v8729
      %8858 = vst.msk [vmem:[%s363 + $0x64] sm:$0xf] %vm3488, %v8730
      %8859 = vst.msk [vmem:[%s363 + $0x68] sm:$0xf] %vm3488, %v8731
      %8860 = vst.msk [vmem:[%s363 + $0x6c] sm:$0xf] %vm3488, %v8732
      %8861 = vst.msk [vmem:[%s363 + $0x70] sm:$0xf] %vm3488, %v8733
      %8862 = vst.msk [vmem:[%s363 + $0x74] sm:$0xf] %vm3488, %v8734
      %8863 = vst.msk [vmem:[%s363 + $0x78] sm:$0xf] %vm3488, %v8735
      %8864 = vst.msk [vmem:[%s363 + $0x7c] sm:$0xf] %vm3488, %v8736
      %8865 = vst.msk [vmem:[%s363 + $0x80] sm:$0xf] %vm3488, %v8737
      %8866 = vst.msk [vmem:[%s363 + $0x84] sm:$0xf] %vm3488, %v8738
      %8867 = vst.msk [vmem:[%s363 + $0x88] sm:$0xf] %vm3488, %v8739
      %8868 = vst.msk [vmem:[%s363 + $0x8c] sm:$0xf] %vm3488, %v8740
      %8869 = vst.msk [vmem:[%s363 + $0x90] sm:$0xf] %vm3488, %v8741
      %8870 = vst.msk [vmem:[%s363 + $0x94] sm:$0xf] %vm3488, %v8742
      %8871 = vst.msk [vmem:[%s363 + $0x98] sm:$0xf] %vm3488, %v8743
      %8872 = vst.msk [vmem:[%s363 + $0x9c] sm:$0xf] %vm3488, %v8744
      %8873 = vst.msk [vmem:[%s363 + $0xa0] sm:$0xf] %vm3488, %v8745
      %8874 = vst.msk [vmem:[%s363 + $0xa4] sm:$0xf] %vm3488, %v8746
      %8875 = vst.msk [vmem:[%s363 + $0xa8] sm:$0xf] %vm3488, %v8747
      %8876 = vst.msk [vmem:[%s363 + $0xac] sm:$0xf] %vm3488, %v8748
      %8877 = vst.msk [vmem:[%s363 + $0xb0] sm:$0xf] %vm3488, %v8749
      %8878 = vst.msk [vmem:[%s363 + $0xb4] sm:$0xf] %vm3488, %v8750
      %8879 = vst.msk [vmem:[%s363 + $0xb8] sm:$0xf] %vm3488, %v8751
      %8880 = vst.msk [vmem:[%s363 + $0xbc] sm:$0xf] %vm3488, %v8752
      %8881 = vst.msk [vmem:[%s363 + $0xc0] sm:$0xf] %vm3488, %v8753
      %8882 = vst.msk [vmem:[%s363 + $0xc4] sm:$0xf] %vm3488, %v8754
      %8883 = vst.msk [vmem:[%s363 + $0xc8] sm:$0xf] %vm3488, %v8755
      %8884 = vst.msk [vmem:[%s363 + $0xcc] sm:$0xf] %vm3488, %v8756
      %8885 = vst.msk [vmem:[%s363 + $0xd0] sm:$0xf] %vm3488, %v8757
      %8886 = vst.msk [vmem:[%s363 + $0xd4] sm:$0xf] %vm3488, %v8758
      %8887 = vst.msk [vmem:[%s363 + $0xd8] sm:$0xf] %vm3488, %v8759
      %8888 = vst.msk [vmem:[%s363 + $0xdc] sm:$0xf] %vm3488, %v8760
      %8889 = vst.msk [vmem:[%s363 + $0xe0] sm:$0xf] %vm3488, %v8761
      %8890 = vst.msk [vmem:[%s363 + $0xe4] sm:$0xf] %vm3488, %v8762
      %8891 = vst.msk [vmem:[%s363 + $0xe8] sm:$0xf] %vm3488, %v8763
      %8892 = vst.msk [vmem:[%s363 + $0xec] sm:$0xf] %vm3488, %v8764
      %8893 = vst.msk [vmem:[%s363 + $0xf0] sm:$0xf] %vm3488, %v8765
      %8894 = vst.msk [vmem:[%s363 + $0xf4] sm:$0xf] %vm3488, %v8766
      %8895 = vst.msk [vmem:[%s363 + $0xf8] sm:$0xf] %vm3488, %v8767
      %8896 = vst.msk [vmem:[%s363 + $0xfc] sm:$0xf] %vm3488, %v8768
      %s8897 = smul.u32 16, %s24
      %p8898 = scmp.lt.s32.totalorder %s23, 1
      %s8899 = scalar_select %p8898, %s23, 1
      %p8900 = scmp.lt.s32.totalorder %s8897, 15
      %s8901 = scalar_select %p8900, %s8897, 15
      %s8902 = smul.addr %s8899, 64
      %s8903 = sadd.s32 %s8901, %s8902
      %s8904 = smul.addr %s8903, 4
      %s8905 = scalar_lea.vmem %s5, %s8904
      %s8906 = smul.u32 16, %s24
      %p8907 = scmp.lt.s32.totalorder %s23, 1
      %s8908 = scalar_select %p8907, %s23, 1
      %p8909 = scmp.lt.s32.totalorder %s8906, 15
      %s8910 = scalar_select %p8909, %s8906, 15
      %s8911 = smul.addr %s8908, 64
      %s8912 = sadd.s32 %s8910, %s8911
      %s8913 = smul.addr %s8912, 4
      %s8914 = scalar_lea.vmem %s6, %s8913
      %s8915 = smul.u32 16, %s24
      %p8916 = scmp.lt.s32.totalorder %s23, 1
      %s8917 = scalar_select %p8916, %s23, 1
      %p8918 = scmp.lt.s32.totalorder %s8915, 15
      %s8919 = scalar_select %p8918, %s8915, 15
      %s8920 = smul.addr %s8917, 64
      %s8921 = sadd.s32 %s8919, %s8920
      %s8922 = smul.addr %s8921, 4
      %s8923 = scalar_lea.vmem %s7, %s8922
      // Predicated region
      $region41: #{tpu_custom_call.1} parent=39 // pred_check
        %p8924 = pneg %p163
      $region42: #{tpu_custom_call.1} parent=39 // pred_check_branch
        %8926 = sbr.rel (%p8924) target = $region44
      $region43: #{tpu_custom_call.1} parent=39 // pred_region
        %s8927 = smul.u32 16, %s24
      $region44: #{tpu_custom_call.1} parent=39 // pred_fallthru
        _
      // Predicated region
      $region45: #{tpu_custom_call.1} parent=39 // pred_check
        %p8928 = pneg %p191
      $region46: #{tpu_custom_call.1} parent=39 // pred_check_branch
        %8930 = sbr.rel (%p8928) target = $region48
      $region47: #{tpu_custom_call.1} parent=39 // pred_region
        %s8931 = smul.u32 16, %s24
      $region48: #{tpu_custom_call.1} parent=39 // pred_fallthru
        _
      // Predicated region
      $region49: #{tpu_custom_call.1} parent=39 // pred_check
        %p8932 = pneg %p219
      $region50: #{tpu_custom_call.1} parent=39 // pred_check_branch
        %8934 = sbr.rel (%p8932) target = $region52
      $region51: #{tpu_custom_call.1} parent=39 // pred_region
        %s8935 = smul.u32 16, %s24
      $region52: #{tpu_custom_call.1} parent=39 // pred_fallthru
        _
    $region40: #{tpu_custom_call.1} parent=5 // pred_fallthru
      _
    %p8936 = scmp.le.s32.totalorder 2, %s14
    // Predicated region
    $region53: #{tpu_custom_call.1} parent=5 // pred_check
      %p8937 = pneg %p8936
    $region54: #{tpu_custom_call.1} parent=5 // pred_check_branch
      %8939 = sbr.rel (%p8937) target = $region56
    $region55: #{tpu_custom_call.1} parent=5 // pred_region
      %s8940 = ssub.s32 %s14, 2
      // Predicated region
      $region57: #{tpu_custom_call.1} parent=55 // pred_check
        %p8941 = pneg %p169
      $region58: #{tpu_custom_call.1} parent=55 // pred_check_branch
        %8943 = sbr.rel (%p8941) target = $region60
      $region59: #{tpu_custom_call.1} parent=55 // pred_region
        %s8944 = smul.u32 16, %s26
        %p8945 = scmp.lt.s32.totalorder %s25, 1
        %s8946 = scalar_select %p8945, %s25, 1
        %p8947 = scmp.lt.s32.totalorder %s8944, 15
        %s8948 = scalar_select %p8947, %s8944, 15
        %s8949 = smul.addr %s8946, 64
        %s8950 = sadd.s32 %s8948, %s8949
        %s8951 = smul.addr %s8950, 4
        %s8952 = scalar_lea.vmem %s5, %s8951
      $region60: #{tpu_custom_call.1} parent=55 // pred_fallthru
        _
      // Predicated region
      $region61: #{tpu_custom_call.1} parent=55 // pred_check
        %p8953 = pneg %p197
      $region62: #{tpu_custom_call.1} parent=55 // pred_check_branch
        %8955 = sbr.rel (%p8953) target = $region64
      $region63: #{tpu_custom_call.1} parent=55 // pred_region
        %s8956 = smul.u32 16, %s26
        %p8957 = scmp.lt.s32.totalorder %s25, 1
        %s8958 = scalar_select %p8957, %s25, 1
        %p8959 = scmp.lt.s32.totalorder %s8956, 15
        %s8960 = scalar_select %p8959, %s8956, 15
        %s8961 = smul.addr %s8958, 64
        %s8962 = sadd.s32 %s8960, %s8961
        %s8963 = smul.addr %s8962, 4
        %s8964 = scalar_lea.vmem %s6, %s8963
      $region64: #{tpu_custom_call.1} parent=55 // pred_fallthru
        _
      // Predicated region
      $region65: #{tpu_custom_call.1} parent=55 // pred_check
        %p8965 = pneg %p225
      $region66: #{tpu_custom_call.1} parent=55 // pred_check_branch
        %8967 = sbr.rel (%p8965) target = $region68
      $region67: #{tpu_custom_call.1} parent=55 // pred_region
        %s8968 = smul.u32 16, %s26
        %p8969 = scmp.lt.s32.totalorder %s25, 1
        %s8970 = scalar_select %p8969, %s25, 1
        %p8971 = scmp.lt.s32.totalorder %s8968, 15
        %s8972 = scalar_select %p8971, %s8968, 15
        %s8973 = smul.addr %s8970, 64
        %s8974 = sadd.s32 %s8972, %s8973
        %s8975 = smul.addr %s8974, 4
        %s8976 = scalar_lea.vmem %s7, %s8975
      $region68: #{tpu_custom_call.1} parent=55 // pred_fallthru
        _
    $region56: #{tpu_custom_call.1} parent=5 // pred_fallthru
      _
  $region6: #{tpu_custom_call.1} parent=0 // loop_footer
    %s18 = sadd.s32 1, %s14
  $region7: #{tpu_custom_call.1} parent=0 // loop_footer_branch
    %13 = sbr.rel target = $region3
  $region8: #{tpu_custom_call.1} parent=0 // loop_exit
    _

</llo_original>
